<compile_context>
chip_gen: v7x
topology: tpu7x:2x2x1
jax: 0.10.0
libtpu: 0.0.40
codegen_flags: <defaults>
</compile_context>

<pallas_src>
import jax
import jax.numpy as jnp
from jax import lax
from jax.experimental import pallas as pl
from jax.experimental.pallas import tpu as pltpu

MATMUL_DTYPE = jnp.bfloat16   # MXU operand dtype; accumulation stays f32.
LANE = 128                    # hidden dim padded to a multiple of this
SUBLANE_PACK = 16             # batch padded to a multiple of this (bf16 sublane packing)


def _round_up(x, m):
    return (x + m - 1) // m * m


def _pad_gates(w, H, H_pad):
    """Pad the leading 4H gate axis of a PyTorch-layout LSTM param ([i,f,g,o] blocks)
    to 4*H_pad, zero-filling inside each gate block so gate boundaries stay lane-aligned."""
    tail = w.shape[1:]
    w4 = w.reshape((4, H) + tail)
    pad = [(0, 0), (0, H_pad - H)] + [(0, 0)] * len(tail)
    return jnp.pad(w4, pad).reshape((4 * H_pad,) + tail)


def _make_lstm_block_kernel(T_total, TB, H, needs_mask, unroll):
    """Kernel processing TB LSTM steps per grid step; h/c state lives in VMEM scratch.

    grid = (batch_shards, time_blocks); time is the serial ('arbitrary') axis.
    """

    def kernel(gx_ref, whh_ref, h0_ref, c0_ref,
               hseq_ref, hn_ref, cn_ref,
               h_scr, c_scr):
        tb = pl.program_id(1)

        @pl.when(tb == 0)
        def _():
            # Decoder starts from the encoder state, not zeros.
            h_scr[...] = h0_ref[...]
            c_scr[...] = c0_ref[...]

        def step(s, carry):
            h, c = carry
            # Only the recurrent projection sits on the serial path; the input
            # projection + bias were folded into gx_ref (f32) outside the kernel.
            gates = gx_ref[s] + jnp.dot(
                h.astype(whh_ref.dtype), whh_ref[...],
                preferred_element_type=jnp.float32)
            # PyTorch gate order [i, f, g, o]; H is a multiple of 128 so each
            # slice is a whole-vreg lane block. Elementwise math stays in f32.
            i_g = jax.nn.sigmoid(gates[:, 0 * H:1 * H])
            f_g = jax.nn.sigmoid(gates[:, 1 * H:2 * H])
            g_g = jnp.tanh(gates[:, 2 * H:3 * H])
            o_g = jax.nn.sigmoid(gates[:, 3 * H:4 * H])
            c_new = f_g * c + i_g * g_g
            h_new = o_g * jnp.tanh(c_new)
            if needs_mask:
                # Padded time steps (t >= T_total) must not advance the state.
                valid = (tb * TB + s) < T_total
                h_new = jnp.where(valid, h_new, h)
                c_new = jnp.where(valid, c_new, c)
            # h_seq is the large HBM stream; it is consumed in bf16 by the
            # output projection anyway, so write it back in bf16.
            hseq_ref[s] = h_new.astype(hseq_ref.dtype)
            return (h_new, c_new)

        # TODO(synk): for production-scale H, switch to partial unroll (2-4) or
        # tile the 4H gate axis if the bundle dump shows vreg spills.
        h, c = lax.fori_loop(0, TB, step, (h_scr[...], c_scr[...]), unroll=unroll)
        h_scr[...] = h
        c_scr[...] = c

        @pl.when(tb == pl.num_programs(1) - 1)
        def _():
            hn_ref[...] = h
            cn_ref[...] = c

    return kernel


def lstm_sequence(gates_x, w_hh_t, h0, c0, *, time_block=32, unroll=True):
    """Run the LSTM recurrence in Pallas.

    gates_x: (T, B, 4H) f32  -- precomputed x @ W_ih^T + (b_ih + b_hh), H lane-aligned
    w_hh_t:  (H, 4H)   bf16  -- recurrent weights, pre-transposed, H lane-aligned
    h0, c0:  (B, H)    f32   -- initial state (from the encoder)

    Returns (h_seq (T, B, H) bf16, h_n (B, H) f32, c_n (B, H) f32).
    """
    T, B, H4 = gates_x.shape
    H = w_hh_t.shape[0]
    assert H4 == 4 * H and H % LANE == 0, "pad H to a multiple of 128 before calling"

    # ---- batch padding / sharding -------------------------------------------
    # Pad B to a multiple of 16 (bf16 sublane packing). When B is large enough,
    # split it into 2 shards on a leading 'parallel' grid axis so v7x's two
    # TensorCores each run an independent recurrence (no effect on v5e/v6e).
    n_bshards = 2 if B >= 32 else 1
    B_shard = _round_up(-(-B // n_bshards), SUBLANE_PACK)
    B_pad = B_shard * n_bshards
    if B_pad != B:
        gates_x = jnp.pad(gates_x, ((0, 0), (0, B_pad - B), (0, 0)))
        h0 = jnp.pad(h0, ((0, B_pad - B), (0, 0)))
        c0 = jnp.pad(c0, ((0, B_pad - B), (0, 0)))

    # ---- time blocking --------------------------------------------------------
    TB = max(1, min(time_block, T))
    n_tblocks = pl.cdiv(T, TB)
    Tp = n_tblocks * TB
    if Tp != T:
        gates_x = jnp.pad(gates_x, ((0, Tp - T), (0, 0), (0, 0)))

    kernel = _make_lstm_block_kernel(T, TB, H, needs_mask=(Tp != T), unroll=unroll)

    # ---- explicit VMEM budget -------------------------------------------------
    # Resident W_hh^T (single buffer) + double-buffered gates_x / h_seq time
    # blocks + small state blocks + scratch, plus headroom.
    vmem_need = (
        H * H4 * 2                       # W_hh^T, bf16, single buffer
        + 2 * TB * B_shard * H4 * 4      # gates_x block, f32, double buffered
        + 2 * TB * B_shard * H * 2       # h_seq block, bf16, double buffered
        + 10 * B_shard * H * 4           # h0/c0/h_n/c_n blocks + h/c scratch, f32
    )
    # TODO(synk): for very large H on v7x (64 MiB VMEM/TC) tile the 4H gate axis
    # instead of relying on a larger limit.
    vmem_limit = int(min(max(vmem_need + (4 << 20), 32 << 20), 100 << 20))

    def run(single_buffer_resident):
        def resident(shape, imap, is_const):
            if single_buffer_resident and is_const:
                # Constant-index block: double-buffering only wastes VMEM.
                return pl.BlockSpec(shape, imap, pipeline_mode=pl.Buffered(1))
            return pl.BlockSpec(shape, imap)

        grid_spec = pltpu.PrefetchScalarGridSpec(
            num_scalar_prefetch=0,
            grid=(n_bshards, n_tblocks),
            in_specs=[
                pl.BlockSpec((TB, B_shard, H4), lambda bs, tb: (tb, bs, 0)),      # gates_x
                resident((H, H4), lambda bs, tb: (0, 0), True),                   # W_hh^T
                resident((B_shard, H), lambda bs, tb: (bs, 0), n_bshards == 1),   # h0
                resident((B_shard, H), lambda bs, tb: (bs, 0), n_bshards == 1),   # c0
            ],
            out_specs=[
                pl.BlockSpec((TB, B_shard, H), lambda bs, tb: (tb, bs, 0)),       # h_seq
                pl.BlockSpec((B_shard, H), lambda bs, tb: (bs, 0)),               # h_n
                pl.BlockSpec((B_shard, H), lambda bs, tb: (bs, 0)),               # c_n
            ],
            scratch_shapes=[
                pltpu.VMEM((B_shard, H), jnp.float32),   # h state
                pltpu.VMEM((B_shard, H), jnp.float32),   # c state
            ],
        )
        return pl.pallas_call(
            kernel,
            out_shape=(
                jax.ShapeDtypeStruct((Tp, B_pad, H), jnp.bfloat16),
                jax.ShapeDtypeStruct((B_pad, H), jnp.float32),
                jax.ShapeDtypeStruct((B_pad, H), jnp.float32),
            ),
            grid_spec=grid_spec,
            compiler_params=pltpu.CompilerParams(
                dimension_semantics=("parallel", "arbitrary"),
                vmem_limit_bytes=vmem_limit,
            ),
        )(gates_x, w_hh_t, h0, c0)

    try:
        h_seq, h_n, c_n = run(True)
    except Exception:
        # Fallback for jax builds that reject pipeline_mode=pl.Buffered(1) on TPU;
        # identical semantics, just double-buffered resident blocks.
        h_seq, h_n, c_n = run(False)

    return h_seq[:T, :B], h_n[:B], c_n[:B]


class DecoderPallas:
    """JAX/Pallas equivalent of the PyTorch Decoder module."""

    def __init__(self, vocab_size, embedding_dim, hidden_dim, padding_idx, key):
        self.hidden_dim = hidden_dim
        self.padding_idx = padding_idx
        self.vocab_size = vocab_size
        H = hidden_dim
        H_pad = _round_up(H, LANE)
        self.H_pad = H_pad

        (k_emb, k_wih, k_whh, k_bih, k_bhh, k_lw, k_lb) = jax.random.split(key, 7)

        # nn.Embedding(vocab_size, embedding_dim, padding_idx): padding row is zero.
        emb = jax.random.normal(k_emb, (vocab_size, embedding_dim), jnp.float32)
        emb = emb.at[padding_idx].set(0.0)
        self.embedding_table = emb

        # nn.LSTM(embedding_dim, hidden_dim): weights U(-1/sqrt(H), 1/sqrt(H)).
        bound = 1.0 / jnp.sqrt(jnp.float32(hidden_dim))
        H4 = 4 * hidden_dim
        w_ih = jax.random.uniform(k_wih, (H4, embedding_dim), jnp.float32, -bound, bound)
        w_hh = jax.random.uniform(k_whh, (H4, hidden_dim), jnp.float32, -bound, bound)
        b_ih = jax.random.uniform(k_bih, (H4,), jnp.float32, -bound, bound)
        b_hh = jax.random.uniform(k_bhh, (H4,), jnp.float32, -bound, bound)

        # nn.Linear(hidden_dim, vocab_size)
        w_out = jax.random.uniform(k_lw, (vocab_size, hidden_dim), jnp.float32, -bound, bound)
        b_out = jax.random.uniform(k_lb, (vocab_size,), jnp.float32, -bound, bound)

        # Unpadded bf16 copies (used only by the pure-JAX reference check).
        self.w_ih_t = w_ih.T.astype(MATMUL_DTYPE)       # (E, 4H)
        self.w_hh_t = w_hh.T.astype(MATMUL_DTYPE)       # (H, 4H)
        self.bias = (b_ih + b_hh).astype(jnp.float32)   # (4H,)
        self.w_out_t = w_out.T.astype(MATMUL_DTYPE)     # (H, V)
        self.b_out = b_out                              # (V,)

        # Gate-blocked, lane-aligned params for the kernel path. Zero padding
        # inside each [i,f,g,o] block keeps padded hidden units exactly zero
        # through the whole recurrence, so results are unchanged.
        w_ih_p = _pad_gates(w_ih, H, H_pad)                                      # (4H_pad, E)
        w_hh_p = jnp.pad(_pad_gates(w_hh, H, H_pad), ((0, 0), (0, H_pad - H)))   # (4H_pad, H_pad)
        self.bias_pad = _pad_gates(b_ih + b_hh, H, H_pad)                        # (4H_pad,)
        self.w_ih_t_pad = w_ih_p.T.astype(MATMUL_DTYPE)                          # (E, 4H_pad)
        self.w_hh_t_pad = w_hh_p.T.astype(MATMUL_DTYPE)                          # (H_pad, 4H_pad)
        self.w_out_t_pad = jnp.pad(w_out.T, ((0, H_pad - H), (0, 0))).astype(MATMUL_DTYPE)  # (H_pad, V)

        # For modest vocabularies, fuse the embedding gather and the input
        # projection: gates_x becomes a single row-gather of this table.
        if vocab_size * 4 * H_pad * 4 <= (64 << 20):
            self.fused_gate_table = (
                jnp.dot(emb.astype(MATMUL_DTYPE), self.w_ih_t_pad,
                        preferred_element_type=jnp.float32) + self.bias_pad)     # (V, 4H_pad) f32
        else:
            self.fused_gate_table = None

    def __call__(self, sequence, encoder_state, *, time_block=32):
        # sequence: (B, T) int32 token ids; encoder_state: (h0, c0) each (1, B, H).
        h0, c0 = encoder_state
        B, T = sequence.shape
        H, H_pad = self.hidden_dim, self.H_pad

        # gates_x = emb(sequence) @ W_ih^T + b, laid out (T, B, 4H_pad) in f32.
        if self.fused_gate_table is not None:
            # Embedding gather and input projection fused into one table lookup.
            gates_x = jnp.take(self.fused_gate_table, sequence.T, axis=0)
        else:
            emb_tbe = jnp.take(self.embedding_table, sequence.T, axis=0)        # (T, B, E)
            gates_x = jnp.dot(emb_tbe.astype(MATMUL_DTYPE), self.w_ih_t_pad,
                              preferred_element_type=jnp.float32) + self.bias_pad

        # Lane-align the initial state.
        h0p = jnp.pad(h0[0], ((0, 0), (0, H_pad - H)))
        c0p = jnp.pad(c0[0], ((0, 0), (0, H_pad - H)))

        # Serial recurrence in Pallas.
        h_seq, h_n, c_n = lstm_sequence(gates_x, self.w_hh_t_pad, h0p, c0p,
                                        time_block=time_block)

        # hidden2linear over all (T, B) positions at once (padded H rows of
        # w_out_t_pad are zero, so padded lanes contribute nothing).
        logits = jnp.dot(h_seq, self.w_out_t_pad,
                         preferred_element_type=jnp.float32) + self.b_out       # (T, B, V)
        output = jnp.transpose(logits, (1, 0, 2))                               # (B, T, V)

        # Match PyTorch nn.LSTM state shapes: (num_layers=1, B, H)
        return output, (h_n[:, :H][None], c_n[:, :H][None])


def _reference_forward(dec, sequence, encoder_state):
    """Pure-JAX reference of the same forward (same bf16 matmul / f32 acc numerics)."""
    emb = jnp.take(dec.embedding_table, sequence, axis=0)   # (B, T, E)
    B, T, _ = emb.shape
    H = dec.hidden_dim
    h = encoder_state[0][0]
    c = encoder_state[1][0]
    hs = []
    for t in range(T):
        gates = (jnp.dot(emb[:, t, :].astype(dec.w_ih_t.dtype), dec.w_ih_t,
                         preferred_element_type=jnp.float32)
                 + jnp.dot(h.astype(dec.w_hh_t.dtype), dec.w_hh_t,
                           preferred_element_type=jnp.float32)
                 + dec.bias)
        i = jax.nn.sigmoid(gates[:, 0 * H:1 * H])
        f = jax.nn.sigmoid(gates[:, 1 * H:2 * H])
        g = jnp.tanh(gates[:, 2 * H:3 * H])
        o = jax.nn.sigmoid(gates[:, 3 * H:4 * H])
        c = f * c + i * g
        h = o * jnp.tanh(c)
        hs.append(h)
    h_seq = jnp.stack(hs, axis=1)                            # (B, T, H)
    out = jnp.dot(h_seq.astype(dec.w_out_t.dtype), dec.w_out_t,
                  preferred_element_type=jnp.float32) + dec.b_out
    return out, (h[None], c[None])


if __name__ == "__main__":
    vocab_size = 16
    embedding_dim = 32
    hidden_dim = 32
    padding_idx = 0
    batch = 2
    seq_len = 8

    key = jax.random.PRNGKey(0)
    k_params, k_seq, k_h0, k_c0 = jax.random.split(key, 4)

    dec = DecoderPallas(vocab_size, embedding_dim, hidden_dim, padding_idx, k_params)

    sequence = jax.random.randint(k_seq, (batch, seq_len), 0, vocab_size, jnp.int32)
    h0 = 0.1 * jax.random.normal(k_h0, (1, batch, hidden_dim), jnp.float32)
    c0 = 0.1 * jax.random.normal(k_c0, (1, batch, hidden_dim), jnp.float32)
    encoder_state = (h0, c0)

    output, (h_n, c_n) = dec(sequence, encoder_state)
    output = jax.block_until_ready(output)
    h_n = jax.block_until_ready(h_n)
    c_n = jax.block_until_ready(c_n)

    out_ref, (h_ref, c_ref) = _reference_forward(dec, sequence, encoder_state)
    assert output.shape == (batch, seq_len, vocab_size)
    assert h_n.shape == (1, batch, hidden_dim)
    assert c_n.shape == (1, batch, hidden_dim)
    assert jnp.allclose(output, out_ref, atol=2e-2), "output mismatch vs reference"
    assert jnp.allclose(h_n, h_ref, atol=2e-2), "h_n mismatch vs reference"
    assert jnp.allclose(c_n, c_ref, atol=2e-2), "c_n mismatch vs reference"

    print("KERNEL_OK")
</pallas_src>

<mosaic_0001>
module attributes {stable_mosaic.version = 11 : i64} {
  func.func @kernel(%arg0: i32, %arg1: i32, %arg2: memref<8x16x512xf32, #tpu.memory_space<vmem>>, %arg3: memref<128x512xbf16, #tpu.memory_space<vmem>>, %arg4: memref<16x128xf32, #tpu.memory_space<vmem>>, %arg5: memref<16x128xf32, #tpu.memory_space<vmem>>, %arg6: memref<8x16x128xbf16, #tpu.memory_space<vmem>>, %arg7: memref<16x128xf32, #tpu.memory_space<vmem>>, %arg8: memref<16x128xf32, #tpu.memory_space<vmem>>, %arg9: memref<16x128xf32, #tpu.memory_space<vmem>>, %arg10: memref<16x128xf32, #tpu.memory_space<vmem>>) attributes {dimension_semantics = [#tpu.dimension_semantics<parallel>, #tpu.dimension_semantics<arbitrary>], iteration_bounds = array<i64: 1, 1>, scalar_prefetch = 0 : i64, scratch_operands = 2 : i64, tpu.core_type = #tpu.core_type<tc>, window_params = [{transform_indices = @transform_0, window_bounds = array<i64: 8, 16, 512>}, {pipeline_mode = #tpu.pipeline_mode<synchronous>, transform_indices = @transform_1, window_bounds = array<i64: 128, 512>}, {pipeline_mode = #tpu.pipeline_mode<synchronous>, transform_indices = @transform_2, window_bounds = array<i64: 16, 128>}, {pipeline_mode = #tpu.pipeline_mode<synchronous>, transform_indices = @transform_3, window_bounds = array<i64: 16, 128>}, {transform_indices = @transform_4, window_bounds = array<i64: 8, 16, 128>}, {transform_indices = @transform_5, window_bounds = array<i64: 16, 128>}, {transform_indices = @transform_6, window_bounds = array<i64: 16, 128>}]} {
    %c0_i32 = arith.constant 0 : i32
    %0 = arith.cmpi eq, %arg1, %c0_i32 : i32
    %1 = arith.extui %0 : i1 to i32
    %c0_i32_0 = arith.constant 0 : i32
    %2 = arith.cmpi ne, %1, %c0_i32_0 : i32
    scf.if %2 {
      %c0_90 = arith.constant 0 : index
      %c0_91 = arith.constant 0 : index
      %306 = vector.load %arg4[%c0_90, %c0_91] : memref<16x128xf32, #tpu.memory_space<vmem>>, vector<16x128xf32>
      %c0_92 = arith.constant 0 : index
      %c0_93 = arith.constant 0 : index
      %307 = vector.load %arg9[%c0_92, %c0_93] : memref<16x128xf32, #tpu.memory_space<vmem>>, vector<16x128xf32>
      tpu.vector_store %arg9[%c0_92, %c0_93], %306 {strides = array<i32>} : memref<16x128xf32, #tpu.memory_space<vmem>>, vector<16x128xf32>,
      %c0_94 = arith.constant 0 : index
      %c0_95 = arith.constant 0 : index
      %308 = vector.load %arg5[%c0_94, %c0_95] : memref<16x128xf32, #tpu.memory_space<vmem>>, vector<16x128xf32>
      %c0_96 = arith.constant 0 : index
      %c0_97 = arith.constant 0 : index
      %309 = vector.load %arg10[%c0_96, %c0_97] : memref<16x128xf32, #tpu.memory_space<vmem>>, vector<16x128xf32>
      tpu.vector_store %arg10[%c0_96, %c0_97], %308 {strides = array<i32>} : memref<16x128xf32, #tpu.memory_space<vmem>>, vector<16x128xf32>,
    } else {
    }
    %c0 = arith.constant 0 : index
    %c0_1 = arith.constant 0 : index
    %3 = vector.load %arg9[%c0, %c0_1] : memref<16x128xf32, #tpu.memory_space<vmem>>, vector<16x128xf32>
    %c0_2 = arith.constant 0 : index
    %c0_3 = arith.constant 0 : index
    %4 = vector.load %arg10[%c0_2, %c0_3] : memref<16x128xf32, #tpu.memory_space<vmem>>, vector<16x128xf32>
    %c0_i32_4 = arith.constant 0 : i32
    %5 = arith.index_cast %c0_i32_4 : i32 to index
    %c0_5 = arith.constant 0 : index
    %c0_6 = arith.constant 0 : index
    %6 = vector.load %arg2[%5, %c0_5, %c0_6] : memref<8x16x512xf32, #tpu.memory_space<vmem>>, vector<1x16x512xf32>
    %7 = vector.shape_cast %6 : vector<1x16x512xf32> to vector<16x512xf32>
    %8 = arith.truncf %3 : vector<16x128xf32> to vector<16x128xbf16>
    %c0_7 = arith.constant 0 : index
    %c0_8 = arith.constant 0 : index
    %9 = vector.load %arg3[%c0_7, %c0_8] : memref<128x512xbf16, #tpu.memory_space<vmem>>, vector<128x512xbf16>
    %cst = arith.constant dense<0.000000e+00> : vector<16x512xf32>
    %10 = tpu.matmul %8, %9, %cst {dimension_numbers = #tpu.dot_dimension_numbers<[1], [0], [0], [1], [0, 0, 1, 1], [], []>} : vector<16x128xbf16>, vector<128x512xbf16>, vector<16x512xf32> -> vector<16x512xf32>
    %11 = arith.addf %7, %10 : vector<16x512xf32>
    %12 = vector.extract_strided_slice %11 {offsets = [0, 0], sizes = [16, 128], strides = [1, 1]} : vector<16x512xf32> to vector<16x128xf32>
    %13 = arith.negf %12 : vector<16x128xf32>
    %14 = math.exp %13 : vector<16x128xf32>
    %cst_9 = arith.constant 1.000000e+00 : f32
    %15 = vector.broadcast %cst_9 : f32 to vector<16x128xf32>
    %16 = arith.addf %15, %14 : vector<16x128xf32>
    %17 = arith.divf %15, %16 : vector<16x128xf32>
    %18 = vector.extract_strided_slice %11 {offsets = [0, 128], sizes = [16, 128], strides = [1, 1]} : vector<16x512xf32> to vector<16x128xf32>
    %19 = arith.negf %18 : vector<16x128xf32>
    %20 = math.exp %19 : vector<16x128xf32>
    %cst_10 = arith.constant 1.000000e+00 : f32
    %21 = vector.broadcast %cst_10 : f32 to vector<16x128xf32>
    %22 = arith.addf %21, %20 : vector<16x128xf32>
    %23 = arith.divf %21, %22 : vector<16x128xf32>
    %24 = vector.extract_strided_slice %11 {offsets = [0, 256], sizes = [16, 128], strides = [1, 1]} : vector<16x512xf32> to vector<16x128xf32>
    %25 = math.tanh %24 : vector<16x128xf32>
    %26 = vector.extract_strided_slice %11 {offsets = [0, 384], sizes = [16, 128], strides = [1, 1]} : vector<16x512xf32> to vector<16x128xf32>
    %27 = arith.negf %26 : vector<16x128xf32>
    %28 = math.exp %27 : vector<16x128xf32>
    %cst_11 = arith.constant 1.000000e+00 : f32
    %29 = vector.broadcast %cst_11 : f32 to vector<16x128xf32>
    %30 = arith.addf %29, %28 : vector<16x128xf32>
    %31 = arith.divf %29, %30 : vector<16x128xf32>
    %32 = arith.mulf %23, %4 : vector<16x128xf32>
    %33 = arith.mulf %17, %25 : vector<16x128xf32>
    %34 = arith.addf %32, %33 : vector<16x128xf32>
    %35 = math.tanh %34 : vector<16x128xf32>
    %36 = arith.mulf %31, %35 : vector<16x128xf32>
    %37 = arith.truncf %36 : vector<16x128xf32> to vector<16x128xbf16>
    %38 = arith.index_cast %c0_i32_4 : i32 to index
    %c0_12 = arith.constant 0 : index
    %c0_13 = arith.constant 0 : index
    %39 = vector.load %arg6[%38, %c0_12, %c0_13] : memref<8x16x128xbf16, #tpu.memory_space<vmem>>, vector<1x16x128xbf16>
    %40 = vector.shape_cast %39 : vector<1x16x128xbf16> to vector<16x128xbf16>
    %41 = vector.shape_cast %37 : vector<16x128xbf16> to vector<1x16x128xbf16>
    tpu.vector_store %arg6[%38, %c0_12, %c0_13], %41 {strides = array<i32>} : memref<8x16x128xbf16, #tpu.memory_space<vmem>>, vector<1x16x128xbf16>,
    %c1_i32 = arith.constant 1 : i32
    %42 = arith.index_cast %c1_i32 : i32 to index
    %c0_14 = arith.constant 0 : index
    %c0_15 = arith.constant 0 : index
    %43 = vector.load %arg2[%42, %c0_14, %c0_15] : memref<8x16x512xf32, #tpu.memory_space<vmem>>, vector<1x16x512xf32>
    %44 = vector.shape_cast %43 : vector<1x16x512xf32> to vector<16x512xf32>
    %45 = arith.truncf %36 : vector<16x128xf32> to vector<16x128xbf16>
    %c0_16 = arith.constant 0 : index
    %c0_17 = arith.constant 0 : index
    %46 = vector.load %arg3[%c0_16, %c0_17] : memref<128x512xbf16, #tpu.memory_space<vmem>>, vector<128x512xbf16>
    %cst_18 = arith.constant dense<0.000000e+00> : vector<16x512xf32>
    %47 = tpu.matmul %45, %46, %cst_18 {dimension_numbers = #tpu.dot_dimension_numbers<[1], [0], [0], [1], [0, 0, 1, 1], [], []>} : vector<16x128xbf16>, vector<128x512xbf16>, vector<16x512xf32> -> vector<16x512xf32>
    %48 = arith.addf %44, %47 : vector<16x512xf32>
    %49 = vector.extract_strided_slice %48 {offsets = [0, 0], sizes = [16, 128], strides = [1, 1]} : vector<16x512xf32> to vector<16x128xf32>
    %50 = arith.negf %49 : vector<16x128xf32>
    %51 = math.exp %50 : vector<16x128xf32>
    %cst_19 = arith.constant 1.000000e+00 : f32
    %52 = vector.broadcast %cst_19 : f32 to vector<16x128xf32>
    %53 = arith.addf %52, %51 : vector<16x128xf32>
    %54 = arith.divf %52, %53 : vector<16x128xf32>
    %55 = vector.extract_strided_slice %48 {offsets = [0, 128], sizes = [16, 128], strides = [1, 1]} : vector<16x512xf32> to vector<16x128xf32>
    %56 = arith.negf %55 : vector<16x128xf32>
    %57 = math.exp %56 : vector<16x128xf32>
    %cst_20 = arith.constant 1.000000e+00 : f32
    %58 = vector.broadcast %cst_20 : f32 to vector<16x128xf32>
    %59 = arith.addf %58, %57 : vector<16x128xf32>
    %60 = arith.divf %58, %59 : vector<16x128xf32>
    %61 = vector.extract_strided_slice %48 {offsets = [0, 256], sizes = [16, 128], strides = [1, 1]} : vector<16x512xf32> to vector<16x128xf32>
    %62 = math.tanh %61 : vector<16x128xf32>
    %63 = vector.extract_strided_slice %48 {offsets = [0, 384], sizes = [16, 128], strides = [1, 1]} : vector<16x512xf32> to vector<16x128xf32>
    %64 = arith.negf %63 : vector<16x128xf32>
    %65 = math.exp %64 : vector<16x128xf32>
    %cst_21 = arith.constant 1.000000e+00 : f32
    %66 = vector.broadcast %cst_21 : f32 to vector<16x128xf32>
    %67 = arith.addf %66, %65 : vector<16x128xf32>
    %68 = arith.divf %66, %67 : vector<16x128xf32>
    %69 = arith.mulf %60, %34 : vector<16x128xf32>
    %70 = arith.mulf %54, %62 : vector<16x128xf32>
    %71 = arith.addf %69, %70 : vector<16x128xf32>
    %72 = math.tanh %71 : vector<16x128xf32>
    %73 = arith.mulf %68, %72 : vector<16x128xf32>
    %74 = arith.truncf %73 : vector<16x128xf32> to vector<16x128xbf16>
    %75 = arith.index_cast %c1_i32 : i32 to index
    %c0_22 = arith.constant 0 : index
    %c0_23 = arith.constant 0 : index
    %76 = vector.load %arg6[%75, %c0_22, %c0_23] : memref<8x16x128xbf16, #tpu.memory_space<vmem>>, vector<1x16x128xbf16>
    %77 = vector.shape_cast %76 : vector<1x16x128xbf16> to vector<16x128xbf16>
    %78 = vector.shape_cast %74 : vector<16x128xbf16> to vector<1x16x128xbf16>
    tpu.vector_store %arg6[%75, %c0_22, %c0_23], %78 {strides = array<i32>} : memref<8x16x128xbf16, #tpu.memory_space<vmem>>, vector<1x16x128xbf16>,
    %c2_i32 = arith.constant 2 : i32
    %79 = arith.index_cast %c2_i32 : i32 to index
    %c0_24 = arith.constant 0 : index
    %c0_25 = arith.constant 0 : index
    %80 = vector.load %arg2[%79, %c0_24, %c0_25] : memref<8x16x512xf32, #tpu.memory_space<vmem>>, vector<1x16x512xf32>
    %81 = vector.shape_cast %80 : vector<1x16x512xf32> to vector<16x512xf32>
    %82 = arith.truncf %73 : vector<16x128xf32> to vector<16x128xbf16>
    %c0_26 = arith.constant 0 : index
    %c0_27 = arith.constant 0 : index
    %83 = vector.load %arg3[%c0_26, %c0_27] : memref<128x512xbf16, #tpu.memory_space<vmem>>, vector<128x512xbf16>
    %cst_28 = arith.constant dense<0.000000e+00> : vector<16x512xf32>
    %84 = tpu.matmul %82, %83, %cst_28 {dimension_numbers = #tpu.dot_dimension_numbers<[1], [0], [0], [1], [0, 0, 1, 1], [], []>} : vector<16x128xbf16>, vector<128x512xbf16>, vector<16x512xf32> -> vector<16x512xf32>
    %85 = arith.addf %81, %84 : vector<16x512xf32>
    %86 = vector.extract_strided_slice %85 {offsets = [0, 0], sizes = [16, 128], strides = [1, 1]} : vector<16x512xf32> to vector<16x128xf32>
    %87 = arith.negf %86 : vector<16x128xf32>
    %88 = math.exp %87 : vector<16x128xf32>
    %cst_29 = arith.constant 1.000000e+00 : f32
    %89 = vector.broadcast %cst_29 : f32 to vector<16x128xf32>
    %90 = arith.addf %89, %88 : vector<16x128xf32>
    %91 = arith.divf %89, %90 : vector<16x128xf32>
    %92 = vector.extract_strided_slice %85 {offsets = [0, 128], sizes = [16, 128], strides = [1, 1]} : vector<16x512xf32> to vector<16x128xf32>
    %93 = arith.negf %92 : vector<16x128xf32>
    %94 = math.exp %93 : vector<16x128xf32>
    %cst_30 = arith.constant 1.000000e+00 : f32
    %95 = vector.broadcast %cst_30 : f32 to vector<16x128xf32>
    %96 = arith.addf %95, %94 : vector<16x128xf32>
    %97 = arith.divf %95, %96 : vector<16x128xf32>
    %98 = vector.extract_strided_slice %85 {offsets = [0, 256], sizes = [16, 128], strides = [1, 1]} : vector<16x512xf32> to vector<16x128xf32>
    %99 = math.tanh %98 : vector<16x128xf32>
    %100 = vector.extract_strided_slice %85 {offsets = [0, 384], sizes = [16, 128], strides = [1, 1]} : vector<16x512xf32> to vector<16x128xf32>
    %101 = arith.negf %100 : vector<16x128xf32>
    %102 = math.exp %101 : vector<16x128xf32>
    %cst_31 = arith.constant 1.000000e+00 : f32
    %103 = vector.broadcast %cst_31 : f32 to vector<16x128xf32>
    %104 = arith.addf %103, %102 : vector<16x128xf32>
    %105 = arith.divf %103, %104 : vector<16x128xf32>
    %106 = arith.mulf %97, %71 : vector<16x128xf32>
    %107 = arith.mulf %91, %99 : vector<16x128xf32>
    %108 = arith.addf %106, %107 : vector<16x128xf32>
    %109 = math.tanh %108 : vector<16x128xf32>
    %110 = arith.mulf %105, %109 : vector<16x128xf32>
    %111 = arith.truncf %110 : vector<16x128xf32> to vector<16x128xbf16>
    %112 = arith.index_cast %c2_i32 : i32 to index
    %c0_32 = arith.constant 0 : index
    %c0_33 = arith.constant 0 : index
    %113 = vector.load %arg6[%112, %c0_32, %c0_33] : memref<8x16x128xbf16, #tpu.memory_space<vmem>>, vector<1x16x128xbf16>
    %114 = vector.shape_cast %113 : vector<1x16x128xbf16> to vector<16x128xbf16>
    %115 = vector.shape_cast %111 : vector<16x128xbf16> to vector<1x16x128xbf16>
    tpu.vector_store %arg6[%112, %c0_32, %c0_33], %115 {strides = array<i32>} : memref<8x16x128xbf16, #tpu.memory_space<vmem>>, vector<1x16x128xbf16>,
    %c3_i32 = arith.constant 3 : i32
    %116 = arith.index_cast %c3_i32 : i32 to index
    %c0_34 = arith.constant 0 : index
    %c0_35 = arith.constant 0 : index
    %117 = vector.load %arg2[%116, %c0_34, %c0_35] : memref<8x16x512xf32, #tpu.memory_space<vmem>>, vector<1x16x512xf32>
    %118 = vector.shape_cast %117 : vector<1x16x512xf32> to vector<16x512xf32>
    %119 = arith.truncf %110 : vector<16x128xf32> to vector<16x128xbf16>
    %c0_36 = arith.constant 0 : index
    %c0_37 = arith.constant 0 : index
    %120 = vector.load %arg3[%c0_36, %c0_37] : memref<128x512xbf16, #tpu.memory_space<vmem>>, vector<128x512xbf16>
    %cst_38 = arith.constant dense<0.000000e+00> : vector<16x512xf32>
    %121 = tpu.matmul %119, %120, %cst_38 {dimension_numbers = #tpu.dot_dimension_numbers<[1], [0], [0], [1], [0, 0, 1, 1], [], []>} : vector<16x128xbf16>, vector<128x512xbf16>, vector<16x512xf32> -> vector<16x512xf32>
    %122 = arith.addf %118, %121 : vector<16x512xf32>
    %123 = vector.extract_strided_slice %122 {offsets = [0, 0], sizes = [16, 128], strides = [1, 1]} : vector<16x512xf32> to vector<16x128xf32>
    %124 = arith.negf %123 : vector<16x128xf32>
    %125 = math.exp %124 : vector<16x128xf32>
    %cst_39 = arith.constant 1.000000e+00 : f32
    %126 = vector.broadcast %cst_39 : f32 to vector<16x128xf32>
    %127 = arith.addf %126, %125 : vector<16x128xf32>
    %128 = arith.divf %126, %127 : vector<16x128xf32>
    %129 = vector.extract_strided_slice %122 {offsets = [0, 128], sizes = [16, 128], strides = [1, 1]} : vector<16x512xf32> to vector<16x128xf32>
    %130 = arith.negf %129 : vector<16x128xf32>
    %131 = math.exp %130 : vector<16x128xf32>
    %cst_40 = arith.constant 1.000000e+00 : f32
    %132 = vector.broadcast %cst_40 : f32 to vector<16x128xf32>
    %133 = arith.addf %132, %131 : vector<16x128xf32>
    %134 = arith.divf %132, %133 : vector<16x128xf32>
    %135 = vector.extract_strided_slice %122 {offsets = [0, 256], sizes = [16, 128], strides = [1, 1]} : vector<16x512xf32> to vector<16x128xf32>
    %136 = math.tanh %135 : vector<16x128xf32>
    %137 = vector.extract_strided_slice %122 {offsets = [0, 384], sizes = [16, 128], strides = [1, 1]} : vector<16x512xf32> to vector<16x128xf32>
    %138 = arith.negf %137 : vector<16x128xf32>
    %139 = math.exp %138 : vector<16x128xf32>
    %cst_41 = arith.constant 1.000000e+00 : f32
    %140 = vector.broadcast %cst_41 : f32 to vector<16x128xf32>
    %141 = arith.addf %140, %139 : vector<16x128xf32>
    %142 = arith.divf %140, %141 : vector<16x128xf32>
    %143 = arith.mulf %134, %108 : vector<16x128xf32>
    %144 = arith.mulf %128, %136 : vector<16x128xf32>
    %145 = arith.addf %143, %144 : vector<16x128xf32>
    %146 = math.tanh %145 : vector<16x128xf32>
    %147 = arith.mulf %142, %146 : vector<16x128xf32>
    %148 = arith.truncf %147 : vector<16x128xf32> to vector<16x128xbf16>
    %149 = arith.index_cast %c3_i32 : i32 to index
    %c0_42 = arith.constant 0 : index
    %c0_43 = arith.constant 0 : index
    %150 = vector.load %arg6[%149, %c0_42, %c0_43] : memref<8x16x128xbf16, #tpu.memory_space<vmem>>, vector<1x16x128xbf16>
    %151 = vector.shape_cast %150 : vector<1x16x128xbf16> to vector<16x128xbf16>
    %152 = vector.shape_cast %148 : vector<16x128xbf16> to vector<1x16x128xbf16>
    tpu.vector_store %arg6[%149, %c0_42, %c0_43], %152 {strides = array<i32>} : memref<8x16x128xbf16, #tpu.memory_space<vmem>>, vector<1x16x128xbf16>,
    %c4_i32 = arith.constant 4 : i32
    %153 = arith.index_cast %c4_i32 : i32 to index
    %c0_44 = arith.constant 0 : index
    %c0_45 = arith.constant 0 : index
    %154 = vector.load %arg2[%153, %c0_44, %c0_45] : memref<8x16x512xf32, #tpu.memory_space<vmem>>, vector<1x16x512xf32>
    %155 = vector.shape_cast %154 : vector<1x16x512xf32> to vector<16x512xf32>
    %156 = arith.truncf %147 : vector<16x128xf32> to vector<16x128xbf16>
    %c0_46 = arith.constant 0 : index
    %c0_47 = arith.constant 0 : index
    %157 = vector.load %arg3[%c0_46, %c0_47] : memref<128x512xbf16, #tpu.memory_space<vmem>>, vector<128x512xbf16>
    %cst_48 = arith.constant dense<0.000000e+00> : vector<16x512xf32>
    %158 = tpu.matmul %156, %157, %cst_48 {dimension_numbers = #tpu.dot_dimension_numbers<[1], [0], [0], [1], [0, 0, 1, 1], [], []>} : vector<16x128xbf16>, vector<128x512xbf16>, vector<16x512xf32> -> vector<16x512xf32>
    %159 = arith.addf %155, %158 : vector<16x512xf32>
    %160 = vector.extract_strided_slice %159 {offsets = [0, 0], sizes = [16, 128], strides = [1, 1]} : vector<16x512xf32> to vector<16x128xf32>
    %161 = arith.negf %160 : vector<16x128xf32>
    %162 = math.exp %161 : vector<16x128xf32>
    %cst_49 = arith.constant 1.000000e+00 : f32
    %163 = vector.broadcast %cst_49 : f32 to vector<16x128xf32>
    %164 = arith.addf %163, %162 : vector<16x128xf32>
    %165 = arith.divf %163, %164 : vector<16x128xf32>
    %166 = vector.extract_strided_slice %159 {offsets = [0, 128], sizes = [16, 128], strides = [1, 1]} : vector<16x512xf32> to vector<16x128xf32>
    %167 = arith.negf %166 : vector<16x128xf32>
    %168 = math.exp %167 : vector<16x128xf32>
    %cst_50 = arith.constant 1.000000e+00 : f32
    %169 = vector.broadcast %cst_50 : f32 to vector<16x128xf32>
    %170 = arith.addf %169, %168 : vector<16x128xf32>
    %171 = arith.divf %169, %170 : vector<16x128xf32>
    %172 = vector.extract_strided_slice %159 {offsets = [0, 256], sizes = [16, 128], strides = [1, 1]} : vector<16x512xf32> to vector<16x128xf32>
    %173 = math.tanh %172 : vector<16x128xf32>
    %174 = vector.extract_strided_slice %159 {offsets = [0, 384], sizes = [16, 128], strides = [1, 1]} : vector<16x512xf32> to vector<16x128xf32>
    %175 = arith.negf %174 : vector<16x128xf32>
    %176 = math.exp %175 : vector<16x128xf32>
    %cst_51 = arith.constant 1.000000e+00 : f32
    %177 = vector.broadcast %cst_51 : f32 to vector<16x128xf32>
    %178 = arith.addf %177, %176 : vector<16x128xf32>
    %179 = arith.divf %177, %178 : vector<16x128xf32>
    %180 = arith.mulf %171, %145 : vector<16x128xf32>
    %181 = arith.mulf %165, %173 : vector<16x128xf32>
    %182 = arith.addf %180, %181 : vector<16x128xf32>
    %183 = math.tanh %182 : vector<16x128xf32>
    %184 = arith.mulf %179, %183 : vector<16x128xf32>
    %185 = arith.truncf %184 : vector<16x128xf32> to vector<16x128xbf16>
    %186 = arith.index_cast %c4_i32 : i32 to index
    %c0_52 = arith.constant 0 : index
    %c0_53 = arith.constant 0 : index
    %187 = vector.load %arg6[%186, %c0_52, %c0_53] : memref<8x16x128xbf16, #tpu.memory_space<vmem>>, vector<1x16x128xbf16>
    %188 = vector.shape_cast %187 : vector<1x16x128xbf16> to vector<16x128xbf16>
    %189 = vector.shape_cast %185 : vector<16x128xbf16> to vector<1x16x128xbf16>
    tpu.vector_store %arg6[%186, %c0_52, %c0_53], %189 {strides = array<i32>} : memref<8x16x128xbf16, #tpu.memory_space<vmem>>, vector<1x16x128xbf16>,
    %c5_i32 = arith.constant 5 : i32
    %190 = arith.index_cast %c5_i32 : i32 to index
    %c0_54 = arith.constant 0 : index
    %c0_55 = arith.constant 0 : index
    %191 = vector.load %arg2[%190, %c0_54, %c0_55] : memref<8x16x512xf32, #tpu.memory_space<vmem>>, vector<1x16x512xf32>
    %192 = vector.shape_cast %191 : vector<1x16x512xf32> to vector<16x512xf32>
    %193 = arith.truncf %184 : vector<16x128xf32> to vector<16x128xbf16>
    %c0_56 = arith.constant 0 : index
    %c0_57 = arith.constant 0 : index
    %194 = vector.load %arg3[%c0_56, %c0_57] : memref<128x512xbf16, #tpu.memory_space<vmem>>, vector<128x512xbf16>
    %cst_58 = arith.constant dense<0.000000e+00> : vector<16x512xf32>
    %195 = tpu.matmul %193, %194, %cst_58 {dimension_numbers = #tpu.dot_dimension_numbers<[1], [0], [0], [1], [0, 0, 1, 1], [], []>} : vector<16x128xbf16>, vector<128x512xbf16>, vector<16x512xf32> -> vector<16x512xf32>
    %196 = arith.addf %192, %195 : vector<16x512xf32>
    %197 = vector.extract_strided_slice %196 {offsets = [0, 0], sizes = [16, 128], strides = [1, 1]} : vector<16x512xf32> to vector<16x128xf32>
    %198 = arith.negf %197 : vector<16x128xf32>
    %199 = math.exp %198 : vector<16x128xf32>
    %cst_59 = arith.constant 1.000000e+00 : f32
    %200 = vector.broadcast %cst_59 : f32 to vector<16x128xf32>
    %201 = arith.addf %200, %199 : vector<16x128xf32>
    %202 = arith.divf %200, %201 : vector<16x128xf32>
    %203 = vector.extract_strided_slice %196 {offsets = [0, 128], sizes = [16, 128], strides = [1, 1]} : vector<16x512xf32> to vector<16x128xf32>
    %204 = arith.negf %203 : vector<16x128xf32>
    %205 = math.exp %204 : vector<16x128xf32>
    %cst_60 = arith.constant 1.000000e+00 : f32
    %206 = vector.broadcast %cst_60 : f32 to vector<16x128xf32>
    %207 = arith.addf %206, %205 : vector<16x128xf32>
    %208 = arith.divf %206, %207 : vector<16x128xf32>
    %209 = vector.extract_strided_slice %196 {offsets = [0, 256], sizes = [16, 128], strides = [1, 1]} : vector<16x512xf32> to vector<16x128xf32>
    %210 = math.tanh %209 : vector<16x128xf32>
    %211 = vector.extract_strided_slice %196 {offsets = [0, 384], sizes = [16, 128], strides = [1, 1]} : vector<16x512xf32> to vector<16x128xf32>
    %212 = arith.negf %211 : vector<16x128xf32>
    %213 = math.exp %212 : vector<16x128xf32>
    %cst_61 = arith.constant 1.000000e+00 : f32
    %214 = vector.broadcast %cst_61 : f32 to vector<16x128xf32>
    %215 = arith.addf %214, %213 : vector<16x128xf32>
    %216 = arith.divf %214, %215 : vector<16x128xf32>
    %217 = arith.mulf %208, %182 : vector<16x128xf32>
    %218 = arith.mulf %202, %210 : vector<16x128xf32>
    %219 = arith.addf %217, %218 : vector<16x128xf32>
    %220 = math.tanh %219 : vector<16x128xf32>
    %221 = arith.mulf %216, %220 : vector<16x128xf32>
    %222 = arith.truncf %221 : vector<16x128xf32> to vector<16x128xbf16>
    %223 = arith.index_cast %c5_i32 : i32 to index
    %c0_62 = arith.constant 0 : index
    %c0_63 = arith.constant 0 : index
    %224 = vector.load %arg6[%223, %c0_62, %c0_63] : memref<8x16x128xbf16, #tpu.memory_space<vmem>>, vector<1x16x128xbf16>
    %225 = vector.shape_cast %224 : vector<1x16x128xbf16> to vector<16x128xbf16>
    %226 = vector.shape_cast %222 : vector<16x128xbf16> to vector<1x16x128xbf16>
    tpu.vector_store %arg6[%223, %c0_62, %c0_63], %226 {strides = array<i32>} : memref<8x16x128xbf16, #tpu.memory_space<vmem>>, vector<1x16x128xbf16>,
    %c6_i32 = arith.constant 6 : i32
    %227 = arith.index_cast %c6_i32 : i32 to index
    %c0_64 = arith.constant 0 : index
    %c0_65 = arith.constant 0 : index
    %228 = vector.load %arg2[%227, %c0_64, %c0_65] : memref<8x16x512xf32, #tpu.memory_space<vmem>>, vector<1x16x512xf32>
    %229 = vector.shape_cast %228 : vector<1x16x512xf32> to vector<16x512xf32>
    %230 = arith.truncf %221 : vector<16x128xf32> to vector<16x128xbf16>
    %c0_66 = arith.constant 0 : index
    %c0_67 = arith.constant 0 : index
    %231 = vector.load %arg3[%c0_66, %c0_67] : memref<128x512xbf16, #tpu.memory_space<vmem>>, vector<128x512xbf16>
    %cst_68 = arith.constant dense<0.000000e+00> : vector<16x512xf32>
    %232 = tpu.matmul %230, %231, %cst_68 {dimension_numbers = #tpu.dot_dimension_numbers<[1], [0], [0], [1], [0, 0, 1, 1], [], []>} : vector<16x128xbf16>, vector<128x512xbf16>, vector<16x512xf32> -> vector<16x512xf32>
    %233 = arith.addf %229, %232 : vector<16x512xf32>
    %234 = vector.extract_strided_slice %233 {offsets = [0, 0], sizes = [16, 128], strides = [1, 1]} : vector<16x512xf32> to vector<16x128xf32>
    %235 = arith.negf %234 : vector<16x128xf32>
    %236 = math.exp %235 : vector<16x128xf32>
    %cst_69 = arith.constant 1.000000e+00 : f32
    %237 = vector.broadcast %cst_69 : f32 to vector<16x128xf32>
    %238 = arith.addf %237, %236 : vector<16x128xf32>
    %239 = arith.divf %237, %238 : vector<16x128xf32>
    %240 = vector.extract_strided_slice %233 {offsets = [0, 128], sizes = [16, 128], strides = [1, 1]} : vector<16x512xf32> to vector<16x128xf32>
    %241 = arith.negf %240 : vector<16x128xf32>
    %242 = math.exp %241 : vector<16x128xf32>
    %cst_70 = arith.constant 1.000000e+00 : f32
    %243 = vector.broadcast %cst_70 : f32 to vector<16x128xf32>
    %244 = arith.addf %243, %242 : vector<16x128xf32>
    %245 = arith.divf %243, %244 : vector<16x128xf32>
    %246 = vector.extract_strided_slice %233 {offsets = [0, 256], sizes = [16, 128], strides = [1, 1]} : vector<16x512xf32> to vector<16x128xf32>
    %247 = math.tanh %246 : vector<16x128xf32>
    %248 = vector.extract_strided_slice %233 {offsets = [0, 384], sizes = [16, 128], strides = [1, 1]} : vector<16x512xf32> to vector<16x128xf32>
    %249 = arith.negf %248 : vector<16x128xf32>
    %250 = math.exp %249 : vector<16x128xf32>
    %cst_71 = arith.constant 1.000000e+00 : f32
    %251 = vector.broadcast %cst_71 : f32 to vector<16x128xf32>
    %252 = arith.addf %251, %250 : vector<16x128xf32>
    %253 = arith.divf %251, %252 : vector<16x128xf32>
    %254 = arith.mulf %245, %219 : vector<16x128xf32>
    %255 = arith.mulf %239, %247 : vector<16x128xf32>
    %256 = arith.addf %254, %255 : vector<16x128xf32>
    %257 = math.tanh %256 : vector<16x128xf32>
    %258 = arith.mulf %253, %257 : vector<16x128xf32>
    %259 = arith.truncf %258 : vector<16x128xf32> to vector<16x128xbf16>
    %260 = arith.index_cast %c6_i32 : i32 to index
    %c0_72 = arith.constant 0 : index
    %c0_73 = arith.constant 0 : index
    %261 = vector.load %arg6[%260, %c0_72, %c0_73] : memref<8x16x128xbf16, #tpu.memory_space<vmem>>, vector<1x16x128xbf16>
    %262 = vector.shape_cast %261 : vector<1x16x128xbf16> to vector<16x128xbf16>
    %263 = vector.shape_cast %259 : vector<16x128xbf16> to vector<1x16x128xbf16>
    tpu.vector_store %arg6[%260, %c0_72, %c0_73], %263 {strides = array<i32>} : memref<8x16x128xbf16, #tpu.memory_space<vmem>>, vector<1x16x128xbf16>,
    %c7_i32 = arith.constant 7 : i32
    %264 = arith.index_cast %c7_i32 : i32 to index
    %c0_74 = arith.constant 0 : index
    %c0_75 = arith.constant 0 : index
    %265 = vector.load %arg2[%264, %c0_74, %c0_75] : memref<8x16x512xf32, #tpu.memory_space<vmem>>, vector<1x16x512xf32>
    %266 = vector.shape_cast %265 : vector<1x16x512xf32> to vector<16x512xf32>
    %267 = arith.truncf %258 : vector<16x128xf32> to vector<16x128xbf16>
    %c0_76 = arith.constant 0 : index
    %c0_77 = arith.constant 0 : index
    %268 = vector.load %arg3[%c0_76, %c0_77] : memref<128x512xbf16, #tpu.memory_space<vmem>>, vector<128x512xbf16>
    %cst_78 = arith.constant dense<0.000000e+00> : vector<16x512xf32>
    %269 = tpu.matmul %267, %268, %cst_78 {dimension_numbers = #tpu.dot_dimension_numbers<[1], [0], [0], [1], [0, 0, 1, 1], [], []>} : vector<16x128xbf16>, vector<128x512xbf16>, vector<16x512xf32> -> vector<16x512xf32>
    %270 = arith.addf %266, %269 : vector<16x512xf32>
    %271 = vector.extract_strided_slice %270 {offsets = [0, 0], sizes = [16, 128], strides = [1, 1]} : vector<16x512xf32> to vector<16x128xf32>
    %272 = arith.negf %271 : vector<16x128xf32>
    %273 = math.exp %272 : vector<16x128xf32>
    %cst_79 = arith.constant 1.000000e+00 : f32
    %274 = vector.broadcast %cst_79 : f32 to vector<16x128xf32>
    %275 = arith.addf %274, %273 : vector<16x128xf32>
    %276 = arith.divf %274, %275 : vector<16x128xf32>
    %277 = vector.extract_strided_slice %270 {offsets = [0, 128], sizes = [16, 128], strides = [1, 1]} : vector<16x512xf32> to vector<16x128xf32>
    %278 = arith.negf %277 : vector<16x128xf32>
    %279 = math.exp %278 : vector<16x128xf32>
    %cst_80 = arith.constant 1.000000e+00 : f32
    %280 = vector.broadcast %cst_80 : f32 to vector<16x128xf32>
    %281 = arith.addf %280, %279 : vector<16x128xf32>
    %282 = arith.divf %280, %281 : vector<16x128xf32>
    %283 = vector.extract_strided_slice %270 {offsets = [0, 256], sizes = [16, 128], strides = [1, 1]} : vector<16x512xf32> to vector<16x128xf32>
    %284 = math.tanh %283 : vector<16x128xf32>
    %285 = vector.extract_strided_slice %270 {offsets = [0, 384], sizes = [16, 128], strides = [1, 1]} : vector<16x512xf32> to vector<16x128xf32>
    %286 = arith.negf %285 : vector<16x128xf32>
    %287 = math.exp %286 : vector<16x128xf32>
    %cst_81 = arith.constant 1.000000e+00 : f32
    %288 = vector.broadcast %cst_81 : f32 to vector<16x128xf32>
    %289 = arith.addf %288, %287 : vector<16x128xf32>
    %290 = arith.divf %288, %289 : vector<16x128xf32>
    %291 = arith.mulf %282, %256 : vector<16x128xf32>
    %292 = arith.mulf %276, %284 : vector<16x128xf32>
    %293 = arith.addf %291, %292 : vector<16x128xf32>
    %294 = math.tanh %293 : vector<16x128xf32>
    %295 = arith.mulf %290, %294 : vector<16x128xf32>
    %296 = arith.truncf %295 : vector<16x128xf32> to vector<16x128xbf16>
    %297 = arith.index_cast %c7_i32 : i32 to index
    %c0_82 = arith.constant 0 : index
    %c0_83 = arith.constant 0 : index
    %298 = vector.load %arg6[%297, %c0_82, %c0_83] : memref<8x16x128xbf16, #tpu.memory_space<vmem>>, vector<1x16x128xbf16>
    %299 = vector.shape_cast %298 : vector<1x16x128xbf16> to vector<16x128xbf16>
    %300 = vector.shape_cast %296 : vector<16x128xbf16> to vector<1x16x128xbf16>
    tpu.vector_store %arg6[%297, %c0_82, %c0_83], %300 {strides = array<i32>} : memref<8x16x128xbf16, #tpu.memory_space<vmem>>, vector<1x16x128xbf16>,
    %c8_i32 = arith.constant 8 : i32
    %c0_84 = arith.constant 0 : index
    %c0_85 = arith.constant 0 : index
    %301 = vector.load %arg9[%c0_84, %c0_85] : memref<16x128xf32, #tpu.memory_space<vmem>>, vector<16x128xf32>
    tpu.vector_store %arg9[%c0_84, %c0_85], %295 {strides = array<i32>} : memref<16x128xf32, #tpu.memory_space<vmem>>, vector<16x128xf32>,
    %c0_86 = arith.constant 0 : index
    %c0_87 = arith.constant 0 : index
    %302 = vector.load %arg10[%c0_86, %c0_87] : memref<16x128xf32, #tpu.memory_space<vmem>>, vector<16x128xf32>
    tpu.vector_store %arg10[%c0_86, %c0_87], %293 {strides = array<i32>} : memref<16x128xf32, #tpu.memory_space<vmem>>, vector<16x128xf32>,
    %c0_i32_88 = arith.constant 0 : i32
    %303 = arith.cmpi eq, %arg1, %c0_i32_88 : i32
    %304 = arith.extui %303 : i1 to i32
    %c0_i32_89 = arith.constant 0 : i32
    %305 = arith.cmpi ne, %304, %c0_i32_89 : i32
    scf.if %305 {
      %c0_90 = arith.constant 0 : index
      %c0_91 = arith.constant 0 : index
      %306 = vector.load %arg7[%c0_90, %c0_91] : memref<16x128xf32, #tpu.memory_space<vmem>>, vector<16x128xf32>
      tpu.vector_store %arg7[%c0_90, %c0_91], %295 {strides = array<i32>} : memref<16x128xf32, #tpu.memory_space<vmem>>, vector<16x128xf32>,
      %c0_92 = arith.constant 0 : index
      %c0_93 = arith.constant 0 : index
      %307 = vector.load %arg8[%c0_92, %c0_93] : memref<16x128xf32, #tpu.memory_space<vmem>>, vector<16x128xf32>
      tpu.vector_store %arg8[%c0_92, %c0_93], %293 {strides = array<i32>} : memref<16x128xf32, #tpu.memory_space<vmem>>, vector<16x128xf32>,
    } else {
    }
    return
  }
  func.func @transform_0(%arg0: i32, %arg1: i32) -> (i32, i32, i32) {
    %c0_i32 = arith.constant 0 : i32
    %c0_i32_0 = arith.constant 0 : i32
    return %arg1, %arg0, %c0_i32 : i32, i32, i32
  }
  func.func @transform_1(%arg0: i32, %arg1: i32) -> (i32, i32) {
    %c0_i32 = arith.constant 0 : i32
    %c0_i32_0 = arith.constant 0 : i32
    %c0_i32_1 = arith.constant 0 : i32
    return %c0_i32, %c0_i32_0 : i32, i32
  }
  func.func @transform_2(%arg0: i32, %arg1: i32) -> (i32, i32) {
    %c0_i32 = arith.constant 0 : i32
    %c0_i32_0 = arith.constant 0 : i32
    return %arg0, %c0_i32 : i32, i32
  }
  func.func @transform_3(%arg0: i32, %arg1: i32) -> (i32, i32) {
    %c0_i32 = arith.constant 0 : i32
    %c0_i32_0 = arith.constant 0 : i32
    return %arg0, %c0_i32 : i32, i32
  }
  func.func @transform_4(%arg0: i32, %arg1: i32) -> (i32, i32, i32) {
    %c0_i32 = arith.constant 0 : i32
    %c0_i32_0 = arith.constant 0 : i32
    return %arg1, %arg0, %c0_i32 : i32, i32, i32
  }
  func.func @transform_5(%arg0: i32, %arg1: i32) -> (i32, i32) {
    %c0_i32 = arith.constant 0 : i32
    %c0_i32_0 = arith.constant 0 : i32
    return %arg0, %c0_i32 : i32, i32
  }
  func.func @transform_6(%arg0: i32, %arg1: i32) -> (i32, i32) {
    %c0_i32 = arith.constant 0 : i32
    %c0_i32_0 = arith.constant 0 : i32
    return %arg0, %c0_i32 : i32, i32
  }
}

module attributes {stable_mosaic.version = 11 : i64} {
  func.func @kernel(%arg0: i32, %arg1: i32, %arg2: memref<8x16x512xf32, #tpu.memory_space<vmem>>, %arg3: memref<128x512xbf16, #tpu.memory_space<vmem>>, %arg4: memref<16x128xf32, #tpu.memory_space<vmem>>, %arg5: memref<16x128xf32, #tpu.memory_space<vmem>>, %arg6: memref<8x16x128xbf16, #tpu.memory_space<vmem>>, %arg7: memref<16x128xf32, #tpu.memory_space<vmem>>, %arg8: memref<16x128xf32, #tpu.memory_space<vmem>>, %arg9: memref<16x128xf32, #tpu.memory_space<vmem>>, %arg10: memref<16x128xf32, #tpu.memory_space<vmem>>) attributes {dimension_semantics = [#tpu.dimension_semantics<parallel>, #tpu.dimension_semantics<arbitrary>], iteration_bounds = array<i64: 1, 1>, scalar_prefetch = 0 : i64, scratch_operands = 2 : i64, tpu.core_type = #tpu.core_type<tc>, window_params = [{transform_indices = @transform_0, window_bounds = array<i64: 8, 16, 512>}, {pipeline_mode = #tpu.pipeline_mode<synchronous>, transform_indices = @transform_1, window_bounds = array<i64: 128, 512>}, {transform_indices = @transform_2, window_bounds = array<i64: 16, 128>}, {transform_indices = @transform_3, window_bounds = array<i64: 16, 128>}, {transform_indices = @transform_4, window_bounds = array<i64: 8, 16, 128>}, {transform_indices = @transform_5, window_bounds = array<i64: 16, 128>}, {transform_indices = @transform_6, window_bounds = array<i64: 16, 128>}]} {
    %c0_i32 = arith.constant 0 : i32
    %0 = arith.cmpi eq, %arg1, %c0_i32 : i32
    %1 = arith.extui %0 : i1 to i32
    %c0_i32_0 = arith.constant 0 : i32
    %2 = arith.cmpi ne, %1, %c0_i32_0 : i32
    scf.if %2 {
      %c0_90 = arith.constant 0 : index
      %c0_91 = arith.constant 0 : index
      %306 = vector.load %arg4[%c0_90, %c0_91] : memref<16x128xf32, #tpu.memory_space<vmem>>, vector<16x128xf32>
      %c0_92 = arith.constant 0 : index
      %c0_93 = arith.constant 0 : index
      %307 = vector.load %arg9[%c0_92, %c0_93] : memref<16x128xf32, #tpu.memory_space<vmem>>, vector<16x128xf32>
      tpu.vector_store %arg9[%c0_92, %c0_93], %306 {strides = array<i32>} : memref<16x128xf32, #tpu.memory_space<vmem>>, vector<16x128xf32>,
      %c0_94 = arith.constant 0 : index
      %c0_95 = arith.constant 0 : index
      %308 = vector.load %arg5[%c0_94, %c0_95] : memref<16x128xf32, #tpu.memory_space<vmem>>, vector<16x128xf32>
      %c0_96 = arith.constant 0 : index
      %c0_97 = arith.constant 0 : index
      %309 = vector.load %arg10[%c0_96, %c0_97] : memref<16x128xf32, #tpu.memory_space<vmem>>, vector<16x128xf32>
      tpu.vector_store %arg10[%c0_96, %c0_97], %308 {strides = array<i32>} : memref<16x128xf32, #tpu.memory_space<vmem>>, vector<16x128xf32>,
    } else {
    }
    %c0 = arith.constant 0 : index
    %c0_1 = arith.constant 0 : index
    %3 = vector.load %arg9[%c0, %c0_1] : memref<16x128xf32, #tpu.memory_space<vmem>>, vector<16x128xf32>
    %c0_2 = arith.constant 0 : index
    %c0_3 = arith.constant 0 : index
    %4 = vector.load %arg10[%c0_2, %c0_3] : memref<16x128xf32, #tpu.memory_space<vmem>>, vector<16x128xf32>
    %c0_i32_4 = arith.constant 0 : i32
    %5 = arith.index_cast %c0_i32_4 : i32 to index
    %c0_5 = arith.constant 0 : index
    %c0_6 = arith.constant 0 : index
    %6 = vector.load %arg2[%5, %c0_5, %c0_6] : memref<8x16x512xf32, #tpu.memory_space<vmem>>, vector<1x16x512xf32>
    %7 = vector.shape_cast %6 : vector<1x16x512xf32> to vector<16x512xf32>
    %8 = arith.truncf %3 : vector<16x128xf32> to vector<16x128xbf16>
    %c0_7 = arith.constant 0 : index
    %c0_8 = arith.constant 0 : index
    %9 = vector.load %arg3[%c0_7, %c0_8] : memref<128x512xbf16, #tpu.memory_space<vmem>>, vector<128x512xbf16>
    %cst = arith.constant dense<0.000000e+00> : vector<16x512xf32>
    %10 = tpu.matmul %8, %9, %cst {dimension_numbers = #tpu.dot_dimension_numbers<[1], [0], [0], [1], [0, 0, 1, 1], [], []>} : vector<16x128xbf16>, vector<128x512xbf16>, vector<16x512xf32> -> vector<16x512xf32>
    %11 = arith.addf %7, %10 : vector<16x512xf32>
    %12 = vector.extract_strided_slice %11 {offsets = [0, 0], sizes = [16, 128], strides = [1, 1]} : vector<16x512xf32> to vector<16x128xf32>
    %13 = arith.negf %12 : vector<16x128xf32>
    %14 = math.exp %13 : vector<16x128xf32>
    %cst_9 = arith.constant 1.000000e+00 : f32
    %15 = vector.broadcast %cst_9 : f32 to vector<16x128xf32>
    %16 = arith.addf %15, %14 : vector<16x128xf32>
    %17 = arith.divf %15, %16 : vector<16x128xf32>
    %18 = vector.extract_strided_slice %11 {offsets = [0, 128], sizes = [16, 128], strides = [1, 1]} : vector<16x512xf32> to vector<16x128xf32>
    %19 = arith.negf %18 : vector<16x128xf32>
    %20 = math.exp %19 : vector<16x128xf32>
    %cst_10 = arith.constant 1.000000e+00 : f32
    %21 = vector.broadcast %cst_10 : f32 to vector<16x128xf32>
    %22 = arith.addf %21, %20 : vector<16x128xf32>
    %23 = arith.divf %21, %22 : vector<16x128xf32>
    %24 = vector.extract_strided_slice %11 {offsets = [0, 256], sizes = [16, 128], strides = [1, 1]} : vector<16x512xf32> to vector<16x128xf32>
    %25 = math.tanh %24 : vector<16x128xf32>
    %26 = vector.extract_strided_slice %11 {offsets = [0, 384], sizes = [16, 128], strides = [1, 1]} : vector<16x512xf32> to vector<16x128xf32>
    %27 = arith.negf %26 : vector<16x128xf32>
    %28 = math.exp %27 : vector<16x128xf32>
    %cst_11 = arith.constant 1.000000e+00 : f32
    %29 = vector.broadcast %cst_11 : f32 to vector<16x128xf32>
    %30 = arith.addf %29, %28 : vector<16x128xf32>
    %31 = arith.divf %29, %30 : vector<16x128xf32>
    %32 = arith.mulf %23, %4 : vector<16x128xf32>
    %33 = arith.mulf %17, %25 : vector<16x128xf32>
    %34 = arith.addf %32, %33 : vector<16x128xf32>
    %35 = math.tanh %34 : vector<16x128xf32>
    %36 = arith.mulf %31, %35 : vector<16x128xf32>
    %37 = arith.truncf %36 : vector<16x128xf32> to vector<16x128xbf16>
    %38 = arith.index_cast %c0_i32_4 : i32 to index
    %c0_12 = arith.constant 0 : index
    %c0_13 = arith.constant 0 : index
    %39 = vector.load %arg6[%38, %c0_12, %c0_13] : memref<8x16x128xbf16, #tpu.memory_space<vmem>>, vector<1x16x128xbf16>
    %40 = vector.shape_cast %39 : vector<1x16x128xbf16> to vector<16x128xbf16>
    %41 = vector.shape_cast %37 : vector<16x128xbf16> to vector<1x16x128xbf16>
    tpu.vector_store %arg6[%38, %c0_12, %c0_13], %41 {strides = array<i32>} : memref<8x16x128xbf16, #tpu.memory_space<vmem>>, vector<1x16x128xbf16>,
    %c1_i32 = arith.constant 1 : i32
    %42 = arith.index_cast %c1_i32 : i32 to index
    %c0_14 = arith.constant 0 : index
    %c0_15 = arith.constant 0 : index
    %43 = vector.load %arg2[%42, %c0_14, %c0_15] : memref<8x16x512xf32, #tpu.memory_space<vmem>>, vector<1x16x512xf32>
    %44 = vector.shape_cast %43 : vector<1x16x512xf32> to vector<16x512xf32>
    %45 = arith.truncf %36 : vector<16x128xf32> to vector<16x128xbf16>
    %c0_16 = arith.constant 0 : index
    %c0_17 = arith.constant 0 : index
    %46 = vector.load %arg3[%c0_16, %c0_17] : memref<128x512xbf16, #tpu.memory_space<vmem>>, vector<128x512xbf16>
    %cst_18 = arith.constant dense<0.000000e+00> : vector<16x512xf32>
    %47 = tpu.matmul %45, %46, %cst_18 {dimension_numbers = #tpu.dot_dimension_numbers<[1], [0], [0], [1], [0, 0, 1, 1], [], []>} : vector<16x128xbf16>, vector<128x512xbf16>, vector<16x512xf32> -> vector<16x512xf32>
    %48 = arith.addf %44, %47 : vector<16x512xf32>
    %49 = vector.extract_strided_slice %48 {offsets = [0, 0], sizes = [16, 128], strides = [1, 1]} : vector<16x512xf32> to vector<16x128xf32>
    %50 = arith.negf %49 : vector<16x128xf32>
    %51 = math.exp %50 : vector<16x128xf32>
    %cst_19 = arith.constant 1.000000e+00 : f32
    %52 = vector.broadcast %cst_19 : f32 to vector<16x128xf32>
    %53 = arith.addf %52, %51 : vector<16x128xf32>
    %54 = arith.divf %52, %53 : vector<16x128xf32>
    %55 = vector.extract_strided_slice %48 {offsets = [0, 128], sizes = [16, 128], strides = [1, 1]} : vector<16x512xf32> to vector<16x128xf32>
    %56 = arith.negf %55 : vector<16x128xf32>
    %57 = math.exp %56 : vector<16x128xf32>
    %cst_20 = arith.constant 1.000000e+00 : f32
    %58 = vector.broadcast %cst_20 : f32 to vector<16x128xf32>
    %59 = arith.addf %58, %57 : vector<16x128xf32>
    %60 = arith.divf %58, %59 : vector<16x128xf32>
    %61 = vector.extract_strided_slice %48 {offsets = [0, 256], sizes = [16, 128], strides = [1, 1]} : vector<16x512xf32> to vector<16x128xf32>
    %62 = math.tanh %61 : vector<16x128xf32>
    %63 = vector.extract_strided_slice %48 {offsets = [0, 384], sizes = [16, 128], strides = [1, 1]} : vector<16x512xf32> to vector<16x128xf32>
    %64 = arith.negf %63 : vector<16x128xf32>
    %65 = math.exp %64 : vector<16x128xf32>
    %cst_21 = arith.constant 1.000000e+00 : f32
    %66 = vector.broadcast %cst_21 : f32 to vector<16x128xf32>
    %67 = arith.addf %66, %65 : vector<16x128xf32>
    %68 = arith.divf %66, %67 : vector<16x128xf32>
    %69 = arith.mulf %60, %34 : vector<16x128xf32>
    %70 = arith.mulf %54, %62 : vector<16x128xf32>
    %71 = arith.addf %69, %70 : vector<16x128xf32>
    %72 = math.tanh %71 : vector<16x128xf32>
    %73 = arith.mulf %68, %72 : vector<16x128xf32>
    %74 = arith.truncf %73 : vector<16x128xf32> to vector<16x128xbf16>
    %75 = arith.index_cast %c1_i32 : i32 to index
    %c0_22 = arith.constant 0 : index
    %c0_23 = arith.constant 0 : index
    %76 = vector.load %arg6[%75, %c0_22, %c0_23] : memref<8x16x128xbf16, #tpu.memory_space<vmem>>, vector<1x16x128xbf16>
    %77 = vector.shape_cast %76 : vector<1x16x128xbf16> to vector<16x128xbf16>
    %78 = vector.shape_cast %74 : vector<16x128xbf16> to vector<1x16x128xbf16>
    tpu.vector_store %arg6[%75, %c0_22, %c0_23], %78 {strides = array<i32>} : memref<8x16x128xbf16, #tpu.memory_space<vmem>>, vector<1x16x128xbf16>,
    %c2_i32 = arith.constant 2 : i32
    %79 = arith.index_cast %c2_i32 : i32 to index
    %c0_24 = arith.constant 0 : index
    %c0_25 = arith.constant 0 : index
    %80 = vector.load %arg2[%79, %c0_24, %c0_25] : memref<8x16x512xf32, #tpu.memory_space<vmem>>, vector<1x16x512xf32>
    %81 = vector.shape_cast %80 : vector<1x16x512xf32> to vector<16x512xf32>
    %82 = arith.truncf %73 : vector<16x128xf32> to vector<16x128xbf16>
    %c0_26 = arith.constant 0 : index
    %c0_27 = arith.constant 0 : index
    %83 = vector.load %arg3[%c0_26, %c0_27] : memref<128x512xbf16, #tpu.memory_space<vmem>>, vector<128x512xbf16>
    %cst_28 = arith.constant dense<0.000000e+00> : vector<16x512xf32>
    %84 = tpu.matmul %82, %83, %cst_28 {dimension_numbers = #tpu.dot_dimension_numbers<[1], [0], [0], [1], [0, 0, 1, 1], [], []>} : vector<16x128xbf16>, vector<128x512xbf16>, vector<16x512xf32> -> vector<16x512xf32>
    %85 = arith.addf %81, %84 : vector<16x512xf32>
    %86 = vector.extract_strided_slice %85 {offsets = [0, 0], sizes = [16, 128], strides = [1, 1]} : vector<16x512xf32> to vector<16x128xf32>
    %87 = arith.negf %86 : vector<16x128xf32>
    %88 = math.exp %87 : vector<16x128xf32>
    %cst_29 = arith.constant 1.000000e+00 : f32
    %89 = vector.broadcast %cst_29 : f32 to vector<16x128xf32>
    %90 = arith.addf %89, %88 : vector<16x128xf32>
    %91 = arith.divf %89, %90 : vector<16x128xf32>
    %92 = vector.extract_strided_slice %85 {offsets = [0, 128], sizes = [16, 128], strides = [1, 1]} : vector<16x512xf32> to vector<16x128xf32>
    %93 = arith.negf %92 : vector<16x128xf32>
    %94 = math.exp %93 : vector<16x128xf32>
    %cst_30 = arith.constant 1.000000e+00 : f32
    %95 = vector.broadcast %cst_30 : f32 to vector<16x128xf32>
    %96 = arith.addf %95, %94 : vector<16x128xf32>
    %97 = arith.divf %95, %96 : vector<16x128xf32>
    %98 = vector.extract_strided_slice %85 {offsets = [0, 256], sizes = [16, 128], strides = [1, 1]} : vector<16x512xf32> to vector<16x128xf32>
    %99 = math.tanh %98 : vector<16x128xf32>
    %100 = vector.extract_strided_slice %85 {offsets = [0, 384], sizes = [16, 128], strides = [1, 1]} : vector<16x512xf32> to vector<16x128xf32>
    %101 = arith.negf %100 : vector<16x128xf32>
    %102 = math.exp %101 : vector<16x128xf32>
    %cst_31 = arith.constant 1.000000e+00 : f32
    %103 = vector.broadcast %cst_31 : f32 to vector<16x128xf32>
    %104 = arith.addf %103, %102 : vector<16x128xf32>
    %105 = arith.divf %103, %104 : vector<16x128xf32>
    %106 = arith.mulf %97, %71 : vector<16x128xf32>
    %107 = arith.mulf %91, %99 : vector<16x128xf32>
    %108 = arith.addf %106, %107 : vector<16x128xf32>
    %109 = math.tanh %108 : vector<16x128xf32>
    %110 = arith.mulf %105, %109 : vector<16x128xf32>
    %111 = arith.truncf %110 : vector<16x128xf32> to vector<16x128xbf16>
    %112 = arith.index_cast %c2_i32 : i32 to index
    %c0_32 = arith.constant 0 : index
    %c0_33 = arith.constant 0 : index
    %113 = vector.load %arg6[%112, %c0_32, %c0_33] : memref<8x16x128xbf16, #tpu.memory_space<vmem>>, vector<1x16x128xbf16>
    %114 = vector.shape_cast %113 : vector<1x16x128xbf16> to vector<16x128xbf16>
    %115 = vector.shape_cast %111 : vector<16x128xbf16> to vector<1x16x128xbf16>
    tpu.vector_store %arg6[%112, %c0_32, %c0_33], %115 {strides = array<i32>} : memref<8x16x128xbf16, #tpu.memory_space<vmem>>, vector<1x16x128xbf16>,
    %c3_i32 = arith.constant 3 : i32
    %116 = arith.index_cast %c3_i32 : i32 to index
    %c0_34 = arith.constant 0 : index
    %c0_35 = arith.constant 0 : index
    %117 = vector.load %arg2[%116, %c0_34, %c0_35] : memref<8x16x512xf32, #tpu.memory_space<vmem>>, vector<1x16x512xf32>
    %118 = vector.shape_cast %117 : vector<1x16x512xf32> to vector<16x512xf32>
    %119 = arith.truncf %110 : vector<16x128xf32> to vector<16x128xbf16>
    %c0_36 = arith.constant 0 : index
    %c0_37 = arith.constant 0 : index
    %120 = vector.load %arg3[%c0_36, %c0_37] : memref<128x512xbf16, #tpu.memory_space<vmem>>, vector<128x512xbf16>
    %cst_38 = arith.constant dense<0.000000e+00> : vector<16x512xf32>
    %121 = tpu.matmul %119, %120, %cst_38 {dimension_numbers = #tpu.dot_dimension_numbers<[1], [0], [0], [1], [0, 0, 1, 1], [], []>} : vector<16x128xbf16>, vector<128x512xbf16>, vector<16x512xf32> -> vector<16x512xf32>
    %122 = arith.addf %118, %121 : vector<16x512xf32>
    %123 = vector.extract_strided_slice %122 {offsets = [0, 0], sizes = [16, 128], strides = [1, 1]} : vector<16x512xf32> to vector<16x128xf32>
    %124 = arith.negf %123 : vector<16x128xf32>
    %125 = math.exp %124 : vector<16x128xf32>
    %cst_39 = arith.constant 1.000000e+00 : f32
    %126 = vector.broadcast %cst_39 : f32 to vector<16x128xf32>
    %127 = arith.addf %126, %125 : vector<16x128xf32>
    %128 = arith.divf %126, %127 : vector<16x128xf32>
    %129 = vector.extract_strided_slice %122 {offsets = [0, 128], sizes = [16, 128], strides = [1, 1]} : vector<16x512xf32> to vector<16x128xf32>
    %130 = arith.negf %129 : vector<16x128xf32>
    %131 = math.exp %130 : vector<16x128xf32>
    %cst_40 = arith.constant 1.000000e+00 : f32
    %132 = vector.broadcast %cst_40 : f32 to vector<16x128xf32>
    %133 = arith.addf %132, %131 : vector<16x128xf32>
    %134 = arith.divf %132, %133 : vector<16x128xf32>
    %135 = vector.extract_strided_slice %122 {offsets = [0, 256], sizes = [16, 128], strides = [1, 1]} : vector<16x512xf32> to vector<16x128xf32>
    %136 = math.tanh %135 : vector<16x128xf32>
    %137 = vector.extract_strided_slice %122 {offsets = [0, 384], sizes = [16, 128], strides = [1, 1]} : vector<16x512xf32> to vector<16x128xf32>
    %138 = arith.negf %137 : vector<16x128xf32>
    %139 = math.exp %138 : vector<16x128xf32>
    %cst_41 = arith.constant 1.000000e+00 : f32
    %140 = vector.broadcast %cst_41 : f32 to vector<16x128xf32>
    %141 = arith.addf %140, %139 : vector<16x128xf32>
    %142 = arith.divf %140, %141 : vector<16x128xf32>
    %143 = arith.mulf %134, %108 : vector<16x128xf32>
    %144 = arith.mulf %128, %136 : vector<16x128xf32>
    %145 = arith.addf %143, %144 : vector<16x128xf32>
    %146 = math.tanh %145 : vector<16x128xf32>
    %147 = arith.mulf %142, %146 : vector<16x128xf32>
    %148 = arith.truncf %147 : vector<16x128xf32> to vector<16x128xbf16>
    %149 = arith.index_cast %c3_i32 : i32 to index
    %c0_42 = arith.constant 0 : index
    %c0_43 = arith.constant 0 : index
    %150 = vector.load %arg6[%149, %c0_42, %c0_43] : memref<8x16x128xbf16, #tpu.memory_space<vmem>>, vector<1x16x128xbf16>
    %151 = vector.shape_cast %150 : vector<1x16x128xbf16> to vector<16x128xbf16>
    %152 = vector.shape_cast %148 : vector<16x128xbf16> to vector<1x16x128xbf16>
    tpu.vector_store %arg6[%149, %c0_42, %c0_43], %152 {strides = array<i32>} : memref<8x16x128xbf16, #tpu.memory_space<vmem>>, vector<1x16x128xbf16>,
    %c4_i32 = arith.constant 4 : i32
    %153 = arith.index_cast %c4_i32 : i32 to index
    %c0_44 = arith.constant 0 : index
    %c0_45 = arith.constant 0 : index
    %154 = vector.load %arg2[%153, %c0_44, %c0_45] : memref<8x16x512xf32, #tpu.memory_space<vmem>>, vector<1x16x512xf32>
    %155 = vector.shape_cast %154 : vector<1x16x512xf32> to vector<16x512xf32>
    %156 = arith.truncf %147 : vector<16x128xf32> to vector<16x128xbf16>
    %c0_46 = arith.constant 0 : index
    %c0_47 = arith.constant 0 : index
    %157 = vector.load %arg3[%c0_46, %c0_47] : memref<128x512xbf16, #tpu.memory_space<vmem>>, vector<128x512xbf16>
    %cst_48 = arith.constant dense<0.000000e+00> : vector<16x512xf32>
    %158 = tpu.matmul %156, %157, %cst_48 {dimension_numbers = #tpu.dot_dimension_numbers<[1], [0], [0], [1], [0, 0, 1, 1], [], []>} : vector<16x128xbf16>, vector<128x512xbf16>, vector<16x512xf32> -> vector<16x512xf32>
    %159 = arith.addf %155, %158 : vector<16x512xf32>
    %160 = vector.extract_strided_slice %159 {offsets = [0, 0], sizes = [16, 128], strides = [1, 1]} : vector<16x512xf32> to vector<16x128xf32>
    %161 = arith.negf %160 : vector<16x128xf32>
    %162 = math.exp %161 : vector<16x128xf32>
    %cst_49 = arith.constant 1.000000e+00 : f32
    %163 = vector.broadcast %cst_49 : f32 to vector<16x128xf32>
    %164 = arith.addf %163, %162 : vector<16x128xf32>
    %165 = arith.divf %163, %164 : vector<16x128xf32>
    %166 = vector.extract_strided_slice %159 {offsets = [0, 128], sizes = [16, 128], strides = [1, 1]} : vector<16x512xf32> to vector<16x128xf32>
    %167 = arith.negf %166 : vector<16x128xf32>
    %168 = math.exp %167 : vector<16x128xf32>
    %cst_50 = arith.constant 1.000000e+00 : f32
    %169 = vector.broadcast %cst_50 : f32 to vector<16x128xf32>
    %170 = arith.addf %169, %168 : vector<16x128xf32>
    %171 = arith.divf %169, %170 : vector<16x128xf32>
    %172 = vector.extract_strided_slice %159 {offsets = [0, 256], sizes = [16, 128], strides = [1, 1]} : vector<16x512xf32> to vector<16x128xf32>
    %173 = math.tanh %172 : vector<16x128xf32>
    %174 = vector.extract_strided_slice %159 {offsets = [0, 384], sizes = [16, 128], strides = [1, 1]} : vector<16x512xf32> to vector<16x128xf32>
    %175 = arith.negf %174 : vector<16x128xf32>
    %176 = math.exp %175 : vector<16x128xf32>
    %cst_51 = arith.constant 1.000000e+00 : f32
    %177 = vector.broadcast %cst_51 : f32 to vector<16x128xf32>
    %178 = arith.addf %177, %176 : vector<16x128xf32>
    %179 = arith.divf %177, %178 : vector<16x128xf32>
    %180 = arith.mulf %171, %145 : vector<16x128xf32>
    %181 = arith.mulf %165, %173 : vector<16x128xf32>
    %182 = arith.addf %180, %181 : vector<16x128xf32>
    %183 = math.tanh %182 : vector<16x128xf32>
    %184 = arith.mulf %179, %183 : vector<16x128xf32>
    %185 = arith.truncf %184 : vector<16x128xf32> to vector<16x128xbf16>
    %186 = arith.index_cast %c4_i32 : i32 to index
    %c0_52 = arith.constant 0 : index
    %c0_53 = arith.constant 0 : index
    %187 = vector.load %arg6[%186, %c0_52, %c0_53] : memref<8x16x128xbf16, #tpu.memory_space<vmem>>, vector<1x16x128xbf16>
    %188 = vector.shape_cast %187 : vector<1x16x128xbf16> to vector<16x128xbf16>
    %189 = vector.shape_cast %185 : vector<16x128xbf16> to vector<1x16x128xbf16>
    tpu.vector_store %arg6[%186, %c0_52, %c0_53], %189 {strides = array<i32>} : memref<8x16x128xbf16, #tpu.memory_space<vmem>>, vector<1x16x128xbf16>,
    %c5_i32 = arith.constant 5 : i32
    %190 = arith.index_cast %c5_i32 : i32 to index
    %c0_54 = arith.constant 0 : index
    %c0_55 = arith.constant 0 : index
    %191 = vector.load %arg2[%190, %c0_54, %c0_55] : memref<8x16x512xf32, #tpu.memory_space<vmem>>, vector<1x16x512xf32>
    %192 = vector.shape_cast %191 : vector<1x16x512xf32> to vector<16x512xf32>
    %193 = arith.truncf %184 : vector<16x128xf32> to vector<16x128xbf16>
    %c0_56 = arith.constant 0 : index
    %c0_57 = arith.constant 0 : index
    %194 = vector.load %arg3[%c0_56, %c0_57] : memref<128x512xbf16, #tpu.memory_space<vmem>>, vector<128x512xbf16>
    %cst_58 = arith.constant dense<0.000000e+00> : vector<16x512xf32>
    %195 = tpu.matmul %193, %194, %cst_58 {dimension_numbers = #tpu.dot_dimension_numbers<[1], [0], [0], [1], [0, 0, 1, 1], [], []>} : vector<16x128xbf16>, vector<128x512xbf16>, vector<16x512xf32> -> vector<16x512xf32>
    %196 = arith.addf %192, %195 : vector<16x512xf32>
    %197 = vector.extract_strided_slice %196 {offsets = [0, 0], sizes = [16, 128], strides = [1, 1]} : vector<16x512xf32> to vector<16x128xf32>
    %198 = arith.negf %197 : vector<16x128xf32>
    %199 = math.exp %198 : vector<16x128xf32>
    %cst_59 = arith.constant 1.000000e+00 : f32
    %200 = vector.broadcast %cst_59 : f32 to vector<16x128xf32>
    %201 = arith.addf %200, %199 : vector<16x128xf32>
    %202 = arith.divf %200, %201 : vector<16x128xf32>
    %203 = vector.extract_strided_slice %196 {offsets = [0, 128], sizes = [16, 128], strides = [1, 1]} : vector<16x512xf32> to vector<16x128xf32>
    %204 = arith.negf %203 : vector<16x128xf32>
    %205 = math.exp %204 : vector<16x128xf32>
    %cst_60 = arith.constant 1.000000e+00 : f32
    %206 = vector.broadcast %cst_60 : f32 to vector<16x128xf32>
    %207 = arith.addf %206, %205 : vector<16x128xf32>
    %208 = arith.divf %206, %207 : vector<16x128xf32>
    %209 = vector.extract_strided_slice %196 {offsets = [0, 256], sizes = [16, 128], strides = [1, 1]} : vector<16x512xf32> to vector<16x128xf32>
    %210 = math.tanh %209 : vector<16x128xf32>
    %211 = vector.extract_strided_slice %196 {offsets = [0, 384], sizes = [16, 128], strides = [1, 1]} : vector<16x512xf32> to vector<16x128xf32>
    %212 = arith.negf %211 : vector<16x128xf32>
    %213 = math.exp %212 : vector<16x128xf32>
    %cst_61 = arith.constant 1.000000e+00 : f32
    %214 = vector.broadcast %cst_61 : f32 to vector<16x128xf32>
    %215 = arith.addf %214, %213 : vector<16x128xf32>
    %216 = arith.divf %214, %215 : vector<16x128xf32>
    %217 = arith.mulf %208, %182 : vector<16x128xf32>
    %218 = arith.mulf %202, %210 : vector<16x128xf32>
    %219 = arith.addf %217, %218 : vector<16x128xf32>
    %220 = math.tanh %219 : vector<16x128xf32>
    %221 = arith.mulf %216, %220 : vector<16x128xf32>
    %222 = arith.truncf %221 : vector<16x128xf32> to vector<16x128xbf16>
    %223 = arith.index_cast %c5_i32 : i32 to index
    %c0_62 = arith.constant 0 : index
    %c0_63 = arith.constant 0 : index
    %224 = vector.load %arg6[%223, %c0_62, %c0_63] : memref<8x16x128xbf16, #tpu.memory_space<vmem>>, vector<1x16x128xbf16>
    %225 = vector.shape_cast %224 : vector<1x16x128xbf16> to vector<16x128xbf16>
    %226 = vector.shape_cast %222 : vector<16x128xbf16> to vector<1x16x128xbf16>
    tpu.vector_store %arg6[%223, %c0_62, %c0_63], %226 {strides = array<i32>} : memref<8x16x128xbf16, #tpu.memory_space<vmem>>, vector<1x16x128xbf16>,
    %c6_i32 = arith.constant 6 : i32
    %227 = arith.index_cast %c6_i32 : i32 to index
    %c0_64 = arith.constant 0 : index
    %c0_65 = arith.constant 0 : index
    %228 = vector.load %arg2[%227, %c0_64, %c0_65] : memref<8x16x512xf32, #tpu.memory_space<vmem>>, vector<1x16x512xf32>
    %229 = vector.shape_cast %228 : vector<1x16x512xf32> to vector<16x512xf32>
    %230 = arith.truncf %221 : vector<16x128xf32> to vector<16x128xbf16>
    %c0_66 = arith.constant 0 : index
    %c0_67 = arith.constant 0 : index
    %231 = vector.load %arg3[%c0_66, %c0_67] : memref<128x512xbf16, #tpu.memory_space<vmem>>, vector<128x512xbf16>
    %cst_68 = arith.constant dense<0.000000e+00> : vector<16x512xf32>
    %232 = tpu.matmul %230, %231, %cst_68 {dimension_numbers = #tpu.dot_dimension_numbers<[1], [0], [0], [1], [0, 0, 1, 1], [], []>} : vector<16x128xbf16>, vector<128x512xbf16>, vector<16x512xf32> -> vector<16x512xf32>
    %233 = arith.addf %229, %232 : vector<16x512xf32>
    %234 = vector.extract_strided_slice %233 {offsets = [0, 0], sizes = [16, 128], strides = [1, 1]} : vector<16x512xf32> to vector<16x128xf32>
    %235 = arith.negf %234 : vector<16x128xf32>
    %236 = math.exp %235 : vector<16x128xf32>
    %cst_69 = arith.constant 1.000000e+00 : f32
    %237 = vector.broadcast %cst_69 : f32 to vector<16x128xf32>
    %238 = arith.addf %237, %236 : vector<16x128xf32>
    %239 = arith.divf %237, %238 : vector<16x128xf32>
    %240 = vector.extract_strided_slice %233 {offsets = [0, 128], sizes = [16, 128], strides = [1, 1]} : vector<16x512xf32> to vector<16x128xf32>
    %241 = arith.negf %240 : vector<16x128xf32>
    %242 = math.exp %241 : vector<16x128xf32>
    %cst_70 = arith.constant 1.000000e+00 : f32
    %243 = vector.broadcast %cst_70 : f32 to vector<16x128xf32>
    %244 = arith.addf %243, %242 : vector<16x128xf32>
    %245 = arith.divf %243, %244 : vector<16x128xf32>
    %246 = vector.extract_strided_slice %233 {offsets = [0, 256], sizes = [16, 128], strides = [1, 1]} : vector<16x512xf32> to vector<16x128xf32>
    %247 = math.tanh %246 : vector<16x128xf32>
    %248 = vector.extract_strided_slice %233 {offsets = [0, 384], sizes = [16, 128], strides = [1, 1]} : vector<16x512xf32> to vector<16x128xf32>
    %249 = arith.negf %248 : vector<16x128xf32>
    %250 = math.exp %249 : vector<16x128xf32>
    %cst_71 = arith.constant 1.000000e+00 : f32
    %251 = vector.broadcast %cst_71 : f32 to vector<16x128xf32>
    %252 = arith.addf %251, %250 : vector<16x128xf32>
    %253 = arith.divf %251, %252 : vector<16x128xf32>
    %254 = arith.mulf %245, %219 : vector<16x128xf32>
    %255 = arith.mulf %239, %247 : vector<16x128xf32>
    %256 = arith.addf %254, %255 : vector<16x128xf32>
    %257 = math.tanh %256 : vector<16x128xf32>
    %258 = arith.mulf %253, %257 : vector<16x128xf32>
    %259 = arith.truncf %258 : vector<16x128xf32> to vector<16x128xbf16>
    %260 = arith.index_cast %c6_i32 : i32 to index
    %c0_72 = arith.constant 0 : index
    %c0_73 = arith.constant 0 : index
    %261 = vector.load %arg6[%260, %c0_72, %c0_73] : memref<8x16x128xbf16, #tpu.memory_space<vmem>>, vector<1x16x128xbf16>
    %262 = vector.shape_cast %261 : vector<1x16x128xbf16> to vector<16x128xbf16>
    %263 = vector.shape_cast %259 : vector<16x128xbf16> to vector<1x16x128xbf16>
    tpu.vector_store %arg6[%260, %c0_72, %c0_73], %263 {strides = array<i32>} : memref<8x16x128xbf16, #tpu.memory_space<vmem>>, vector<1x16x128xbf16>,
    %c7_i32 = arith.constant 7 : i32
    %264 = arith.index_cast %c7_i32 : i32 to index
    %c0_74 = arith.constant 0 : index
    %c0_75 = arith.constant 0 : index
    %265 = vector.load %arg2[%264, %c0_74, %c0_75] : memref<8x16x512xf32, #tpu.memory_space<vmem>>, vector<1x16x512xf32>
    %266 = vector.shape_cast %265 : vector<1x16x512xf32> to vector<16x512xf32>
    %267 = arith.truncf %258 : vector<16x128xf32> to vector<16x128xbf16>
    %c0_76 = arith.constant 0 : index
    %c0_77 = arith.constant 0 : index
    %268 = vector.load %arg3[%c0_76, %c0_77] : memref<128x512xbf16, #tpu.memory_space<vmem>>, vector<128x512xbf16>
    %cst_78 = arith.constant dense<0.000000e+00> : vector<16x512xf32>
    %269 = tpu.matmul %267, %268, %cst_78 {dimension_numbers = #tpu.dot_dimension_numbers<[1], [0], [0], [1], [0, 0, 1, 1], [], []>} : vector<16x128xbf16>, vector<128x512xbf16>, vector<16x512xf32> -> vector<16x512xf32>
    %270 = arith.addf %266, %269 : vector<16x512xf32>
    %271 = vector.extract_strided_slice %270 {offsets = [0, 0], sizes = [16, 128], strides = [1, 1]} : vector<16x512xf32> to vector<16x128xf32>
    %272 = arith.negf %271 : vector<16x128xf32>
    %273 = math.exp %272 : vector<16x128xf32>
    %cst_79 = arith.constant 1.000000e+00 : f32
    %274 = vector.broadcast %cst_79 : f32 to vector<16x128xf32>
    %275 = arith.addf %274, %273 : vector<16x128xf32>
    %276 = arith.divf %274, %275 : vector<16x128xf32>
    %277 = vector.extract_strided_slice %270 {offsets = [0, 128], sizes = [16, 128], strides = [1, 1]} : vector<16x512xf32> to vector<16x128xf32>
    %278 = arith.negf %277 : vector<16x128xf32>
    %279 = math.exp %278 : vector<16x128xf32>
    %cst_80 = arith.constant 1.000000e+00 : f32
    %280 = vector.broadcast %cst_80 : f32 to vector<16x128xf32>
    %281 = arith.addf %280, %279 : vector<16x128xf32>
    %282 = arith.divf %280, %281 : vector<16x128xf32>
    %283 = vector.extract_strided_slice %270 {offsets = [0, 256], sizes = [16, 128], strides = [1, 1]} : vector<16x512xf32> to vector<16x128xf32>
    %284 = math.tanh %283 : vector<16x128xf32>
    %285 = vector.extract_strided_slice %270 {offsets = [0, 384], sizes = [16, 128], strides = [1, 1]} : vector<16x512xf32> to vector<16x128xf32>
    %286 = arith.negf %285 : vector<16x128xf32>
    %287 = math.exp %286 : vector<16x128xf32>
    %cst_81 = arith.constant 1.000000e+00 : f32
    %288 = vector.broadcast %cst_81 : f32 to vector<16x128xf32>
    %289 = arith.addf %288, %287 : vector<16x128xf32>
    %290 = arith.divf %288, %289 : vector<16x128xf32>
    %291 = arith.mulf %282, %256 : vector<16x128xf32>
    %292 = arith.mulf %276, %284 : vector<16x128xf32>
    %293 = arith.addf %291, %292 : vector<16x128xf32>
    %294 = math.tanh %293 : vector<16x128xf32>
    %295 = arith.mulf %290, %294 : vector<16x128xf32>
    %296 = arith.truncf %295 : vector<16x128xf32> to vector<16x128xbf16>
    %297 = arith.index_cast %c7_i32 : i32 to index
    %c0_82 = arith.constant 0 : index
    %c0_83 = arith.constant 0 : index
    %298 = vector.load %arg6[%297, %c0_82, %c0_83] : memref<8x16x128xbf16, #tpu.memory_space<vmem>>, vector<1x16x128xbf16>
    %299 = vector.shape_cast %298 : vector<1x16x128xbf16> to vector<16x128xbf16>
    %300 = vector.shape_cast %296 : vector<16x128xbf16> to vector<1x16x128xbf16>
    tpu.vector_store %arg6[%297, %c0_82, %c0_83], %300 {strides = array<i32>} : memref<8x16x128xbf16, #tpu.memory_space<vmem>>, vector<1x16x128xbf16>,
    %c8_i32 = arith.constant 8 : i32
    %c0_84 = arith.constant 0 : index
    %c0_85 = arith.constant 0 : index
    %301 = vector.load %arg9[%c0_84, %c0_85] : memref<16x128xf32, #tpu.memory_space<vmem>>, vector<16x128xf32>
    tpu.vector_store %arg9[%c0_84, %c0_85], %295 {strides = array<i32>} : memref<16x128xf32, #tpu.memory_space<vmem>>, vector<16x128xf32>,
    %c0_86 = arith.constant 0 : index
    %c0_87 = arith.constant 0 : index
    %302 = vector.load %arg10[%c0_86, %c0_87] : memref<16x128xf32, #tpu.memory_space<vmem>>, vector<16x128xf32>
    tpu.vector_store %arg10[%c0_86, %c0_87], %293 {strides = array<i32>} : memref<16x128xf32, #tpu.memory_space<vmem>>, vector<16x128xf32>,
    %c0_i32_88 = arith.constant 0 : i32
    %303 = arith.cmpi eq, %arg1, %c0_i32_88 : i32
    %304 = arith.extui %303 : i1 to i32
    %c0_i32_89 = arith.constant 0 : i32
    %305 = arith.cmpi ne, %304, %c0_i32_89 : i32
    scf.if %305 {
      %c0_90 = arith.constant 0 : index
      %c0_91 = arith.constant 0 : index
      %306 = vector.load %arg7[%c0_90, %c0_91] : memref<16x128xf32, #tpu.memory_space<vmem>>, vector<16x128xf32>
      tpu.vector_store %arg7[%c0_90, %c0_91], %295 {strides = array<i32>} : memref<16x128xf32, #tpu.memory_space<vmem>>, vector<16x128xf32>,
      %c0_92 = arith.constant 0 : index
      %c0_93 = arith.constant 0 : index
      %307 = vector.load %arg8[%c0_92, %c0_93] : memref<16x128xf32, #tpu.memory_space<vmem>>, vector<16x128xf32>
      tpu.vector_store %arg8[%c0_92, %c0_93], %293 {strides = array<i32>} : memref<16x128xf32, #tpu.memory_space<vmem>>, vector<16x128xf32>,
    } else {
    }
    return
  }
  func.func @transform_0(%arg0: i32, %arg1: i32) -> (i32, i32, i32) {
    %c0_i32 = arith.constant 0 : i32
    %c0_i32_0 = arith.constant 0 : i32
    return %arg1, %arg0, %c0_i32 : i32, i32, i32
  }
  func.func @transform_1(%arg0: i32, %arg1: i32) -> (i32, i32) {
    %c0_i32 = arith.constant 0 : i32
    %c0_i32_0 = arith.constant 0 : i32
    %c0_i32_1 = arith.constant 0 : i32
    return %c0_i32, %c0_i32_0 : i32, i32
  }
  func.func @transform_2(%arg0: i32, %arg1: i32) -> (i32, i32) {
    %c0_i32 = arith.constant 0 : i32
    %c0_i32_0 = arith.constant 0 : i32
    return %arg0, %c0_i32 : i32, i32
  }
  func.func @transform_3(%arg0: i32, %arg1: i32) -> (i32, i32) {
    %c0_i32 = arith.constant 0 : i32
    %c0_i32_0 = arith.constant 0 : i32
    return %arg0, %c0_i32 : i32, i32
  }
  func.func @transform_4(%arg0: i32, %arg1: i32) -> (i32, i32, i32) {
    %c0_i32 = arith.constant 0 : i32
    %c0_i32_0 = arith.constant 0 : i32
    return %arg1, %arg0, %c0_i32 : i32, i32, i32
  }
  func.func @transform_5(%arg0: i32, %arg1: i32) -> (i32, i32) {
    %c0_i32 = arith.constant 0 : i32
    %c0_i32_0 = arith.constant 0 : i32
    return %arg0, %c0_i32 : i32, i32
  }
  func.func @transform_6(%arg0: i32, %arg1: i32) -> (i32, i32) {
    %c0_i32 = arith.constant 0 : i32
    %c0_i32_0 = arith.constant 0 : i32
    return %arg0, %c0_i32 : i32, i32
  }
}

</mosaic_0001>

<llo_original>
// kernel: tpu_custom_call.1
$region0: #{tpu_custom_call.1}
  #allocation0 [shape = 'u32[]', space=smem, size = 0x4, offset = 0x4, fixed_abs, tag = 'smem constant byte address 0x4 - core index']
  #allocation1 [shape = 'u32[144,128]{1,0:T(1,128)}', space=vmem, size = 0x12000, scoped, tag = 'internal scratch']
  #allocation2 [shape = 'f32[16,128]{1,0:T(8,128)}', space=vmem, size = 0x2000, scoped, tag = 'scratch operand']
  #allocation3 [shape = 'f32[16,128]{1,0:T(8,128)}', space=vmem, size = 0x2000, scoped, tag = 'scratch operand']
  %s0 = inlined_call_operand.hbm [shape: f32[8,16,512], index: 0, kind: input, shape index: {}]
  %s1 = inlined_call_operand.hbm [shape: bf16[128,512], index: 1, kind: input, shape index: {}]
  %s2 = inlined_call_operand.hbm [shape: f32[16,128], index: 2, kind: input, shape index: {}]
  %s3 = inlined_call_operand.hbm [shape: f32[16,128], index: 3, kind: input, shape index: {}]
  %s4 = inlined_call_operand.hbm [shape: bf16[8,16,128], index: 4, kind: output, shape index: {0}]
  %s5 = inlined_call_operand.hbm [shape: f32[16,128], index: 5, kind: output, shape index: {1}]
  %s6 = inlined_call_operand.hbm [shape: f32[16,128], index: 6, kind: output, shape index: {2}]
  %7 = xla_tuple %s4, %s5, %s6
  %s8 = sld [smem:[#allocation0]]
  $region66: #{tpu_custom_call.1} parent=0
    _
  %s10 = ssub.s32 1, %s8
  %s11 = scalar_select 0, %s10, %s8
  $region1: #{tpu_custom_call.1} parent=0
    #allocation4 [shape = 'u8[262144]{0}', space=vmem, size = 0x40000, scoped, tag = 'input window, operand 0, single buffered']
    #allocation5 [shape = 's32[1]{0}', space=sflag, size = 0x4, scoped, tag = 'scoped memory for tpu_custom_call.1']
    #allocation6 [shape = 's32[1]{0}', space=sflag, size = 0x4, scoped, tag = 'scoped memory for tpu_custom_call.1']
    #allocation7 [shape = 'u8[131072]{0}', space=vmem, size = 0x20000, scoped, tag = 'input window, operand 1, single buffered']
    #allocation8 [shape = 's32[1]{0}', space=sflag, size = 0x4, scoped, tag = 'scoped memory for tpu_custom_call.1']
    #allocation9 [shape = 'u8[8192]{0}', space=vmem, size = 0x2000, scoped, tag = 'input window, operand 2, single buffered']
    #allocation10 [shape = 'u8[8192]{0}', space=vmem, size = 0x2000, scoped, tag = 'input window, operand 3, single buffered']
    #allocation11 [shape = 's32[1]{0}', space=sflag, size = 0x4, scoped, tag = 'scoped memory for tpu_custom_call.1']
    #allocation12 [shape = 'u8[32768]{0}', space=vmem, size = 0x8000, scoped, tag = 'output window, operand 0, single buffered']
    #allocation13 [shape = 'u8[8192]{0}', space=vmem, size = 0x2000, scoped, tag = 'output window, operand 1, single buffered']
    #allocation14 [shape = 's32[1]{0}', space=sflag, size = 0x4, scoped, tag = 'scoped memory for tpu_custom_call.1']
    #allocation15 [shape = 'u8[8192]{0}', space=vmem, size = 0x2000, scoped, tag = 'output window, operand 2, single buffered']
    %12 = vsyncpa [#allocation5], 0
    %13 = vsyncpa [#allocation8], 0
    %14 = vsyncpa [#allocation11], 0
    %15 = vsyncpa [#allocation6], 0
    %16 = vsyncpa [#allocation14], 0
    // Predicated region
    $region2: #{tpu_custom_call.1} parent=1 // pred_check
      _
    $region3: #{tpu_custom_call.1} parent=1 // pred_check_branch
      %18 = sbr.rel (0) target = $region5
    $region4: #{tpu_custom_call.1} parent=1 // pred_region
      %s20 = ssub.s32 8192, 8192
      %21 = vsyncadd [#allocation5], %s20
      %s22 = sshll.u32 [#allocation4], 4
      %s23 = int_to_ptr.vmem [resolvable:$true] %s22
      %28 = dma.hbm_to_vmem [thread:$0]  %s0, 8192, %s23, [#allocation5], 512, 512, 32
    $region5: #{tpu_custom_call.1} parent=1 // pred_fallthru
      _
    // Predicated region
    $region6: #{tpu_custom_call.1} parent=1 // pred_check
      _
    $region7: #{tpu_custom_call.1} parent=1 // pred_check_branch
      %30 = sbr.rel (0) target = $region9
    $region8: #{tpu_custom_call.1} parent=1 // pred_region
      %s32 = ssub.s32 4096, 4096
      %33 = vsyncadd [#allocation8], %s32
      %s34 = sshll.u32 [#allocation7], 4
      %s35 = int_to_ptr.vmem [resolvable:$true] %s34
      %40 = dma.hbm_to_vmem [thread:$0]  %s1, 4096, %s35, [#allocation8], 256, 256, 16
    $region9: #{tpu_custom_call.1} parent=1 // pred_fallthru
      _
    // Predicated region
    $region10: #{tpu_custom_call.1} parent=1 // pred_check
      _
    $region11: #{tpu_custom_call.1} parent=1 // pred_check_branch
      %42 = sbr.rel (0) target = $region13
    $region12: #{tpu_custom_call.1} parent=1 // pred_region
      %s44 = ssub.s32 256, 256
      %45 = vsyncadd [#allocation8], %s44
      %s46 = sshll.u32 [#allocation9], 4
      %s47 = int_to_ptr.vmem [resolvable:$true] %s46
      %52 = dma.hbm_to_vmem [thread:$0]  %s2, 256, %s47, [#allocation8], 128, 128, 8
    $region13: #{tpu_custom_call.1} parent=1 // pred_fallthru
      _
    // Predicated region
    $region14: #{tpu_custom_call.1} parent=1 // pred_check
      _
    $region15: #{tpu_custom_call.1} parent=1 // pred_check_branch
      %54 = sbr.rel (0) target = $region17
    $region16: #{tpu_custom_call.1} parent=1 // pred_region
      %s56 = ssub.s32 256, 256
      %57 = vsyncadd [#allocation11], %s56
      %s58 = sshll.u32 [#allocation10], 4
      %s59 = int_to_ptr.vmem [resolvable:$true] %s58
      %64 = dma.hbm_to_vmem [thread:$0]  %s3, 256, %s59, [#allocation11], 128, 128, 8
    $region17: #{tpu_custom_call.1} parent=1 // pred_fallthru
      _
    // Predicated region
    $region18: #{tpu_custom_call.1} parent=1 // pred_check
      _
    $region19: #{tpu_custom_call.1} parent=1 // pred_check_branch
      %66 = sbr.rel (0) target = $region21
    $region20: #{tpu_custom_call.1} parent=1 // pred_region
      %67 = dma.done [#allocation5], 8192
    $region21: #{tpu_custom_call.1} parent=1 // pred_fallthru
      _
    // Predicated region
    $region22: #{tpu_custom_call.1} parent=1 // pred_check
      _
    $region23: #{tpu_custom_call.1} parent=1 // pred_check_branch
      %69 = sbr.rel (0) target = $region25
    $region24: #{tpu_custom_call.1} parent=1 // pred_region
      %70 = dma.done [#allocation8], 4096
    $region25: #{tpu_custom_call.1} parent=1 // pred_fallthru
      _
    // Predicated region
    $region26: #{tpu_custom_call.1} parent=1 // pred_check
      _
    $region27: #{tpu_custom_call.1} parent=1 // pred_check_branch
      %72 = sbr.rel (0) target = $region29
    $region28: #{tpu_custom_call.1} parent=1 // pred_region
      %73 = dma.done [#allocation8], 256
    $region29: #{tpu_custom_call.1} parent=1 // pred_fallthru
      _
    // Predicated region
    $region30: #{tpu_custom_call.1} parent=1 // pred_check
      _
    $region31: #{tpu_custom_call.1} parent=1 // pred_check_branch
      %75 = sbr.rel (0) target = $region33
    $region32: #{tpu_custom_call.1} parent=1 // pred_region
      %76 = dma.done [#allocation11], 256
    $region33: #{tpu_custom_call.1} parent=1 // pred_fallthru
      _
    %p78 = scmp.eq.s32.totalorder 0, 0
    // Predicated region
    $region34: #{tpu_custom_call.1} parent=1 // pred_check
      %p79 = pneg %p78
    $region35: #{tpu_custom_call.1} parent=1 // pred_check_branch
      %81 = sbr.rel (%p79) target = $region37
    $region36: #{tpu_custom_call.1} parent=1 // pred_region
      %v82 = vld [vmem:[#allocation9] sm:$0xff]
      %v83 = vld [vmem:[#allocation9 + $0x8] sm:$0xff]
      %84 = vst [vmem:[#allocation2] sm:$0xff] %v82
      %85 = vst [vmem:[#allocation2 + $0x8] sm:$0xff] %v83
      %v86 = vld [vmem:[#allocation10] sm:$0xff]
      %v87 = vld [vmem:[#allocation10 + $0x8] sm:$0xff]
      %88 = vst [vmem:[#allocation3] sm:$0xff] %v86
      %89 = vst [vmem:[#allocation3 + $0x8] sm:$0xff] %v87
    $region37: #{tpu_custom_call.1} parent=1 // pred_fallthru
      _
    %v90 = vld [vmem:[#allocation2] sm:$0xff]
    %v91 = vld [vmem:[#allocation2 + $0x8] sm:$0xff]
    %v92 = vld [vmem:[#allocation3] sm:$0xff]
    %v93 = vld [vmem:[#allocation3 + $0x8] sm:$0xff]
    %v94 = vld [vmem:[#allocation4] sm:$0xff]
    %v95 = vld [vmem:[#allocation4 + $0x8] sm:$0xff]
    %v96 = vld [vmem:[#allocation4 + $0x10] sm:$0xff]
    %v97 = vld [vmem:[#allocation4 + $0x18] sm:$0xff]
    %v98 = vld [vmem:[#allocation4 + $0x20] sm:$0xff]
    %v99 = vld [vmem:[#allocation4 + $0x28] sm:$0xff]
    %v100 = vld [vmem:[#allocation4 + $0x30] sm:$0xff]
    %v101 = vld [vmem:[#allocation4 + $0x38] sm:$0xff]
    %v102 = vpack.c.bf16 %v91, %v90
    %v103 = vld [vmem:[#allocation7] sm:$0xff]
    %v104 = vld [vmem:[#allocation7 + $0x8] sm:$0xff]
    %v105 = vld [vmem:[#allocation7 + $0x10] sm:$0xff]
    %v106 = vld [vmem:[#allocation7 + $0x18] sm:$0xff]
    %v107 = vld [vmem:[#allocation7 + $0x20] sm:$0xff]
    %v108 = vld [vmem:[#allocation7 + $0x28] sm:$0xff]
    %v109 = vld [vmem:[#allocation7 + $0x30] sm:$0xff]
    %v110 = vld [vmem:[#allocation7 + $0x38] sm:$0xff]
    %v111 = vld [vmem:[#allocation7 + $0x40] sm:$0xff]
    %v112 = vld [vmem:[#allocation7 + $0x48] sm:$0xff]
    %v113 = vld [vmem:[#allocation7 + $0x50] sm:$0xff]
    %v114 = vld [vmem:[#allocation7 + $0x58] sm:$0xff]
    %v115 = vld [vmem:[#allocation7 + $0x60] sm:$0xff]
    %v116 = vld [vmem:[#allocation7 + $0x68] sm:$0xff]
    %v117 = vld [vmem:[#allocation7 + $0x70] sm:$0xff]
    %v118 = vld [vmem:[#allocation7 + $0x78] sm:$0xff]
    %v119 = vld [vmem:[#allocation7 + $0x80] sm:$0xff]
    %v120 = vld [vmem:[#allocation7 + $0x88] sm:$0xff]
    %v121 = vld [vmem:[#allocation7 + $0x90] sm:$0xff]
    %v122 = vld [vmem:[#allocation7 + $0x98] sm:$0xff]
    %v123 = vld [vmem:[#allocation7 + $0xa0] sm:$0xff]
    %v124 = vld [vmem:[#allocation7 + $0xa8] sm:$0xff]
    %v125 = vld [vmem:[#allocation7 + $0xb0] sm:$0xff]
    %v126 = vld [vmem:[#allocation7 + $0xb8] sm:$0xff]
    %v127 = vld [vmem:[#allocation7 + $0xc0] sm:$0xff]
    %v128 = vld [vmem:[#allocation7 + $0xc8] sm:$0xff]
    %v129 = vld [vmem:[#allocation7 + $0xd0] sm:$0xff]
    %v130 = vld [vmem:[#allocation7 + $0xd8] sm:$0xff]
    %v131 = vld [vmem:[#allocation7 + $0xe0] sm:$0xff]
    %v132 = vld [vmem:[#allocation7 + $0xe8] sm:$0xff]
    %v133 = vld [vmem:[#allocation7 + $0xf0] sm:$0xff]
    %v134 = vld [vmem:[#allocation7 + $0xf8] sm:$0xff]
    %v167 = vunpack.c.l.b16 %v103
    %v168 = vunpack.c.h.b16 %v103
    %v169 = vunpack.c.l.b16 %v104
    %v170 = vunpack.c.h.b16 %v104
    %v171 = vunpack.c.l.b16 %v105
    %v172 = vunpack.c.h.b16 %v105
    %v173 = vunpack.c.l.b16 %v106
    %v174 = vunpack.c.h.b16 %v106
    %v175 = vunpack.c.l.b16 %v107
    %v176 = vunpack.c.h.b16 %v107
    %v177 = vunpack.c.l.b16 %v108
    %v178 = vunpack.c.h.b16 %v108
    %v179 = vunpack.c.l.b16 %v109
    %v180 = vunpack.c.h.b16 %v109
    %v181 = vunpack.c.l.b16 %v110
    %v182 = vunpack.c.h.b16 %v110
    %v183 = vunpack.c.l.b16 %v111
    %v184 = vunpack.c.h.b16 %v111
    %v185 = vunpack.c.l.b16 %v112
    %v186 = vunpack.c.h.b16 %v112
    %v187 = vunpack.c.l.b16 %v113
    %v188 = vunpack.c.h.b16 %v113
    %v189 = vunpack.c.l.b16 %v114
    %v190 = vunpack.c.h.b16 %v114
    %v191 = vunpack.c.l.b16 %v115
    %v192 = vunpack.c.h.b16 %v115
    %v193 = vunpack.c.l.b16 %v116
    %v194 = vunpack.c.h.b16 %v116
    %v195 = vunpack.c.l.b16 %v117
    %v196 = vunpack.c.h.b16 %v117
    %v197 = vunpack.c.l.b16 %v118
    %v198 = vunpack.c.h.b16 %v118
    %v199 = vunpack.c.l.b16 %v119
    %v200 = vunpack.c.h.b16 %v119
    %v201 = vunpack.c.l.b16 %v120
    %v202 = vunpack.c.h.b16 %v120
    %v203 = vunpack.c.l.b16 %v121
    %v204 = vunpack.c.h.b16 %v121
    %v205 = vunpack.c.l.b16 %v122
    %v206 = vunpack.c.h.b16 %v122
    %v207 = vunpack.c.l.b16 %v123
    %v208 = vunpack.c.h.b16 %v123
    %v209 = vunpack.c.l.b16 %v124
    %v210 = vunpack.c.h.b16 %v124
    %v211 = vunpack.c.l.b16 %v125
    %v212 = vunpack.c.h.b16 %v125
    %v213 = vunpack.c.l.b16 %v126
    %v214 = vunpack.c.h.b16 %v126
    %v215 = vunpack.c.l.b16 %v127
    %v216 = vunpack.c.h.b16 %v127
    %v217 = vunpack.c.l.b16 %v128
    %v218 = vunpack.c.h.b16 %v128
    %v219 = vunpack.c.l.b16 %v129
    %v220 = vunpack.c.h.b16 %v129
    %v221 = vunpack.c.l.b16 %v130
    %v222 = vunpack.c.h.b16 %v130
    %v223 = vunpack.c.l.b16 %v131
    %v224 = vunpack.c.h.b16 %v131
    %v225 = vunpack.c.l.b16 %v132
    %v226 = vunpack.c.h.b16 %v132
    %v227 = vunpack.c.l.b16 %v133
    %v228 = vunpack.c.h.b16 %v133
    %v229 = vunpack.c.l.b16 %v134
    %v230 = vunpack.c.h.b16 %v134
    %v231 = vpack.c.b16 %v171, %v167
    %v232 = vpack.c.b16 %v172, %v168
    %v233 = vpack.c.b16 %v173, %v169
    %v234 = vpack.c.b16 %v174, %v170
    %v235 = vpack.c.b16 %v179, %v175
    %v236 = vpack.c.b16 %v180, %v176
    %v237 = vpack.c.b16 %v181, %v177
    %v238 = vpack.c.b16 %v182, %v178
    %v239 = vpack.c.b16 %v187, %v183
    %v240 = vpack.c.b16 %v188, %v184
    %v241 = vpack.c.b16 %v189, %v185
    %v242 = vpack.c.b16 %v190, %v186
    %v243 = vpack.c.b16 %v195, %v191
    %v244 = vpack.c.b16 %v196, %v192
    %v245 = vpack.c.b16 %v197, %v193
    %v246 = vpack.c.b16 %v198, %v194
    %v247 = vpack.c.b16 %v203, %v199
    %v248 = vpack.c.b16 %v204, %v200
    %v249 = vpack.c.b16 %v205, %v201
    %v250 = vpack.c.b16 %v206, %v202
    %v251 = vpack.c.b16 %v211, %v207
    %v252 = vpack.c.b16 %v212, %v208
    %v253 = vpack.c.b16 %v213, %v209
    %v254 = vpack.c.b16 %v214, %v210
    %v255 = vpack.c.b16 %v219, %v215
    %v256 = vpack.c.b16 %v220, %v216
    %v257 = vpack.c.b16 %v221, %v217
    %v258 = vpack.c.b16 %v222, %v218
    %v259 = vpack.c.b16 %v227, %v223
    %v260 = vpack.c.b16 %v228, %v224
    %v261 = vpack.c.b16 %v229, %v225
    %v262 = vpack.c.b16 %v230, %v226
    %295 = vmatprep.subr.bf16.mxu0 %v232
    %296 = vmatpush1.bf16.msra.mxu0 %v231
    %297 = vmatprep.subr.bf16.mxu0 %v236
    %298 = vmatpush1.bf16.msra.mxu0 %v235
    %299 = vmatprep.subr.bf16.mxu0 %v240
    %300 = vmatpush1.bf16.msra.mxu0 %v239
    %301 = vmatprep.subr.bf16.mxu0 %v244
    %302 = vmatpush1.bf16.msra.mxu0 %v243
    %303 = vmatprep.subr.bf16.mxu0 %v248
    %304 = vmatpush1.bf16.msra.mxu0 %v247
    %305 = vmatprep.subr.bf16.mxu0 %v252
    %306 = vmatpush1.bf16.msra.mxu0 %v251
    %307 = vmatprep.subr.bf16.mxu0 %v256
    %308 = vmatpush1.bf16.msra.mxu0 %v255
    %309 = vmatprep.subr.bf16.mxu0 %v260
    %310 = vmatpush1.bf16.msra.mxu0 %v259
    %311 = vmatprep.subr.bf16.mxu0 0
    %312 = vmatpush1.bf16.msra.mxu0 0
    %313 = vmatprep.subr.bf16.mxu0 0
    %314 = vmatpush1.bf16.msra.mxu0 0
    %315 = vmatprep.subr.bf16.mxu0 0
    %316 = vmatpush1.bf16.msra.mxu0 0
    %317 = vmatprep.subr.bf16.mxu0 0
    %318 = vmatpush1.bf16.msra.mxu0 0
    %319 = vmatprep.subr.bf16.mxu0 0
    %320 = vmatpush1.bf16.msra.mxu0 0
    %321 = vmatprep.subr.bf16.mxu0 0
    %322 = vmatpush1.bf16.msra.mxu0 0
    %323 = vmatprep.subr.bf16.mxu0 0
    %324 = vmatpush1.bf16.msra.mxu0 0
    %325 = vmatprep.subr.bf16.mxu0 0
    %326 = vmatpush1.bf16.msra.mxu0 0
    %327 = vmatprep.mubr.bf16.mxu0 0
    %328 = vmatmul.mubr.bf16.gmra.mrb[0].mxu0 %v102
    %v329 = vpop.f32.mrb[0].mxu0
    %v330 = vadd.f32 0.0, %v329
    %v331 = vpop.f32.mrb[0].mxu0
    %v332 = vadd.f32 0.0, %v331
    %v333 = vpop.f32.mrb[0].mxu0
    %v334 = vadd.f32 0.0, %v333
    %v335 = vpop.f32.mrb[0].mxu0
    %v336 = vadd.f32 0.0, %v335
    %337 = vdwg.mxu0
    %338 = vmatprep.subr.bf16.mxu0 %v234
    %339 = vmatpush1.bf16.msra.mxu0 %v233
    %340 = vmatprep.subr.bf16.mxu0 %v238
    %341 = vmatpush1.bf16.msra.mxu0 %v237
    %342 = vmatprep.subr.bf16.mxu0 %v242
    %343 = vmatpush1.bf16.msra.mxu0 %v241
    %344 = vmatprep.subr.bf16.mxu0 %v246
    %345 = vmatpush1.bf16.msra.mxu0 %v245
    %346 = vmatprep.subr.bf16.mxu0 %v250
    %347 = vmatpush1.bf16.msra.mxu0 %v249
    %348 = vmatprep.subr.bf16.mxu0 %v254
    %349 = vmatpush1.bf16.msra.mxu0 %v253
    %350 = vmatprep.subr.bf16.mxu0 %v258
    %351 = vmatpush1.bf16.msra.mxu0 %v257
    %352 = vmatprep.subr.bf16.mxu0 %v262
    %353 = vmatpush1.bf16.msra.mxu0 %v261
    %354 = vmatprep.subr.bf16.mxu0 0
    %355 = vmatpush1.bf16.msra.mxu0 0
    %356 = vmatprep.subr.bf16.mxu0 0
    %357 = vmatpush1.bf16.msra.mxu0 0
    %358 = vmatprep.subr.bf16.mxu0 0
    %359 = vmatpush1.bf16.msra.mxu0 0
    %360 = vmatprep.subr.bf16.mxu0 0
    %361 = vmatpush1.bf16.msra.mxu0 0
    %362 = vmatprep.subr.bf16.mxu0 0
    %363 = vmatpush1.bf16.msra.mxu0 0
    %364 = vmatprep.subr.bf16.mxu0 0
    %365 = vmatpush1.bf16.msra.mxu0 0
    %366 = vmatprep.subr.bf16.mxu0 0
    %367 = vmatpush1.bf16.msra.mxu0 0
    %368 = vmatprep.subr.bf16.mxu0 0
    %369 = vmatpush1.bf16.msra.mxu0 0
    %370 = vmatprep.mubr.bf16.mxu0 0
    %371 = vmatmul.mubr.bf16.gmra.mrb[0].mxu0 %v102
    %v372 = vpop.f32.mrb[0].mxu0
    %v373 = vadd.f32 0.0, %v372
    %v374 = vpop.f32.mrb[0].mxu0
    %v375 = vadd.f32 0.0, %v374
    %v376 = vpop.f32.mrb[0].mxu0
    %v377 = vadd.f32 0.0, %v376
    %v378 = vpop.f32.mrb[0].mxu0
    %v379 = vadd.f32 0.0, %v378
    %380 = vdwg.mxu0
    %v381 = vadd.f32 %v94, %v330
    %v382 = vadd.f32 %v95, %v332
    %v383 = vadd.f32 %v96, %v373
    %v384 = vadd.f32 %v97, %v375
    %v385 = vadd.f32 %v98, %v334
    %v386 = vadd.f32 %v99, %v336
    %v387 = vadd.f32 %v100, %v377
    %v388 = vadd.f32 %v101, %v379
    %v389 = vxor.u32 %v381, 2147483648
    %v390 = vxor.u32 %v385, 2147483648
    %v391 = vmul.f32 %v389, 1.442695
    %v392 = vpow.pop %v391
    %v393 = vmul.f32 %v390, 1.442695
    %v394 = vpow.pop %v393
    %v395 = vadd.f32 %v392, 1.0
    %v396 = vadd.f32 %v394, 1.0
    %v397 = vrcp.pop %v395
    %v398 = vmul.f32 1.0, %v397
    %v399 = vrcp.pop %v396
    %v400 = vmul.f32 1.0, %v399
    %v401 = vxor.u32 %v382, 2147483648
    %v402 = vxor.u32 %v386, 2147483648
    %v403 = vmul.f32 %v401, 1.442695
    %v404 = vpow.pop %v403
    %v405 = vmul.f32 %v402, 1.442695
    %v406 = vpow.pop %v405
    %v407 = vadd.f32 %v404, 1.0
    %v408 = vadd.f32 %v406, 1.0
    %v409 = vrcp.pop %v407
    %v410 = vmul.f32 1.0, %v409
    %v411 = vrcp.pop %v408
    %v412 = vmul.f32 1.0, %v411
    %v413 = vtanh.pop %v383
    %v414 = vtanh.pop %v387
    %v415 = vxor.u32 %v384, 2147483648
    %v416 = vxor.u32 %v388, 2147483648
    %v417 = vmul.f32 %v415, 1.442695
    %v418 = vpow.pop %v417
    %v419 = vmul.f32 %v416, 1.442695
    %v420 = vpow.pop %v419
    %v421 = vadd.f32 %v418, 1.0
    %v422 = vadd.f32 %v420, 1.0
    %v423 = vrcp.pop %v421
    %v424 = vmul.f32 1.0, %v423
    %v425 = vrcp.pop %v422
    %v426 = vmul.f32 1.0, %v425
    %v427 = vmul.f32 %v410, %v92
    %v428 = vmul.f32 %v412, %v93
    %v429 = vmul.f32 %v398, %v413
    %v430 = vmul.f32 %v400, %v414
    %v431 = vadd.f32 %v427, %v429
    %v432 = vadd.f32 %v428, %v430
    %v433 = vtanh.pop %v431
    %v434 = vtanh.pop %v432
    %v435 = vmul.f32 %v424, %v433
    %v436 = vmul.f32 %v426, %v434
    %v437 = vpack.c.bf16 %v436, %v435
    %v439 = vunpack.c.l.b16 %v437
    %v440 = vunpack.c.h.b16 %v437
    %v441 = vpack.c.b16 %v439, %v439
    %v442 = vpack.c.b16 %v440, %v440
    %445 = vst [vmem:[#allocation12] sm:$0xf] %v441
    %446 = vst [vmem:[#allocation12 + $0x4] sm:$0xf] %v442
    %s447 = scalar_lea.vmem [#allocation4], 64
    %v448 = vld [vmem:[%s447] sm:$0xff]
    %v449 = vld [vmem:[%s447 + $0x8] sm:$0xff]
    %v450 = vld [vmem:[%s447 + $0x10] sm:$0xff]
    %v451 = vld [vmem:[%s447 + $0x18] sm:$0xff]
    %v452 = vld [vmem:[%s447 + $0x20] sm:$0xff]
    %v453 = vld [vmem:[%s447 + $0x28] sm:$0xff]
    %v454 = vld [vmem:[%s447 + $0x30] sm:$0xff]
    %v455 = vld [vmem:[%s447 + $0x38] sm:$0xff]
    %v456 = vld [vmem:[#allocation7] sm:$0xff]
    %v457 = vld [vmem:[#allocation7 + $0x8] sm:$0xff]
    %v458 = vld [vmem:[#allocation7 + $0x10] sm:$0xff]
    %v459 = vld [vmem:[#allocation7 + $0x18] sm:$0xff]
    %v460 = vld [vmem:[#allocation7 + $0x20] sm:$0xff]
    %v461 = vld [vmem:[#allocation7 + $0x28] sm:$0xff]
    %v462 = vld [vmem:[#allocation7 + $0x30] sm:$0xff]
    %v463 = vld [vmem:[#allocation7 + $0x38] sm:$0xff]
    %v464 = vld [vmem:[#allocation7 + $0x40] sm:$0xff]
    %v465 = vld [vmem:[#allocation7 + $0x48] sm:$0xff]
    %v466 = vld [vmem:[#allocation7 + $0x50] sm:$0xff]
    %v467 = vld [vmem:[#allocation7 + $0x58] sm:$0xff]
    %v468 = vld [vmem:[#allocation7 + $0x60] sm:$0xff]
    %v469 = vld [vmem:[#allocation7 + $0x68] sm:$0xff]
    %v470 = vld [vmem:[#allocation7 + $0x70] sm:$0xff]
    %v471 = vld [vmem:[#allocation7 + $0x78] sm:$0xff]
    %v472 = vld [vmem:[#allocation7 + $0x80] sm:$0xff]
    %v473 = vld [vmem:[#allocation7 + $0x88] sm:$0xff]
    %v474 = vld [vmem:[#allocation7 + $0x90] sm:$0xff]
    %v475 = vld [vmem:[#allocation7 + $0x98] sm:$0xff]
    %v476 = vld [vmem:[#allocation7 + $0xa0] sm:$0xff]
    %v477 = vld [vmem:[#allocation7 + $0xa8] sm:$0xff]
    %v478 = vld [vmem:[#allocation7 + $0xb0] sm:$0xff]
    %v479 = vld [vmem:[#allocation7 + $0xb8] sm:$0xff]
    %v480 = vld [vmem:[#allocation7 + $0xc0] sm:$0xff]
    %v481 = vld [vmem:[#allocation7 + $0xc8] sm:$0xff]
    %v482 = vld [vmem:[#allocation7 + $0xd0] sm:$0xff]
    %v483 = vld [vmem:[#allocation7 + $0xd8] sm:$0xff]
    %v484 = vld [vmem:[#allocation7 + $0xe0] sm:$0xff]
    %v485 = vld [vmem:[#allocation7 + $0xe8] sm:$0xff]
    %v486 = vld [vmem:[#allocation7 + $0xf0] sm:$0xff]
    %v487 = vld [vmem:[#allocation7 + $0xf8] sm:$0xff]
    %v520 = vunpack.c.l.b16 %v456
    %v521 = vunpack.c.h.b16 %v456
    %v522 = vunpack.c.l.b16 %v457
    %v523 = vunpack.c.h.b16 %v457
    %v524 = vunpack.c.l.b16 %v458
    %v525 = vunpack.c.h.b16 %v458
    %v526 = vunpack.c.l.b16 %v459
    %v527 = vunpack.c.h.b16 %v459
    %v528 = vunpack.c.l.b16 %v460
    %v529 = vunpack.c.h.b16 %v460
    %v530 = vunpack.c.l.b16 %v461
    %v531 = vunpack.c.h.b16 %v461
    %v532 = vunpack.c.l.b16 %v462
    %v533 = vunpack.c.h.b16 %v462
    %v534 = vunpack.c.l.b16 %v463
    %v535 = vunpack.c.h.b16 %v463
    %v536 = vunpack.c.l.b16 %v464
    %v537 = vunpack.c.h.b16 %v464
    %v538 = vunpack.c.l.b16 %v465
    %v539 = vunpack.c.h.b16 %v465
    %v540 = vunpack.c.l.b16 %v466
    %v541 = vunpack.c.h.b16 %v466
    %v542 = vunpack.c.l.b16 %v467
    %v543 = vunpack.c.h.b16 %v467
    %v544 = vunpack.c.l.b16 %v468
    %v545 = vunpack.c.h.b16 %v468
    %v546 = vunpack.c.l.b16 %v469
    %v547 = vunpack.c.h.b16 %v469
    %v548 = vunpack.c.l.b16 %v470
    %v549 = vunpack.c.h.b16 %v470
    %v550 = vunpack.c.l.b16 %v471
    %v551 = vunpack.c.h.b16 %v471
    %v552 = vunpack.c.l.b16 %v472
    %v553 = vunpack.c.h.b16 %v472
    %v554 = vunpack.c.l.b16 %v473
    %v555 = vunpack.c.h.b16 %v473
    %v556 = vunpack.c.l.b16 %v474
    %v557 = vunpack.c.h.b16 %v474
    %v558 = vunpack.c.l.b16 %v475
    %v559 = vunpack.c.h.b16 %v475
    %v560 = vunpack.c.l.b16 %v476
    %v561 = vunpack.c.h.b16 %v476
    %v562 = vunpack.c.l.b16 %v477
    %v563 = vunpack.c.h.b16 %v477
    %v564 = vunpack.c.l.b16 %v478
    %v565 = vunpack.c.h.b16 %v478
    %v566 = vunpack.c.l.b16 %v479
    %v567 = vunpack.c.h.b16 %v479
    %v568 = vunpack.c.l.b16 %v480
    %v569 = vunpack.c.h.b16 %v480
    %v570 = vunpack.c.l.b16 %v481
    %v571 = vunpack.c.h.b16 %v481
    %v572 = vunpack.c.l.b16 %v482
    %v573 = vunpack.c.h.b16 %v482
    %v574 = vunpack.c.l.b16 %v483
    %v575 = vunpack.c.h.b16 %v483
    %v576 = vunpack.c.l.b16 %v484
    %v577 = vunpack.c.h.b16 %v484
    %v578 = vunpack.c.l.b16 %v485
    %v579 = vunpack.c.h.b16 %v485
    %v580 = vunpack.c.l.b16 %v486
    %v581 = vunpack.c.h.b16 %v486
    %v582 = vunpack.c.l.b16 %v487
    %v583 = vunpack.c.h.b16 %v487
    %v584 = vpack.c.b16 %v524, %v520
    %v585 = vpack.c.b16 %v525, %v521
    %v586 = vpack.c.b16 %v526, %v522
    %v587 = vpack.c.b16 %v527, %v523
    %v588 = vpack.c.b16 %v532, %v528
    %v589 = vpack.c.b16 %v533, %v529
    %v590 = vpack.c.b16 %v534, %v530
    %v591 = vpack.c.b16 %v535, %v531
    %v592 = vpack.c.b16 %v540, %v536
    %v593 = vpack.c.b16 %v541, %v537
    %v594 = vpack.c.b16 %v542, %v538
    %v595 = vpack.c.b16 %v543, %v539
    %v596 = vpack.c.b16 %v548, %v544
    %v597 = vpack.c.b16 %v549, %v545
    %v598 = vpack.c.b16 %v550, %v546
    %v599 = vpack.c.b16 %v551, %v547
    %v600 = vpack.c.b16 %v556, %v552
    %v601 = vpack.c.b16 %v557, %v553
    %v602 = vpack.c.b16 %v558, %v554
    %v603 = vpack.c.b16 %v559, %v555
    %v604 = vpack.c.b16 %v564, %v560
    %v605 = vpack.c.b16 %v565, %v561
    %v606 = vpack.c.b16 %v566, %v562
    %v607 = vpack.c.b16 %v567, %v563
    %v608 = vpack.c.b16 %v572, %v568
    %v609 = vpack.c.b16 %v573, %v569
    %v610 = vpack.c.b16 %v574, %v570
    %v611 = vpack.c.b16 %v575, %v571
    %v612 = vpack.c.b16 %v580, %v576
    %v613 = vpack.c.b16 %v581, %v577
    %v614 = vpack.c.b16 %v582, %v578
    %v615 = vpack.c.b16 %v583, %v579
    %648 = vmatprep.subr.bf16.mxu0 %v585
    %649 = vmatpush1.bf16.msra.mxu0 %v584
    %650 = vmatprep.subr.bf16.mxu0 %v589
    %651 = vmatpush1.bf16.msra.mxu0 %v588
    %652 = vmatprep.subr.bf16.mxu0 %v593
    %653 = vmatpush1.bf16.msra.mxu0 %v592
    %654 = vmatprep.subr.bf16.mxu0 %v597
    %655 = vmatpush1.bf16.msra.mxu0 %v596
    %656 = vmatprep.subr.bf16.mxu0 %v601
    %657 = vmatpush1.bf16.msra.mxu0 %v600
    %658 = vmatprep.subr.bf16.mxu0 %v605
    %659 = vmatpush1.bf16.msra.mxu0 %v604
    %660 = vmatprep.subr.bf16.mxu0 %v609
    %661 = vmatpush1.bf16.msra.mxu0 %v608
    %662 = vmatprep.subr.bf16.mxu0 %v613
    %663 = vmatpush1.bf16.msra.mxu0 %v612
    %664 = vmatprep.subr.bf16.mxu0 0
    %665 = vmatpush1.bf16.msra.mxu0 0
    %666 = vmatprep.subr.bf16.mxu0 0
    %667 = vmatpush1.bf16.msra.mxu0 0
    %668 = vmatprep.subr.bf16.mxu0 0
    %669 = vmatpush1.bf16.msra.mxu0 0
    %670 = vmatprep.subr.bf16.mxu0 0
    %671 = vmatpush1.bf16.msra.mxu0 0
    %672 = vmatprep.subr.bf16.mxu0 0
    %673 = vmatpush1.bf16.msra.mxu0 0
    %674 = vmatprep.subr.bf16.mxu0 0
    %675 = vmatpush1.bf16.msra.mxu0 0
    %676 = vmatprep.subr.bf16.mxu0 0
    %677 = vmatpush1.bf16.msra.mxu0 0
    %678 = vmatprep.subr.bf16.mxu0 0
    %679 = vmatpush1.bf16.msra.mxu0 0
    %680 = vmatprep.mubr.bf16.mxu0 0
    %681 = vmatmul.mubr.bf16.gmra.mrb[0].mxu0 %v437
    %v682 = vpop.f32.mrb[0].mxu0
    %v683 = vadd.f32 0.0, %v682
    %v684 = vpop.f32.mrb[0].mxu0
    %v685 = vadd.f32 0.0, %v684
    %v686 = vpop.f32.mrb[0].mxu0
    %v687 = vadd.f32 0.0, %v686
    %v688 = vpop.f32.mrb[0].mxu0
    %v689 = vadd.f32 0.0, %v688
    %690 = vdwg.mxu0
    %691 = vmatprep.subr.bf16.mxu0 %v587
    %692 = vmatpush1.bf16.msra.mxu0 %v586
    %693 = vmatprep.subr.bf16.mxu0 %v591
    %694 = vmatpush1.bf16.msra.mxu0 %v590
    %695 = vmatprep.subr.bf16.mxu0 %v595
    %696 = vmatpush1.bf16.msra.mxu0 %v594
    %697 = vmatprep.subr.bf16.mxu0 %v599
    %698 = vmatpush1.bf16.msra.mxu0 %v598
    %699 = vmatprep.subr.bf16.mxu0 %v603
    %700 = vmatpush1.bf16.msra.mxu0 %v602
    %701 = vmatprep.subr.bf16.mxu0 %v607
    %702 = vmatpush1.bf16.msra.mxu0 %v606
    %703 = vmatprep.subr.bf16.mxu0 %v611
    %704 = vmatpush1.bf16.msra.mxu0 %v610
    %705 = vmatprep.subr.bf16.mxu0 %v615
    %706 = vmatpush1.bf16.msra.mxu0 %v614
    %707 = vmatprep.subr.bf16.mxu0 0
    %708 = vmatpush1.bf16.msra.mxu0 0
    %709 = vmatprep.subr.bf16.mxu0 0
    %710 = vmatpush1.bf16.msra.mxu0 0
    %711 = vmatprep.subr.bf16.mxu0 0
    %712 = vmatpush1.bf16.msra.mxu0 0
    %713 = vmatprep.subr.bf16.mxu0 0
    %714 = vmatpush1.bf16.msra.mxu0 0
    %715 = vmatprep.subr.bf16.mxu0 0
    %716 = vmatpush1.bf16.msra.mxu0 0
    %717 = vmatprep.subr.bf16.mxu0 0
    %718 = vmatpush1.bf16.msra.mxu0 0
    %719 = vmatprep.subr.bf16.mxu0 0
    %720 = vmatpush1.bf16.msra.mxu0 0
    %721 = vmatprep.subr.bf16.mxu0 0
    %722 = vmatpush1.bf16.msra.mxu0 0
    %723 = vmatprep.mubr.bf16.mxu0 0
    %724 = vmatmul.mubr.bf16.gmra.mrb[0].mxu0 %v437
    %v725 = vpop.f32.mrb[0].mxu0
    %v726 = vadd.f32 0.0, %v725
    %v727 = vpop.f32.mrb[0].mxu0
    %v728 = vadd.f32 0.0, %v727
    %v729 = vpop.f32.mrb[0].mxu0
    %v730 = vadd.f32 0.0, %v729
    %v731 = vpop.f32.mrb[0].mxu0
    %v732 = vadd.f32 0.0, %v731
    %733 = vdwg.mxu0
    %v734 = vadd.f32 %v448, %v683
    %v735 = vadd.f32 %v449, %v685
    %v736 = vadd.f32 %v450, %v726
    %v737 = vadd.f32 %v451, %v728
    %v738 = vadd.f32 %v452, %v687
    %v739 = vadd.f32 %v453, %v689
    %v740 = vadd.f32 %v454, %v730
    %v741 = vadd.f32 %v455, %v732
    %v742 = vxor.u32 %v734, 2147483648
    %v743 = vxor.u32 %v738, 2147483648
    %v744 = vmul.f32 %v742, 1.442695
    %v745 = vpow.pop %v744
    %v746 = vmul.f32 %v743, 1.442695
    %v747 = vpow.pop %v746
    %v748 = vadd.f32 %v745, 1.0
    %v749 = vadd.f32 %v747, 1.0
    %v750 = vrcp.pop %v748
    %v751 = vmul.f32 1.0, %v750
    %v752 = vrcp.pop %v749
    %v753 = vmul.f32 1.0, %v752
    %v754 = vxor.u32 %v735, 2147483648
    %v755 = vxor.u32 %v739, 2147483648
    %v756 = vmul.f32 %v754, 1.442695
    %v757 = vpow.pop %v756
    %v758 = vmul.f32 %v755, 1.442695
    %v759 = vpow.pop %v758
    %v760 = vadd.f32 %v757, 1.0
    %v761 = vadd.f32 %v759, 1.0
    %v762 = vrcp.pop %v760
    %v763 = vmul.f32 1.0, %v762
    %v764 = vrcp.pop %v761
    %v765 = vmul.f32 1.0, %v764
    %v766 = vtanh.pop %v736
    %v767 = vtanh.pop %v740
    %v768 = vxor.u32 %v737, 2147483648
    %v769 = vxor.u32 %v741, 2147483648
    %v770 = vmul.f32 %v768, 1.442695
    %v771 = vpow.pop %v770
    %v772 = vmul.f32 %v769, 1.442695
    %v773 = vpow.pop %v772
    %v774 = vadd.f32 %v771, 1.0
    %v775 = vadd.f32 %v773, 1.0
    %v776 = vrcp.pop %v774
    %v777 = vmul.f32 1.0, %v776
    %v778 = vrcp.pop %v775
    %v779 = vmul.f32 1.0, %v778
    %v780 = vmul.f32 %v763, %v431
    %v781 = vmul.f32 %v765, %v432
    %v782 = vmul.f32 %v751, %v766
    %v783 = vmul.f32 %v753, %v767
    %v784 = vadd.f32 %v780, %v782
    %v785 = vadd.f32 %v781, %v783
    %v786 = vtanh.pop %v784
    %v787 = vtanh.pop %v785
    %v788 = vmul.f32 %v777, %v786
    %v789 = vmul.f32 %v779, %v787
    %v790 = vpack.c.bf16 %v789, %v788
    %v792 = vunpack.c.l.b16 %v790
    %v793 = vunpack.c.h.b16 %v790
    %v794 = vpack.c.b16 %v792, %v792
    %v795 = vpack.c.b16 %v793, %v793
    %s798 = scalar_lea.vmem [#allocation12], 8
    %799 = vst [vmem:[%s798] sm:$0xf] %v794
    %800 = vst [vmem:[%s798 + $0x4] sm:$0xf] %v795
    %s801 = scalar_lea.vmem [#allocation4], 128
    %v802 = vld [vmem:[%s801] sm:$0xff]
    %v803 = vld [vmem:[%s801 + $0x8] sm:$0xff]
    %v804 = vld [vmem:[%s801 + $0x10] sm:$0xff]
    %v805 = vld [vmem:[%s801 + $0x18] sm:$0xff]
    %v806 = vld [vmem:[%s801 + $0x20] sm:$0xff]
    %v807 = vld [vmem:[%s801 + $0x28] sm:$0xff]
    %v808 = vld [vmem:[%s801 + $0x30] sm:$0xff]
    %v809 = vld [vmem:[%s801 + $0x38] sm:$0xff]
    %v810 = vld [vmem:[#allocation7] sm:$0xff]
    %v811 = vld [vmem:[#allocation7 + $0x8] sm:$0xff]
    %v812 = vld [vmem:[#allocation7 + $0x10] sm:$0xff]
    %v813 = vld [vmem:[#allocation7 + $0x18] sm:$0xff]
    %v814 = vld [vmem:[#allocation7 + $0x20] sm:$0xff]
    %v815 = vld [vmem:[#allocation7 + $0x28] sm:$0xff]
    %v816 = vld [vmem:[#allocation7 + $0x30] sm:$0xff]
    %v817 = vld [vmem:[#allocation7 + $0x38] sm:$0xff]
    %v818 = vld [vmem:[#allocation7 + $0x40] sm:$0xff]
    %v819 = vld [vmem:[#allocation7 + $0x48] sm:$0xff]
    %v820 = vld [vmem:[#allocation7 + $0x50] sm:$0xff]
    %v821 = vld [vmem:[#allocation7 + $0x58] sm:$0xff]
    %v822 = vld [vmem:[#allocation7 + $0x60] sm:$0xff]
    %v823 = vld [vmem:[#allocation7 + $0x68] sm:$0xff]
    %v824 = vld [vmem:[#allocation7 + $0x70] sm:$0xff]
    %v825 = vld [vmem:[#allocation7 + $0x78] sm:$0xff]
    %v826 = vld [vmem:[#allocation7 + $0x80] sm:$0xff]
    %v827 = vld [vmem:[#allocation7 + $0x88] sm:$0xff]
    %v828 = vld [vmem:[#allocation7 + $0x90] sm:$0xff]
    %v829 = vld [vmem:[#allocation7 + $0x98] sm:$0xff]
    %v830 = vld [vmem:[#allocation7 + $0xa0] sm:$0xff]
    %v831 = vld [vmem:[#allocation7 + $0xa8] sm:$0xff]
    %v832 = vld [vmem:[#allocation7 + $0xb0] sm:$0xff]
    %v833 = vld [vmem:[#allocation7 + $0xb8] sm:$0xff]
    %v834 = vld [vmem:[#allocation7 + $0xc0] sm:$0xff]
    %v835 = vld [vmem:[#allocation7 + $0xc8] sm:$0xff]
    %v836 = vld [vmem:[#allocation7 + $0xd0] sm:$0xff]
    %v837 = vld [vmem:[#allocation7 + $0xd8] sm:$0xff]
    %v838 = vld [vmem:[#allocation7 + $0xe0] sm:$0xff]
    %v839 = vld [vmem:[#allocation7 + $0xe8] sm:$0xff]
    %v840 = vld [vmem:[#allocation7 + $0xf0] sm:$0xff]
    %v841 = vld [vmem:[#allocation7 + $0xf8] sm:$0xff]
    %v874 = vunpack.c.l.b16 %v810
    %v875 = vunpack.c.h.b16 %v810
    %v876 = vunpack.c.l.b16 %v811
    %v877 = vunpack.c.h.b16 %v811
    %v878 = vunpack.c.l.b16 %v812
    %v879 = vunpack.c.h.b16 %v812
    %v880 = vunpack.c.l.b16 %v813
    %v881 = vunpack.c.h.b16 %v813
    %v882 = vunpack.c.l.b16 %v814
    %v883 = vunpack.c.h.b16 %v814
    %v884 = vunpack.c.l.b16 %v815
    %v885 = vunpack.c.h.b16 %v815
    %v886 = vunpack.c.l.b16 %v816
    %v887 = vunpack.c.h.b16 %v816
    %v888 = vunpack.c.l.b16 %v817
    %v889 = vunpack.c.h.b16 %v817
    %v890 = vunpack.c.l.b16 %v818
    %v891 = vunpack.c.h.b16 %v818
    %v892 = vunpack.c.l.b16 %v819
    %v893 = vunpack.c.h.b16 %v819
    %v894 = vunpack.c.l.b16 %v820
    %v895 = vunpack.c.h.b16 %v820
    %v896 = vunpack.c.l.b16 %v821
    %v897 = vunpack.c.h.b16 %v821
    %v898 = vunpack.c.l.b16 %v822
    %v899 = vunpack.c.h.b16 %v822
    %v900 = vunpack.c.l.b16 %v823
    %v901 = vunpack.c.h.b16 %v823
    %v902 = vunpack.c.l.b16 %v824
    %v903 = vunpack.c.h.b16 %v824
    %v904 = vunpack.c.l.b16 %v825
    %v905 = vunpack.c.h.b16 %v825
    %v906 = vunpack.c.l.b16 %v826
    %v907 = vunpack.c.h.b16 %v826
    %v908 = vunpack.c.l.b16 %v827
    %v909 = vunpack.c.h.b16 %v827
    %v910 = vunpack.c.l.b16 %v828
    %v911 = vunpack.c.h.b16 %v828
    %v912 = vunpack.c.l.b16 %v829
    %v913 = vunpack.c.h.b16 %v829
    %v914 = vunpack.c.l.b16 %v830
    %v915 = vunpack.c.h.b16 %v830
    %v916 = vunpack.c.l.b16 %v831
    %v917 = vunpack.c.h.b16 %v831
    %v918 = vunpack.c.l.b16 %v832
    %v919 = vunpack.c.h.b16 %v832
    %v920 = vunpack.c.l.b16 %v833
    %v921 = vunpack.c.h.b16 %v833
    %v922 = vunpack.c.l.b16 %v834
    %v923 = vunpack.c.h.b16 %v834
    %v924 = vunpack.c.l.b16 %v835
    %v925 = vunpack.c.h.b16 %v835
    %v926 = vunpack.c.l.b16 %v836
    %v927 = vunpack.c.h.b16 %v836
    %v928 = vunpack.c.l.b16 %v837
    %v929 = vunpack.c.h.b16 %v837
    %v930 = vunpack.c.l.b16 %v838
    %v931 = vunpack.c.h.b16 %v838
    %v932 = vunpack.c.l.b16 %v839
    %v933 = vunpack.c.h.b16 %v839
    %v934 = vunpack.c.l.b16 %v840
    %v935 = vunpack.c.h.b16 %v840
    %v936 = vunpack.c.l.b16 %v841
    %v937 = vunpack.c.h.b16 %v841
    %v938 = vpack.c.b16 %v878, %v874
    %v939 = vpack.c.b16 %v879, %v875
    %v940 = vpack.c.b16 %v880, %v876
    %v941 = vpack.c.b16 %v881, %v877
    %v942 = vpack.c.b16 %v886, %v882
    %v943 = vpack.c.b16 %v887, %v883
    %v944 = vpack.c.b16 %v888, %v884
    %v945 = vpack.c.b16 %v889, %v885
    %v946 = vpack.c.b16 %v894, %v890
    %v947 = vpack.c.b16 %v895, %v891
    %v948 = vpack.c.b16 %v896, %v892
    %v949 = vpack.c.b16 %v897, %v893
    %v950 = vpack.c.b16 %v902, %v898
    %v951 = vpack.c.b16 %v903, %v899
    %v952 = vpack.c.b16 %v904, %v900
    %v953 = vpack.c.b16 %v905, %v901
    %v954 = vpack.c.b16 %v910, %v906
    %v955 = vpack.c.b16 %v911, %v907
    %v956 = vpack.c.b16 %v912, %v908
    %v957 = vpack.c.b16 %v913, %v909
    %v958 = vpack.c.b16 %v918, %v914
    %v959 = vpack.c.b16 %v919, %v915
    %v960 = vpack.c.b16 %v920, %v916
    %v961 = vpack.c.b16 %v921, %v917
    %v962 = vpack.c.b16 %v926, %v922
    %v963 = vpack.c.b16 %v927, %v923
    %v964 = vpack.c.b16 %v928, %v924
    %v965 = vpack.c.b16 %v929, %v925
    %v966 = vpack.c.b16 %v934, %v930
    %v967 = vpack.c.b16 %v935, %v931
    %v968 = vpack.c.b16 %v936, %v932
    %v969 = vpack.c.b16 %v937, %v933
    %1002 = vmatprep.subr.bf16.mxu0 %v939
    %1003 = vmatpush1.bf16.msra.mxu0 %v938
    %1004 = vmatprep.subr.bf16.mxu0 %v943
    %1005 = vmatpush1.bf16.msra.mxu0 %v942
    %1006 = vmatprep.subr.bf16.mxu0 %v947
    %1007 = vmatpush1.bf16.msra.mxu0 %v946
    %1008 = vmatprep.subr.bf16.mxu0 %v951
    %1009 = vmatpush1.bf16.msra.mxu0 %v950
    %1010 = vmatprep.subr.bf16.mxu0 %v955
    %1011 = vmatpush1.bf16.msra.mxu0 %v954
    %1012 = vmatprep.subr.bf16.mxu0 %v959
    %1013 = vmatpush1.bf16.msra.mxu0 %v958
    %1014 = vmatprep.subr.bf16.mxu0 %v963
    %1015 = vmatpush1.bf16.msra.mxu0 %v962
    %1016 = vmatprep.subr.bf16.mxu0 %v967
    %1017 = vmatpush1.bf16.msra.mxu0 %v966
    %1018 = vmatprep.subr.bf16.mxu0 0
    %1019 = vmatpush1.bf16.msra.mxu0 0
    %1020 = vmatprep.subr.bf16.mxu0 0
    %1021 = vmatpush1.bf16.msra.mxu0 0
    %1022 = vmatprep.subr.bf16.mxu0 0
    %1023 = vmatpush1.bf16.msra.mxu0 0
    %1024 = vmatprep.subr.bf16.mxu0 0
    %1025 = vmatpush1.bf16.msra.mxu0 0
    %1026 = vmatprep.subr.bf16.mxu0 0
    %1027 = vmatpush1.bf16.msra.mxu0 0
    %1028 = vmatprep.subr.bf16.mxu0 0
    %1029 = vmatpush1.bf16.msra.mxu0 0
    %1030 = vmatprep.subr.bf16.mxu0 0
    %1031 = vmatpush1.bf16.msra.mxu0 0
    %1032 = vmatprep.subr.bf16.mxu0 0
    %1033 = vmatpush1.bf16.msra.mxu0 0
    %1034 = vmatprep.mubr.bf16.mxu0 0
    %1035 = vmatmul.mubr.bf16.gmra.mrb[0].mxu0 %v790
    %v1036 = vpop.f32.mrb[0].mxu0
    %v1037 = vadd.f32 0.0, %v1036
    %v1038 = vpop.f32.mrb[0].mxu0
    %v1039 = vadd.f32 0.0, %v1038
    %v1040 = vpop.f32.mrb[0].mxu0
    %v1041 = vadd.f32 0.0, %v1040
    %v1042 = vpop.f32.mrb[0].mxu0
    %v1043 = vadd.f32 0.0, %v1042
    %1044 = vdwg.mxu0
    %1045 = vmatprep.subr.bf16.mxu0 %v941
    %1046 = vmatpush1.bf16.msra.mxu0 %v940
    %1047 = vmatprep.subr.bf16.mxu0 %v945
    %1048 = vmatpush1.bf16.msra.mxu0 %v944
    %1049 = vmatprep.subr.bf16.mxu0 %v949
    %1050 = vmatpush1.bf16.msra.mxu0 %v948
    %1051 = vmatprep.subr.bf16.mxu0 %v953
    %1052 = vmatpush1.bf16.msra.mxu0 %v952
    %1053 = vmatprep.subr.bf16.mxu0 %v957
    %1054 = vmatpush1.bf16.msra.mxu0 %v956
    %1055 = vmatprep.subr.bf16.mxu0 %v961
    %1056 = vmatpush1.bf16.msra.mxu0 %v960
    %1057 = vmatprep.subr.bf16.mxu0 %v965
    %1058 = vmatpush1.bf16.msra.mxu0 %v964
    %1059 = vmatprep.subr.bf16.mxu0 %v969
    %1060 = vmatpush1.bf16.msra.mxu0 %v968
    %1061 = vmatprep.subr.bf16.mxu0 0
    %1062 = vmatpush1.bf16.msra.mxu0 0
    %1063 = vmatprep.subr.bf16.mxu0 0
    %1064 = vmatpush1.bf16.msra.mxu0 0
    %1065 = vmatprep.subr.bf16.mxu0 0
    %1066 = vmatpush1.bf16.msra.mxu0 0
    %1067 = vmatprep.subr.bf16.mxu0 0
    %1068 = vmatpush1.bf16.msra.mxu0 0
    %1069 = vmatprep.subr.bf16.mxu0 0
    %1070 = vmatpush1.bf16.msra.mxu0 0
    %1071 = vmatprep.subr.bf16.mxu0 0
    %1072 = vmatpush1.bf16.msra.mxu0 0
    %1073 = vmatprep.subr.bf16.mxu0 0
    %1074 = vmatpush1.bf16.msra.mxu0 0
    %1075 = vmatprep.subr.bf16.mxu0 0
    %1076 = vmatpush1.bf16.msra.mxu0 0
    %1077 = vmatprep.mubr.bf16.mxu0 0
    %1078 = vmatmul.mubr.bf16.gmra.mrb[0].mxu0 %v790
    %v1079 = vpop.f32.mrb[0].mxu0
    %v1080 = vadd.f32 0.0, %v1079
    %v1081 = vpop.f32.mrb[0].mxu0
    %v1082 = vadd.f32 0.0, %v1081
    %v1083 = vpop.f32.mrb[0].mxu0
    %v1084 = vadd.f32 0.0, %v1083
    %v1085 = vpop.f32.mrb[0].mxu0
    %v1086 = vadd.f32 0.0, %v1085
    %1087 = vdwg.mxu0
    %v1088 = vadd.f32 %v802, %v1037
    %v1089 = vadd.f32 %v803, %v1039
    %v1090 = vadd.f32 %v804, %v1080
    %v1091 = vadd.f32 %v805, %v1082
    %v1092 = vadd.f32 %v806, %v1041
    %v1093 = vadd.f32 %v807, %v1043
    %v1094 = vadd.f32 %v808, %v1084
    %v1095 = vadd.f32 %v809, %v1086
    %v1096 = vxor.u32 %v1088, 2147483648
    %v1097 = vxor.u32 %v1092, 2147483648
    %v1098 = vmul.f32 %v1096, 1.442695
    %v1099 = vpow.pop %v1098
    %v1100 = vmul.f32 %v1097, 1.442695
    %v1101 = vpow.pop %v1100
    %v1102 = vadd.f32 %v1099, 1.0
    %v1103 = vadd.f32 %v1101, 1.0
    %v1104 = vrcp.pop %v1102
    %v1105 = vmul.f32 1.0, %v1104
    %v1106 = vrcp.pop %v1103
    %v1107 = vmul.f32 1.0, %v1106
    %v1108 = vxor.u32 %v1089, 2147483648
    %v1109 = vxor.u32 %v1093, 2147483648
    %v1110 = vmul.f32 %v1108, 1.442695
    %v1111 = vpow.pop %v1110
    %v1112 = vmul.f32 %v1109, 1.442695
    %v1113 = vpow.pop %v1112
    %v1114 = vadd.f32 %v1111, 1.0
    %v1115 = vadd.f32 %v1113, 1.0
    %v1116 = vrcp.pop %v1114
    %v1117 = vmul.f32 1.0, %v1116
    %v1118 = vrcp.pop %v1115
    %v1119 = vmul.f32 1.0, %v1118
    %v1120 = vtanh.pop %v1090
    %v1121 = vtanh.pop %v1094
    %v1122 = vxor.u32 %v1091, 2147483648
    %v1123 = vxor.u32 %v1095, 2147483648
    %v1124 = vmul.f32 %v1122, 1.442695
    %v1125 = vpow.pop %v1124
    %v1126 = vmul.f32 %v1123, 1.442695
    %v1127 = vpow.pop %v1126
    %v1128 = vadd.f32 %v1125, 1.0
    %v1129 = vadd.f32 %v1127, 1.0
    %v1130 = vrcp.pop %v1128
    %v1131 = vmul.f32 1.0, %v1130
    %v1132 = vrcp.pop %v1129
    %v1133 = vmul.f32 1.0, %v1132
    %v1134 = vmul.f32 %v1117, %v784
    %v1135 = vmul.f32 %v1119, %v785
    %v1136 = vmul.f32 %v1105, %v1120
    %v1137 = vmul.f32 %v1107, %v1121
    %v1138 = vadd.f32 %v1134, %v1136
    %v1139 = vadd.f32 %v1135, %v1137
    %v1140 = vtanh.pop %v1138
    %v1141 = vtanh.pop %v1139
    %v1142 = vmul.f32 %v1131, %v1140
    %v1143 = vmul.f32 %v1133, %v1141
    %v1144 = vpack.c.bf16 %v1143, %v1142
    %v1146 = vunpack.c.l.b16 %v1144
    %v1147 = vunpack.c.h.b16 %v1144
    %v1148 = vpack.c.b16 %v1146, %v1146
    %v1149 = vpack.c.b16 %v1147, %v1147
    %s1152 = scalar_lea.vmem [#allocation12], 16
    %1153 = vst [vmem:[%s1152] sm:$0xf] %v1148
    %1154 = vst [vmem:[%s1152 + $0x4] sm:$0xf] %v1149
    %s1155 = scalar_lea.vmem [#allocation4], 192
    %v1156 = vld [vmem:[%s1155] sm:$0xff]
    %v1157 = vld [vmem:[%s1155 + $0x8] sm:$0xff]
    %v1158 = vld [vmem:[%s1155 + $0x10] sm:$0xff]
    %v1159 = vld [vmem:[%s1155 + $0x18] sm:$0xff]
    %v1160 = vld [vmem:[%s1155 + $0x20] sm:$0xff]
    %v1161 = vld [vmem:[%s1155 + $0x28] sm:$0xff]
    %v1162 = vld [vmem:[%s1155 + $0x30] sm:$0xff]
    %v1163 = vld [vmem:[%s1155 + $0x38] sm:$0xff]
    %v1164 = vld [vmem:[#allocation7] sm:$0xff]
    %v1165 = vld [vmem:[#allocation7 + $0x8] sm:$0xff]
    %v1166 = vld [vmem:[#allocation7 + $0x10] sm:$0xff]
    %v1167 = vld [vmem:[#allocation7 + $0x18] sm:$0xff]
    %v1168 = vld [vmem:[#allocation7 + $0x20] sm:$0xff]
    %v1169 = vld [vmem:[#allocation7 + $0x28] sm:$0xff]
    %v1170 = vld [vmem:[#allocation7 + $0x30] sm:$0xff]
    %v1171 = vld [vmem:[#allocation7 + $0x38] sm:$0xff]
    %v1172 = vld [vmem:[#allocation7 + $0x40] sm:$0xff]
    %v1173 = vld [vmem:[#allocation7 + $0x48] sm:$0xff]
    %v1174 = vld [vmem:[#allocation7 + $0x50] sm:$0xff]
    %v1175 = vld [vmem:[#allocation7 + $0x58] sm:$0xff]
    %v1176 = vld [vmem:[#allocation7 + $0x60] sm:$0xff]
    %v1177 = vld [vmem:[#allocation7 + $0x68] sm:$0xff]
    %v1178 = vld [vmem:[#allocation7 + $0x70] sm:$0xff]
    %v1179 = vld [vmem:[#allocation7 + $0x78] sm:$0xff]
    %v1180 = vld [vmem:[#allocation7 + $0x80] sm:$0xff]
    %v1181 = vld [vmem:[#allocation7 + $0x88] sm:$0xff]
    %v1182 = vld [vmem:[#allocation7 + $0x90] sm:$0xff]
    %v1183 = vld [vmem:[#allocation7 + $0x98] sm:$0xff]
    %v1184 = vld [vmem:[#allocation7 + $0xa0] sm:$0xff]
    %v1185 = vld [vmem:[#allocation7 + $0xa8] sm:$0xff]
    %v1186 = vld [vmem:[#allocation7 + $0xb0] sm:$0xff]
    %v1187 = vld [vmem:[#allocation7 + $0xb8] sm:$0xff]
    %v1188 = vld [vmem:[#allocation7 + $0xc0] sm:$0xff]
    %v1189 = vld [vmem:[#allocation7 + $0xc8] sm:$0xff]
    %v1190 = vld [vmem:[#allocation7 + $0xd0] sm:$0xff]
    %v1191 = vld [vmem:[#allocation7 + $0xd8] sm:$0xff]
    %v1192 = vld [vmem:[#allocation7 + $0xe0] sm:$0xff]
    %v1193 = vld [vmem:[#allocation7 + $0xe8] sm:$0xff]
    %v1194 = vld [vmem:[#allocation7 + $0xf0] sm:$0xff]
    %v1195 = vld [vmem:[#allocation7 + $0xf8] sm:$0xff]
    %v1228 = vunpack.c.l.b16 %v1164
    %v1229 = vunpack.c.h.b16 %v1164
    %v1230 = vunpack.c.l.b16 %v1165
    %v1231 = vunpack.c.h.b16 %v1165
    %v1232 = vunpack.c.l.b16 %v1166
    %v1233 = vunpack.c.h.b16 %v1166
    %v1234 = vunpack.c.l.b16 %v1167
    %v1235 = vunpack.c.h.b16 %v1167
    %v1236 = vunpack.c.l.b16 %v1168
    %v1237 = vunpack.c.h.b16 %v1168
    %v1238 = vunpack.c.l.b16 %v1169
    %v1239 = vunpack.c.h.b16 %v1169
    %v1240 = vunpack.c.l.b16 %v1170
    %v1241 = vunpack.c.h.b16 %v1170
    %v1242 = vunpack.c.l.b16 %v1171
    %v1243 = vunpack.c.h.b16 %v1171
    %v1244 = vunpack.c.l.b16 %v1172
    %v1245 = vunpack.c.h.b16 %v1172
    %v1246 = vunpack.c.l.b16 %v1173
    %v1247 = vunpack.c.h.b16 %v1173
    %v1248 = vunpack.c.l.b16 %v1174
    %v1249 = vunpack.c.h.b16 %v1174
    %v1250 = vunpack.c.l.b16 %v1175
    %v1251 = vunpack.c.h.b16 %v1175
    %v1252 = vunpack.c.l.b16 %v1176
    %v1253 = vunpack.c.h.b16 %v1176
    %v1254 = vunpack.c.l.b16 %v1177
    %v1255 = vunpack.c.h.b16 %v1177
    %v1256 = vunpack.c.l.b16 %v1178
    %v1257 = vunpack.c.h.b16 %v1178
    %v1258 = vunpack.c.l.b16 %v1179
    %v1259 = vunpack.c.h.b16 %v1179
    %v1260 = vunpack.c.l.b16 %v1180
    %v1261 = vunpack.c.h.b16 %v1180
    %v1262 = vunpack.c.l.b16 %v1181
    %v1263 = vunpack.c.h.b16 %v1181
    %v1264 = vunpack.c.l.b16 %v1182
    %v1265 = vunpack.c.h.b16 %v1182
    %v1266 = vunpack.c.l.b16 %v1183
    %v1267 = vunpack.c.h.b16 %v1183
    %v1268 = vunpack.c.l.b16 %v1184
    %v1269 = vunpack.c.h.b16 %v1184
    %v1270 = vunpack.c.l.b16 %v1185
    %v1271 = vunpack.c.h.b16 %v1185
    %v1272 = vunpack.c.l.b16 %v1186
    %v1273 = vunpack.c.h.b16 %v1186
    %v1274 = vunpack.c.l.b16 %v1187
    %v1275 = vunpack.c.h.b16 %v1187
    %v1276 = vunpack.c.l.b16 %v1188
    %v1277 = vunpack.c.h.b16 %v1188
    %v1278 = vunpack.c.l.b16 %v1189
    %v1279 = vunpack.c.h.b16 %v1189
    %v1280 = vunpack.c.l.b16 %v1190
    %v1281 = vunpack.c.h.b16 %v1190
    %v1282 = vunpack.c.l.b16 %v1191
    %v1283 = vunpack.c.h.b16 %v1191
    %v1284 = vunpack.c.l.b16 %v1192
    %v1285 = vunpack.c.h.b16 %v1192
    %v1286 = vunpack.c.l.b16 %v1193
    %v1287 = vunpack.c.h.b16 %v1193
    %v1288 = vunpack.c.l.b16 %v1194
    %v1289 = vunpack.c.h.b16 %v1194
    %v1290 = vunpack.c.l.b16 %v1195
    %v1291 = vunpack.c.h.b16 %v1195
    %v1292 = vpack.c.b16 %v1232, %v1228
    %v1293 = vpack.c.b16 %v1233, %v1229
    %v1294 = vpack.c.b16 %v1234, %v1230
    %v1295 = vpack.c.b16 %v1235, %v1231
    %v1296 = vpack.c.b16 %v1240, %v1236
    %v1297 = vpack.c.b16 %v1241, %v1237
    %v1298 = vpack.c.b16 %v1242, %v1238
    %v1299 = vpack.c.b16 %v1243, %v1239
    %v1300 = vpack.c.b16 %v1248, %v1244
    %v1301 = vpack.c.b16 %v1249, %v1245
    %v1302 = vpack.c.b16 %v1250, %v1246
    %v1303 = vpack.c.b16 %v1251, %v1247
    %v1304 = vpack.c.b16 %v1256, %v1252
    %v1305 = vpack.c.b16 %v1257, %v1253
    %v1306 = vpack.c.b16 %v1258, %v1254
    %v1307 = vpack.c.b16 %v1259, %v1255
    %v1308 = vpack.c.b16 %v1264, %v1260
    %v1309 = vpack.c.b16 %v1265, %v1261
    %v1310 = vpack.c.b16 %v1266, %v1262
    %v1311 = vpack.c.b16 %v1267, %v1263
    %v1312 = vpack.c.b16 %v1272, %v1268
    %v1313 = vpack.c.b16 %v1273, %v1269
    %v1314 = vpack.c.b16 %v1274, %v1270
    %v1315 = vpack.c.b16 %v1275, %v1271
    %v1316 = vpack.c.b16 %v1280, %v1276
    %v1317 = vpack.c.b16 %v1281, %v1277
    %v1318 = vpack.c.b16 %v1282, %v1278
    %v1319 = vpack.c.b16 %v1283, %v1279
    %v1320 = vpack.c.b16 %v1288, %v1284
    %v1321 = vpack.c.b16 %v1289, %v1285
    %v1322 = vpack.c.b16 %v1290, %v1286
    %v1323 = vpack.c.b16 %v1291, %v1287
    %1356 = vmatprep.subr.bf16.mxu0 %v1293
    %1357 = vmatpush1.bf16.msra.mxu0 %v1292
    %1358 = vmatprep.subr.bf16.mxu0 %v1297
    %1359 = vmatpush1.bf16.msra.mxu0 %v1296
    %1360 = vmatprep.subr.bf16.mxu0 %v1301
    %1361 = vmatpush1.bf16.msra.mxu0 %v1300
    %1362 = vmatprep.subr.bf16.mxu0 %v1305
    %1363 = vmatpush1.bf16.msra.mxu0 %v1304
    %1364 = vmatprep.subr.bf16.mxu0 %v1309
    %1365 = vmatpush1.bf16.msra.mxu0 %v1308
    %1366 = vmatprep.subr.bf16.mxu0 %v1313
    %1367 = vmatpush1.bf16.msra.mxu0 %v1312
    %1368 = vmatprep.subr.bf16.mxu0 %v1317
    %1369 = vmatpush1.bf16.msra.mxu0 %v1316
    %1370 = vmatprep.subr.bf16.mxu0 %v1321
    %1371 = vmatpush1.bf16.msra.mxu0 %v1320
    %1372 = vmatprep.subr.bf16.mxu0 0
    %1373 = vmatpush1.bf16.msra.mxu0 0
    %1374 = vmatprep.subr.bf16.mxu0 0
    %1375 = vmatpush1.bf16.msra.mxu0 0
    %1376 = vmatprep.subr.bf16.mxu0 0
    %1377 = vmatpush1.bf16.msra.mxu0 0
    %1378 = vmatprep.subr.bf16.mxu0 0
    %1379 = vmatpush1.bf16.msra.mxu0 0
    %1380 = vmatprep.subr.bf16.mxu0 0
    %1381 = vmatpush1.bf16.msra.mxu0 0
    %1382 = vmatprep.subr.bf16.mxu0 0
    %1383 = vmatpush1.bf16.msra.mxu0 0
    %1384 = vmatprep.subr.bf16.mxu0 0
    %1385 = vmatpush1.bf16.msra.mxu0 0
    %1386 = vmatprep.subr.bf16.mxu0 0
    %1387 = vmatpush1.bf16.msra.mxu0 0
    %1388 = vmatprep.mubr.bf16.mxu0 0
    %1389 = vmatmul.mubr.bf16.gmra.mrb[0].mxu0 %v1144
    %v1390 = vpop.f32.mrb[0].mxu0
    %v1391 = vadd.f32 0.0, %v1390
    %v1392 = vpop.f32.mrb[0].mxu0
    %v1393 = vadd.f32 0.0, %v1392
    %v1394 = vpop.f32.mrb[0].mxu0
    %v1395 = vadd.f32 0.0, %v1394
    %v1396 = vpop.f32.mrb[0].mxu0
    %v1397 = vadd.f32 0.0, %v1396
    %1398 = vdwg.mxu0
    %1399 = vmatprep.subr.bf16.mxu0 %v1295
    %1400 = vmatpush1.bf16.msra.mxu0 %v1294
    %1401 = vmatprep.subr.bf16.mxu0 %v1299
    %1402 = vmatpush1.bf16.msra.mxu0 %v1298
    %1403 = vmatprep.subr.bf16.mxu0 %v1303
    %1404 = vmatpush1.bf16.msra.mxu0 %v1302
    %1405 = vmatprep.subr.bf16.mxu0 %v1307
    %1406 = vmatpush1.bf16.msra.mxu0 %v1306
    %1407 = vmatprep.subr.bf16.mxu0 %v1311
    %1408 = vmatpush1.bf16.msra.mxu0 %v1310
    %1409 = vmatprep.subr.bf16.mxu0 %v1315
    %1410 = vmatpush1.bf16.msra.mxu0 %v1314
    %1411 = vmatprep.subr.bf16.mxu0 %v1319
    %1412 = vmatpush1.bf16.msra.mxu0 %v1318
    %1413 = vmatprep.subr.bf16.mxu0 %v1323
    %1414 = vmatpush1.bf16.msra.mxu0 %v1322
    %1415 = vmatprep.subr.bf16.mxu0 0
    %1416 = vmatpush1.bf16.msra.mxu0 0
    %1417 = vmatprep.subr.bf16.mxu0 0
    %1418 = vmatpush1.bf16.msra.mxu0 0
    %1419 = vmatprep.subr.bf16.mxu0 0
    %1420 = vmatpush1.bf16.msra.mxu0 0
    %1421 = vmatprep.subr.bf16.mxu0 0
    %1422 = vmatpush1.bf16.msra.mxu0 0
    %1423 = vmatprep.subr.bf16.mxu0 0
    %1424 = vmatpush1.bf16.msra.mxu0 0
    %1425 = vmatprep.subr.bf16.mxu0 0
    %1426 = vmatpush1.bf16.msra.mxu0 0
    %1427 = vmatprep.subr.bf16.mxu0 0
    %1428 = vmatpush1.bf16.msra.mxu0 0
    %1429 = vmatprep.subr.bf16.mxu0 0
    %1430 = vmatpush1.bf16.msra.mxu0 0
    %1431 = vmatprep.mubr.bf16.mxu0 0
    %1432 = vmatmul.mubr.bf16.gmra.mrb[0].mxu0 %v1144
    %v1433 = vpop.f32.mrb[0].mxu0
    %v1434 = vadd.f32 0.0, %v1433
    %v1435 = vpop.f32.mrb[0].mxu0
    %v1436 = vadd.f32 0.0, %v1435
    %v1437 = vpop.f32.mrb[0].mxu0
    %v1438 = vadd.f32 0.0, %v1437
    %v1439 = vpop.f32.mrb[0].mxu0
    %v1440 = vadd.f32 0.0, %v1439
    %1441 = vdwg.mxu0
    %v1442 = vadd.f32 %v1156, %v1391
    %v1443 = vadd.f32 %v1157, %v1393
    %v1444 = vadd.f32 %v1158, %v1434
    %v1445 = vadd.f32 %v1159, %v1436
    %v1446 = vadd.f32 %v1160, %v1395
    %v1447 = vadd.f32 %v1161, %v1397
    %v1448 = vadd.f32 %v1162, %v1438
    %v1449 = vadd.f32 %v1163, %v1440
    %v1450 = vxor.u32 %v1442, 2147483648
    %v1451 = vxor.u32 %v1446, 2147483648
    %v1452 = vmul.f32 %v1450, 1.442695
    %v1453 = vpow.pop %v1452
    %v1454 = vmul.f32 %v1451, 1.442695
    %v1455 = vpow.pop %v1454
    %v1456 = vadd.f32 %v1453, 1.0
    %v1457 = vadd.f32 %v1455, 1.0
    %v1458 = vrcp.pop %v1456
    %v1459 = vmul.f32 1.0, %v1458
    %v1460 = vrcp.pop %v1457
    %v1461 = vmul.f32 1.0, %v1460
    %v1462 = vxor.u32 %v1443, 2147483648
    %v1463 = vxor.u32 %v1447, 2147483648
    %v1464 = vmul.f32 %v1462, 1.442695
    %v1465 = vpow.pop %v1464
    %v1466 = vmul.f32 %v1463, 1.442695
    %v1467 = vpow.pop %v1466
    %v1468 = vadd.f32 %v1465, 1.0
    %v1469 = vadd.f32 %v1467, 1.0
    %v1470 = vrcp.pop %v1468
    %v1471 = vmul.f32 1.0, %v1470
    %v1472 = vrcp.pop %v1469
    %v1473 = vmul.f32 1.0, %v1472
    %v1474 = vtanh.pop %v1444
    %v1475 = vtanh.pop %v1448
    %v1476 = vxor.u32 %v1445, 2147483648
    %v1477 = vxor.u32 %v1449, 2147483648
    %v1478 = vmul.f32 %v1476, 1.442695
    %v1479 = vpow.pop %v1478
    %v1480 = vmul.f32 %v1477, 1.442695
    %v1481 = vpow.pop %v1480
    %v1482 = vadd.f32 %v1479, 1.0
    %v1483 = vadd.f32 %v1481, 1.0
    %v1484 = vrcp.pop %v1482
    %v1485 = vmul.f32 1.0, %v1484
    %v1486 = vrcp.pop %v1483
    %v1487 = vmul.f32 1.0, %v1486
    %v1488 = vmul.f32 %v1471, %v1138
    %v1489 = vmul.f32 %v1473, %v1139
    %v1490 = vmul.f32 %v1459, %v1474
    %v1491 = vmul.f32 %v1461, %v1475
    %v1492 = vadd.f32 %v1488, %v1490
    %v1493 = vadd.f32 %v1489, %v1491
    %v1494 = vtanh.pop %v1492
    %v1495 = vtanh.pop %v1493
    %v1496 = vmul.f32 %v1485, %v1494
    %v1497 = vmul.f32 %v1487, %v1495
    %v1498 = vpack.c.bf16 %v1497, %v1496
    %v1500 = vunpack.c.l.b16 %v1498
    %v1501 = vunpack.c.h.b16 %v1498
    %v1502 = vpack.c.b16 %v1500, %v1500
    %v1503 = vpack.c.b16 %v1501, %v1501
    %s1506 = scalar_lea.vmem [#allocation12], 24
    %1507 = vst [vmem:[%s1506] sm:$0xf] %v1502
    %1508 = vst [vmem:[%s1506 + $0x4] sm:$0xf] %v1503
    %s1509 = scalar_lea.vmem [#allocation4], 256
    %v1510 = vld [vmem:[%s1509] sm:$0xff]
    %v1511 = vld [vmem:[%s1509 + $0x8] sm:$0xff]
    %v1512 = vld [vmem:[%s1509 + $0x10] sm:$0xff]
    %v1513 = vld [vmem:[%s1509 + $0x18] sm:$0xff]
    %v1514 = vld [vmem:[%s1509 + $0x20] sm:$0xff]
    %v1515 = vld [vmem:[%s1509 + $0x28] sm:$0xff]
    %v1516 = vld [vmem:[%s1509 + $0x30] sm:$0xff]
    %v1517 = vld [vmem:[%s1509 + $0x38] sm:$0xff]
    %v1518 = vld [vmem:[#allocation7] sm:$0xff]
    %v1519 = vld [vmem:[#allocation7 + $0x8] sm:$0xff]
    %v1520 = vld [vmem:[#allocation7 + $0x10] sm:$0xff]
    %v1521 = vld [vmem:[#allocation7 + $0x18] sm:$0xff]
    %v1522 = vld [vmem:[#allocation7 + $0x20] sm:$0xff]
    %v1523 = vld [vmem:[#allocation7 + $0x28] sm:$0xff]
    %v1524 = vld [vmem:[#allocation7 + $0x30] sm:$0xff]
    %v1525 = vld [vmem:[#allocation7 + $0x38] sm:$0xff]
    %v1526 = vld [vmem:[#allocation7 + $0x40] sm:$0xff]
    %v1527 = vld [vmem:[#allocation7 + $0x48] sm:$0xff]
    %v1528 = vld [vmem:[#allocation7 + $0x50] sm:$0xff]
    %v1529 = vld [vmem:[#allocation7 + $0x58] sm:$0xff]
    %v1530 = vld [vmem:[#allocation7 + $0x60] sm:$0xff]
    %v1531 = vld [vmem:[#allocation7 + $0x68] sm:$0xff]
    %v1532 = vld [vmem:[#allocation7 + $0x70] sm:$0xff]
    %v1533 = vld [vmem:[#allocation7 + $0x78] sm:$0xff]
    %v1534 = vld [vmem:[#allocation7 + $0x80] sm:$0xff]
    %v1535 = vld [vmem:[#allocation7 + $0x88] sm:$0xff]
    %v1536 = vld [vmem:[#allocation7 + $0x90] sm:$0xff]
    %v1537 = vld [vmem:[#allocation7 + $0x98] sm:$0xff]
    %v1538 = vld [vmem:[#allocation7 + $0xa0] sm:$0xff]
    %v1539 = vld [vmem:[#allocation7 + $0xa8] sm:$0xff]
    %v1540 = vld [vmem:[#allocation7 + $0xb0] sm:$0xff]
    %v1541 = vld [vmem:[#allocation7 + $0xb8] sm:$0xff]
    %v1542 = vld [vmem:[#allocation7 + $0xc0] sm:$0xff]
    %v1543 = vld [vmem:[#allocation7 + $0xc8] sm:$0xff]
    %v1544 = vld [vmem:[#allocation7 + $0xd0] sm:$0xff]
    %v1545 = vld [vmem:[#allocation7 + $0xd8] sm:$0xff]
    %v1546 = vld [vmem:[#allocation7 + $0xe0] sm:$0xff]
    %v1547 = vld [vmem:[#allocation7 + $0xe8] sm:$0xff]
    %v1548 = vld [vmem:[#allocation7 + $0xf0] sm:$0xff]
    %v1549 = vld [vmem:[#allocation7 + $0xf8] sm:$0xff]
    %v1582 = vunpack.c.l.b16 %v1518
    %v1583 = vunpack.c.h.b16 %v1518
    %v1584 = vunpack.c.l.b16 %v1519
    %v1585 = vunpack.c.h.b16 %v1519
    %v1586 = vunpack.c.l.b16 %v1520
    %v1587 = vunpack.c.h.b16 %v1520
    %v1588 = vunpack.c.l.b16 %v1521
    %v1589 = vunpack.c.h.b16 %v1521
    %v1590 = vunpack.c.l.b16 %v1522
    %v1591 = vunpack.c.h.b16 %v1522
    %v1592 = vunpack.c.l.b16 %v1523
    %v1593 = vunpack.c.h.b16 %v1523
    %v1594 = vunpack.c.l.b16 %v1524
    %v1595 = vunpack.c.h.b16 %v1524
    %v1596 = vunpack.c.l.b16 %v1525
    %v1597 = vunpack.c.h.b16 %v1525
    %v1598 = vunpack.c.l.b16 %v1526
    %v1599 = vunpack.c.h.b16 %v1526
    %v1600 = vunpack.c.l.b16 %v1527
    %v1601 = vunpack.c.h.b16 %v1527
    %v1602 = vunpack.c.l.b16 %v1528
    %v1603 = vunpack.c.h.b16 %v1528
    %v1604 = vunpack.c.l.b16 %v1529
    %v1605 = vunpack.c.h.b16 %v1529
    %v1606 = vunpack.c.l.b16 %v1530
    %v1607 = vunpack.c.h.b16 %v1530
    %v1608 = vunpack.c.l.b16 %v1531
    %v1609 = vunpack.c.h.b16 %v1531
    %v1610 = vunpack.c.l.b16 %v1532
    %v1611 = vunpack.c.h.b16 %v1532
    %v1612 = vunpack.c.l.b16 %v1533
    %v1613 = vunpack.c.h.b16 %v1533
    %v1614 = vunpack.c.l.b16 %v1534
    %v1615 = vunpack.c.h.b16 %v1534
    %v1616 = vunpack.c.l.b16 %v1535
    %v1617 = vunpack.c.h.b16 %v1535
    %v1618 = vunpack.c.l.b16 %v1536
    %v1619 = vunpack.c.h.b16 %v1536
    %v1620 = vunpack.c.l.b16 %v1537
    %v1621 = vunpack.c.h.b16 %v1537
    %v1622 = vunpack.c.l.b16 %v1538
    %v1623 = vunpack.c.h.b16 %v1538
    %v1624 = vunpack.c.l.b16 %v1539
    %v1625 = vunpack.c.h.b16 %v1539
    %v1626 = vunpack.c.l.b16 %v1540
    %v1627 = vunpack.c.h.b16 %v1540
    %v1628 = vunpack.c.l.b16 %v1541
    %v1629 = vunpack.c.h.b16 %v1541
    %v1630 = vunpack.c.l.b16 %v1542
    %v1631 = vunpack.c.h.b16 %v1542
    %v1632 = vunpack.c.l.b16 %v1543
    %v1633 = vunpack.c.h.b16 %v1543
    %v1634 = vunpack.c.l.b16 %v1544
    %v1635 = vunpack.c.h.b16 %v1544
    %v1636 = vunpack.c.l.b16 %v1545
    %v1637 = vunpack.c.h.b16 %v1545
    %v1638 = vunpack.c.l.b16 %v1546
    %v1639 = vunpack.c.h.b16 %v1546
    %v1640 = vunpack.c.l.b16 %v1547
    %v1641 = vunpack.c.h.b16 %v1547
    %v1642 = vunpack.c.l.b16 %v1548
    %v1643 = vunpack.c.h.b16 %v1548
    %v1644 = vunpack.c.l.b16 %v1549
    %v1645 = vunpack.c.h.b16 %v1549
    %v1646 = vpack.c.b16 %v1586, %v1582
    %v1647 = vpack.c.b16 %v1587, %v1583
    %v1648 = vpack.c.b16 %v1588, %v1584
    %v1649 = vpack.c.b16 %v1589, %v1585
    %v1650 = vpack.c.b16 %v1594, %v1590
    %v1651 = vpack.c.b16 %v1595, %v1591
    %v1652 = vpack.c.b16 %v1596, %v1592
    %v1653 = vpack.c.b16 %v1597, %v1593
    %v1654 = vpack.c.b16 %v1602, %v1598
    %v1655 = vpack.c.b16 %v1603, %v1599
    %v1656 = vpack.c.b16 %v1604, %v1600
    %v1657 = vpack.c.b16 %v1605, %v1601
    %v1658 = vpack.c.b16 %v1610, %v1606
    %v1659 = vpack.c.b16 %v1611, %v1607
    %v1660 = vpack.c.b16 %v1612, %v1608
    %v1661 = vpack.c.b16 %v1613, %v1609
    %v1662 = vpack.c.b16 %v1618, %v1614
    %v1663 = vpack.c.b16 %v1619, %v1615
    %v1664 = vpack.c.b16 %v1620, %v1616
    %v1665 = vpack.c.b16 %v1621, %v1617
    %v1666 = vpack.c.b16 %v1626, %v1622
    %v1667 = vpack.c.b16 %v1627, %v1623
    %v1668 = vpack.c.b16 %v1628, %v1624
    %v1669 = vpack.c.b16 %v1629, %v1625
    %v1670 = vpack.c.b16 %v1634, %v1630
    %v1671 = vpack.c.b16 %v1635, %v1631
    %v1672 = vpack.c.b16 %v1636, %v1632
    %v1673 = vpack.c.b16 %v1637, %v1633
    %v1674 = vpack.c.b16 %v1642, %v1638
    %v1675 = vpack.c.b16 %v1643, %v1639
    %v1676 = vpack.c.b16 %v1644, %v1640
    %v1677 = vpack.c.b16 %v1645, %v1641
    %1710 = vmatprep.subr.bf16.mxu0 %v1647
    %1711 = vmatpush1.bf16.msra.mxu0 %v1646
    %1712 = vmatprep.subr.bf16.mxu0 %v1651
    %1713 = vmatpush1.bf16.msra.mxu0 %v1650
    %1714 = vmatprep.subr.bf16.mxu0 %v1655
    %1715 = vmatpush1.bf16.msra.mxu0 %v1654
    %1716 = vmatprep.subr.bf16.mxu0 %v1659
    %1717 = vmatpush1.bf16.msra.mxu0 %v1658
    %1718 = vmatprep.subr.bf16.mxu0 %v1663
    %1719 = vmatpush1.bf16.msra.mxu0 %v1662
    %1720 = vmatprep.subr.bf16.mxu0 %v1667
    %1721 = vmatpush1.bf16.msra.mxu0 %v1666
    %1722 = vmatprep.subr.bf16.mxu0 %v1671
    %1723 = vmatpush1.bf16.msra.mxu0 %v1670
    %1724 = vmatprep.subr.bf16.mxu0 %v1675
    %1725 = vmatpush1.bf16.msra.mxu0 %v1674
    %1726 = vmatprep.subr.bf16.mxu0 0
    %1727 = vmatpush1.bf16.msra.mxu0 0
    %1728 = vmatprep.subr.bf16.mxu0 0
    %1729 = vmatpush1.bf16.msra.mxu0 0
    %1730 = vmatprep.subr.bf16.mxu0 0
    %1731 = vmatpush1.bf16.msra.mxu0 0
    %1732 = vmatprep.subr.bf16.mxu0 0
    %1733 = vmatpush1.bf16.msra.mxu0 0
    %1734 = vmatprep.subr.bf16.mxu0 0
    %1735 = vmatpush1.bf16.msra.mxu0 0
    %1736 = vmatprep.subr.bf16.mxu0 0
    %1737 = vmatpush1.bf16.msra.mxu0 0
    %1738 = vmatprep.subr.bf16.mxu0 0
    %1739 = vmatpush1.bf16.msra.mxu0 0
    %1740 = vmatprep.subr.bf16.mxu0 0
    %1741 = vmatpush1.bf16.msra.mxu0 0
    %1742 = vmatprep.mubr.bf16.mxu0 0
    %1743 = vmatmul.mubr.bf16.gmra.mrb[0].mxu0 %v1498
    %v1744 = vpop.f32.mrb[0].mxu0
    %v1745 = vadd.f32 0.0, %v1744
    %v1746 = vpop.f32.mrb[0].mxu0
    %v1747 = vadd.f32 0.0, %v1746
    %v1748 = vpop.f32.mrb[0].mxu0
    %v1749 = vadd.f32 0.0, %v1748
    %v1750 = vpop.f32.mrb[0].mxu0
    %v1751 = vadd.f32 0.0, %v1750
    %1752 = vdwg.mxu0
    %1753 = vmatprep.subr.bf16.mxu0 %v1649
    %1754 = vmatpush1.bf16.msra.mxu0 %v1648
    %1755 = vmatprep.subr.bf16.mxu0 %v1653
    %1756 = vmatpush1.bf16.msra.mxu0 %v1652
    %1757 = vmatprep.subr.bf16.mxu0 %v1657
    %1758 = vmatpush1.bf16.msra.mxu0 %v1656
    %1759 = vmatprep.subr.bf16.mxu0 %v1661
    %1760 = vmatpush1.bf16.msra.mxu0 %v1660
    %1761 = vmatprep.subr.bf16.mxu0 %v1665
    %1762 = vmatpush1.bf16.msra.mxu0 %v1664
    %1763 = vmatprep.subr.bf16.mxu0 %v1669
    %1764 = vmatpush1.bf16.msra.mxu0 %v1668
    %1765 = vmatprep.subr.bf16.mxu0 %v1673
    %1766 = vmatpush1.bf16.msra.mxu0 %v1672
    %1767 = vmatprep.subr.bf16.mxu0 %v1677
    %1768 = vmatpush1.bf16.msra.mxu0 %v1676
    %1769 = vmatprep.subr.bf16.mxu0 0
    %1770 = vmatpush1.bf16.msra.mxu0 0
    %1771 = vmatprep.subr.bf16.mxu0 0
    %1772 = vmatpush1.bf16.msra.mxu0 0
    %1773 = vmatprep.subr.bf16.mxu0 0
    %1774 = vmatpush1.bf16.msra.mxu0 0
    %1775 = vmatprep.subr.bf16.mxu0 0
    %1776 = vmatpush1.bf16.msra.mxu0 0
    %1777 = vmatprep.subr.bf16.mxu0 0
    %1778 = vmatpush1.bf16.msra.mxu0 0
    %1779 = vmatprep.subr.bf16.mxu0 0
    %1780 = vmatpush1.bf16.msra.mxu0 0
    %1781 = vmatprep.subr.bf16.mxu0 0
    %1782 = vmatpush1.bf16.msra.mxu0 0
    %1783 = vmatprep.subr.bf16.mxu0 0
    %1784 = vmatpush1.bf16.msra.mxu0 0
    %1785 = vmatprep.mubr.bf16.mxu0 0
    %1786 = vmatmul.mubr.bf16.gmra.mrb[0].mxu0 %v1498
    %v1787 = vpop.f32.mrb[0].mxu0
    %v1788 = vadd.f32 0.0, %v1787
    %v1789 = vpop.f32.mrb[0].mxu0
    %v1790 = vadd.f32 0.0, %v1789
    %v1791 = vpop.f32.mrb[0].mxu0
    %v1792 = vadd.f32 0.0, %v1791
    %v1793 = vpop.f32.mrb[0].mxu0
    %v1794 = vadd.f32 0.0, %v1793
    %1795 = vdwg.mxu0
    %v1796 = vadd.f32 %v1510, %v1745
    %v1797 = vadd.f32 %v1511, %v1747
    %v1798 = vadd.f32 %v1512, %v1788
    %v1799 = vadd.f32 %v1513, %v1790
    %v1800 = vadd.f32 %v1514, %v1749
    %v1801 = vadd.f32 %v1515, %v1751
    %v1802 = vadd.f32 %v1516, %v1792
    %v1803 = vadd.f32 %v1517, %v1794
    %v1804 = vxor.u32 %v1796, 2147483648
    %v1805 = vxor.u32 %v1800, 2147483648
    %v1806 = vmul.f32 %v1804, 1.442695
    %v1807 = vpow.pop %v1806
    %v1808 = vmul.f32 %v1805, 1.442695
    %v1809 = vpow.pop %v1808
    %v1810 = vadd.f32 %v1807, 1.0
    %v1811 = vadd.f32 %v1809, 1.0
    %v1812 = vrcp.pop %v1810
    %v1813 = vmul.f32 1.0, %v1812
    %v1814 = vrcp.pop %v1811
    %v1815 = vmul.f32 1.0, %v1814
    %v1816 = vxor.u32 %v1797, 2147483648
    %v1817 = vxor.u32 %v1801, 2147483648
    %v1818 = vmul.f32 %v1816, 1.442695
    %v1819 = vpow.pop %v1818
    %v1820 = vmul.f32 %v1817, 1.442695
    %v1821 = vpow.pop %v1820
    %v1822 = vadd.f32 %v1819, 1.0
    %v1823 = vadd.f32 %v1821, 1.0
    %v1824 = vrcp.pop %v1822
    %v1825 = vmul.f32 1.0, %v1824
    %v1826 = vrcp.pop %v1823
    %v1827 = vmul.f32 1.0, %v1826
    %v1828 = vtanh.pop %v1798
    %v1829 = vtanh.pop %v1802
    %v1830 = vxor.u32 %v1799, 2147483648
    %v1831 = vxor.u32 %v1803, 2147483648
    %v1832 = vmul.f32 %v1830, 1.442695
    %v1833 = vpow.pop %v1832
    %v1834 = vmul.f32 %v1831, 1.442695
    %v1835 = vpow.pop %v1834
    %v1836 = vadd.f32 %v1833, 1.0
    %v1837 = vadd.f32 %v1835, 1.0
    %v1838 = vrcp.pop %v1836
    %v1839 = vmul.f32 1.0, %v1838
    %v1840 = vrcp.pop %v1837
    %v1841 = vmul.f32 1.0, %v1840
    %v1842 = vmul.f32 %v1825, %v1492
    %v1843 = vmul.f32 %v1827, %v1493
    %v1844 = vmul.f32 %v1813, %v1828
    %v1845 = vmul.f32 %v1815, %v1829
    %v1846 = vadd.f32 %v1842, %v1844
    %v1847 = vadd.f32 %v1843, %v1845
    %v1848 = vtanh.pop %v1846
    %v1849 = vtanh.pop %v1847
    %v1850 = vmul.f32 %v1839, %v1848
    %v1851 = vmul.f32 %v1841, %v1849
    %v1852 = vpack.c.bf16 %v1851, %v1850
    %v1854 = vunpack.c.l.b16 %v1852
    %v1855 = vunpack.c.h.b16 %v1852
    %v1856 = vpack.c.b16 %v1854, %v1854
    %v1857 = vpack.c.b16 %v1855, %v1855
    %s1860 = scalar_lea.vmem [#allocation12], 32
    %1861 = vst [vmem:[%s1860] sm:$0xf] %v1856
    %1862 = vst [vmem:[%s1860 + $0x4] sm:$0xf] %v1857
    %s1863 = scalar_lea.vmem [#allocation4], 320
    %v1864 = vld [vmem:[%s1863] sm:$0xff]
    %v1865 = vld [vmem:[%s1863 + $0x8] sm:$0xff]
    %v1866 = vld [vmem:[%s1863 + $0x10] sm:$0xff]
    %v1867 = vld [vmem:[%s1863 + $0x18] sm:$0xff]
    %v1868 = vld [vmem:[%s1863 + $0x20] sm:$0xff]
    %v1869 = vld [vmem:[%s1863 + $0x28] sm:$0xff]
    %v1870 = vld [vmem:[%s1863 + $0x30] sm:$0xff]
    %v1871 = vld [vmem:[%s1863 + $0x38] sm:$0xff]
    %v1872 = vld [vmem:[#allocation7] sm:$0xff]
    %v1873 = vld [vmem:[#allocation7 + $0x8] sm:$0xff]
    %v1874 = vld [vmem:[#allocation7 + $0x10] sm:$0xff]
    %v1875 = vld [vmem:[#allocation7 + $0x18] sm:$0xff]
    %v1876 = vld [vmem:[#allocation7 + $0x20] sm:$0xff]
    %v1877 = vld [vmem:[#allocation7 + $0x28] sm:$0xff]
    %v1878 = vld [vmem:[#allocation7 + $0x30] sm:$0xff]
    %v1879 = vld [vmem:[#allocation7 + $0x38] sm:$0xff]
    %v1880 = vld [vmem:[#allocation7 + $0x40] sm:$0xff]
    %v1881 = vld [vmem:[#allocation7 + $0x48] sm:$0xff]
    %v1882 = vld [vmem:[#allocation7 + $0x50] sm:$0xff]
    %v1883 = vld [vmem:[#allocation7 + $0x58] sm:$0xff]
    %v1884 = vld [vmem:[#allocation7 + $0x60] sm:$0xff]
    %v1885 = vld [vmem:[#allocation7 + $0x68] sm:$0xff]
    %v1886 = vld [vmem:[#allocation7 + $0x70] sm:$0xff]
    %v1887 = vld [vmem:[#allocation7 + $0x78] sm:$0xff]
    %v1888 = vld [vmem:[#allocation7 + $0x80] sm:$0xff]
    %v1889 = vld [vmem:[#allocation7 + $0x88] sm:$0xff]
    %v1890 = vld [vmem:[#allocation7 + $0x90] sm:$0xff]
    %v1891 = vld [vmem:[#allocation7 + $0x98] sm:$0xff]
    %v1892 = vld [vmem:[#allocation7 + $0xa0] sm:$0xff]
    %v1893 = vld [vmem:[#allocation7 + $0xa8] sm:$0xff]
    %v1894 = vld [vmem:[#allocation7 + $0xb0] sm:$0xff]
    %v1895 = vld [vmem:[#allocation7 + $0xb8] sm:$0xff]
    %v1896 = vld [vmem:[#allocation7 + $0xc0] sm:$0xff]
    %v1897 = vld [vmem:[#allocation7 + $0xc8] sm:$0xff]
    %v1898 = vld [vmem:[#allocation7 + $0xd0] sm:$0xff]
    %v1899 = vld [vmem:[#allocation7 + $0xd8] sm:$0xff]
    %v1900 = vld [vmem:[#allocation7 + $0xe0] sm:$0xff]
    %v1901 = vld [vmem:[#allocation7 + $0xe8] sm:$0xff]
    %v1902 = vld [vmem:[#allocation7 + $0xf0] sm:$0xff]
    %v1903 = vld [vmem:[#allocation7 + $0xf8] sm:$0xff]
    %v1936 = vunpack.c.l.b16 %v1872
    %v1937 = vunpack.c.h.b16 %v1872
    %v1938 = vunpack.c.l.b16 %v1873
    %v1939 = vunpack.c.h.b16 %v1873
    %v1940 = vunpack.c.l.b16 %v1874
    %v1941 = vunpack.c.h.b16 %v1874
    %v1942 = vunpack.c.l.b16 %v1875
    %v1943 = vunpack.c.h.b16 %v1875
    %v1944 = vunpack.c.l.b16 %v1876
    %v1945 = vunpack.c.h.b16 %v1876
    %v1946 = vunpack.c.l.b16 %v1877
    %v1947 = vunpack.c.h.b16 %v1877
    %v1948 = vunpack.c.l.b16 %v1878
    %v1949 = vunpack.c.h.b16 %v1878
    %v1950 = vunpack.c.l.b16 %v1879
    %v1951 = vunpack.c.h.b16 %v1879
    %v1952 = vunpack.c.l.b16 %v1880
    %v1953 = vunpack.c.h.b16 %v1880
    %v1954 = vunpack.c.l.b16 %v1881
    %v1955 = vunpack.c.h.b16 %v1881
    %v1956 = vunpack.c.l.b16 %v1882
    %v1957 = vunpack.c.h.b16 %v1882
    %v1958 = vunpack.c.l.b16 %v1883
    %v1959 = vunpack.c.h.b16 %v1883
    %v1960 = vunpack.c.l.b16 %v1884
    %v1961 = vunpack.c.h.b16 %v1884
    %v1962 = vunpack.c.l.b16 %v1885
    %v1963 = vunpack.c.h.b16 %v1885
    %v1964 = vunpack.c.l.b16 %v1886
    %v1965 = vunpack.c.h.b16 %v1886
    %v1966 = vunpack.c.l.b16 %v1887
    %v1967 = vunpack.c.h.b16 %v1887
    %v1968 = vunpack.c.l.b16 %v1888
    %v1969 = vunpack.c.h.b16 %v1888
    %v1970 = vunpack.c.l.b16 %v1889
    %v1971 = vunpack.c.h.b16 %v1889
    %v1972 = vunpack.c.l.b16 %v1890
    %v1973 = vunpack.c.h.b16 %v1890
    %v1974 = vunpack.c.l.b16 %v1891
    %v1975 = vunpack.c.h.b16 %v1891
    %v1976 = vunpack.c.l.b16 %v1892
    %v1977 = vunpack.c.h.b16 %v1892
    %v1978 = vunpack.c.l.b16 %v1893
    %v1979 = vunpack.c.h.b16 %v1893
    %v1980 = vunpack.c.l.b16 %v1894
    %v1981 = vunpack.c.h.b16 %v1894
    %v1982 = vunpack.c.l.b16 %v1895
    %v1983 = vunpack.c.h.b16 %v1895
    %v1984 = vunpack.c.l.b16 %v1896
    %v1985 = vunpack.c.h.b16 %v1896
    %v1986 = vunpack.c.l.b16 %v1897
    %v1987 = vunpack.c.h.b16 %v1897
    %v1988 = vunpack.c.l.b16 %v1898
    %v1989 = vunpack.c.h.b16 %v1898
    %v1990 = vunpack.c.l.b16 %v1899
    %v1991 = vunpack.c.h.b16 %v1899
    %v1992 = vunpack.c.l.b16 %v1900
    %v1993 = vunpack.c.h.b16 %v1900
    %v1994 = vunpack.c.l.b16 %v1901
    %v1995 = vunpack.c.h.b16 %v1901
    %v1996 = vunpack.c.l.b16 %v1902
    %v1997 = vunpack.c.h.b16 %v1902
    %v1998 = vunpack.c.l.b16 %v1903
    %v1999 = vunpack.c.h.b16 %v1903
    %v2000 = vpack.c.b16 %v1940, %v1936
    %v2001 = vpack.c.b16 %v1941, %v1937
    %v2002 = vpack.c.b16 %v1942, %v1938
    %v2003 = vpack.c.b16 %v1943, %v1939
    %v2004 = vpack.c.b16 %v1948, %v1944
    %v2005 = vpack.c.b16 %v1949, %v1945
    %v2006 = vpack.c.b16 %v1950, %v1946
    %v2007 = vpack.c.b16 %v1951, %v1947
    %v2008 = vpack.c.b16 %v1956, %v1952
    %v2009 = vpack.c.b16 %v1957, %v1953
    %v2010 = vpack.c.b16 %v1958, %v1954
    %v2011 = vpack.c.b16 %v1959, %v1955
    %v2012 = vpack.c.b16 %v1964, %v1960
    %v2013 = vpack.c.b16 %v1965, %v1961
    %v2014 = vpack.c.b16 %v1966, %v1962
    %v2015 = vpack.c.b16 %v1967, %v1963
    %v2016 = vpack.c.b16 %v1972, %v1968
    %v2017 = vpack.c.b16 %v1973, %v1969
    %v2018 = vpack.c.b16 %v1974, %v1970
    %v2019 = vpack.c.b16 %v1975, %v1971
    %v2020 = vpack.c.b16 %v1980, %v1976
    %v2021 = vpack.c.b16 %v1981, %v1977
    %v2022 = vpack.c.b16 %v1982, %v1978
    %v2023 = vpack.c.b16 %v1983, %v1979
    %v2024 = vpack.c.b16 %v1988, %v1984
    %v2025 = vpack.c.b16 %v1989, %v1985
    %v2026 = vpack.c.b16 %v1990, %v1986
    %v2027 = vpack.c.b16 %v1991, %v1987
    %v2028 = vpack.c.b16 %v1996, %v1992
    %v2029 = vpack.c.b16 %v1997, %v1993
    %v2030 = vpack.c.b16 %v1998, %v1994
    %v2031 = vpack.c.b16 %v1999, %v1995
    %2064 = vmatprep.subr.bf16.mxu0 %v2001
    %2065 = vmatpush1.bf16.msra.mxu0 %v2000
    %2066 = vmatprep.subr.bf16.mxu0 %v2005
    %2067 = vmatpush1.bf16.msra.mxu0 %v2004
    %2068 = vmatprep.subr.bf16.mxu0 %v2009
    %2069 = vmatpush1.bf16.msra.mxu0 %v2008
    %2070 = vmatprep.subr.bf16.mxu0 %v2013
    %2071 = vmatpush1.bf16.msra.mxu0 %v2012
    %2072 = vmatprep.subr.bf16.mxu0 %v2017
    %2073 = vmatpush1.bf16.msra.mxu0 %v2016
    %2074 = vmatprep.subr.bf16.mxu0 %v2021
    %2075 = vmatpush1.bf16.msra.mxu0 %v2020
    %2076 = vmatprep.subr.bf16.mxu0 %v2025
    %2077 = vmatpush1.bf16.msra.mxu0 %v2024
    %2078 = vmatprep.subr.bf16.mxu0 %v2029
    %2079 = vmatpush1.bf16.msra.mxu0 %v2028
    %2080 = vmatprep.subr.bf16.mxu0 0
    %2081 = vmatpush1.bf16.msra.mxu0 0
    %2082 = vmatprep.subr.bf16.mxu0 0
    %2083 = vmatpush1.bf16.msra.mxu0 0
    %2084 = vmatprep.subr.bf16.mxu0 0
    %2085 = vmatpush1.bf16.msra.mxu0 0
    %2086 = vmatprep.subr.bf16.mxu0 0
    %2087 = vmatpush1.bf16.msra.mxu0 0
    %2088 = vmatprep.subr.bf16.mxu0 0
    %2089 = vmatpush1.bf16.msra.mxu0 0
    %2090 = vmatprep.subr.bf16.mxu0 0
    %2091 = vmatpush1.bf16.msra.mxu0 0
    %2092 = vmatprep.subr.bf16.mxu0 0
    %2093 = vmatpush1.bf16.msra.mxu0 0
    %2094 = vmatprep.subr.bf16.mxu0 0
    %2095 = vmatpush1.bf16.msra.mxu0 0
    %2096 = vmatprep.mubr.bf16.mxu0 0
    %2097 = vmatmul.mubr.bf16.gmra.mrb[0].mxu0 %v1852
    %v2098 = vpop.f32.mrb[0].mxu0
    %v2099 = vadd.f32 0.0, %v2098
    %v2100 = vpop.f32.mrb[0].mxu0
    %v2101 = vadd.f32 0.0, %v2100
    %v2102 = vpop.f32.mrb[0].mxu0
    %v2103 = vadd.f32 0.0, %v2102
    %v2104 = vpop.f32.mrb[0].mxu0
    %v2105 = vadd.f32 0.0, %v2104
    %2106 = vdwg.mxu0
    %2107 = vmatprep.subr.bf16.mxu0 %v2003
    %2108 = vmatpush1.bf16.msra.mxu0 %v2002
    %2109 = vmatprep.subr.bf16.mxu0 %v2007
    %2110 = vmatpush1.bf16.msra.mxu0 %v2006
    %2111 = vmatprep.subr.bf16.mxu0 %v2011
    %2112 = vmatpush1.bf16.msra.mxu0 %v2010
    %2113 = vmatprep.subr.bf16.mxu0 %v2015
    %2114 = vmatpush1.bf16.msra.mxu0 %v2014
    %2115 = vmatprep.subr.bf16.mxu0 %v2019
    %2116 = vmatpush1.bf16.msra.mxu0 %v2018
    %2117 = vmatprep.subr.bf16.mxu0 %v2023
    %2118 = vmatpush1.bf16.msra.mxu0 %v2022
    %2119 = vmatprep.subr.bf16.mxu0 %v2027
    %2120 = vmatpush1.bf16.msra.mxu0 %v2026
    %2121 = vmatprep.subr.bf16.mxu0 %v2031
    %2122 = vmatpush1.bf16.msra.mxu0 %v2030
    %2123 = vmatprep.subr.bf16.mxu0 0
    %2124 = vmatpush1.bf16.msra.mxu0 0
    %2125 = vmatprep.subr.bf16.mxu0 0
    %2126 = vmatpush1.bf16.msra.mxu0 0
    %2127 = vmatprep.subr.bf16.mxu0 0
    %2128 = vmatpush1.bf16.msra.mxu0 0
    %2129 = vmatprep.subr.bf16.mxu0 0
    %2130 = vmatpush1.bf16.msra.mxu0 0
    %2131 = vmatprep.subr.bf16.mxu0 0
    %2132 = vmatpush1.bf16.msra.mxu0 0
    %2133 = vmatprep.subr.bf16.mxu0 0
    %2134 = vmatpush1.bf16.msra.mxu0 0
    %2135 = vmatprep.subr.bf16.mxu0 0
    %2136 = vmatpush1.bf16.msra.mxu0 0
    %2137 = vmatprep.subr.bf16.mxu0 0
    %2138 = vmatpush1.bf16.msra.mxu0 0
    %2139 = vmatprep.mubr.bf16.mxu0 0
    %2140 = vmatmul.mubr.bf16.gmra.mrb[0].mxu0 %v1852
    %v2141 = vpop.f32.mrb[0].mxu0
    %v2142 = vadd.f32 0.0, %v2141
    %v2143 = vpop.f32.mrb[0].mxu0
    %v2144 = vadd.f32 0.0, %v2143
    %v2145 = vpop.f32.mrb[0].mxu0
    %v2146 = vadd.f32 0.0, %v2145
    %v2147 = vpop.f32.mrb[0].mxu0
    %v2148 = vadd.f32 0.0, %v2147
    %2149 = vdwg.mxu0
    %v2150 = vadd.f32 %v1864, %v2099
    %v2151 = vadd.f32 %v1865, %v2101
    %v2152 = vadd.f32 %v1866, %v2142
    %v2153 = vadd.f32 %v1867, %v2144
    %v2154 = vadd.f32 %v1868, %v2103
    %v2155 = vadd.f32 %v1869, %v2105
    %v2156 = vadd.f32 %v1870, %v2146
    %v2157 = vadd.f32 %v1871, %v2148
    %v2158 = vxor.u32 %v2150, 2147483648
    %v2159 = vxor.u32 %v2154, 2147483648
    %v2160 = vmul.f32 %v2158, 1.442695
    %v2161 = vpow.pop %v2160
    %v2162 = vmul.f32 %v2159, 1.442695
    %v2163 = vpow.pop %v2162
    %v2164 = vadd.f32 %v2161, 1.0
    %v2165 = vadd.f32 %v2163, 1.0
    %v2166 = vrcp.pop %v2164
    %v2167 = vmul.f32 1.0, %v2166
    %v2168 = vrcp.pop %v2165
    %v2169 = vmul.f32 1.0, %v2168
    %v2170 = vxor.u32 %v2151, 2147483648
    %v2171 = vxor.u32 %v2155, 2147483648
    %v2172 = vmul.f32 %v2170, 1.442695
    %v2173 = vpow.pop %v2172
    %v2174 = vmul.f32 %v2171, 1.442695
    %v2175 = vpow.pop %v2174
    %v2176 = vadd.f32 %v2173, 1.0
    %v2177 = vadd.f32 %v2175, 1.0
    %v2178 = vrcp.pop %v2176
    %v2179 = vmul.f32 1.0, %v2178
    %v2180 = vrcp.pop %v2177
    %v2181 = vmul.f32 1.0, %v2180
    %v2182 = vtanh.pop %v2152
    %v2183 = vtanh.pop %v2156
    %v2184 = vxor.u32 %v2153, 2147483648
    %v2185 = vxor.u32 %v2157, 2147483648
    %v2186 = vmul.f32 %v2184, 1.442695
    %v2187 = vpow.pop %v2186
    %v2188 = vmul.f32 %v2185, 1.442695
    %v2189 = vpow.pop %v2188
    %v2190 = vadd.f32 %v2187, 1.0
    %v2191 = vadd.f32 %v2189, 1.0
    %v2192 = vrcp.pop %v2190
    %v2193 = vmul.f32 1.0, %v2192
    %v2194 = vrcp.pop %v2191
    %v2195 = vmul.f32 1.0, %v2194
    %v2196 = vmul.f32 %v2179, %v1846
    %v2197 = vmul.f32 %v2181, %v1847
    %v2198 = vmul.f32 %v2167, %v2182
    %v2199 = vmul.f32 %v2169, %v2183
    %v2200 = vadd.f32 %v2196, %v2198
    %v2201 = vadd.f32 %v2197, %v2199
    %v2202 = vtanh.pop %v2200
    %v2203 = vtanh.pop %v2201
    %v2204 = vmul.f32 %v2193, %v2202
    %v2205 = vmul.f32 %v2195, %v2203
    %v2206 = vpack.c.bf16 %v2205, %v2204
    %v2208 = vunpack.c.l.b16 %v2206
    %v2209 = vunpack.c.h.b16 %v2206
    %v2210 = vpack.c.b16 %v2208, %v2208
    %v2211 = vpack.c.b16 %v2209, %v2209
    %s2214 = scalar_lea.vmem [#allocation12], 40
    %2215 = vst [vmem:[%s2214] sm:$0xf] %v2210
    %2216 = vst [vmem:[%s2214 + $0x4] sm:$0xf] %v2211
    %s2217 = scalar_lea.vmem [#allocation4], 384
    %v2218 = vld [vmem:[%s2217] sm:$0xff]
    %v2219 = vld [vmem:[%s2217 + $0x8] sm:$0xff]
    %v2220 = vld [vmem:[%s2217 + $0x10] sm:$0xff]
    %v2221 = vld [vmem:[%s2217 + $0x18] sm:$0xff]
    %v2222 = vld [vmem:[%s2217 + $0x20] sm:$0xff]
    %v2223 = vld [vmem:[%s2217 + $0x28] sm:$0xff]
    %v2224 = vld [vmem:[%s2217 + $0x30] sm:$0xff]
    %v2225 = vld [vmem:[%s2217 + $0x38] sm:$0xff]
    %v2226 = vld [vmem:[#allocation7] sm:$0xff]
    %v2227 = vld [vmem:[#allocation7 + $0x8] sm:$0xff]
    %v2228 = vld [vmem:[#allocation7 + $0x10] sm:$0xff]
    %v2229 = vld [vmem:[#allocation7 + $0x18] sm:$0xff]
    %v2230 = vld [vmem:[#allocation7 + $0x20] sm:$0xff]
    %v2231 = vld [vmem:[#allocation7 + $0x28] sm:$0xff]
    %v2232 = vld [vmem:[#allocation7 + $0x30] sm:$0xff]
    %v2233 = vld [vmem:[#allocation7 + $0x38] sm:$0xff]
    %v2234 = vld [vmem:[#allocation7 + $0x40] sm:$0xff]
    %v2235 = vld [vmem:[#allocation7 + $0x48] sm:$0xff]
    %v2236 = vld [vmem:[#allocation7 + $0x50] sm:$0xff]
    %v2237 = vld [vmem:[#allocation7 + $0x58] sm:$0xff]
    %v2238 = vld [vmem:[#allocation7 + $0x60] sm:$0xff]
    %v2239 = vld [vmem:[#allocation7 + $0x68] sm:$0xff]
    %v2240 = vld [vmem:[#allocation7 + $0x70] sm:$0xff]
    %v2241 = vld [vmem:[#allocation7 + $0x78] sm:$0xff]
    %v2242 = vld [vmem:[#allocation7 + $0x80] sm:$0xff]
    %v2243 = vld [vmem:[#allocation7 + $0x88] sm:$0xff]
    %v2244 = vld [vmem:[#allocation7 + $0x90] sm:$0xff]
    %v2245 = vld [vmem:[#allocation7 + $0x98] sm:$0xff]
    %v2246 = vld [vmem:[#allocation7 + $0xa0] sm:$0xff]
    %v2247 = vld [vmem:[#allocation7 + $0xa8] sm:$0xff]
    %v2248 = vld [vmem:[#allocation7 + $0xb0] sm:$0xff]
    %v2249 = vld [vmem:[#allocation7 + $0xb8] sm:$0xff]
    %v2250 = vld [vmem:[#allocation7 + $0xc0] sm:$0xff]
    %v2251 = vld [vmem:[#allocation7 + $0xc8] sm:$0xff]
    %v2252 = vld [vmem:[#allocation7 + $0xd0] sm:$0xff]
    %v2253 = vld [vmem:[#allocation7 + $0xd8] sm:$0xff]
    %v2254 = vld [vmem:[#allocation7 + $0xe0] sm:$0xff]
    %v2255 = vld [vmem:[#allocation7 + $0xe8] sm:$0xff]
    %v2256 = vld [vmem:[#allocation7 + $0xf0] sm:$0xff]
    %v2257 = vld [vmem:[#allocation7 + $0xf8] sm:$0xff]
    %v2290 = vunpack.c.l.b16 %v2226
    %v2291 = vunpack.c.h.b16 %v2226
    %v2292 = vunpack.c.l.b16 %v2227
    %v2293 = vunpack.c.h.b16 %v2227
    %v2294 = vunpack.c.l.b16 %v2228
    %v2295 = vunpack.c.h.b16 %v2228
    %v2296 = vunpack.c.l.b16 %v2229
    %v2297 = vunpack.c.h.b16 %v2229
    %v2298 = vunpack.c.l.b16 %v2230
    %v2299 = vunpack.c.h.b16 %v2230
    %v2300 = vunpack.c.l.b16 %v2231
    %v2301 = vunpack.c.h.b16 %v2231
    %v2302 = vunpack.c.l.b16 %v2232
    %v2303 = vunpack.c.h.b16 %v2232
    %v2304 = vunpack.c.l.b16 %v2233
    %v2305 = vunpack.c.h.b16 %v2233
    %v2306 = vunpack.c.l.b16 %v2234
    %v2307 = vunpack.c.h.b16 %v2234
    %v2308 = vunpack.c.l.b16 %v2235
    %v2309 = vunpack.c.h.b16 %v2235
    %v2310 = vunpack.c.l.b16 %v2236
    %v2311 = vunpack.c.h.b16 %v2236
    %v2312 = vunpack.c.l.b16 %v2237
    %v2313 = vunpack.c.h.b16 %v2237
    %v2314 = vunpack.c.l.b16 %v2238
    %v2315 = vunpack.c.h.b16 %v2238
    %v2316 = vunpack.c.l.b16 %v2239
    %v2317 = vunpack.c.h.b16 %v2239
    %v2318 = vunpack.c.l.b16 %v2240
    %v2319 = vunpack.c.h.b16 %v2240
    %v2320 = vunpack.c.l.b16 %v2241
    %v2321 = vunpack.c.h.b16 %v2241
    %v2322 = vunpack.c.l.b16 %v2242
    %v2323 = vunpack.c.h.b16 %v2242
    %v2324 = vunpack.c.l.b16 %v2243
    %v2325 = vunpack.c.h.b16 %v2243
    %v2326 = vunpack.c.l.b16 %v2244
    %v2327 = vunpack.c.h.b16 %v2244
    %v2328 = vunpack.c.l.b16 %v2245
    %v2329 = vunpack.c.h.b16 %v2245
    %v2330 = vunpack.c.l.b16 %v2246
    %v2331 = vunpack.c.h.b16 %v2246
    %v2332 = vunpack.c.l.b16 %v2247
    %v2333 = vunpack.c.h.b16 %v2247
    %v2334 = vunpack.c.l.b16 %v2248
    %v2335 = vunpack.c.h.b16 %v2248
    %v2336 = vunpack.c.l.b16 %v2249
    %v2337 = vunpack.c.h.b16 %v2249
    %v2338 = vunpack.c.l.b16 %v2250
    %v2339 = vunpack.c.h.b16 %v2250
    %v2340 = vunpack.c.l.b16 %v2251
    %v2341 = vunpack.c.h.b16 %v2251
    %v2342 = vunpack.c.l.b16 %v2252
    %v2343 = vunpack.c.h.b16 %v2252
    %v2344 = vunpack.c.l.b16 %v2253
    %v2345 = vunpack.c.h.b16 %v2253
    %v2346 = vunpack.c.l.b16 %v2254
    %v2347 = vunpack.c.h.b16 %v2254
    %v2348 = vunpack.c.l.b16 %v2255
    %v2349 = vunpack.c.h.b16 %v2255
    %v2350 = vunpack.c.l.b16 %v2256
    %v2351 = vunpack.c.h.b16 %v2256
    %v2352 = vunpack.c.l.b16 %v2257
    %v2353 = vunpack.c.h.b16 %v2257
    %v2354 = vpack.c.b16 %v2294, %v2290
    %v2355 = vpack.c.b16 %v2295, %v2291
    %v2356 = vpack.c.b16 %v2296, %v2292
    %v2357 = vpack.c.b16 %v2297, %v2293
    %v2358 = vpack.c.b16 %v2302, %v2298
    %v2359 = vpack.c.b16 %v2303, %v2299
    %v2360 = vpack.c.b16 %v2304, %v2300
    %v2361 = vpack.c.b16 %v2305, %v2301
    %v2362 = vpack.c.b16 %v2310, %v2306
    %v2363 = vpack.c.b16 %v2311, %v2307
    %v2364 = vpack.c.b16 %v2312, %v2308
    %v2365 = vpack.c.b16 %v2313, %v2309
    %v2366 = vpack.c.b16 %v2318, %v2314
    %v2367 = vpack.c.b16 %v2319, %v2315
    %v2368 = vpack.c.b16 %v2320, %v2316
    %v2369 = vpack.c.b16 %v2321, %v2317
    %v2370 = vpack.c.b16 %v2326, %v2322
    %v2371 = vpack.c.b16 %v2327, %v2323
    %v2372 = vpack.c.b16 %v2328, %v2324
    %v2373 = vpack.c.b16 %v2329, %v2325
    %v2374 = vpack.c.b16 %v2334, %v2330
    %v2375 = vpack.c.b16 %v2335, %v2331
    %v2376 = vpack.c.b16 %v2336, %v2332
    %v2377 = vpack.c.b16 %v2337, %v2333
    %v2378 = vpack.c.b16 %v2342, %v2338
    %v2379 = vpack.c.b16 %v2343, %v2339
    %v2380 = vpack.c.b16 %v2344, %v2340
    %v2381 = vpack.c.b16 %v2345, %v2341
    %v2382 = vpack.c.b16 %v2350, %v2346
    %v2383 = vpack.c.b16 %v2351, %v2347
    %v2384 = vpack.c.b16 %v2352, %v2348
    %v2385 = vpack.c.b16 %v2353, %v2349
    %2418 = vmatprep.subr.bf16.mxu0 %v2355
    %2419 = vmatpush1.bf16.msra.mxu0 %v2354
    %2420 = vmatprep.subr.bf16.mxu0 %v2359
    %2421 = vmatpush1.bf16.msra.mxu0 %v2358
    %2422 = vmatprep.subr.bf16.mxu0 %v2363
    %2423 = vmatpush1.bf16.msra.mxu0 %v2362
    %2424 = vmatprep.subr.bf16.mxu0 %v2367
    %2425 = vmatpush1.bf16.msra.mxu0 %v2366
    %2426 = vmatprep.subr.bf16.mxu0 %v2371
    %2427 = vmatpush1.bf16.msra.mxu0 %v2370
    %2428 = vmatprep.subr.bf16.mxu0 %v2375
    %2429 = vmatpush1.bf16.msra.mxu0 %v2374
    %2430 = vmatprep.subr.bf16.mxu0 %v2379
    %2431 = vmatpush1.bf16.msra.mxu0 %v2378
    %2432 = vmatprep.subr.bf16.mxu0 %v2383
    %2433 = vmatpush1.bf16.msra.mxu0 %v2382
    %2434 = vmatprep.subr.bf16.mxu0 0
    %2435 = vmatpush1.bf16.msra.mxu0 0
    %2436 = vmatprep.subr.bf16.mxu0 0
    %2437 = vmatpush1.bf16.msra.mxu0 0
    %2438 = vmatprep.subr.bf16.mxu0 0
    %2439 = vmatpush1.bf16.msra.mxu0 0
    %2440 = vmatprep.subr.bf16.mxu0 0
    %2441 = vmatpush1.bf16.msra.mxu0 0
    %2442 = vmatprep.subr.bf16.mxu0 0
    %2443 = vmatpush1.bf16.msra.mxu0 0
    %2444 = vmatprep.subr.bf16.mxu0 0
    %2445 = vmatpush1.bf16.msra.mxu0 0
    %2446 = vmatprep.subr.bf16.mxu0 0
    %2447 = vmatpush1.bf16.msra.mxu0 0
    %2448 = vmatprep.subr.bf16.mxu0 0
    %2449 = vmatpush1.bf16.msra.mxu0 0
    %2450 = vmatprep.mubr.bf16.mxu0 0
    %2451 = vmatmul.mubr.bf16.gmra.mrb[0].mxu0 %v2206
    %v2452 = vpop.f32.mrb[0].mxu0
    %v2453 = vadd.f32 0.0, %v2452
    %v2454 = vpop.f32.mrb[0].mxu0
    %v2455 = vadd.f32 0.0, %v2454
    %v2456 = vpop.f32.mrb[0].mxu0
    %v2457 = vadd.f32 0.0, %v2456
    %v2458 = vpop.f32.mrb[0].mxu0
    %v2459 = vadd.f32 0.0, %v2458
    %2460 = vdwg.mxu0
    %2461 = vmatprep.subr.bf16.mxu0 %v2357
    %2462 = vmatpush1.bf16.msra.mxu0 %v2356
    %2463 = vmatprep.subr.bf16.mxu0 %v2361
    %2464 = vmatpush1.bf16.msra.mxu0 %v2360
    %2465 = vmatprep.subr.bf16.mxu0 %v2365
    %2466 = vmatpush1.bf16.msra.mxu0 %v2364
    %2467 = vmatprep.subr.bf16.mxu0 %v2369
    %2468 = vmatpush1.bf16.msra.mxu0 %v2368
    %2469 = vmatprep.subr.bf16.mxu0 %v2373
    %2470 = vmatpush1.bf16.msra.mxu0 %v2372
    %2471 = vmatprep.subr.bf16.mxu0 %v2377
    %2472 = vmatpush1.bf16.msra.mxu0 %v2376
    %2473 = vmatprep.subr.bf16.mxu0 %v2381
    %2474 = vmatpush1.bf16.msra.mxu0 %v2380
    %2475 = vmatprep.subr.bf16.mxu0 %v2385
    %2476 = vmatpush1.bf16.msra.mxu0 %v2384
    %2477 = vmatprep.subr.bf16.mxu0 0
    %2478 = vmatpush1.bf16.msra.mxu0 0
    %2479 = vmatprep.subr.bf16.mxu0 0
    %2480 = vmatpush1.bf16.msra.mxu0 0
    %2481 = vmatprep.subr.bf16.mxu0 0
    %2482 = vmatpush1.bf16.msra.mxu0 0
    %2483 = vmatprep.subr.bf16.mxu0 0
    %2484 = vmatpush1.bf16.msra.mxu0 0
    %2485 = vmatprep.subr.bf16.mxu0 0
    %2486 = vmatpush1.bf16.msra.mxu0 0
    %2487 = vmatprep.subr.bf16.mxu0 0
    %2488 = vmatpush1.bf16.msra.mxu0 0
    %2489 = vmatprep.subr.bf16.mxu0 0
    %2490 = vmatpush1.bf16.msra.mxu0 0
    %2491 = vmatprep.subr.bf16.mxu0 0
    %2492 = vmatpush1.bf16.msra.mxu0 0
    %2493 = vmatprep.mubr.bf16.mxu0 0
    %2494 = vmatmul.mubr.bf16.gmra.mrb[0].mxu0 %v2206
    %v2495 = vpop.f32.mrb[0].mxu0
    %v2496 = vadd.f32 0.0, %v2495
    %v2497 = vpop.f32.mrb[0].mxu0
    %v2498 = vadd.f32 0.0, %v2497
    %v2499 = vpop.f32.mrb[0].mxu0
    %v2500 = vadd.f32 0.0, %v2499
    %v2501 = vpop.f32.mrb[0].mxu0
    %v2502 = vadd.f32 0.0, %v2501
    %2503 = vdwg.mxu0
    %v2504 = vadd.f32 %v2218, %v2453
    %v2505 = vadd.f32 %v2219, %v2455
    %v2506 = vadd.f32 %v2220, %v2496
    %v2507 = vadd.f32 %v2221, %v2498
    %v2508 = vadd.f32 %v2222, %v2457
    %v2509 = vadd.f32 %v2223, %v2459
    %v2510 = vadd.f32 %v2224, %v2500
    %v2511 = vadd.f32 %v2225, %v2502
    %v2512 = vxor.u32 %v2504, 2147483648
    %v2513 = vxor.u32 %v2508, 2147483648
    %v2514 = vmul.f32 %v2512, 1.442695
    %v2515 = vpow.pop %v2514
    %v2516 = vmul.f32 %v2513, 1.442695
    %v2517 = vpow.pop %v2516
    %v2518 = vadd.f32 %v2515, 1.0
    %v2519 = vadd.f32 %v2517, 1.0
    %v2520 = vrcp.pop %v2518
    %v2521 = vmul.f32 1.0, %v2520
    %v2522 = vrcp.pop %v2519
    %v2523 = vmul.f32 1.0, %v2522
    %v2524 = vxor.u32 %v2505, 2147483648
    %v2525 = vxor.u32 %v2509, 2147483648
    %v2526 = vmul.f32 %v2524, 1.442695
    %v2527 = vpow.pop %v2526
    %v2528 = vmul.f32 %v2525, 1.442695
    %v2529 = vpow.pop %v2528
    %v2530 = vadd.f32 %v2527, 1.0
    %v2531 = vadd.f32 %v2529, 1.0
    %v2532 = vrcp.pop %v2530
    %v2533 = vmul.f32 1.0, %v2532
    %v2534 = vrcp.pop %v2531
    %v2535 = vmul.f32 1.0, %v2534
    %v2536 = vtanh.pop %v2506
    %v2537 = vtanh.pop %v2510
    %v2538 = vxor.u32 %v2507, 2147483648
    %v2539 = vxor.u32 %v2511, 2147483648
    %v2540 = vmul.f32 %v2538, 1.442695
    %v2541 = vpow.pop %v2540
    %v2542 = vmul.f32 %v2539, 1.442695
    %v2543 = vpow.pop %v2542
    %v2544 = vadd.f32 %v2541, 1.0
    %v2545 = vadd.f32 %v2543, 1.0
    %v2546 = vrcp.pop %v2544
    %v2547 = vmul.f32 1.0, %v2546
    %v2548 = vrcp.pop %v2545
    %v2549 = vmul.f32 1.0, %v2548
    %v2550 = vmul.f32 %v2533, %v2200
    %v2551 = vmul.f32 %v2535, %v2201
    %v2552 = vmul.f32 %v2521, %v2536
    %v2553 = vmul.f32 %v2523, %v2537
    %v2554 = vadd.f32 %v2550, %v2552
    %v2555 = vadd.f32 %v2551, %v2553
    %v2556 = vtanh.pop %v2554
    %v2557 = vtanh.pop %v2555
    %v2558 = vmul.f32 %v2547, %v2556
    %v2559 = vmul.f32 %v2549, %v2557
    %v2560 = vpack.c.bf16 %v2559, %v2558
    %v2562 = vunpack.c.l.b16 %v2560
    %v2563 = vunpack.c.h.b16 %v2560
    %v2564 = vpack.c.b16 %v2562, %v2562
    %v2565 = vpack.c.b16 %v2563, %v2563
    %s2568 = scalar_lea.vmem [#allocation12], 48
    %2569 = vst [vmem:[%s2568] sm:$0xf] %v2564
    %2570 = vst [vmem:[%s2568 + $0x4] sm:$0xf] %v2565
    %s2571 = scalar_lea.vmem [#allocation4], 448
    %v2572 = vld [vmem:[%s2571] sm:$0xff]
    %v2573 = vld [vmem:[%s2571 + $0x8] sm:$0xff]
    %v2574 = vld [vmem:[%s2571 + $0x10] sm:$0xff]
    %v2575 = vld [vmem:[%s2571 + $0x18] sm:$0xff]
    %v2576 = vld [vmem:[%s2571 + $0x20] sm:$0xff]
    %v2577 = vld [vmem:[%s2571 + $0x28] sm:$0xff]
    %v2578 = vld [vmem:[%s2571 + $0x30] sm:$0xff]
    %v2579 = vld [vmem:[%s2571 + $0x38] sm:$0xff]
    %v2580 = vld [vmem:[#allocation7] sm:$0xff]
    %v2581 = vld [vmem:[#allocation7 + $0x8] sm:$0xff]
    %v2582 = vld [vmem:[#allocation7 + $0x10] sm:$0xff]
    %v2583 = vld [vmem:[#allocation7 + $0x18] sm:$0xff]
    %v2584 = vld [vmem:[#allocation7 + $0x20] sm:$0xff]
    %v2585 = vld [vmem:[#allocation7 + $0x28] sm:$0xff]
    %v2586 = vld [vmem:[#allocation7 + $0x30] sm:$0xff]
    %v2587 = vld [vmem:[#allocation7 + $0x38] sm:$0xff]
    %v2588 = vld [vmem:[#allocation7 + $0x40] sm:$0xff]
    %v2589 = vld [vmem:[#allocation7 + $0x48] sm:$0xff]
    %v2590 = vld [vmem:[#allocation7 + $0x50] sm:$0xff]
    %v2591 = vld [vmem:[#allocation7 + $0x58] sm:$0xff]
    %v2592 = vld [vmem:[#allocation7 + $0x60] sm:$0xff]
    %v2593 = vld [vmem:[#allocation7 + $0x68] sm:$0xff]
    %v2594 = vld [vmem:[#allocation7 + $0x70] sm:$0xff]
    %v2595 = vld [vmem:[#allocation7 + $0x78] sm:$0xff]
    %v2596 = vld [vmem:[#allocation7 + $0x80] sm:$0xff]
    %v2597 = vld [vmem:[#allocation7 + $0x88] sm:$0xff]
    %v2598 = vld [vmem:[#allocation7 + $0x90] sm:$0xff]
    %v2599 = vld [vmem:[#allocation7 + $0x98] sm:$0xff]
    %v2600 = vld [vmem:[#allocation7 + $0xa0] sm:$0xff]
    %v2601 = vld [vmem:[#allocation7 + $0xa8] sm:$0xff]
    %v2602 = vld [vmem:[#allocation7 + $0xb0] sm:$0xff]
    %v2603 = vld [vmem:[#allocation7 + $0xb8] sm:$0xff]
    %v2604 = vld [vmem:[#allocation7 + $0xc0] sm:$0xff]
    %v2605 = vld [vmem:[#allocation7 + $0xc8] sm:$0xff]
    %v2606 = vld [vmem:[#allocation7 + $0xd0] sm:$0xff]
    %v2607 = vld [vmem:[#allocation7 + $0xd8] sm:$0xff]
    %v2608 = vld [vmem:[#allocation7 + $0xe0] sm:$0xff]
    %v2609 = vld [vmem:[#allocation7 + $0xe8] sm:$0xff]
    %v2610 = vld [vmem:[#allocation7 + $0xf0] sm:$0xff]
    %v2611 = vld [vmem:[#allocation7 + $0xf8] sm:$0xff]
    %v2644 = vunpack.c.l.b16 %v2580
    %v2645 = vunpack.c.h.b16 %v2580
    %v2646 = vunpack.c.l.b16 %v2581
    %v2647 = vunpack.c.h.b16 %v2581
    %v2648 = vunpack.c.l.b16 %v2582
    %v2649 = vunpack.c.h.b16 %v2582
    %v2650 = vunpack.c.l.b16 %v2583
    %v2651 = vunpack.c.h.b16 %v2583
    %v2652 = vunpack.c.l.b16 %v2584
    %v2653 = vunpack.c.h.b16 %v2584
    %v2654 = vunpack.c.l.b16 %v2585
    %v2655 = vunpack.c.h.b16 %v2585
    %v2656 = vunpack.c.l.b16 %v2586
    %v2657 = vunpack.c.h.b16 %v2586
    %v2658 = vunpack.c.l.b16 %v2587
    %v2659 = vunpack.c.h.b16 %v2587
    %v2660 = vunpack.c.l.b16 %v2588
    %v2661 = vunpack.c.h.b16 %v2588
    %v2662 = vunpack.c.l.b16 %v2589
    %v2663 = vunpack.c.h.b16 %v2589
    %v2664 = vunpack.c.l.b16 %v2590
    %v2665 = vunpack.c.h.b16 %v2590
    %v2666 = vunpack.c.l.b16 %v2591
    %v2667 = vunpack.c.h.b16 %v2591
    %v2668 = vunpack.c.l.b16 %v2592
    %v2669 = vunpack.c.h.b16 %v2592
    %v2670 = vunpack.c.l.b16 %v2593
    %v2671 = vunpack.c.h.b16 %v2593
    %v2672 = vunpack.c.l.b16 %v2594
    %v2673 = vunpack.c.h.b16 %v2594
    %v2674 = vunpack.c.l.b16 %v2595
    %v2675 = vunpack.c.h.b16 %v2595
    %v2676 = vunpack.c.l.b16 %v2596
    %v2677 = vunpack.c.h.b16 %v2596
    %v2678 = vunpack.c.l.b16 %v2597
    %v2679 = vunpack.c.h.b16 %v2597
    %v2680 = vunpack.c.l.b16 %v2598
    %v2681 = vunpack.c.h.b16 %v2598
    %v2682 = vunpack.c.l.b16 %v2599
    %v2683 = vunpack.c.h.b16 %v2599
    %v2684 = vunpack.c.l.b16 %v2600
    %v2685 = vunpack.c.h.b16 %v2600
    %v2686 = vunpack.c.l.b16 %v2601
    %v2687 = vunpack.c.h.b16 %v2601
    %v2688 = vunpack.c.l.b16 %v2602
    %v2689 = vunpack.c.h.b16 %v2602
    %v2690 = vunpack.c.l.b16 %v2603
    %v2691 = vunpack.c.h.b16 %v2603
    %v2692 = vunpack.c.l.b16 %v2604
    %v2693 = vunpack.c.h.b16 %v2604
    %v2694 = vunpack.c.l.b16 %v2605
    %v2695 = vunpack.c.h.b16 %v2605
    %v2696 = vunpack.c.l.b16 %v2606
    %v2697 = vunpack.c.h.b16 %v2606
    %v2698 = vunpack.c.l.b16 %v2607
    %v2699 = vunpack.c.h.b16 %v2607
    %v2700 = vunpack.c.l.b16 %v2608
    %v2701 = vunpack.c.h.b16 %v2608
    %v2702 = vunpack.c.l.b16 %v2609
    %v2703 = vunpack.c.h.b16 %v2609
    %v2704 = vunpack.c.l.b16 %v2610
    %v2705 = vunpack.c.h.b16 %v2610
    %v2706 = vunpack.c.l.b16 %v2611
    %v2707 = vunpack.c.h.b16 %v2611
    %v2708 = vpack.c.b16 %v2648, %v2644
    %v2709 = vpack.c.b16 %v2649, %v2645
    %v2710 = vpack.c.b16 %v2650, %v2646
    %v2711 = vpack.c.b16 %v2651, %v2647
    %v2712 = vpack.c.b16 %v2656, %v2652
    %v2713 = vpack.c.b16 %v2657, %v2653
    %v2714 = vpack.c.b16 %v2658, %v2654
    %v2715 = vpack.c.b16 %v2659, %v2655
    %v2716 = vpack.c.b16 %v2664, %v2660
    %v2717 = vpack.c.b16 %v2665, %v2661
    %v2718 = vpack.c.b16 %v2666, %v2662
    %v2719 = vpack.c.b16 %v2667, %v2663
    %v2720 = vpack.c.b16 %v2672, %v2668
    %v2721 = vpack.c.b16 %v2673, %v2669
    %v2722 = vpack.c.b16 %v2674, %v2670
    %v2723 = vpack.c.b16 %v2675, %v2671
    %v2724 = vpack.c.b16 %v2680, %v2676
    %v2725 = vpack.c.b16 %v2681, %v2677
    %v2726 = vpack.c.b16 %v2682, %v2678
    %v2727 = vpack.c.b16 %v2683, %v2679
    %v2728 = vpack.c.b16 %v2688, %v2684
    %v2729 = vpack.c.b16 %v2689, %v2685
    %v2730 = vpack.c.b16 %v2690, %v2686
    %v2731 = vpack.c.b16 %v2691, %v2687
    %v2732 = vpack.c.b16 %v2696, %v2692
    %v2733 = vpack.c.b16 %v2697, %v2693
    %v2734 = vpack.c.b16 %v2698, %v2694
    %v2735 = vpack.c.b16 %v2699, %v2695
    %v2736 = vpack.c.b16 %v2704, %v2700
    %v2737 = vpack.c.b16 %v2705, %v2701
    %v2738 = vpack.c.b16 %v2706, %v2702
    %v2739 = vpack.c.b16 %v2707, %v2703
    %2772 = vmatprep.subr.bf16.mxu0 %v2709
    %2773 = vmatpush1.bf16.msra.mxu0 %v2708
    %2774 = vmatprep.subr.bf16.mxu0 %v2713
    %2775 = vmatpush1.bf16.msra.mxu0 %v2712
    %2776 = vmatprep.subr.bf16.mxu0 %v2717
    %2777 = vmatpush1.bf16.msra.mxu0 %v2716
    %2778 = vmatprep.subr.bf16.mxu0 %v2721
    %2779 = vmatpush1.bf16.msra.mxu0 %v2720
    %2780 = vmatprep.subr.bf16.mxu0 %v2725
    %2781 = vmatpush1.bf16.msra.mxu0 %v2724
    %2782 = vmatprep.subr.bf16.mxu0 %v2729
    %2783 = vmatpush1.bf16.msra.mxu0 %v2728
    %2784 = vmatprep.subr.bf16.mxu0 %v2733
    %2785 = vmatpush1.bf16.msra.mxu0 %v2732
    %2786 = vmatprep.subr.bf16.mxu0 %v2737
    %2787 = vmatpush1.bf16.msra.mxu0 %v2736
    %2788 = vmatprep.subr.bf16.mxu0 0
    %2789 = vmatpush1.bf16.msra.mxu0 0
    %2790 = vmatprep.subr.bf16.mxu0 0
    %2791 = vmatpush1.bf16.msra.mxu0 0
    %2792 = vmatprep.subr.bf16.mxu0 0
    %2793 = vmatpush1.bf16.msra.mxu0 0
    %2794 = vmatprep.subr.bf16.mxu0 0
    %2795 = vmatpush1.bf16.msra.mxu0 0
    %2796 = vmatprep.subr.bf16.mxu0 0
    %2797 = vmatpush1.bf16.msra.mxu0 0
    %2798 = vmatprep.subr.bf16.mxu0 0
    %2799 = vmatpush1.bf16.msra.mxu0 0
    %2800 = vmatprep.subr.bf16.mxu0 0
    %2801 = vmatpush1.bf16.msra.mxu0 0
    %2802 = vmatprep.subr.bf16.mxu0 0
    %2803 = vmatpush1.bf16.msra.mxu0 0
    %2804 = vmatprep.mubr.bf16.mxu0 0
    %2805 = vmatmul.mubr.bf16.gmra.mrb[0].mxu0 %v2560
    %v2806 = vpop.f32.mrb[0].mxu0
    %v2807 = vadd.f32 0.0, %v2806
    %v2808 = vpop.f32.mrb[0].mxu0
    %v2809 = vadd.f32 0.0, %v2808
    %v2810 = vpop.f32.mrb[0].mxu0
    %v2811 = vadd.f32 0.0, %v2810
    %v2812 = vpop.f32.mrb[0].mxu0
    %v2813 = vadd.f32 0.0, %v2812
    %2814 = vdwg.mxu0
    %2815 = vmatprep.subr.bf16.mxu0 %v2711
    %2816 = vmatpush1.bf16.msra.mxu0 %v2710
    %2817 = vmatprep.subr.bf16.mxu0 %v2715
    %2818 = vmatpush1.bf16.msra.mxu0 %v2714
    %2819 = vmatprep.subr.bf16.mxu0 %v2719
    %2820 = vmatpush1.bf16.msra.mxu0 %v2718
    %2821 = vmatprep.subr.bf16.mxu0 %v2723
    %2822 = vmatpush1.bf16.msra.mxu0 %v2722
    %2823 = vmatprep.subr.bf16.mxu0 %v2727
    %2824 = vmatpush1.bf16.msra.mxu0 %v2726
    %2825 = vmatprep.subr.bf16.mxu0 %v2731
    %2826 = vmatpush1.bf16.msra.mxu0 %v2730
    %2827 = vmatprep.subr.bf16.mxu0 %v2735
    %2828 = vmatpush1.bf16.msra.mxu0 %v2734
    %2829 = vmatprep.subr.bf16.mxu0 %v2739
    %2830 = vmatpush1.bf16.msra.mxu0 %v2738
    %2831 = vmatprep.subr.bf16.mxu0 0
    %2832 = vmatpush1.bf16.msra.mxu0 0
    %2833 = vmatprep.subr.bf16.mxu0 0
    %2834 = vmatpush1.bf16.msra.mxu0 0
    %2835 = vmatprep.subr.bf16.mxu0 0
    %2836 = vmatpush1.bf16.msra.mxu0 0
    %2837 = vmatprep.subr.bf16.mxu0 0
    %2838 = vmatpush1.bf16.msra.mxu0 0
    %2839 = vmatprep.subr.bf16.mxu0 0
    %2840 = vmatpush1.bf16.msra.mxu0 0
    %2841 = vmatprep.subr.bf16.mxu0 0
    %2842 = vmatpush1.bf16.msra.mxu0 0
    %2843 = vmatprep.subr.bf16.mxu0 0
    %2844 = vmatpush1.bf16.msra.mxu0 0
    %2845 = vmatprep.subr.bf16.mxu0 0
    %2846 = vmatpush1.bf16.msra.mxu0 0
    %2847 = vmatprep.mubr.bf16.mxu0 0
    %2848 = vmatmul.mubr.bf16.gmra.mrb[0].mxu0 %v2560
    %v2849 = vpop.f32.mrb[0].mxu0
    %v2850 = vadd.f32 0.0, %v2849
    %v2851 = vpop.f32.mrb[0].mxu0
    %v2852 = vadd.f32 0.0, %v2851
    %v2853 = vpop.f32.mrb[0].mxu0
    %v2854 = vadd.f32 0.0, %v2853
    %v2855 = vpop.f32.mrb[0].mxu0
    %v2856 = vadd.f32 0.0, %v2855
    %2857 = vdwg.mxu0
    %v2858 = vadd.f32 %v2572, %v2807
    %v2859 = vadd.f32 %v2573, %v2809
    %v2860 = vadd.f32 %v2574, %v2850
    %v2861 = vadd.f32 %v2575, %v2852
    %v2862 = vadd.f32 %v2576, %v2811
    %v2863 = vadd.f32 %v2577, %v2813
    %v2864 = vadd.f32 %v2578, %v2854
    %v2865 = vadd.f32 %v2579, %v2856
    %v2866 = vxor.u32 %v2858, 2147483648
    %v2867 = vxor.u32 %v2862, 2147483648
    %v2868 = vmul.f32 %v2866, 1.442695
    %v2869 = vpow.pop %v2868
    %v2870 = vmul.f32 %v2867, 1.442695
    %v2871 = vpow.pop %v2870
    %v2872 = vadd.f32 %v2869, 1.0
    %v2873 = vadd.f32 %v2871, 1.0
    %v2874 = vrcp.pop %v2872
    %v2875 = vmul.f32 1.0, %v2874
    %v2876 = vrcp.pop %v2873
    %v2877 = vmul.f32 1.0, %v2876
    %v2878 = vxor.u32 %v2859, 2147483648
    %v2879 = vxor.u32 %v2863, 2147483648
    %v2880 = vmul.f32 %v2878, 1.442695
    %v2881 = vpow.pop %v2880
    %v2882 = vmul.f32 %v2879, 1.442695
    %v2883 = vpow.pop %v2882
    %v2884 = vadd.f32 %v2881, 1.0
    %v2885 = vadd.f32 %v2883, 1.0
    %v2886 = vrcp.pop %v2884
    %v2887 = vmul.f32 1.0, %v2886
    %v2888 = vrcp.pop %v2885
    %v2889 = vmul.f32 1.0, %v2888
    %v2890 = vtanh.pop %v2860
    %v2891 = vtanh.pop %v2864
    %v2892 = vxor.u32 %v2861, 2147483648
    %v2893 = vxor.u32 %v2865, 2147483648
    %v2894 = vmul.f32 %v2892, 1.442695
    %v2895 = vpow.pop %v2894
    %v2896 = vmul.f32 %v2893, 1.442695
    %v2897 = vpow.pop %v2896
    %v2898 = vadd.f32 %v2895, 1.0
    %v2899 = vadd.f32 %v2897, 1.0
    %v2900 = vrcp.pop %v2898
    %v2901 = vmul.f32 1.0, %v2900
    %v2902 = vrcp.pop %v2899
    %v2903 = vmul.f32 1.0, %v2902
    %v2904 = vmul.f32 %v2887, %v2554
    %v2905 = vmul.f32 %v2889, %v2555
    %v2906 = vmul.f32 %v2875, %v2890
    %v2907 = vmul.f32 %v2877, %v2891
    %v2908 = vadd.f32 %v2904, %v2906
    %v2909 = vadd.f32 %v2905, %v2907
    %v2910 = vtanh.pop %v2908
    %v2911 = vtanh.pop %v2909
    %v2912 = vmul.f32 %v2901, %v2910
    %v2913 = vmul.f32 %v2903, %v2911
    %v2914 = vpack.c.bf16 %v2913, %v2912
    %v2916 = vunpack.c.l.b16 %v2914
    %v2917 = vunpack.c.h.b16 %v2914
    %v2918 = vpack.c.b16 %v2916, %v2916
    %v2919 = vpack.c.b16 %v2917, %v2917
    %s2922 = scalar_lea.vmem [#allocation12], 56
    %2923 = vst [vmem:[%s2922] sm:$0xf] %v2918
    %2924 = vst [vmem:[%s2922 + $0x4] sm:$0xf] %v2919
    %2925 = vst [vmem:[#allocation2] sm:$0xff] %v2912
    %2926 = vst [vmem:[#allocation2 + $0x8] sm:$0xff] %v2913
    %2927 = vst [vmem:[#allocation3] sm:$0xff] %v2908
    %2928 = vst [vmem:[#allocation3 + $0x8] sm:$0xff] %v2909
    // Predicated region
    $region38: #{tpu_custom_call.1} parent=1 // pred_check
      %p2929 = pneg %p78
    $region39: #{tpu_custom_call.1} parent=1 // pred_check_branch
      %2931 = sbr.rel (%p2929) target = $region41
    $region40: #{tpu_custom_call.1} parent=1 // pred_region
      %2932 = vst [vmem:[#allocation13] sm:$0xff] %v2912
      %2933 = vst [vmem:[#allocation13 + $0x8] sm:$0xff] %v2913
      %2934 = vst [vmem:[#allocation15] sm:$0xff] %v2908
      %2935 = vst [vmem:[#allocation15 + $0x8] sm:$0xff] %v2909
    $region41: #{tpu_custom_call.1} parent=1 // pred_fallthru
      _
    // Predicated region
    $region42: #{tpu_custom_call.1} parent=1 // pred_check
      _
    $region43: #{tpu_custom_call.1} parent=1 // pred_check_branch
      %2937 = sbr.rel (0) target = $region45
    $region44: #{tpu_custom_call.1} parent=1 // pred_region
      %s2939 = ssub.s32 1024, 1024
      %2940 = vsyncadd [#allocation6], %s2939
      %s2941 = sshll.u32 [#allocation12], 4
      %s2942 = int_to_ptr.vmem [resolvable:$true] %s2941
      %2947 = dma.vmem_to_hbm [thread:$0]  %s2942, 1024, %s4, [#allocation6], 64, 64, 4
    $region45: #{tpu_custom_call.1} parent=1 // pred_fallthru
      _
    // Predicated region
    $region46: #{tpu_custom_call.1} parent=1 // pred_check
      _
    $region47: #{tpu_custom_call.1} parent=1 // pred_check_branch
      %2949 = sbr.rel (0) target = $region49
    $region48: #{tpu_custom_call.1} parent=1 // pred_region
      %s2951 = ssub.s32 256, 256
      %2952 = vsyncadd [#allocation14], %s2951
      %s2953 = sshll.u32 [#allocation13], 4
      %s2954 = int_to_ptr.vmem [resolvable:$true] %s2953
      %2959 = dma.vmem_to_hbm [thread:$0]  %s2954, 256, %s5, [#allocation14], 128, 128, 8
    $region49: #{tpu_custom_call.1} parent=1 // pred_fallthru
      _
    // Predicated region
    $region50: #{tpu_custom_call.1} parent=1 // pred_check
      _
    $region51: #{tpu_custom_call.1} parent=1 // pred_check_branch
      %2961 = sbr.rel (0) target = $region53
    $region52: #{tpu_custom_call.1} parent=1 // pred_region
      %s2963 = ssub.s32 256, 256
      %2964 = vsyncadd [#allocation14], %s2963
      %s2965 = sshll.u32 [#allocation15], 4
      %s2966 = int_to_ptr.vmem [resolvable:$true] %s2965
      %2971 = dma.vmem_to_hbm [thread:$0]  %s2966, 256, %s6, [#allocation14], 128, 128, 8
    $region53: #{tpu_custom_call.1} parent=1 // pred_fallthru
      _
    // Predicated region
    $region54: #{tpu_custom_call.1} parent=1 // pred_check
      _
    $region55: #{tpu_custom_call.1} parent=1 // pred_check_branch
      %2973 = sbr.rel (0) target = $region57
    $region56: #{tpu_custom_call.1} parent=1 // pred_region
      %2974 = dma.done [#allocation6], 1024
    $region57: #{tpu_custom_call.1} parent=1 // pred_fallthru
      _
    // Predicated region
    $region58: #{tpu_custom_call.1} parent=1 // pred_check
      _
    $region59: #{tpu_custom_call.1} parent=1 // pred_check_branch
      %2976 = sbr.rel (0) target = $region61
    $region60: #{tpu_custom_call.1} parent=1 // pred_region
      %2977 = dma.done [#allocation14], 256
    $region61: #{tpu_custom_call.1} parent=1 // pred_fallthru
      _
    // Predicated region
    $region62: #{tpu_custom_call.1} parent=1 // pred_check
      _
    $region63: #{tpu_custom_call.1} parent=1 // pred_check_branch
      %2979 = sbr.rel (0) target = $region65
    $region64: #{tpu_custom_call.1} parent=1 // pred_region
      %2980 = dma.done [#allocation14], 256
    $region65: #{tpu_custom_call.1} parent=1 // pred_fallthru
      _
    %2981 = vsyncpa [#allocation5], 1
    %2982 = vsyncpa [#allocation8], 1
    %2983 = vsyncpa [#allocation11], 1
    %2984 = vsyncpa [#allocation6], 1
    %2985 = vsyncpa [#allocation14], 1

// kernel: tpu_custom_call.1
$region0: #{tpu_custom_call.1}
  #allocation0 [shape = 'u32[]', space=smem, size = 0x4, offset = 0x4, fixed_abs, tag = 'smem constant byte address 0x4 - core index']
  #allocation1 [shape = 'u32[144,128]{1,0:T(1,128)}', space=vmem, size = 0x12000, scoped, tag = 'internal scratch']
  #allocation2 [shape = 'f32[16,128]{1,0:T(8,128)}', space=vmem, size = 0x2000, scoped, tag = 'scratch operand']
  #allocation3 [shape = 'f32[16,128]{1,0:T(8,128)}', space=vmem, size = 0x2000, scoped, tag = 'scratch operand']
  %s0 = inlined_call_operand.hbm [shape: f32[8,16,512], index: 0, kind: input, shape index: {}]
  %s1 = inlined_call_operand.hbm [shape: bf16[128,512], index: 1, kind: input, shape index: {}]
  %s2 = inlined_call_operand.hbm [shape: f32[16,128], index: 2, kind: input, shape index: {}]
  %s3 = inlined_call_operand.hbm [shape: f32[16,128], index: 3, kind: input, shape index: {}]
  %s4 = inlined_call_operand.hbm [shape: bf16[8,16,128], index: 4, kind: output, shape index: {0}]
  %s5 = inlined_call_operand.hbm [shape: f32[16,128], index: 5, kind: output, shape index: {1}]
  %s6 = inlined_call_operand.hbm [shape: f32[16,128], index: 6, kind: output, shape index: {2}]
  %7 = xla_tuple %s4, %s5, %s6
  %s8 = sld [smem:[#allocation0]]
  $region66: #{tpu_custom_call.1} parent=0
    _
  %s10 = ssub.s32 1, %s8
  %s11 = scalar_select 0, %s10, %s8
  $region1: #{tpu_custom_call.1} parent=0
    #allocation4 [shape = 'u8[262144]{0}', space=vmem, size = 0x40000, scoped, tag = 'input window, operand 0, single buffered']
    #allocation5 [shape = 's32[1]{0}', space=sflag, size = 0x4, scoped, tag = 'scoped memory for tpu_custom_call.1']
    #allocation6 [shape = 's32[1]{0}', space=sflag, size = 0x4, scoped, tag = 'scoped memory for tpu_custom_call.1']
    #allocation7 [shape = 'u8[131072]{0}', space=vmem, size = 0x20000, scoped, tag = 'input window, operand 1, single buffered']
    #allocation8 [shape = 's32[1]{0}', space=sflag, size = 0x4, scoped, tag = 'scoped memory for tpu_custom_call.1']
    #allocation9 [shape = 'u8[8192]{0}', space=vmem, size = 0x2000, scoped, tag = 'input window, operand 2, single buffered']
    #allocation10 [shape = 'u8[8192]{0}', space=vmem, size = 0x2000, scoped, tag = 'input window, operand 3, single buffered']
    #allocation11 [shape = 's32[1]{0}', space=sflag, size = 0x4, scoped, tag = 'scoped memory for tpu_custom_call.1']
    #allocation12 [shape = 'u8[32768]{0}', space=vmem, size = 0x8000, scoped, tag = 'output window, operand 0, single buffered']
    #allocation13 [shape = 'u8[8192]{0}', space=vmem, size = 0x2000, scoped, tag = 'output window, operand 1, single buffered']
    #allocation14 [shape = 's32[1]{0}', space=sflag, size = 0x4, scoped, tag = 'scoped memory for tpu_custom_call.1']
    #allocation15 [shape = 'u8[8192]{0}', space=vmem, size = 0x2000, scoped, tag = 'output window, operand 2, single buffered']
    %12 = vsyncpa [#allocation5], 0
    %13 = vsyncpa [#allocation8], 0
    %14 = vsyncpa [#allocation11], 0
    %15 = vsyncpa [#allocation6], 0
    %16 = vsyncpa [#allocation14], 0
    // Predicated region
    $region2: #{tpu_custom_call.1} parent=1 // pred_check
      _
    $region3: #{tpu_custom_call.1} parent=1 // pred_check_branch
      %18 = sbr.rel (0) target = $region5
    $region4: #{tpu_custom_call.1} parent=1 // pred_region
      %s20 = ssub.s32 8192, 8192
      %21 = vsyncadd [#allocation5], %s20
      %s22 = sshll.u32 [#allocation4], 4
      %s23 = int_to_ptr.vmem [resolvable:$true] %s22
      %28 = dma.hbm_to_vmem [thread:$0]  %s0, 8192, %s23, [#allocation5], 512, 512, 32
    $region5: #{tpu_custom_call.1} parent=1 // pred_fallthru
      _
    // Predicated region
    $region6: #{tpu_custom_call.1} parent=1 // pred_check
      _
    $region7: #{tpu_custom_call.1} parent=1 // pred_check_branch
      %30 = sbr.rel (0) target = $region9
    $region8: #{tpu_custom_call.1} parent=1 // pred_region
      %s32 = ssub.s32 4096, 4096
      %33 = vsyncadd [#allocation8], %s32
      %s34 = sshll.u32 [#allocation7], 4
      %s35 = int_to_ptr.vmem [resolvable:$true] %s34
      %40 = dma.hbm_to_vmem [thread:$0]  %s1, 4096, %s35, [#allocation8], 256, 256, 16
    $region9: #{tpu_custom_call.1} parent=1 // pred_fallthru
      _
    // Predicated region
    $region10: #{tpu_custom_call.1} parent=1 // pred_check
      _
    $region11: #{tpu_custom_call.1} parent=1 // pred_check_branch
      %42 = sbr.rel (0) target = $region13
    $region12: #{tpu_custom_call.1} parent=1 // pred_region
      %s44 = ssub.s32 256, 256
      %45 = vsyncadd [#allocation8], %s44
      %s46 = sshll.u32 [#allocation9], 4
      %s47 = int_to_ptr.vmem [resolvable:$true] %s46
      %52 = dma.hbm_to_vmem [thread:$0]  %s2, 256, %s47, [#allocation8], 128, 128, 8
    $region13: #{tpu_custom_call.1} parent=1 // pred_fallthru
      _
    // Predicated region
    $region14: #{tpu_custom_call.1} parent=1 // pred_check
      _
    $region15: #{tpu_custom_call.1} parent=1 // pred_check_branch
      %54 = sbr.rel (0) target = $region17
    $region16: #{tpu_custom_call.1} parent=1 // pred_region
      %s56 = ssub.s32 256, 256
      %57 = vsyncadd [#allocation11], %s56
      %s58 = sshll.u32 [#allocation10], 4
      %s59 = int_to_ptr.vmem [resolvable:$true] %s58
      %64 = dma.hbm_to_vmem [thread:$0]  %s3, 256, %s59, [#allocation11], 128, 128, 8
    $region17: #{tpu_custom_call.1} parent=1 // pred_fallthru
      _
    // Predicated region
    $region18: #{tpu_custom_call.1} parent=1 // pred_check
      _
    $region19: #{tpu_custom_call.1} parent=1 // pred_check_branch
      %66 = sbr.rel (0) target = $region21
    $region20: #{tpu_custom_call.1} parent=1 // pred_region
      %67 = dma.done [#allocation5], 8192
    $region21: #{tpu_custom_call.1} parent=1 // pred_fallthru
      _
    // Predicated region
    $region22: #{tpu_custom_call.1} parent=1 // pred_check
      _
    $region23: #{tpu_custom_call.1} parent=1 // pred_check_branch
      %69 = sbr.rel (0) target = $region25
    $region24: #{tpu_custom_call.1} parent=1 // pred_region
      %70 = dma.done [#allocation8], 4096
    $region25: #{tpu_custom_call.1} parent=1 // pred_fallthru
      _
    // Predicated region
    $region26: #{tpu_custom_call.1} parent=1 // pred_check
      _
    $region27: #{tpu_custom_call.1} parent=1 // pred_check_branch
      %72 = sbr.rel (0) target = $region29
    $region28: #{tpu_custom_call.1} parent=1 // pred_region
      %73 = dma.done [#allocation8], 256
    $region29: #{tpu_custom_call.1} parent=1 // pred_fallthru
      _
    // Predicated region
    $region30: #{tpu_custom_call.1} parent=1 // pred_check
      _
    $region31: #{tpu_custom_call.1} parent=1 // pred_check_branch
      %75 = sbr.rel (0) target = $region33
    $region32: #{tpu_custom_call.1} parent=1 // pred_region
      %76 = dma.done [#allocation11], 256
    $region33: #{tpu_custom_call.1} parent=1 // pred_fallthru
      _
    %p78 = scmp.eq.s32.totalorder 0, 0
    // Predicated region
    $region34: #{tpu_custom_call.1} parent=1 // pred_check
      %p79 = pneg %p78
    $region35: #{tpu_custom_call.1} parent=1 // pred_check_branch
      %81 = sbr.rel (%p79) target = $region37
    $region36: #{tpu_custom_call.1} parent=1 // pred_region
      %v82 = vld [vmem:[#allocation9] sm:$0xff]
      %v83 = vld [vmem:[#allocation9 + $0x8] sm:$0xff]
      %84 = vst [vmem:[#allocation2] sm:$0xff] %v82
      %85 = vst [vmem:[#allocation2 + $0x8] sm:$0xff] %v83
      %v86 = vld [vmem:[#allocation10] sm:$0xff]
      %v87 = vld [vmem:[#allocation10 + $0x8] sm:$0xff]
      %88 = vst [vmem:[#allocation3] sm:$0xff] %v86
      %89 = vst [vmem:[#allocation3 + $0x8] sm:$0xff] %v87
    $region37: #{tpu_custom_call.1} parent=1 // pred_fallthru
      _
    %v90 = vld [vmem:[#allocation2] sm:$0xff]
    %v91 = vld [vmem:[#allocation2 + $0x8] sm:$0xff]
    %v92 = vld [vmem:[#allocation3] sm:$0xff]
    %v93 = vld [vmem:[#allocation3 + $0x8] sm:$0xff]
    %v94 = vld [vmem:[#allocation4] sm:$0xff]
    %v95 = vld [vmem:[#allocation4 + $0x8] sm:$0xff]
    %v96 = vld [vmem:[#allocation4 + $0x10] sm:$0xff]
    %v97 = vld [vmem:[#allocation4 + $0x18] sm:$0xff]
    %v98 = vld [vmem:[#allocation4 + $0x20] sm:$0xff]
    %v99 = vld [vmem:[#allocation4 + $0x28] sm:$0xff]
    %v100 = vld [vmem:[#allocation4 + $0x30] sm:$0xff]
    %v101 = vld [vmem:[#allocation4 + $0x38] sm:$0xff]
    %v102 = vpack.c.bf16 %v91, %v90
    %v103 = vld [vmem:[#allocation7] sm:$0xff]
    %v104 = vld [vmem:[#allocation7 + $0x8] sm:$0xff]
    %v105 = vld [vmem:[#allocation7 + $0x10] sm:$0xff]
    %v106 = vld [vmem:[#allocation7 + $0x18] sm:$0xff]
    %v107 = vld [vmem:[#allocation7 + $0x20] sm:$0xff]
    %v108 = vld [vmem:[#allocation7 + $0x28] sm:$0xff]
    %v109 = vld [vmem:[#allocation7 + $0x30] sm:$0xff]
    %v110 = vld [vmem:[#allocation7 + $0x38] sm:$0xff]
    %v111 = vld [vmem:[#allocation7 + $0x40] sm:$0xff]
    %v112 = vld [vmem:[#allocation7 + $0x48] sm:$0xff]
    %v113 = vld [vmem:[#allocation7 + $0x50] sm:$0xff]
    %v114 = vld [vmem:[#allocation7 + $0x58] sm:$0xff]
    %v115 = vld [vmem:[#allocation7 + $0x60] sm:$0xff]
    %v116 = vld [vmem:[#allocation7 + $0x68] sm:$0xff]
    %v117 = vld [vmem:[#allocation7 + $0x70] sm:$0xff]
    %v118 = vld [vmem:[#allocation7 + $0x78] sm:$0xff]
    %v119 = vld [vmem:[#allocation7 + $0x80] sm:$0xff]
    %v120 = vld [vmem:[#allocation7 + $0x88] sm:$0xff]
    %v121 = vld [vmem:[#allocation7 + $0x90] sm:$0xff]
    %v122 = vld [vmem:[#allocation7 + $0x98] sm:$0xff]
    %v123 = vld [vmem:[#allocation7 + $0xa0] sm:$0xff]
    %v124 = vld [vmem:[#allocation7 + $0xa8] sm:$0xff]
    %v125 = vld [vmem:[#allocation7 + $0xb0] sm:$0xff]
    %v126 = vld [vmem:[#allocation7 + $0xb8] sm:$0xff]
    %v127 = vld [vmem:[#allocation7 + $0xc0] sm:$0xff]
    %v128 = vld [vmem:[#allocation7 + $0xc8] sm:$0xff]
    %v129 = vld [vmem:[#allocation7 + $0xd0] sm:$0xff]
    %v130 = vld [vmem:[#allocation7 + $0xd8] sm:$0xff]
    %v131 = vld [vmem:[#allocation7 + $0xe0] sm:$0xff]
    %v132 = vld [vmem:[#allocation7 + $0xe8] sm:$0xff]
    %v133 = vld [vmem:[#allocation7 + $0xf0] sm:$0xff]
    %v134 = vld [vmem:[#allocation7 + $0xf8] sm:$0xff]
    %v167 = vunpack.c.l.b16 %v103
    %v168 = vunpack.c.h.b16 %v103
    %v169 = vunpack.c.l.b16 %v104
    %v170 = vunpack.c.h.b16 %v104
    %v171 = vunpack.c.l.b16 %v105
    %v172 = vunpack.c.h.b16 %v105
    %v173 = vunpack.c.l.b16 %v106
    %v174 = vunpack.c.h.b16 %v106
    %v175 = vunpack.c.l.b16 %v107
    %v176 = vunpack.c.h.b16 %v107
    %v177 = vunpack.c.l.b16 %v108
    %v178 = vunpack.c.h.b16 %v108
    %v179 = vunpack.c.l.b16 %v109
    %v180 = vunpack.c.h.b16 %v109
    %v181 = vunpack.c.l.b16 %v110
    %v182 = vunpack.c.h.b16 %v110
    %v183 = vunpack.c.l.b16 %v111
    %v184 = vunpack.c.h.b16 %v111
    %v185 = vunpack.c.l.b16 %v112
    %v186 = vunpack.c.h.b16 %v112
    %v187 = vunpack.c.l.b16 %v113
    %v188 = vunpack.c.h.b16 %v113
    %v189 = vunpack.c.l.b16 %v114
    %v190 = vunpack.c.h.b16 %v114
    %v191 = vunpack.c.l.b16 %v115
    %v192 = vunpack.c.h.b16 %v115
    %v193 = vunpack.c.l.b16 %v116
    %v194 = vunpack.c.h.b16 %v116
    %v195 = vunpack.c.l.b16 %v117
    %v196 = vunpack.c.h.b16 %v117
    %v197 = vunpack.c.l.b16 %v118
    %v198 = vunpack.c.h.b16 %v118
    %v199 = vunpack.c.l.b16 %v119
    %v200 = vunpack.c.h.b16 %v119
    %v201 = vunpack.c.l.b16 %v120
    %v202 = vunpack.c.h.b16 %v120
    %v203 = vunpack.c.l.b16 %v121
    %v204 = vunpack.c.h.b16 %v121
    %v205 = vunpack.c.l.b16 %v122
    %v206 = vunpack.c.h.b16 %v122
    %v207 = vunpack.c.l.b16 %v123
    %v208 = vunpack.c.h.b16 %v123
    %v209 = vunpack.c.l.b16 %v124
    %v210 = vunpack.c.h.b16 %v124
    %v211 = vunpack.c.l.b16 %v125
    %v212 = vunpack.c.h.b16 %v125
    %v213 = vunpack.c.l.b16 %v126
    %v214 = vunpack.c.h.b16 %v126
    %v215 = vunpack.c.l.b16 %v127
    %v216 = vunpack.c.h.b16 %v127
    %v217 = vunpack.c.l.b16 %v128
    %v218 = vunpack.c.h.b16 %v128
    %v219 = vunpack.c.l.b16 %v129
    %v220 = vunpack.c.h.b16 %v129
    %v221 = vunpack.c.l.b16 %v130
    %v222 = vunpack.c.h.b16 %v130
    %v223 = vunpack.c.l.b16 %v131
    %v224 = vunpack.c.h.b16 %v131
    %v225 = vunpack.c.l.b16 %v132
    %v226 = vunpack.c.h.b16 %v132
    %v227 = vunpack.c.l.b16 %v133
    %v228 = vunpack.c.h.b16 %v133
    %v229 = vunpack.c.l.b16 %v134
    %v230 = vunpack.c.h.b16 %v134
    %v231 = vpack.c.b16 %v171, %v167
    %v232 = vpack.c.b16 %v172, %v168
    %v233 = vpack.c.b16 %v173, %v169
    %v234 = vpack.c.b16 %v174, %v170
    %v235 = vpack.c.b16 %v179, %v175
    %v236 = vpack.c.b16 %v180, %v176
    %v237 = vpack.c.b16 %v181, %v177
    %v238 = vpack.c.b16 %v182, %v178
    %v239 = vpack.c.b16 %v187, %v183
    %v240 = vpack.c.b16 %v188, %v184
    %v241 = vpack.c.b16 %v189, %v185
    %v242 = vpack.c.b16 %v190, %v186
    %v243 = vpack.c.b16 %v195, %v191
    %v244 = vpack.c.b16 %v196, %v192
    %v245 = vpack.c.b16 %v197, %v193
    %v246 = vpack.c.b16 %v198, %v194
    %v247 = vpack.c.b16 %v203, %v199
    %v248 = vpack.c.b16 %v204, %v200
    %v249 = vpack.c.b16 %v205, %v201
    %v250 = vpack.c.b16 %v206, %v202
    %v251 = vpack.c.b16 %v211, %v207
    %v252 = vpack.c.b16 %v212, %v208
    %v253 = vpack.c.b16 %v213, %v209
    %v254 = vpack.c.b16 %v214, %v210
    %v255 = vpack.c.b16 %v219, %v215
    %v256 = vpack.c.b16 %v220, %v216
    %v257 = vpack.c.b16 %v221, %v217
    %v258 = vpack.c.b16 %v222, %v218
    %v259 = vpack.c.b16 %v227, %v223
    %v260 = vpack.c.b16 %v228, %v224
    %v261 = vpack.c.b16 %v229, %v225
    %v262 = vpack.c.b16 %v230, %v226
    %295 = vmatprep.subr.bf16.mxu0 %v232
    %296 = vmatpush1.bf16.msra.mxu0 %v231
    %297 = vmatprep.subr.bf16.mxu0 %v236
    %298 = vmatpush1.bf16.msra.mxu0 %v235
    %299 = vmatprep.subr.bf16.mxu0 %v240
    %300 = vmatpush1.bf16.msra.mxu0 %v239
    %301 = vmatprep.subr.bf16.mxu0 %v244
    %302 = vmatpush1.bf16.msra.mxu0 %v243
    %303 = vmatprep.subr.bf16.mxu0 %v248
    %304 = vmatpush1.bf16.msra.mxu0 %v247
    %305 = vmatprep.subr.bf16.mxu0 %v252
    %306 = vmatpush1.bf16.msra.mxu0 %v251
    %307 = vmatprep.subr.bf16.mxu0 %v256
    %308 = vmatpush1.bf16.msra.mxu0 %v255
    %309 = vmatprep.subr.bf16.mxu0 %v260
    %310 = vmatpush1.bf16.msra.mxu0 %v259
    %311 = vmatprep.subr.bf16.mxu0 0
    %312 = vmatpush1.bf16.msra.mxu0 0
    %313 = vmatprep.subr.bf16.mxu0 0
    %314 = vmatpush1.bf16.msra.mxu0 0
    %315 = vmatprep.subr.bf16.mxu0 0
    %316 = vmatpush1.bf16.msra.mxu0 0
    %317 = vmatprep.subr.bf16.mxu0 0
    %318 = vmatpush1.bf16.msra.mxu0 0
    %319 = vmatprep.subr.bf16.mxu0 0
    %320 = vmatpush1.bf16.msra.mxu0 0
    %321 = vmatprep.subr.bf16.mxu0 0
    %322 = vmatpush1.bf16.msra.mxu0 0
    %323 = vmatprep.subr.bf16.mxu0 0
    %324 = vmatpush1.bf16.msra.mxu0 0
    %325 = vmatprep.subr.bf16.mxu0 0
    %326 = vmatpush1.bf16.msra.mxu0 0
    %327 = vmatprep.mubr.bf16.mxu0 0
    %328 = vmatmul.mubr.bf16.gmra.mrb[0].mxu0 %v102
    %v329 = vpop.f32.mrb[0].mxu0
    %v330 = vadd.f32 0.0, %v329
    %v331 = vpop.f32.mrb[0].mxu0
    %v332 = vadd.f32 0.0, %v331
    %v333 = vpop.f32.mrb[0].mxu0
    %v334 = vadd.f32 0.0, %v333
    %v335 = vpop.f32.mrb[0].mxu0
    %v336 = vadd.f32 0.0, %v335
    %337 = vdwg.mxu0
    %338 = vmatprep.subr.bf16.mxu0 %v234
    %339 = vmatpush1.bf16.msra.mxu0 %v233
    %340 = vmatprep.subr.bf16.mxu0 %v238
    %341 = vmatpush1.bf16.msra.mxu0 %v237
    %342 = vmatprep.subr.bf16.mxu0 %v242
    %343 = vmatpush1.bf16.msra.mxu0 %v241
    %344 = vmatprep.subr.bf16.mxu0 %v246
    %345 = vmatpush1.bf16.msra.mxu0 %v245
    %346 = vmatprep.subr.bf16.mxu0 %v250
    %347 = vmatpush1.bf16.msra.mxu0 %v249
    %348 = vmatprep.subr.bf16.mxu0 %v254
    %349 = vmatpush1.bf16.msra.mxu0 %v253
    %350 = vmatprep.subr.bf16.mxu0 %v258
    %351 = vmatpush1.bf16.msra.mxu0 %v257
    %352 = vmatprep.subr.bf16.mxu0 %v262
    %353 = vmatpush1.bf16.msra.mxu0 %v261
    %354 = vmatprep.subr.bf16.mxu0 0
    %355 = vmatpush1.bf16.msra.mxu0 0
    %356 = vmatprep.subr.bf16.mxu0 0
    %357 = vmatpush1.bf16.msra.mxu0 0
    %358 = vmatprep.subr.bf16.mxu0 0
    %359 = vmatpush1.bf16.msra.mxu0 0
    %360 = vmatprep.subr.bf16.mxu0 0
    %361 = vmatpush1.bf16.msra.mxu0 0
    %362 = vmatprep.subr.bf16.mxu0 0
    %363 = vmatpush1.bf16.msra.mxu0 0
    %364 = vmatprep.subr.bf16.mxu0 0
    %365 = vmatpush1.bf16.msra.mxu0 0
    %366 = vmatprep.subr.bf16.mxu0 0
    %367 = vmatpush1.bf16.msra.mxu0 0
    %368 = vmatprep.subr.bf16.mxu0 0
    %369 = vmatpush1.bf16.msra.mxu0 0
    %370 = vmatprep.mubr.bf16.mxu0 0
    %371 = vmatmul.mubr.bf16.gmra.mrb[0].mxu0 %v102
    %v372 = vpop.f32.mrb[0].mxu0
    %v373 = vadd.f32 0.0, %v372
    %v374 = vpop.f32.mrb[0].mxu0
    %v375 = vadd.f32 0.0, %v374
    %v376 = vpop.f32.mrb[0].mxu0
    %v377 = vadd.f32 0.0, %v376
    %v378 = vpop.f32.mrb[0].mxu0
    %v379 = vadd.f32 0.0, %v378
    %380 = vdwg.mxu0
    %v381 = vadd.f32 %v94, %v330
    %v382 = vadd.f32 %v95, %v332
    %v383 = vadd.f32 %v96, %v373
    %v384 = vadd.f32 %v97, %v375
    %v385 = vadd.f32 %v98, %v334
    %v386 = vadd.f32 %v99, %v336
    %v387 = vadd.f32 %v100, %v377
    %v388 = vadd.f32 %v101, %v379
    %v389 = vxor.u32 %v381, 2147483648
    %v390 = vxor.u32 %v385, 2147483648
    %v391 = vmul.f32 %v389, 1.442695
    %v392 = vpow.pop %v391
    %v393 = vmul.f32 %v390, 1.442695
    %v394 = vpow.pop %v393
    %v395 = vadd.f32 %v392, 1.0
    %v396 = vadd.f32 %v394, 1.0
    %v397 = vrcp.pop %v395
    %v398 = vmul.f32 1.0, %v397
    %v399 = vrcp.pop %v396
    %v400 = vmul.f32 1.0, %v399
    %v401 = vxor.u32 %v382, 2147483648
    %v402 = vxor.u32 %v386, 2147483648
    %v403 = vmul.f32 %v401, 1.442695
    %v404 = vpow.pop %v403
    %v405 = vmul.f32 %v402, 1.442695
    %v406 = vpow.pop %v405
    %v407 = vadd.f32 %v404, 1.0
    %v408 = vadd.f32 %v406, 1.0
    %v409 = vrcp.pop %v407
    %v410 = vmul.f32 1.0, %v409
    %v411 = vrcp.pop %v408
    %v412 = vmul.f32 1.0, %v411
    %v413 = vtanh.pop %v383
    %v414 = vtanh.pop %v387
    %v415 = vxor.u32 %v384, 2147483648
    %v416 = vxor.u32 %v388, 2147483648
    %v417 = vmul.f32 %v415, 1.442695
    %v418 = vpow.pop %v417
    %v419 = vmul.f32 %v416, 1.442695
    %v420 = vpow.pop %v419
    %v421 = vadd.f32 %v418, 1.0
    %v422 = vadd.f32 %v420, 1.0
    %v423 = vrcp.pop %v421
    %v424 = vmul.f32 1.0, %v423
    %v425 = vrcp.pop %v422
    %v426 = vmul.f32 1.0, %v425
    %v427 = vmul.f32 %v410, %v92
    %v428 = vmul.f32 %v412, %v93
    %v429 = vmul.f32 %v398, %v413
    %v430 = vmul.f32 %v400, %v414
    %v431 = vadd.f32 %v427, %v429
    %v432 = vadd.f32 %v428, %v430
    %v433 = vtanh.pop %v431
    %v434 = vtanh.pop %v432
    %v435 = vmul.f32 %v424, %v433
    %v436 = vmul.f32 %v426, %v434
    %v437 = vpack.c.bf16 %v436, %v435
    %v439 = vunpack.c.l.b16 %v437
    %v440 = vunpack.c.h.b16 %v437
    %v441 = vpack.c.b16 %v439, %v439
    %v442 = vpack.c.b16 %v440, %v440
    %445 = vst [vmem:[#allocation12] sm:$0xf] %v441
    %446 = vst [vmem:[#allocation12 + $0x4] sm:$0xf] %v442
    %s447 = scalar_lea.vmem [#allocation4], 64
    %v448 = vld [vmem:[%s447] sm:$0xff]
    %v449 = vld [vmem:[%s447 + $0x8] sm:$0xff]
    %v450 = vld [vmem:[%s447 + $0x10] sm:$0xff]
    %v451 = vld [vmem:[%s447 + $0x18] sm:$0xff]
    %v452 = vld [vmem:[%s447 + $0x20] sm:$0xff]
    %v453 = vld [vmem:[%s447 + $0x28] sm:$0xff]
    %v454 = vld [vmem:[%s447 + $0x30] sm:$0xff]
    %v455 = vld [vmem:[%s447 + $0x38] sm:$0xff]
    %v456 = vld [vmem:[#allocation7] sm:$0xff]
    %v457 = vld [vmem:[#allocation7 + $0x8] sm:$0xff]
    %v458 = vld [vmem:[#allocation7 + $0x10] sm:$0xff]
    %v459 = vld [vmem:[#allocation7 + $0x18] sm:$0xff]
    %v460 = vld [vmem:[#allocation7 + $0x20] sm:$0xff]
    %v461 = vld [vmem:[#allocation7 + $0x28] sm:$0xff]
    %v462 = vld [vmem:[#allocation7 + $0x30] sm:$0xff]
    %v463 = vld [vmem:[#allocation7 + $0x38] sm:$0xff]
    %v464 = vld [vmem:[#allocation7 + $0x40] sm:$0xff]
    %v465 = vld [vmem:[#allocation7 + $0x48] sm:$0xff]
    %v466 = vld [vmem:[#allocation7 + $0x50] sm:$0xff]
    %v467 = vld [vmem:[#allocation7 + $0x58] sm:$0xff]
    %v468 = vld [vmem:[#allocation7 + $0x60] sm:$0xff]
    %v469 = vld [vmem:[#allocation7 + $0x68] sm:$0xff]
    %v470 = vld [vmem:[#allocation7 + $0x70] sm:$0xff]
    %v471 = vld [vmem:[#allocation7 + $0x78] sm:$0xff]
    %v472 = vld [vmem:[#allocation7 + $0x80] sm:$0xff]
    %v473 = vld [vmem:[#allocation7 + $0x88] sm:$0xff]
    %v474 = vld [vmem:[#allocation7 + $0x90] sm:$0xff]
    %v475 = vld [vmem:[#allocation7 + $0x98] sm:$0xff]
    %v476 = vld [vmem:[#allocation7 + $0xa0] sm:$0xff]
    %v477 = vld [vmem:[#allocation7 + $0xa8] sm:$0xff]
    %v478 = vld [vmem:[#allocation7 + $0xb0] sm:$0xff]
    %v479 = vld [vmem:[#allocation7 + $0xb8] sm:$0xff]
    %v480 = vld [vmem:[#allocation7 + $0xc0] sm:$0xff]
    %v481 = vld [vmem:[#allocation7 + $0xc8] sm:$0xff]
    %v482 = vld [vmem:[#allocation7 + $0xd0] sm:$0xff]
    %v483 = vld [vmem:[#allocation7 + $0xd8] sm:$0xff]
    %v484 = vld [vmem:[#allocation7 + $0xe0] sm:$0xff]
    %v485 = vld [vmem:[#allocation7 + $0xe8] sm:$0xff]
    %v486 = vld [vmem:[#allocation7 + $0xf0] sm:$0xff]
    %v487 = vld [vmem:[#allocation7 + $0xf8] sm:$0xff]
    %v520 = vunpack.c.l.b16 %v456
    %v521 = vunpack.c.h.b16 %v456
    %v522 = vunpack.c.l.b16 %v457
    %v523 = vunpack.c.h.b16 %v457
    %v524 = vunpack.c.l.b16 %v458
    %v525 = vunpack.c.h.b16 %v458
    %v526 = vunpack.c.l.b16 %v459
    %v527 = vunpack.c.h.b16 %v459
    %v528 = vunpack.c.l.b16 %v460
    %v529 = vunpack.c.h.b16 %v460
    %v530 = vunpack.c.l.b16 %v461
    %v531 = vunpack.c.h.b16 %v461
    %v532 = vunpack.c.l.b16 %v462
    %v533 = vunpack.c.h.b16 %v462
    %v534 = vunpack.c.l.b16 %v463
    %v535 = vunpack.c.h.b16 %v463
    %v536 = vunpack.c.l.b16 %v464
    %v537 = vunpack.c.h.b16 %v464
    %v538 = vunpack.c.l.b16 %v465
    %v539 = vunpack.c.h.b16 %v465
    %v540 = vunpack.c.l.b16 %v466
    %v541 = vunpack.c.h.b16 %v466
    %v542 = vunpack.c.l.b16 %v467
    %v543 = vunpack.c.h.b16 %v467
    %v544 = vunpack.c.l.b16 %v468
    %v545 = vunpack.c.h.b16 %v468
    %v546 = vunpack.c.l.b16 %v469
    %v547 = vunpack.c.h.b16 %v469
    %v548 = vunpack.c.l.b16 %v470
    %v549 = vunpack.c.h.b16 %v470
    %v550 = vunpack.c.l.b16 %v471
    %v551 = vunpack.c.h.b16 %v471
    %v552 = vunpack.c.l.b16 %v472
    %v553 = vunpack.c.h.b16 %v472
    %v554 = vunpack.c.l.b16 %v473
    %v555 = vunpack.c.h.b16 %v473
    %v556 = vunpack.c.l.b16 %v474
    %v557 = vunpack.c.h.b16 %v474
    %v558 = vunpack.c.l.b16 %v475
    %v559 = vunpack.c.h.b16 %v475
    %v560 = vunpack.c.l.b16 %v476
    %v561 = vunpack.c.h.b16 %v476
    %v562 = vunpack.c.l.b16 %v477
    %v563 = vunpack.c.h.b16 %v477
    %v564 = vunpack.c.l.b16 %v478
    %v565 = vunpack.c.h.b16 %v478
    %v566 = vunpack.c.l.b16 %v479
    %v567 = vunpack.c.h.b16 %v479
    %v568 = vunpack.c.l.b16 %v480
    %v569 = vunpack.c.h.b16 %v480
    %v570 = vunpack.c.l.b16 %v481
    %v571 = vunpack.c.h.b16 %v481
    %v572 = vunpack.c.l.b16 %v482
    %v573 = vunpack.c.h.b16 %v482
    %v574 = vunpack.c.l.b16 %v483
    %v575 = vunpack.c.h.b16 %v483
    %v576 = vunpack.c.l.b16 %v484
    %v577 = vunpack.c.h.b16 %v484
    %v578 = vunpack.c.l.b16 %v485
    %v579 = vunpack.c.h.b16 %v485
    %v580 = vunpack.c.l.b16 %v486
    %v581 = vunpack.c.h.b16 %v486
    %v582 = vunpack.c.l.b16 %v487
    %v583 = vunpack.c.h.b16 %v487
    %v584 = vpack.c.b16 %v524, %v520
    %v585 = vpack.c.b16 %v525, %v521
    %v586 = vpack.c.b16 %v526, %v522
    %v587 = vpack.c.b16 %v527, %v523
    %v588 = vpack.c.b16 %v532, %v528
    %v589 = vpack.c.b16 %v533, %v529
    %v590 = vpack.c.b16 %v534, %v530
    %v591 = vpack.c.b16 %v535, %v531
    %v592 = vpack.c.b16 %v540, %v536
    %v593 = vpack.c.b16 %v541, %v537
    %v594 = vpack.c.b16 %v542, %v538
    %v595 = vpack.c.b16 %v543, %v539
    %v596 = vpack.c.b16 %v548, %v544
    %v597 = vpack.c.b16 %v549, %v545
    %v598 = vpack.c.b16 %v550, %v546
    %v599 = vpack.c.b16 %v551, %v547
    %v600 = vpack.c.b16 %v556, %v552
    %v601 = vpack.c.b16 %v557, %v553
    %v602 = vpack.c.b16 %v558, %v554
    %v603 = vpack.c.b16 %v559, %v555
    %v604 = vpack.c.b16 %v564, %v560
    %v605 = vpack.c.b16 %v565, %v561
    %v606 = vpack.c.b16 %v566, %v562
    %v607 = vpack.c.b16 %v567, %v563
    %v608 = vpack.c.b16 %v572, %v568
    %v609 = vpack.c.b16 %v573, %v569
    %v610 = vpack.c.b16 %v574, %v570
    %v611 = vpack.c.b16 %v575, %v571
    %v612 = vpack.c.b16 %v580, %v576
    %v613 = vpack.c.b16 %v581, %v577
    %v614 = vpack.c.b16 %v582, %v578
    %v615 = vpack.c.b16 %v583, %v579
    %648 = vmatprep.subr.bf16.mxu0 %v585
    %649 = vmatpush1.bf16.msra.mxu0 %v584
    %650 = vmatprep.subr.bf16.mxu0 %v589
    %651 = vmatpush1.bf16.msra.mxu0 %v588
    %652 = vmatprep.subr.bf16.mxu0 %v593
    %653 = vmatpush1.bf16.msra.mxu0 %v592
    %654 = vmatprep.subr.bf16.mxu0 %v597
    %655 = vmatpush1.bf16.msra.mxu0 %v596
    %656 = vmatprep.subr.bf16.mxu0 %v601
    %657 = vmatpush1.bf16.msra.mxu0 %v600
    %658 = vmatprep.subr.bf16.mxu0 %v605
    %659 = vmatpush1.bf16.msra.mxu0 %v604
    %660 = vmatprep.subr.bf16.mxu0 %v609
    %661 = vmatpush1.bf16.msra.mxu0 %v608
    %662 = vmatprep.subr.bf16.mxu0 %v613
    %663 = vmatpush1.bf16.msra.mxu0 %v612
    %664 = vmatprep.subr.bf16.mxu0 0
    %665 = vmatpush1.bf16.msra.mxu0 0
    %666 = vmatprep.subr.bf16.mxu0 0
    %667 = vmatpush1.bf16.msra.mxu0 0
    %668 = vmatprep.subr.bf16.mxu0 0
    %669 = vmatpush1.bf16.msra.mxu0 0
    %670 = vmatprep.subr.bf16.mxu0 0
    %671 = vmatpush1.bf16.msra.mxu0 0
    %672 = vmatprep.subr.bf16.mxu0 0
    %673 = vmatpush1.bf16.msra.mxu0 0
    %674 = vmatprep.subr.bf16.mxu0 0
    %675 = vmatpush1.bf16.msra.mxu0 0
    %676 = vmatprep.subr.bf16.mxu0 0
    %677 = vmatpush1.bf16.msra.mxu0 0
    %678 = vmatprep.subr.bf16.mxu0 0
    %679 = vmatpush1.bf16.msra.mxu0 0
    %680 = vmatprep.mubr.bf16.mxu0 0
    %681 = vmatmul.mubr.bf16.gmra.mrb[0].mxu0 %v437
    %v682 = vpop.f32.mrb[0].mxu0
    %v683 = vadd.f32 0.0, %v682
    %v684 = vpop.f32.mrb[0].mxu0
    %v685 = vadd.f32 0.0, %v684
    %v686 = vpop.f32.mrb[0].mxu0
    %v687 = vadd.f32 0.0, %v686
    %v688 = vpop.f32.mrb[0].mxu0
    %v689 = vadd.f32 0.0, %v688
    %690 = vdwg.mxu0
    %691 = vmatprep.subr.bf16.mxu0 %v587
    %692 = vmatpush1.bf16.msra.mxu0 %v586
    %693 = vmatprep.subr.bf16.mxu0 %v591
    %694 = vmatpush1.bf16.msra.mxu0 %v590
    %695 = vmatprep.subr.bf16.mxu0 %v595
    %696 = vmatpush1.bf16.msra.mxu0 %v594
    %697 = vmatprep.subr.bf16.mxu0 %v599
    %698 = vmatpush1.bf16.msra.mxu0 %v598
    %699 = vmatprep.subr.bf16.mxu0 %v603
    %700 = vmatpush1.bf16.msra.mxu0 %v602
    %701 = vmatprep.subr.bf16.mxu0 %v607
    %702 = vmatpush1.bf16.msra.mxu0 %v606
    %703 = vmatprep.subr.bf16.mxu0 %v611
    %704 = vmatpush1.bf16.msra.mxu0 %v610
    %705 = vmatprep.subr.bf16.mxu0 %v615
    %706 = vmatpush1.bf16.msra.mxu0 %v614
    %707 = vmatprep.subr.bf16.mxu0 0
    %708 = vmatpush1.bf16.msra.mxu0 0
    %709 = vmatprep.subr.bf16.mxu0 0
    %710 = vmatpush1.bf16.msra.mxu0 0
    %711 = vmatprep.subr.bf16.mxu0 0
    %712 = vmatpush1.bf16.msra.mxu0 0
    %713 = vmatprep.subr.bf16.mxu0 0
    %714 = vmatpush1.bf16.msra.mxu0 0
    %715 = vmatprep.subr.bf16.mxu0 0
    %716 = vmatpush1.bf16.msra.mxu0 0
    %717 = vmatprep.subr.bf16.mxu0 0
    %718 = vmatpush1.bf16.msra.mxu0 0
    %719 = vmatprep.subr.bf16.mxu0 0
    %720 = vmatpush1.bf16.msra.mxu0 0
    %721 = vmatprep.subr.bf16.mxu0 0
    %722 = vmatpush1.bf16.msra.mxu0 0
    %723 = vmatprep.mubr.bf16.mxu0 0
    %724 = vmatmul.mubr.bf16.gmra.mrb[0].mxu0 %v437
    %v725 = vpop.f32.mrb[0].mxu0
    %v726 = vadd.f32 0.0, %v725
    %v727 = vpop.f32.mrb[0].mxu0
    %v728 = vadd.f32 0.0, %v727
    %v729 = vpop.f32.mrb[0].mxu0
    %v730 = vadd.f32 0.0, %v729
    %v731 = vpop.f32.mrb[0].mxu0
    %v732 = vadd.f32 0.0, %v731
    %733 = vdwg.mxu0
    %v734 = vadd.f32 %v448, %v683
    %v735 = vadd.f32 %v449, %v685
    %v736 = vadd.f32 %v450, %v726
    %v737 = vadd.f32 %v451, %v728
    %v738 = vadd.f32 %v452, %v687
    %v739 = vadd.f32 %v453, %v689
    %v740 = vadd.f32 %v454, %v730
    %v741 = vadd.f32 %v455, %v732
    %v742 = vxor.u32 %v734, 2147483648
    %v743 = vxor.u32 %v738, 2147483648
    %v744 = vmul.f32 %v742, 1.442695
    %v745 = vpow.pop %v744
    %v746 = vmul.f32 %v743, 1.442695
    %v747 = vpow.pop %v746
    %v748 = vadd.f32 %v745, 1.0
    %v749 = vadd.f32 %v747, 1.0
    %v750 = vrcp.pop %v748
    %v751 = vmul.f32 1.0, %v750
    %v752 = vrcp.pop %v749
    %v753 = vmul.f32 1.0, %v752
    %v754 = vxor.u32 %v735, 2147483648
    %v755 = vxor.u32 %v739, 2147483648
    %v756 = vmul.f32 %v754, 1.442695
    %v757 = vpow.pop %v756
    %v758 = vmul.f32 %v755, 1.442695
    %v759 = vpow.pop %v758
    %v760 = vadd.f32 %v757, 1.0
    %v761 = vadd.f32 %v759, 1.0
    %v762 = vrcp.pop %v760
    %v763 = vmul.f32 1.0, %v762
    %v764 = vrcp.pop %v761
    %v765 = vmul.f32 1.0, %v764
    %v766 = vtanh.pop %v736
    %v767 = vtanh.pop %v740
    %v768 = vxor.u32 %v737, 2147483648
    %v769 = vxor.u32 %v741, 2147483648
    %v770 = vmul.f32 %v768, 1.442695
    %v771 = vpow.pop %v770
    %v772 = vmul.f32 %v769, 1.442695
    %v773 = vpow.pop %v772
    %v774 = vadd.f32 %v771, 1.0
    %v775 = vadd.f32 %v773, 1.0
    %v776 = vrcp.pop %v774
    %v777 = vmul.f32 1.0, %v776
    %v778 = vrcp.pop %v775
    %v779 = vmul.f32 1.0, %v778
    %v780 = vmul.f32 %v763, %v431
    %v781 = vmul.f32 %v765, %v432
    %v782 = vmul.f32 %v751, %v766
    %v783 = vmul.f32 %v753, %v767
    %v784 = vadd.f32 %v780, %v782
    %v785 = vadd.f32 %v781, %v783
    %v786 = vtanh.pop %v784
    %v787 = vtanh.pop %v785
    %v788 = vmul.f32 %v777, %v786
    %v789 = vmul.f32 %v779, %v787
    %v790 = vpack.c.bf16 %v789, %v788
    %v792 = vunpack.c.l.b16 %v790
    %v793 = vunpack.c.h.b16 %v790
    %v794 = vpack.c.b16 %v792, %v792
    %v795 = vpack.c.b16 %v793, %v793
    %s798 = scalar_lea.vmem [#allocation12], 8
    %799 = vst [vmem:[%s798] sm:$0xf] %v794
    %800 = vst [vmem:[%s798 + $0x4] sm:$0xf] %v795
    %s801 = scalar_lea.vmem [#allocation4], 128
    %v802 = vld [vmem:[%s801] sm:$0xff]
    %v803 = vld [vmem:[%s801 + $0x8] sm:$0xff]
    %v804 = vld [vmem:[%s801 + $0x10] sm:$0xff]
    %v805 = vld [vmem:[%s801 + $0x18] sm:$0xff]
    %v806 = vld [vmem:[%s801 + $0x20] sm:$0xff]
    %v807 = vld [vmem:[%s801 + $0x28] sm:$0xff]
    %v808 = vld [vmem:[%s801 + $0x30] sm:$0xff]
    %v809 = vld [vmem:[%s801 + $0x38] sm:$0xff]
    %v810 = vld [vmem:[#allocation7] sm:$0xff]
    %v811 = vld [vmem:[#allocation7 + $0x8] sm:$0xff]
    %v812 = vld [vmem:[#allocation7 + $0x10] sm:$0xff]
    %v813 = vld [vmem:[#allocation7 + $0x18] sm:$0xff]
    %v814 = vld [vmem:[#allocation7 + $0x20] sm:$0xff]
    %v815 = vld [vmem:[#allocation7 + $0x28] sm:$0xff]
    %v816 = vld [vmem:[#allocation7 + $0x30] sm:$0xff]
    %v817 = vld [vmem:[#allocation7 + $0x38] sm:$0xff]
    %v818 = vld [vmem:[#allocation7 + $0x40] sm:$0xff]
    %v819 = vld [vmem:[#allocation7 + $0x48] sm:$0xff]
    %v820 = vld [vmem:[#allocation7 + $0x50] sm:$0xff]
    %v821 = vld [vmem:[#allocation7 + $0x58] sm:$0xff]
    %v822 = vld [vmem:[#allocation7 + $0x60] sm:$0xff]
    %v823 = vld [vmem:[#allocation7 + $0x68] sm:$0xff]
    %v824 = vld [vmem:[#allocation7 + $0x70] sm:$0xff]
    %v825 = vld [vmem:[#allocation7 + $0x78] sm:$0xff]
    %v826 = vld [vmem:[#allocation7 + $0x80] sm:$0xff]
    %v827 = vld [vmem:[#allocation7 + $0x88] sm:$0xff]
    %v828 = vld [vmem:[#allocation7 + $0x90] sm:$0xff]
    %v829 = vld [vmem:[#allocation7 + $0x98] sm:$0xff]
    %v830 = vld [vmem:[#allocation7 + $0xa0] sm:$0xff]
    %v831 = vld [vmem:[#allocation7 + $0xa8] sm:$0xff]
    %v832 = vld [vmem:[#allocation7 + $0xb0] sm:$0xff]
    %v833 = vld [vmem:[#allocation7 + $0xb8] sm:$0xff]
    %v834 = vld [vmem:[#allocation7 + $0xc0] sm:$0xff]
    %v835 = vld [vmem:[#allocation7 + $0xc8] sm:$0xff]
    %v836 = vld [vmem:[#allocation7 + $0xd0] sm:$0xff]
    %v837 = vld [vmem:[#allocation7 + $0xd8] sm:$0xff]
    %v838 = vld [vmem:[#allocation7 + $0xe0] sm:$0xff]
    %v839 = vld [vmem:[#allocation7 + $0xe8] sm:$0xff]
    %v840 = vld [vmem:[#allocation7 + $0xf0] sm:$0xff]
    %v841 = vld [vmem:[#allocation7 + $0xf8] sm:$0xff]
    %v874 = vunpack.c.l.b16 %v810
    %v875 = vunpack.c.h.b16 %v810
    %v876 = vunpack.c.l.b16 %v811
    %v877 = vunpack.c.h.b16 %v811
    %v878 = vunpack.c.l.b16 %v812
    %v879 = vunpack.c.h.b16 %v812
    %v880 = vunpack.c.l.b16 %v813
    %v881 = vunpack.c.h.b16 %v813
    %v882 = vunpack.c.l.b16 %v814
    %v883 = vunpack.c.h.b16 %v814
    %v884 = vunpack.c.l.b16 %v815
    %v885 = vunpack.c.h.b16 %v815
    %v886 = vunpack.c.l.b16 %v816
    %v887 = vunpack.c.h.b16 %v816
    %v888 = vunpack.c.l.b16 %v817
    %v889 = vunpack.c.h.b16 %v817
    %v890 = vunpack.c.l.b16 %v818
    %v891 = vunpack.c.h.b16 %v818
    %v892 = vunpack.c.l.b16 %v819
    %v893 = vunpack.c.h.b16 %v819
    %v894 = vunpack.c.l.b16 %v820
    %v895 = vunpack.c.h.b16 %v820
    %v896 = vunpack.c.l.b16 %v821
    %v897 = vunpack.c.h.b16 %v821
    %v898 = vunpack.c.l.b16 %v822
    %v899 = vunpack.c.h.b16 %v822
    %v900 = vunpack.c.l.b16 %v823
    %v901 = vunpack.c.h.b16 %v823
    %v902 = vunpack.c.l.b16 %v824
    %v903 = vunpack.c.h.b16 %v824
    %v904 = vunpack.c.l.b16 %v825
    %v905 = vunpack.c.h.b16 %v825
    %v906 = vunpack.c.l.b16 %v826
    %v907 = vunpack.c.h.b16 %v826
    %v908 = vunpack.c.l.b16 %v827
    %v909 = vunpack.c.h.b16 %v827
    %v910 = vunpack.c.l.b16 %v828
    %v911 = vunpack.c.h.b16 %v828
    %v912 = vunpack.c.l.b16 %v829
    %v913 = vunpack.c.h.b16 %v829
    %v914 = vunpack.c.l.b16 %v830
    %v915 = vunpack.c.h.b16 %v830
    %v916 = vunpack.c.l.b16 %v831
    %v917 = vunpack.c.h.b16 %v831
    %v918 = vunpack.c.l.b16 %v832
    %v919 = vunpack.c.h.b16 %v832
    %v920 = vunpack.c.l.b16 %v833
    %v921 = vunpack.c.h.b16 %v833
    %v922 = vunpack.c.l.b16 %v834
    %v923 = vunpack.c.h.b16 %v834
    %v924 = vunpack.c.l.b16 %v835
    %v925 = vunpack.c.h.b16 %v835
    %v926 = vunpack.c.l.b16 %v836
    %v927 = vunpack.c.h.b16 %v836
    %v928 = vunpack.c.l.b16 %v837
    %v929 = vunpack.c.h.b16 %v837
    %v930 = vunpack.c.l.b16 %v838
    %v931 = vunpack.c.h.b16 %v838
    %v932 = vunpack.c.l.b16 %v839
    %v933 = vunpack.c.h.b16 %v839
    %v934 = vunpack.c.l.b16 %v840
    %v935 = vunpack.c.h.b16 %v840
    %v936 = vunpack.c.l.b16 %v841
    %v937 = vunpack.c.h.b16 %v841
    %v938 = vpack.c.b16 %v878, %v874
    %v939 = vpack.c.b16 %v879, %v875
    %v940 = vpack.c.b16 %v880, %v876
    %v941 = vpack.c.b16 %v881, %v877
    %v942 = vpack.c.b16 %v886, %v882
    %v943 = vpack.c.b16 %v887, %v883
    %v944 = vpack.c.b16 %v888, %v884
    %v945 = vpack.c.b16 %v889, %v885
    %v946 = vpack.c.b16 %v894, %v890
    %v947 = vpack.c.b16 %v895, %v891
    %v948 = vpack.c.b16 %v896, %v892
    %v949 = vpack.c.b16 %v897, %v893
    %v950 = vpack.c.b16 %v902, %v898
    %v951 = vpack.c.b16 %v903, %v899
    %v952 = vpack.c.b16 %v904, %v900
    %v953 = vpack.c.b16 %v905, %v901
    %v954 = vpack.c.b16 %v910, %v906
    %v955 = vpack.c.b16 %v911, %v907
    %v956 = vpack.c.b16 %v912, %v908
    %v957 = vpack.c.b16 %v913, %v909
    %v958 = vpack.c.b16 %v918, %v914
    %v959 = vpack.c.b16 %v919, %v915
    %v960 = vpack.c.b16 %v920, %v916
    %v961 = vpack.c.b16 %v921, %v917
    %v962 = vpack.c.b16 %v926, %v922
    %v963 = vpack.c.b16 %v927, %v923
    %v964 = vpack.c.b16 %v928, %v924
    %v965 = vpack.c.b16 %v929, %v925
    %v966 = vpack.c.b16 %v934, %v930
    %v967 = vpack.c.b16 %v935, %v931
    %v968 = vpack.c.b16 %v936, %v932
    %v969 = vpack.c.b16 %v937, %v933
    %1002 = vmatprep.subr.bf16.mxu0 %v939
    %1003 = vmatpush1.bf16.msra.mxu0 %v938
    %1004 = vmatprep.subr.bf16.mxu0 %v943
    %1005 = vmatpush1.bf16.msra.mxu0 %v942
    %1006 = vmatprep.subr.bf16.mxu0 %v947
    %1007 = vmatpush1.bf16.msra.mxu0 %v946
    %1008 = vmatprep.subr.bf16.mxu0 %v951
    %1009 = vmatpush1.bf16.msra.mxu0 %v950
    %1010 = vmatprep.subr.bf16.mxu0 %v955
    %1011 = vmatpush1.bf16.msra.mxu0 %v954
    %1012 = vmatprep.subr.bf16.mxu0 %v959
    %1013 = vmatpush1.bf16.msra.mxu0 %v958
    %1014 = vmatprep.subr.bf16.mxu0 %v963
    %1015 = vmatpush1.bf16.msra.mxu0 %v962
    %1016 = vmatprep.subr.bf16.mxu0 %v967
    %1017 = vmatpush1.bf16.msra.mxu0 %v966
    %1018 = vmatprep.subr.bf16.mxu0 0
    %1019 = vmatpush1.bf16.msra.mxu0 0
    %1020 = vmatprep.subr.bf16.mxu0 0
    %1021 = vmatpush1.bf16.msra.mxu0 0
    %1022 = vmatprep.subr.bf16.mxu0 0
    %1023 = vmatpush1.bf16.msra.mxu0 0
    %1024 = vmatprep.subr.bf16.mxu0 0
    %1025 = vmatpush1.bf16.msra.mxu0 0
    %1026 = vmatprep.subr.bf16.mxu0 0
    %1027 = vmatpush1.bf16.msra.mxu0 0
    %1028 = vmatprep.subr.bf16.mxu0 0
    %1029 = vmatpush1.bf16.msra.mxu0 0
    %1030 = vmatprep.subr.bf16.mxu0 0
    %1031 = vmatpush1.bf16.msra.mxu0 0
    %1032 = vmatprep.subr.bf16.mxu0 0
    %1033 = vmatpush1.bf16.msra.mxu0 0
    %1034 = vmatprep.mubr.bf16.mxu0 0
    %1035 = vmatmul.mubr.bf16.gmra.mrb[0].mxu0 %v790
    %v1036 = vpop.f32.mrb[0].mxu0
    %v1037 = vadd.f32 0.0, %v1036
    %v1038 = vpop.f32.mrb[0].mxu0
    %v1039 = vadd.f32 0.0, %v1038
    %v1040 = vpop.f32.mrb[0].mxu0
    %v1041 = vadd.f32 0.0, %v1040
    %v1042 = vpop.f32.mrb[0].mxu0
    %v1043 = vadd.f32 0.0, %v1042
    %1044 = vdwg.mxu0
    %1045 = vmatprep.subr.bf16.mxu0 %v941
    %1046 = vmatpush1.bf16.msra.mxu0 %v940
    %1047 = vmatprep.subr.bf16.mxu0 %v945
    %1048 = vmatpush1.bf16.msra.mxu0 %v944
    %1049 = vmatprep.subr.bf16.mxu0 %v949
    %1050 = vmatpush1.bf16.msra.mxu0 %v948
    %1051 = vmatprep.subr.bf16.mxu0 %v953
    %1052 = vmatpush1.bf16.msra.mxu0 %v952
    %1053 = vmatprep.subr.bf16.mxu0 %v957
    %1054 = vmatpush1.bf16.msra.mxu0 %v956
    %1055 = vmatprep.subr.bf16.mxu0 %v961
    %1056 = vmatpush1.bf16.msra.mxu0 %v960
    %1057 = vmatprep.subr.bf16.mxu0 %v965
    %1058 = vmatpush1.bf16.msra.mxu0 %v964
    %1059 = vmatprep.subr.bf16.mxu0 %v969
    %1060 = vmatpush1.bf16.msra.mxu0 %v968
    %1061 = vmatprep.subr.bf16.mxu0 0
    %1062 = vmatpush1.bf16.msra.mxu0 0
    %1063 = vmatprep.subr.bf16.mxu0 0
    %1064 = vmatpush1.bf16.msra.mxu0 0
    %1065 = vmatprep.subr.bf16.mxu0 0
    %1066 = vmatpush1.bf16.msra.mxu0 0
    %1067 = vmatprep.subr.bf16.mxu0 0
    %1068 = vmatpush1.bf16.msra.mxu0 0
    %1069 = vmatprep.subr.bf16.mxu0 0
    %1070 = vmatpush1.bf16.msra.mxu0 0
    %1071 = vmatprep.subr.bf16.mxu0 0
    %1072 = vmatpush1.bf16.msra.mxu0 0
    %1073 = vmatprep.subr.bf16.mxu0 0
    %1074 = vmatpush1.bf16.msra.mxu0 0
    %1075 = vmatprep.subr.bf16.mxu0 0
    %1076 = vmatpush1.bf16.msra.mxu0 0
    %1077 = vmatprep.mubr.bf16.mxu0 0
    %1078 = vmatmul.mubr.bf16.gmra.mrb[0].mxu0 %v790
    %v1079 = vpop.f32.mrb[0].mxu0
    %v1080 = vadd.f32 0.0, %v1079
    %v1081 = vpop.f32.mrb[0].mxu0
    %v1082 = vadd.f32 0.0, %v1081
    %v1083 = vpop.f32.mrb[0].mxu0
    %v1084 = vadd.f32 0.0, %v1083
    %v1085 = vpop.f32.mrb[0].mxu0
    %v1086 = vadd.f32 0.0, %v1085
    %1087 = vdwg.mxu0
    %v1088 = vadd.f32 %v802, %v1037
    %v1089 = vadd.f32 %v803, %v1039
    %v1090 = vadd.f32 %v804, %v1080
    %v1091 = vadd.f32 %v805, %v1082
    %v1092 = vadd.f32 %v806, %v1041
    %v1093 = vadd.f32 %v807, %v1043
    %v1094 = vadd.f32 %v808, %v1084
    %v1095 = vadd.f32 %v809, %v1086
    %v1096 = vxor.u32 %v1088, 2147483648
    %v1097 = vxor.u32 %v1092, 2147483648
    %v1098 = vmul.f32 %v1096, 1.442695
    %v1099 = vpow.pop %v1098
    %v1100 = vmul.f32 %v1097, 1.442695
    %v1101 = vpow.pop %v1100
    %v1102 = vadd.f32 %v1099, 1.0
    %v1103 = vadd.f32 %v1101, 1.0
    %v1104 = vrcp.pop %v1102
    %v1105 = vmul.f32 1.0, %v1104
    %v1106 = vrcp.pop %v1103
    %v1107 = vmul.f32 1.0, %v1106
    %v1108 = vxor.u32 %v1089, 2147483648
    %v1109 = vxor.u32 %v1093, 2147483648
    %v1110 = vmul.f32 %v1108, 1.442695
    %v1111 = vpow.pop %v1110
    %v1112 = vmul.f32 %v1109, 1.442695
    %v1113 = vpow.pop %v1112
    %v1114 = vadd.f32 %v1111, 1.0
    %v1115 = vadd.f32 %v1113, 1.0
    %v1116 = vrcp.pop %v1114
    %v1117 = vmul.f32 1.0, %v1116
    %v1118 = vrcp.pop %v1115
    %v1119 = vmul.f32 1.0, %v1118
    %v1120 = vtanh.pop %v1090
    %v1121 = vtanh.pop %v1094
    %v1122 = vxor.u32 %v1091, 2147483648
    %v1123 = vxor.u32 %v1095, 2147483648
    %v1124 = vmul.f32 %v1122, 1.442695
    %v1125 = vpow.pop %v1124
    %v1126 = vmul.f32 %v1123, 1.442695
    %v1127 = vpow.pop %v1126
    %v1128 = vadd.f32 %v1125, 1.0
    %v1129 = vadd.f32 %v1127, 1.0
    %v1130 = vrcp.pop %v1128
    %v1131 = vmul.f32 1.0, %v1130
    %v1132 = vrcp.pop %v1129
    %v1133 = vmul.f32 1.0, %v1132
    %v1134 = vmul.f32 %v1117, %v784
    %v1135 = vmul.f32 %v1119, %v785
    %v1136 = vmul.f32 %v1105, %v1120
    %v1137 = vmul.f32 %v1107, %v1121
    %v1138 = vadd.f32 %v1134, %v1136
    %v1139 = vadd.f32 %v1135, %v1137
    %v1140 = vtanh.pop %v1138
    %v1141 = vtanh.pop %v1139
    %v1142 = vmul.f32 %v1131, %v1140
    %v1143 = vmul.f32 %v1133, %v1141
    %v1144 = vpack.c.bf16 %v1143, %v1142
    %v1146 = vunpack.c.l.b16 %v1144
    %v1147 = vunpack.c.h.b16 %v1144
    %v1148 = vpack.c.b16 %v1146, %v1146
    %v1149 = vpack.c.b16 %v1147, %v1147
    %s1152 = scalar_lea.vmem [#allocation12], 16
    %1153 = vst [vmem:[%s1152] sm:$0xf] %v1148
    %1154 = vst [vmem:[%s1152 + $0x4] sm:$0xf] %v1149
    %s1155 = scalar_lea.vmem [#allocation4], 192
    %v1156 = vld [vmem:[%s1155] sm:$0xff]
    %v1157 = vld [vmem:[%s1155 + $0x8] sm:$0xff]
    %v1158 = vld [vmem:[%s1155 + $0x10] sm:$0xff]
    %v1159 = vld [vmem:[%s1155 + $0x18] sm:$0xff]
    %v1160 = vld [vmem:[%s1155 + $0x20] sm:$0xff]
    %v1161 = vld [vmem:[%s1155 + $0x28] sm:$0xff]
    %v1162 = vld [vmem:[%s1155 + $0x30] sm:$0xff]
    %v1163 = vld [vmem:[%s1155 + $0x38] sm:$0xff]
    %v1164 = vld [vmem:[#allocation7] sm:$0xff]
    %v1165 = vld [vmem:[#allocation7 + $0x8] sm:$0xff]
    %v1166 = vld [vmem:[#allocation7 + $0x10] sm:$0xff]
    %v1167 = vld [vmem:[#allocation7 + $0x18] sm:$0xff]
    %v1168 = vld [vmem:[#allocation7 + $0x20] sm:$0xff]
    %v1169 = vld [vmem:[#allocation7 + $0x28] sm:$0xff]
    %v1170 = vld [vmem:[#allocation7 + $0x30] sm:$0xff]
    %v1171 = vld [vmem:[#allocation7 + $0x38] sm:$0xff]
    %v1172 = vld [vmem:[#allocation7 + $0x40] sm:$0xff]
    %v1173 = vld [vmem:[#allocation7 + $0x48] sm:$0xff]
    %v1174 = vld [vmem:[#allocation7 + $0x50] sm:$0xff]
    %v1175 = vld [vmem:[#allocation7 + $0x58] sm:$0xff]
    %v1176 = vld [vmem:[#allocation7 + $0x60] sm:$0xff]
    %v1177 = vld [vmem:[#allocation7 + $0x68] sm:$0xff]
    %v1178 = vld [vmem:[#allocation7 + $0x70] sm:$0xff]
    %v1179 = vld [vmem:[#allocation7 + $0x78] sm:$0xff]
    %v1180 = vld [vmem:[#allocation7 + $0x80] sm:$0xff]
    %v1181 = vld [vmem:[#allocation7 + $0x88] sm:$0xff]
    %v1182 = vld [vmem:[#allocation7 + $0x90] sm:$0xff]
    %v1183 = vld [vmem:[#allocation7 + $0x98] sm:$0xff]
    %v1184 = vld [vmem:[#allocation7 + $0xa0] sm:$0xff]
    %v1185 = vld [vmem:[#allocation7 + $0xa8] sm:$0xff]
    %v1186 = vld [vmem:[#allocation7 + $0xb0] sm:$0xff]
    %v1187 = vld [vmem:[#allocation7 + $0xb8] sm:$0xff]
    %v1188 = vld [vmem:[#allocation7 + $0xc0] sm:$0xff]
    %v1189 = vld [vmem:[#allocation7 + $0xc8] sm:$0xff]
    %v1190 = vld [vmem:[#allocation7 + $0xd0] sm:$0xff]
    %v1191 = vld [vmem:[#allocation7 + $0xd8] sm:$0xff]
    %v1192 = vld [vmem:[#allocation7 + $0xe0] sm:$0xff]
    %v1193 = vld [vmem:[#allocation7 + $0xe8] sm:$0xff]
    %v1194 = vld [vmem:[#allocation7 + $0xf0] sm:$0xff]
    %v1195 = vld [vmem:[#allocation7 + $0xf8] sm:$0xff]
    %v1228 = vunpack.c.l.b16 %v1164
    %v1229 = vunpack.c.h.b16 %v1164
    %v1230 = vunpack.c.l.b16 %v1165
    %v1231 = vunpack.c.h.b16 %v1165
    %v1232 = vunpack.c.l.b16 %v1166
    %v1233 = vunpack.c.h.b16 %v1166
    %v1234 = vunpack.c.l.b16 %v1167
    %v1235 = vunpack.c.h.b16 %v1167
    %v1236 = vunpack.c.l.b16 %v1168
    %v1237 = vunpack.c.h.b16 %v1168
    %v1238 = vunpack.c.l.b16 %v1169
    %v1239 = vunpack.c.h.b16 %v1169
    %v1240 = vunpack.c.l.b16 %v1170
    %v1241 = vunpack.c.h.b16 %v1170
    %v1242 = vunpack.c.l.b16 %v1171
    %v1243 = vunpack.c.h.b16 %v1171
    %v1244 = vunpack.c.l.b16 %v1172
    %v1245 = vunpack.c.h.b16 %v1172
    %v1246 = vunpack.c.l.b16 %v1173
    %v1247 = vunpack.c.h.b16 %v1173
    %v1248 = vunpack.c.l.b16 %v1174
    %v1249 = vunpack.c.h.b16 %v1174
    %v1250 = vunpack.c.l.b16 %v1175
    %v1251 = vunpack.c.h.b16 %v1175
    %v1252 = vunpack.c.l.b16 %v1176
    %v1253 = vunpack.c.h.b16 %v1176
    %v1254 = vunpack.c.l.b16 %v1177
    %v1255 = vunpack.c.h.b16 %v1177
    %v1256 = vunpack.c.l.b16 %v1178
    %v1257 = vunpack.c.h.b16 %v1178
    %v1258 = vunpack.c.l.b16 %v1179
    %v1259 = vunpack.c.h.b16 %v1179
    %v1260 = vunpack.c.l.b16 %v1180
    %v1261 = vunpack.c.h.b16 %v1180
    %v1262 = vunpack.c.l.b16 %v1181
    %v1263 = vunpack.c.h.b16 %v1181
    %v1264 = vunpack.c.l.b16 %v1182
    %v1265 = vunpack.c.h.b16 %v1182
    %v1266 = vunpack.c.l.b16 %v1183
    %v1267 = vunpack.c.h.b16 %v1183
    %v1268 = vunpack.c.l.b16 %v1184
    %v1269 = vunpack.c.h.b16 %v1184
    %v1270 = vunpack.c.l.b16 %v1185
    %v1271 = vunpack.c.h.b16 %v1185
    %v1272 = vunpack.c.l.b16 %v1186
    %v1273 = vunpack.c.h.b16 %v1186
    %v1274 = vunpack.c.l.b16 %v1187
    %v1275 = vunpack.c.h.b16 %v1187
    %v1276 = vunpack.c.l.b16 %v1188
    %v1277 = vunpack.c.h.b16 %v1188
    %v1278 = vunpack.c.l.b16 %v1189
    %v1279 = vunpack.c.h.b16 %v1189
    %v1280 = vunpack.c.l.b16 %v1190
    %v1281 = vunpack.c.h.b16 %v1190
    %v1282 = vunpack.c.l.b16 %v1191
    %v1283 = vunpack.c.h.b16 %v1191
    %v1284 = vunpack.c.l.b16 %v1192
    %v1285 = vunpack.c.h.b16 %v1192
    %v1286 = vunpack.c.l.b16 %v1193
    %v1287 = vunpack.c.h.b16 %v1193
    %v1288 = vunpack.c.l.b16 %v1194
    %v1289 = vunpack.c.h.b16 %v1194
    %v1290 = vunpack.c.l.b16 %v1195
    %v1291 = vunpack.c.h.b16 %v1195
    %v1292 = vpack.c.b16 %v1232, %v1228
    %v1293 = vpack.c.b16 %v1233, %v1229
    %v1294 = vpack.c.b16 %v1234, %v1230
    %v1295 = vpack.c.b16 %v1235, %v1231
    %v1296 = vpack.c.b16 %v1240, %v1236
    %v1297 = vpack.c.b16 %v1241, %v1237
    %v1298 = vpack.c.b16 %v1242, %v1238
    %v1299 = vpack.c.b16 %v1243, %v1239
    %v1300 = vpack.c.b16 %v1248, %v1244
    %v1301 = vpack.c.b16 %v1249, %v1245
    %v1302 = vpack.c.b16 %v1250, %v1246
    %v1303 = vpack.c.b16 %v1251, %v1247
    %v1304 = vpack.c.b16 %v1256, %v1252
    %v1305 = vpack.c.b16 %v1257, %v1253
    %v1306 = vpack.c.b16 %v1258, %v1254
    %v1307 = vpack.c.b16 %v1259, %v1255
    %v1308 = vpack.c.b16 %v1264, %v1260
    %v1309 = vpack.c.b16 %v1265, %v1261
    %v1310 = vpack.c.b16 %v1266, %v1262
    %v1311 = vpack.c.b16 %v1267, %v1263
    %v1312 = vpack.c.b16 %v1272, %v1268
    %v1313 = vpack.c.b16 %v1273, %v1269
    %v1314 = vpack.c.b16 %v1274, %v1270
    %v1315 = vpack.c.b16 %v1275, %v1271
    %v1316 = vpack.c.b16 %v1280, %v1276
    %v1317 = vpack.c.b16 %v1281, %v1277
    %v1318 = vpack.c.b16 %v1282, %v1278
    %v1319 = vpack.c.b16 %v1283, %v1279
    %v1320 = vpack.c.b16 %v1288, %v1284
    %v1321 = vpack.c.b16 %v1289, %v1285
    %v1322 = vpack.c.b16 %v1290, %v1286
    %v1323 = vpack.c.b16 %v1291, %v1287
    %1356 = vmatprep.subr.bf16.mxu0 %v1293
    %1357 = vmatpush1.bf16.msra.mxu0 %v1292
    %1358 = vmatprep.subr.bf16.mxu0 %v1297
    %1359 = vmatpush1.bf16.msra.mxu0 %v1296
    %1360 = vmatprep.subr.bf16.mxu0 %v1301
    %1361 = vmatpush1.bf16.msra.mxu0 %v1300
    %1362 = vmatprep.subr.bf16.mxu0 %v1305
    %1363 = vmatpush1.bf16.msra.mxu0 %v1304
    %1364 = vmatprep.subr.bf16.mxu0 %v1309
    %1365 = vmatpush1.bf16.msra.mxu0 %v1308
    %1366 = vmatprep.subr.bf16.mxu0 %v1313
    %1367 = vmatpush1.bf16.msra.mxu0 %v1312
    %1368 = vmatprep.subr.bf16.mxu0 %v1317
    %1369 = vmatpush1.bf16.msra.mxu0 %v1316
    %1370 = vmatprep.subr.bf16.mxu0 %v1321
    %1371 = vmatpush1.bf16.msra.mxu0 %v1320
    %1372 = vmatprep.subr.bf16.mxu0 0
    %1373 = vmatpush1.bf16.msra.mxu0 0
    %1374 = vmatprep.subr.bf16.mxu0 0
    %1375 = vmatpush1.bf16.msra.mxu0 0
    %1376 = vmatprep.subr.bf16.mxu0 0
    %1377 = vmatpush1.bf16.msra.mxu0 0
    %1378 = vmatprep.subr.bf16.mxu0 0
    %1379 = vmatpush1.bf16.msra.mxu0 0
    %1380 = vmatprep.subr.bf16.mxu0 0
    %1381 = vmatpush1.bf16.msra.mxu0 0
    %1382 = vmatprep.subr.bf16.mxu0 0
    %1383 = vmatpush1.bf16.msra.mxu0 0
    %1384 = vmatprep.subr.bf16.mxu0 0
    %1385 = vmatpush1.bf16.msra.mxu0 0
    %1386 = vmatprep.subr.bf16.mxu0 0
    %1387 = vmatpush1.bf16.msra.mxu0 0
    %1388 = vmatprep.mubr.bf16.mxu0 0
    %1389 = vmatmul.mubr.bf16.gmra.mrb[0].mxu0 %v1144
    %v1390 = vpop.f32.mrb[0].mxu0
    %v1391 = vadd.f32 0.0, %v1390
    %v1392 = vpop.f32.mrb[0].mxu0
    %v1393 = vadd.f32 0.0, %v1392
    %v1394 = vpop.f32.mrb[0].mxu0
    %v1395 = vadd.f32 0.0, %v1394
    %v1396 = vpop.f32.mrb[0].mxu0
    %v1397 = vadd.f32 0.0, %v1396
    %1398 = vdwg.mxu0
    %1399 = vmatprep.subr.bf16.mxu0 %v1295
    %1400 = vmatpush1.bf16.msra.mxu0 %v1294
    %1401 = vmatprep.subr.bf16.mxu0 %v1299
    %1402 = vmatpush1.bf16.msra.mxu0 %v1298
    %1403 = vmatprep.subr.bf16.mxu0 %v1303
    %1404 = vmatpush1.bf16.msra.mxu0 %v1302
    %1405 = vmatprep.subr.bf16.mxu0 %v1307
    %1406 = vmatpush1.bf16.msra.mxu0 %v1306
    %1407 = vmatprep.subr.bf16.mxu0 %v1311
    %1408 = vmatpush1.bf16.msra.mxu0 %v1310
    %1409 = vmatprep.subr.bf16.mxu0 %v1315
    %1410 = vmatpush1.bf16.msra.mxu0 %v1314
    %1411 = vmatprep.subr.bf16.mxu0 %v1319
    %1412 = vmatpush1.bf16.msra.mxu0 %v1318
    %1413 = vmatprep.subr.bf16.mxu0 %v1323
    %1414 = vmatpush1.bf16.msra.mxu0 %v1322
    %1415 = vmatprep.subr.bf16.mxu0 0
    %1416 = vmatpush1.bf16.msra.mxu0 0
    %1417 = vmatprep.subr.bf16.mxu0 0
    %1418 = vmatpush1.bf16.msra.mxu0 0
    %1419 = vmatprep.subr.bf16.mxu0 0
    %1420 = vmatpush1.bf16.msra.mxu0 0
    %1421 = vmatprep.subr.bf16.mxu0 0
    %1422 = vmatpush1.bf16.msra.mxu0 0
    %1423 = vmatprep.subr.bf16.mxu0 0
    %1424 = vmatpush1.bf16.msra.mxu0 0
    %1425 = vmatprep.subr.bf16.mxu0 0
    %1426 = vmatpush1.bf16.msra.mxu0 0
    %1427 = vmatprep.subr.bf16.mxu0 0
    %1428 = vmatpush1.bf16.msra.mxu0 0
    %1429 = vmatprep.subr.bf16.mxu0 0
    %1430 = vmatpush1.bf16.msra.mxu0 0
    %1431 = vmatprep.mubr.bf16.mxu0 0
    %1432 = vmatmul.mubr.bf16.gmra.mrb[0].mxu0 %v1144
    %v1433 = vpop.f32.mrb[0].mxu0
    %v1434 = vadd.f32 0.0, %v1433
    %v1435 = vpop.f32.mrb[0].mxu0
    %v1436 = vadd.f32 0.0, %v1435
    %v1437 = vpop.f32.mrb[0].mxu0
    %v1438 = vadd.f32 0.0, %v1437
    %v1439 = vpop.f32.mrb[0].mxu0
    %v1440 = vadd.f32 0.0, %v1439
    %1441 = vdwg.mxu0
    %v1442 = vadd.f32 %v1156, %v1391
    %v1443 = vadd.f32 %v1157, %v1393
    %v1444 = vadd.f32 %v1158, %v1434
    %v1445 = vadd.f32 %v1159, %v1436
    %v1446 = vadd.f32 %v1160, %v1395
    %v1447 = vadd.f32 %v1161, %v1397
    %v1448 = vadd.f32 %v1162, %v1438
    %v1449 = vadd.f32 %v1163, %v1440
    %v1450 = vxor.u32 %v1442, 2147483648
    %v1451 = vxor.u32 %v1446, 2147483648
    %v1452 = vmul.f32 %v1450, 1.442695
    %v1453 = vpow.pop %v1452
    %v1454 = vmul.f32 %v1451, 1.442695
    %v1455 = vpow.pop %v1454
    %v1456 = vadd.f32 %v1453, 1.0
    %v1457 = vadd.f32 %v1455, 1.0
    %v1458 = vrcp.pop %v1456
    %v1459 = vmul.f32 1.0, %v1458
    %v1460 = vrcp.pop %v1457
    %v1461 = vmul.f32 1.0, %v1460
    %v1462 = vxor.u32 %v1443, 2147483648
    %v1463 = vxor.u32 %v1447, 2147483648
    %v1464 = vmul.f32 %v1462, 1.442695
    %v1465 = vpow.pop %v1464
    %v1466 = vmul.f32 %v1463, 1.442695
    %v1467 = vpow.pop %v1466
    %v1468 = vadd.f32 %v1465, 1.0
    %v1469 = vadd.f32 %v1467, 1.0
    %v1470 = vrcp.pop %v1468
    %v1471 = vmul.f32 1.0, %v1470
    %v1472 = vrcp.pop %v1469
    %v1473 = vmul.f32 1.0, %v1472
    %v1474 = vtanh.pop %v1444
    %v1475 = vtanh.pop %v1448
    %v1476 = vxor.u32 %v1445, 2147483648
    %v1477 = vxor.u32 %v1449, 2147483648
    %v1478 = vmul.f32 %v1476, 1.442695
    %v1479 = vpow.pop %v1478
    %v1480 = vmul.f32 %v1477, 1.442695
    %v1481 = vpow.pop %v1480
    %v1482 = vadd.f32 %v1479, 1.0
    %v1483 = vadd.f32 %v1481, 1.0
    %v1484 = vrcp.pop %v1482
    %v1485 = vmul.f32 1.0, %v1484
    %v1486 = vrcp.pop %v1483
    %v1487 = vmul.f32 1.0, %v1486
    %v1488 = vmul.f32 %v1471, %v1138
    %v1489 = vmul.f32 %v1473, %v1139
    %v1490 = vmul.f32 %v1459, %v1474
    %v1491 = vmul.f32 %v1461, %v1475
    %v1492 = vadd.f32 %v1488, %v1490
    %v1493 = vadd.f32 %v1489, %v1491
    %v1494 = vtanh.pop %v1492
    %v1495 = vtanh.pop %v1493
    %v1496 = vmul.f32 %v1485, %v1494
    %v1497 = vmul.f32 %v1487, %v1495
    %v1498 = vpack.c.bf16 %v1497, %v1496
    %v1500 = vunpack.c.l.b16 %v1498
    %v1501 = vunpack.c.h.b16 %v1498
    %v1502 = vpack.c.b16 %v1500, %v1500
    %v1503 = vpack.c.b16 %v1501, %v1501
    %s1506 = scalar_lea.vmem [#allocation12], 24
    %1507 = vst [vmem:[%s1506] sm:$0xf] %v1502
    %1508 = vst [vmem:[%s1506 + $0x4] sm:$0xf] %v1503
    %s1509 = scalar_lea.vmem [#allocation4], 256
    %v1510 = vld [vmem:[%s1509] sm:$0xff]
    %v1511 = vld [vmem:[%s1509 + $0x8] sm:$0xff]
    %v1512 = vld [vmem:[%s1509 + $0x10] sm:$0xff]
    %v1513 = vld [vmem:[%s1509 + $0x18] sm:$0xff]
    %v1514 = vld [vmem:[%s1509 + $0x20] sm:$0xff]
    %v1515 = vld [vmem:[%s1509 + $0x28] sm:$0xff]
    %v1516 = vld [vmem:[%s1509 + $0x30] sm:$0xff]
    %v1517 = vld [vmem:[%s1509 + $0x38] sm:$0xff]
    %v1518 = vld [vmem:[#allocation7] sm:$0xff]
    %v1519 = vld [vmem:[#allocation7 + $0x8] sm:$0xff]
    %v1520 = vld [vmem:[#allocation7 + $0x10] sm:$0xff]
    %v1521 = vld [vmem:[#allocation7 + $0x18] sm:$0xff]
    %v1522 = vld [vmem:[#allocation7 + $0x20] sm:$0xff]
    %v1523 = vld [vmem:[#allocation7 + $0x28] sm:$0xff]
    %v1524 = vld [vmem:[#allocation7 + $0x30] sm:$0xff]
    %v1525 = vld [vmem:[#allocation7 + $0x38] sm:$0xff]
    %v1526 = vld [vmem:[#allocation7 + $0x40] sm:$0xff]
    %v1527 = vld [vmem:[#allocation7 + $0x48] sm:$0xff]
    %v1528 = vld [vmem:[#allocation7 + $0x50] sm:$0xff]
    %v1529 = vld [vmem:[#allocation7 + $0x58] sm:$0xff]
    %v1530 = vld [vmem:[#allocation7 + $0x60] sm:$0xff]
    %v1531 = vld [vmem:[#allocation7 + $0x68] sm:$0xff]
    %v1532 = vld [vmem:[#allocation7 + $0x70] sm:$0xff]
    %v1533 = vld [vmem:[#allocation7 + $0x78] sm:$0xff]
    %v1534 = vld [vmem:[#allocation7 + $0x80] sm:$0xff]
    %v1535 = vld [vmem:[#allocation7 + $0x88] sm:$0xff]
    %v1536 = vld [vmem:[#allocation7 + $0x90] sm:$0xff]
    %v1537 = vld [vmem:[#allocation7 + $0x98] sm:$0xff]
    %v1538 = vld [vmem:[#allocation7 + $0xa0] sm:$0xff]
    %v1539 = vld [vmem:[#allocation7 + $0xa8] sm:$0xff]
    %v1540 = vld [vmem:[#allocation7 + $0xb0] sm:$0xff]
    %v1541 = vld [vmem:[#allocation7 + $0xb8] sm:$0xff]
    %v1542 = vld [vmem:[#allocation7 + $0xc0] sm:$0xff]
    %v1543 = vld [vmem:[#allocation7 + $0xc8] sm:$0xff]
    %v1544 = vld [vmem:[#allocation7 + $0xd0] sm:$0xff]
    %v1545 = vld [vmem:[#allocation7 + $0xd8] sm:$0xff]
    %v1546 = vld [vmem:[#allocation7 + $0xe0] sm:$0xff]
    %v1547 = vld [vmem:[#allocation7 + $0xe8] sm:$0xff]
    %v1548 = vld [vmem:[#allocation7 + $0xf0] sm:$0xff]
    %v1549 = vld [vmem:[#allocation7 + $0xf8] sm:$0xff]
    %v1582 = vunpack.c.l.b16 %v1518
    %v1583 = vunpack.c.h.b16 %v1518
    %v1584 = vunpack.c.l.b16 %v1519
    %v1585 = vunpack.c.h.b16 %v1519
    %v1586 = vunpack.c.l.b16 %v1520
    %v1587 = vunpack.c.h.b16 %v1520
    %v1588 = vunpack.c.l.b16 %v1521
    %v1589 = vunpack.c.h.b16 %v1521
    %v1590 = vunpack.c.l.b16 %v1522
    %v1591 = vunpack.c.h.b16 %v1522
    %v1592 = vunpack.c.l.b16 %v1523
    %v1593 = vunpack.c.h.b16 %v1523
    %v1594 = vunpack.c.l.b16 %v1524
    %v1595 = vunpack.c.h.b16 %v1524
    %v1596 = vunpack.c.l.b16 %v1525
    %v1597 = vunpack.c.h.b16 %v1525
    %v1598 = vunpack.c.l.b16 %v1526
    %v1599 = vunpack.c.h.b16 %v1526
    %v1600 = vunpack.c.l.b16 %v1527
    %v1601 = vunpack.c.h.b16 %v1527
    %v1602 = vunpack.c.l.b16 %v1528
    %v1603 = vunpack.c.h.b16 %v1528
    %v1604 = vunpack.c.l.b16 %v1529
    %v1605 = vunpack.c.h.b16 %v1529
    %v1606 = vunpack.c.l.b16 %v1530
    %v1607 = vunpack.c.h.b16 %v1530
    %v1608 = vunpack.c.l.b16 %v1531
    %v1609 = vunpack.c.h.b16 %v1531
    %v1610 = vunpack.c.l.b16 %v1532
    %v1611 = vunpack.c.h.b16 %v1532
    %v1612 = vunpack.c.l.b16 %v1533
    %v1613 = vunpack.c.h.b16 %v1533
    %v1614 = vunpack.c.l.b16 %v1534
    %v1615 = vunpack.c.h.b16 %v1534
    %v1616 = vunpack.c.l.b16 %v1535
    %v1617 = vunpack.c.h.b16 %v1535
    %v1618 = vunpack.c.l.b16 %v1536
    %v1619 = vunpack.c.h.b16 %v1536
    %v1620 = vunpack.c.l.b16 %v1537
    %v1621 = vunpack.c.h.b16 %v1537
    %v1622 = vunpack.c.l.b16 %v1538
    %v1623 = vunpack.c.h.b16 %v1538
    %v1624 = vunpack.c.l.b16 %v1539
    %v1625 = vunpack.c.h.b16 %v1539
    %v1626 = vunpack.c.l.b16 %v1540
    %v1627 = vunpack.c.h.b16 %v1540
    %v1628 = vunpack.c.l.b16 %v1541
    %v1629 = vunpack.c.h.b16 %v1541
    %v1630 = vunpack.c.l.b16 %v1542
    %v1631 = vunpack.c.h.b16 %v1542
    %v1632 = vunpack.c.l.b16 %v1543
    %v1633 = vunpack.c.h.b16 %v1543
    %v1634 = vunpack.c.l.b16 %v1544
    %v1635 = vunpack.c.h.b16 %v1544
    %v1636 = vunpack.c.l.b16 %v1545
    %v1637 = vunpack.c.h.b16 %v1545
    %v1638 = vunpack.c.l.b16 %v1546
    %v1639 = vunpack.c.h.b16 %v1546
    %v1640 = vunpack.c.l.b16 %v1547
    %v1641 = vunpack.c.h.b16 %v1547
    %v1642 = vunpack.c.l.b16 %v1548
    %v1643 = vunpack.c.h.b16 %v1548
    %v1644 = vunpack.c.l.b16 %v1549
    %v1645 = vunpack.c.h.b16 %v1549
    %v1646 = vpack.c.b16 %v1586, %v1582
    %v1647 = vpack.c.b16 %v1587, %v1583
    %v1648 = vpack.c.b16 %v1588, %v1584
    %v1649 = vpack.c.b16 %v1589, %v1585
    %v1650 = vpack.c.b16 %v1594, %v1590
    %v1651 = vpack.c.b16 %v1595, %v1591
    %v1652 = vpack.c.b16 %v1596, %v1592
    %v1653 = vpack.c.b16 %v1597, %v1593
    %v1654 = vpack.c.b16 %v1602, %v1598
    %v1655 = vpack.c.b16 %v1603, %v1599
    %v1656 = vpack.c.b16 %v1604, %v1600
    %v1657 = vpack.c.b16 %v1605, %v1601
    %v1658 = vpack.c.b16 %v1610, %v1606
    %v1659 = vpack.c.b16 %v1611, %v1607
    %v1660 = vpack.c.b16 %v1612, %v1608
    %v1661 = vpack.c.b16 %v1613, %v1609
    %v1662 = vpack.c.b16 %v1618, %v1614
    %v1663 = vpack.c.b16 %v1619, %v1615
    %v1664 = vpack.c.b16 %v1620, %v1616
    %v1665 = vpack.c.b16 %v1621, %v1617
    %v1666 = vpack.c.b16 %v1626, %v1622
    %v1667 = vpack.c.b16 %v1627, %v1623
    %v1668 = vpack.c.b16 %v1628, %v1624
    %v1669 = vpack.c.b16 %v1629, %v1625
    %v1670 = vpack.c.b16 %v1634, %v1630
    %v1671 = vpack.c.b16 %v1635, %v1631
    %v1672 = vpack.c.b16 %v1636, %v1632
    %v1673 = vpack.c.b16 %v1637, %v1633
    %v1674 = vpack.c.b16 %v1642, %v1638
    %v1675 = vpack.c.b16 %v1643, %v1639
    %v1676 = vpack.c.b16 %v1644, %v1640
    %v1677 = vpack.c.b16 %v1645, %v1641
    %1710 = vmatprep.subr.bf16.mxu0 %v1647
    %1711 = vmatpush1.bf16.msra.mxu0 %v1646
    %1712 = vmatprep.subr.bf16.mxu0 %v1651
    %1713 = vmatpush1.bf16.msra.mxu0 %v1650
    %1714 = vmatprep.subr.bf16.mxu0 %v1655
    %1715 = vmatpush1.bf16.msra.mxu0 %v1654
    %1716 = vmatprep.subr.bf16.mxu0 %v1659
    %1717 = vmatpush1.bf16.msra.mxu0 %v1658
    %1718 = vmatprep.subr.bf16.mxu0 %v1663
    %1719 = vmatpush1.bf16.msra.mxu0 %v1662
    %1720 = vmatprep.subr.bf16.mxu0 %v1667
    %1721 = vmatpush1.bf16.msra.mxu0 %v1666
    %1722 = vmatprep.subr.bf16.mxu0 %v1671
    %1723 = vmatpush1.bf16.msra.mxu0 %v1670
    %1724 = vmatprep.subr.bf16.mxu0 %v1675
    %1725 = vmatpush1.bf16.msra.mxu0 %v1674
    %1726 = vmatprep.subr.bf16.mxu0 0
    %1727 = vmatpush1.bf16.msra.mxu0 0
    %1728 = vmatprep.subr.bf16.mxu0 0
    %1729 = vmatpush1.bf16.msra.mxu0 0
    %1730 = vmatprep.subr.bf16.mxu0 0
    %1731 = vmatpush1.bf16.msra.mxu0 0
    %1732 = vmatprep.subr.bf16.mxu0 0
    %1733 = vmatpush1.bf16.msra.mxu0 0
    %1734 = vmatprep.subr.bf16.mxu0 0
    %1735 = vmatpush1.bf16.msra.mxu0 0
    %1736 = vmatprep.subr.bf16.mxu0 0
    %1737 = vmatpush1.bf16.msra.mxu0 0
    %1738 = vmatprep.subr.bf16.mxu0 0
    %1739 = vmatpush1.bf16.msra.mxu0 0
    %1740 = vmatprep.subr.bf16.mxu0 0
    %1741 = vmatpush1.bf16.msra.mxu0 0
    %1742 = vmatprep.mubr.bf16.mxu0 0
    %1743 = vmatmul.mubr.bf16.gmra.mrb[0].mxu0 %v1498
    %v1744 = vpop.f32.mrb[0].mxu0
    %v1745 = vadd.f32 0.0, %v1744
    %v1746 = vpop.f32.mrb[0].mxu0
    %v1747 = vadd.f32 0.0, %v1746
    %v1748 = vpop.f32.mrb[0].mxu0
    %v1749 = vadd.f32 0.0, %v1748
    %v1750 = vpop.f32.mrb[0].mxu0
    %v1751 = vadd.f32 0.0, %v1750
    %1752 = vdwg.mxu0
    %1753 = vmatprep.subr.bf16.mxu0 %v1649
    %1754 = vmatpush1.bf16.msra.mxu0 %v1648
    %1755 = vmatprep.subr.bf16.mxu0 %v1653
    %1756 = vmatpush1.bf16.msra.mxu0 %v1652
    %1757 = vmatprep.subr.bf16.mxu0 %v1657
    %1758 = vmatpush1.bf16.msra.mxu0 %v1656
    %1759 = vmatprep.subr.bf16.mxu0 %v1661
    %1760 = vmatpush1.bf16.msra.mxu0 %v1660
    %1761 = vmatprep.subr.bf16.mxu0 %v1665
    %1762 = vmatpush1.bf16.msra.mxu0 %v1664
    %1763 = vmatprep.subr.bf16.mxu0 %v1669
    %1764 = vmatpush1.bf16.msra.mxu0 %v1668
    %1765 = vmatprep.subr.bf16.mxu0 %v1673
    %1766 = vmatpush1.bf16.msra.mxu0 %v1672
    %1767 = vmatprep.subr.bf16.mxu0 %v1677
    %1768 = vmatpush1.bf16.msra.mxu0 %v1676
    %1769 = vmatprep.subr.bf16.mxu0 0
    %1770 = vmatpush1.bf16.msra.mxu0 0
    %1771 = vmatprep.subr.bf16.mxu0 0
    %1772 = vmatpush1.bf16.msra.mxu0 0
    %1773 = vmatprep.subr.bf16.mxu0 0
    %1774 = vmatpush1.bf16.msra.mxu0 0
    %1775 = vmatprep.subr.bf16.mxu0 0
    %1776 = vmatpush1.bf16.msra.mxu0 0
    %1777 = vmatprep.subr.bf16.mxu0 0
    %1778 = vmatpush1.bf16.msra.mxu0 0
    %1779 = vmatprep.subr.bf16.mxu0 0
    %1780 = vmatpush1.bf16.msra.mxu0 0
    %1781 = vmatprep.subr.bf16.mxu0 0
    %1782 = vmatpush1.bf16.msra.mxu0 0
    %1783 = vmatprep.subr.bf16.mxu0 0
    %1784 = vmatpush1.bf16.msra.mxu0 0
    %1785 = vmatprep.mubr.bf16.mxu0 0
    %1786 = vmatmul.mubr.bf16.gmra.mrb[0].mxu0 %v1498
    %v1787 = vpop.f32.mrb[0].mxu0
    %v1788 = vadd.f32 0.0, %v1787
    %v1789 = vpop.f32.mrb[0].mxu0
    %v1790 = vadd.f32 0.0, %v1789
    %v1791 = vpop.f32.mrb[0].mxu0
    %v1792 = vadd.f32 0.0, %v1791
    %v1793 = vpop.f32.mrb[0].mxu0
    %v1794 = vadd.f32 0.0, %v1793
    %1795 = vdwg.mxu0
    %v1796 = vadd.f32 %v1510, %v1745
    %v1797 = vadd.f32 %v1511, %v1747
    %v1798 = vadd.f32 %v1512, %v1788
    %v1799 = vadd.f32 %v1513, %v1790
    %v1800 = vadd.f32 %v1514, %v1749
    %v1801 = vadd.f32 %v1515, %v1751
    %v1802 = vadd.f32 %v1516, %v1792
    %v1803 = vadd.f32 %v1517, %v1794
    %v1804 = vxor.u32 %v1796, 2147483648
    %v1805 = vxor.u32 %v1800, 2147483648
    %v1806 = vmul.f32 %v1804, 1.442695
    %v1807 = vpow.pop %v1806
    %v1808 = vmul.f32 %v1805, 1.442695
    %v1809 = vpow.pop %v1808
    %v1810 = vadd.f32 %v1807, 1.0
    %v1811 = vadd.f32 %v1809, 1.0
    %v1812 = vrcp.pop %v1810
    %v1813 = vmul.f32 1.0, %v1812
    %v1814 = vrcp.pop %v1811
    %v1815 = vmul.f32 1.0, %v1814
    %v1816 = vxor.u32 %v1797, 2147483648
    %v1817 = vxor.u32 %v1801, 2147483648
    %v1818 = vmul.f32 %v1816, 1.442695
    %v1819 = vpow.pop %v1818
    %v1820 = vmul.f32 %v1817, 1.442695
    %v1821 = vpow.pop %v1820
    %v1822 = vadd.f32 %v1819, 1.0
    %v1823 = vadd.f32 %v1821, 1.0
    %v1824 = vrcp.pop %v1822
    %v1825 = vmul.f32 1.0, %v1824
    %v1826 = vrcp.pop %v1823
    %v1827 = vmul.f32 1.0, %v1826
    %v1828 = vtanh.pop %v1798
    %v1829 = vtanh.pop %v1802
    %v1830 = vxor.u32 %v1799, 2147483648
    %v1831 = vxor.u32 %v1803, 2147483648
    %v1832 = vmul.f32 %v1830, 1.442695
    %v1833 = vpow.pop %v1832
    %v1834 = vmul.f32 %v1831, 1.442695
    %v1835 = vpow.pop %v1834
    %v1836 = vadd.f32 %v1833, 1.0
    %v1837 = vadd.f32 %v1835, 1.0
    %v1838 = vrcp.pop %v1836
    %v1839 = vmul.f32 1.0, %v1838
    %v1840 = vrcp.pop %v1837
    %v1841 = vmul.f32 1.0, %v1840
    %v1842 = vmul.f32 %v1825, %v1492
    %v1843 = vmul.f32 %v1827, %v1493
    %v1844 = vmul.f32 %v1813, %v1828
    %v1845 = vmul.f32 %v1815, %v1829
    %v1846 = vadd.f32 %v1842, %v1844
    %v1847 = vadd.f32 %v1843, %v1845
    %v1848 = vtanh.pop %v1846
    %v1849 = vtanh.pop %v1847
    %v1850 = vmul.f32 %v1839, %v1848
    %v1851 = vmul.f32 %v1841, %v1849
    %v1852 = vpack.c.bf16 %v1851, %v1850
    %v1854 = vunpack.c.l.b16 %v1852
    %v1855 = vunpack.c.h.b16 %v1852
    %v1856 = vpack.c.b16 %v1854, %v1854
    %v1857 = vpack.c.b16 %v1855, %v1855
    %s1860 = scalar_lea.vmem [#allocation12], 32
    %1861 = vst [vmem:[%s1860] sm:$0xf] %v1856
    %1862 = vst [vmem:[%s1860 + $0x4] sm:$0xf] %v1857
    %s1863 = scalar_lea.vmem [#allocation4], 320
    %v1864 = vld [vmem:[%s1863] sm:$0xff]
    %v1865 = vld [vmem:[%s1863 + $0x8] sm:$0xff]
    %v1866 = vld [vmem:[%s1863 + $0x10] sm:$0xff]
    %v1867 = vld [vmem:[%s1863 + $0x18] sm:$0xff]
    %v1868 = vld [vmem:[%s1863 + $0x20] sm:$0xff]
    %v1869 = vld [vmem:[%s1863 + $0x28] sm:$0xff]
    %v1870 = vld [vmem:[%s1863 + $0x30] sm:$0xff]
    %v1871 = vld [vmem:[%s1863 + $0x38] sm:$0xff]
    %v1872 = vld [vmem:[#allocation7] sm:$0xff]
    %v1873 = vld [vmem:[#allocation7 + $0x8] sm:$0xff]
    %v1874 = vld [vmem:[#allocation7 + $0x10] sm:$0xff]
    %v1875 = vld [vmem:[#allocation7 + $0x18] sm:$0xff]
    %v1876 = vld [vmem:[#allocation7 + $0x20] sm:$0xff]
    %v1877 = vld [vmem:[#allocation7 + $0x28] sm:$0xff]
    %v1878 = vld [vmem:[#allocation7 + $0x30] sm:$0xff]
    %v1879 = vld [vmem:[#allocation7 + $0x38] sm:$0xff]
    %v1880 = vld [vmem:[#allocation7 + $0x40] sm:$0xff]
    %v1881 = vld [vmem:[#allocation7 + $0x48] sm:$0xff]
    %v1882 = vld [vmem:[#allocation7 + $0x50] sm:$0xff]
    %v1883 = vld [vmem:[#allocation7 + $0x58] sm:$0xff]
    %v1884 = vld [vmem:[#allocation7 + $0x60] sm:$0xff]
    %v1885 = vld [vmem:[#allocation7 + $0x68] sm:$0xff]
    %v1886 = vld [vmem:[#allocation7 + $0x70] sm:$0xff]
    %v1887 = vld [vmem:[#allocation7 + $0x78] sm:$0xff]
    %v1888 = vld [vmem:[#allocation7 + $0x80] sm:$0xff]
    %v1889 = vld [vmem:[#allocation7 + $0x88] sm:$0xff]
    %v1890 = vld [vmem:[#allocation7 + $0x90] sm:$0xff]
    %v1891 = vld [vmem:[#allocation7 + $0x98] sm:$0xff]
    %v1892 = vld [vmem:[#allocation7 + $0xa0] sm:$0xff]
    %v1893 = vld [vmem:[#allocation7 + $0xa8] sm:$0xff]
    %v1894 = vld [vmem:[#allocation7 + $0xb0] sm:$0xff]
    %v1895 = vld [vmem:[#allocation7 + $0xb8] sm:$0xff]
    %v1896 = vld [vmem:[#allocation7 + $0xc0] sm:$0xff]
    %v1897 = vld [vmem:[#allocation7 + $0xc8] sm:$0xff]
    %v1898 = vld [vmem:[#allocation7 + $0xd0] sm:$0xff]
    %v1899 = vld [vmem:[#allocation7 + $0xd8] sm:$0xff]
    %v1900 = vld [vmem:[#allocation7 + $0xe0] sm:$0xff]
    %v1901 = vld [vmem:[#allocation7 + $0xe8] sm:$0xff]
    %v1902 = vld [vmem:[#allocation7 + $0xf0] sm:$0xff]
    %v1903 = vld [vmem:[#allocation7 + $0xf8] sm:$0xff]
    %v1936 = vunpack.c.l.b16 %v1872
    %v1937 = vunpack.c.h.b16 %v1872
    %v1938 = vunpack.c.l.b16 %v1873
    %v1939 = vunpack.c.h.b16 %v1873
    %v1940 = vunpack.c.l.b16 %v1874
    %v1941 = vunpack.c.h.b16 %v1874
    %v1942 = vunpack.c.l.b16 %v1875
    %v1943 = vunpack.c.h.b16 %v1875
    %v1944 = vunpack.c.l.b16 %v1876
    %v1945 = vunpack.c.h.b16 %v1876
    %v1946 = vunpack.c.l.b16 %v1877
    %v1947 = vunpack.c.h.b16 %v1877
    %v1948 = vunpack.c.l.b16 %v1878
    %v1949 = vunpack.c.h.b16 %v1878
    %v1950 = vunpack.c.l.b16 %v1879
    %v1951 = vunpack.c.h.b16 %v1879
    %v1952 = vunpack.c.l.b16 %v1880
    %v1953 = vunpack.c.h.b16 %v1880
    %v1954 = vunpack.c.l.b16 %v1881
    %v1955 = vunpack.c.h.b16 %v1881
    %v1956 = vunpack.c.l.b16 %v1882
    %v1957 = vunpack.c.h.b16 %v1882
    %v1958 = vunpack.c.l.b16 %v1883
    %v1959 = vunpack.c.h.b16 %v1883
    %v1960 = vunpack.c.l.b16 %v1884
    %v1961 = vunpack.c.h.b16 %v1884
    %v1962 = vunpack.c.l.b16 %v1885
    %v1963 = vunpack.c.h.b16 %v1885
    %v1964 = vunpack.c.l.b16 %v1886
    %v1965 = vunpack.c.h.b16 %v1886
    %v1966 = vunpack.c.l.b16 %v1887
    %v1967 = vunpack.c.h.b16 %v1887
    %v1968 = vunpack.c.l.b16 %v1888
    %v1969 = vunpack.c.h.b16 %v1888
    %v1970 = vunpack.c.l.b16 %v1889
    %v1971 = vunpack.c.h.b16 %v1889
    %v1972 = vunpack.c.l.b16 %v1890
    %v1973 = vunpack.c.h.b16 %v1890
    %v1974 = vunpack.c.l.b16 %v1891
    %v1975 = vunpack.c.h.b16 %v1891
    %v1976 = vunpack.c.l.b16 %v1892
    %v1977 = vunpack.c.h.b16 %v1892
    %v1978 = vunpack.c.l.b16 %v1893
    %v1979 = vunpack.c.h.b16 %v1893
    %v1980 = vunpack.c.l.b16 %v1894
    %v1981 = vunpack.c.h.b16 %v1894
    %v1982 = vunpack.c.l.b16 %v1895
    %v1983 = vunpack.c.h.b16 %v1895
    %v1984 = vunpack.c.l.b16 %v1896
    %v1985 = vunpack.c.h.b16 %v1896
    %v1986 = vunpack.c.l.b16 %v1897
    %v1987 = vunpack.c.h.b16 %v1897
    %v1988 = vunpack.c.l.b16 %v1898
    %v1989 = vunpack.c.h.b16 %v1898
    %v1990 = vunpack.c.l.b16 %v1899
    %v1991 = vunpack.c.h.b16 %v1899
    %v1992 = vunpack.c.l.b16 %v1900
    %v1993 = vunpack.c.h.b16 %v1900
    %v1994 = vunpack.c.l.b16 %v1901
    %v1995 = vunpack.c.h.b16 %v1901
    %v1996 = vunpack.c.l.b16 %v1902
    %v1997 = vunpack.c.h.b16 %v1902
    %v1998 = vunpack.c.l.b16 %v1903
    %v1999 = vunpack.c.h.b16 %v1903
    %v2000 = vpack.c.b16 %v1940, %v1936
    %v2001 = vpack.c.b16 %v1941, %v1937
    %v2002 = vpack.c.b16 %v1942, %v1938
    %v2003 = vpack.c.b16 %v1943, %v1939
    %v2004 = vpack.c.b16 %v1948, %v1944
    %v2005 = vpack.c.b16 %v1949, %v1945
    %v2006 = vpack.c.b16 %v1950, %v1946
    %v2007 = vpack.c.b16 %v1951, %v1947
    %v2008 = vpack.c.b16 %v1956, %v1952
    %v2009 = vpack.c.b16 %v1957, %v1953
    %v2010 = vpack.c.b16 %v1958, %v1954
    %v2011 = vpack.c.b16 %v1959, %v1955
    %v2012 = vpack.c.b16 %v1964, %v1960
    %v2013 = vpack.c.b16 %v1965, %v1961
    %v2014 = vpack.c.b16 %v1966, %v1962
    %v2015 = vpack.c.b16 %v1967, %v1963
    %v2016 = vpack.c.b16 %v1972, %v1968
    %v2017 = vpack.c.b16 %v1973, %v1969
    %v2018 = vpack.c.b16 %v1974, %v1970
    %v2019 = vpack.c.b16 %v1975, %v1971
    %v2020 = vpack.c.b16 %v1980, %v1976
    %v2021 = vpack.c.b16 %v1981, %v1977
    %v2022 = vpack.c.b16 %v1982, %v1978
    %v2023 = vpack.c.b16 %v1983, %v1979
    %v2024 = vpack.c.b16 %v1988, %v1984
    %v2025 = vpack.c.b16 %v1989, %v1985
    %v2026 = vpack.c.b16 %v1990, %v1986
    %v2027 = vpack.c.b16 %v1991, %v1987
    %v2028 = vpack.c.b16 %v1996, %v1992
    %v2029 = vpack.c.b16 %v1997, %v1993
    %v2030 = vpack.c.b16 %v1998, %v1994
    %v2031 = vpack.c.b16 %v1999, %v1995
    %2064 = vmatprep.subr.bf16.mxu0 %v2001
    %2065 = vmatpush1.bf16.msra.mxu0 %v2000
    %2066 = vmatprep.subr.bf16.mxu0 %v2005
    %2067 = vmatpush1.bf16.msra.mxu0 %v2004
    %2068 = vmatprep.subr.bf16.mxu0 %v2009
    %2069 = vmatpush1.bf16.msra.mxu0 %v2008
    %2070 = vmatprep.subr.bf16.mxu0 %v2013
    %2071 = vmatpush1.bf16.msra.mxu0 %v2012
    %2072 = vmatprep.subr.bf16.mxu0 %v2017
    %2073 = vmatpush1.bf16.msra.mxu0 %v2016
    %2074 = vmatprep.subr.bf16.mxu0 %v2021
    %2075 = vmatpush1.bf16.msra.mxu0 %v2020
    %2076 = vmatprep.subr.bf16.mxu0 %v2025
    %2077 = vmatpush1.bf16.msra.mxu0 %v2024
    %2078 = vmatprep.subr.bf16.mxu0 %v2029
    %2079 = vmatpush1.bf16.msra.mxu0 %v2028
    %2080 = vmatprep.subr.bf16.mxu0 0
    %2081 = vmatpush1.bf16.msra.mxu0 0
    %2082 = vmatprep.subr.bf16.mxu0 0
    %2083 = vmatpush1.bf16.msra.mxu0 0
    %2084 = vmatprep.subr.bf16.mxu0 0
    %2085 = vmatpush1.bf16.msra.mxu0 0
    %2086 = vmatprep.subr.bf16.mxu0 0
    %2087 = vmatpush1.bf16.msra.mxu0 0
    %2088 = vmatprep.subr.bf16.mxu0 0
    %2089 = vmatpush1.bf16.msra.mxu0 0
    %2090 = vmatprep.subr.bf16.mxu0 0
    %2091 = vmatpush1.bf16.msra.mxu0 0
    %2092 = vmatprep.subr.bf16.mxu0 0
    %2093 = vmatpush1.bf16.msra.mxu0 0
    %2094 = vmatprep.subr.bf16.mxu0 0
    %2095 = vmatpush1.bf16.msra.mxu0 0
    %2096 = vmatprep.mubr.bf16.mxu0 0
    %2097 = vmatmul.mubr.bf16.gmra.mrb[0].mxu0 %v1852
    %v2098 = vpop.f32.mrb[0].mxu0
    %v2099 = vadd.f32 0.0, %v2098
    %v2100 = vpop.f32.mrb[0].mxu0
    %v2101 = vadd.f32 0.0, %v2100
    %v2102 = vpop.f32.mrb[0].mxu0
    %v2103 = vadd.f32 0.0, %v2102
    %v2104 = vpop.f32.mrb[0].mxu0
    %v2105 = vadd.f32 0.0, %v2104
    %2106 = vdwg.mxu0
    %2107 = vmatprep.subr.bf16.mxu0 %v2003
    %2108 = vmatpush1.bf16.msra.mxu0 %v2002
    %2109 = vmatprep.subr.bf16.mxu0 %v2007
    %2110 = vmatpush1.bf16.msra.mxu0 %v2006
    %2111 = vmatprep.subr.bf16.mxu0 %v2011
    %2112 = vmatpush1.bf16.msra.mxu0 %v2010
    %2113 = vmatprep.subr.bf16.mxu0 %v2015
    %2114 = vmatpush1.bf16.msra.mxu0 %v2014
    %2115 = vmatprep.subr.bf16.mxu0 %v2019
    %2116 = vmatpush1.bf16.msra.mxu0 %v2018
    %2117 = vmatprep.subr.bf16.mxu0 %v2023
    %2118 = vmatpush1.bf16.msra.mxu0 %v2022
    %2119 = vmatprep.subr.bf16.mxu0 %v2027
    %2120 = vmatpush1.bf16.msra.mxu0 %v2026
    %2121 = vmatprep.subr.bf16.mxu0 %v2031
    %2122 = vmatpush1.bf16.msra.mxu0 %v2030
    %2123 = vmatprep.subr.bf16.mxu0 0
    %2124 = vmatpush1.bf16.msra.mxu0 0
    %2125 = vmatprep.subr.bf16.mxu0 0
    %2126 = vmatpush1.bf16.msra.mxu0 0
    %2127 = vmatprep.subr.bf16.mxu0 0
    %2128 = vmatpush1.bf16.msra.mxu0 0
    %2129 = vmatprep.subr.bf16.mxu0 0
    %2130 = vmatpush1.bf16.msra.mxu0 0
    %2131 = vmatprep.subr.bf16.mxu0 0
    %2132 = vmatpush1.bf16.msra.mxu0 0
    %2133 = vmatprep.subr.bf16.mxu0 0
    %2134 = vmatpush1.bf16.msra.mxu0 0
    %2135 = vmatprep.subr.bf16.mxu0 0
    %2136 = vmatpush1.bf16.msra.mxu0 0
    %2137 = vmatprep.subr.bf16.mxu0 0
    %2138 = vmatpush1.bf16.msra.mxu0 0
    %2139 = vmatprep.mubr.bf16.mxu0 0
    %2140 = vmatmul.mubr.bf16.gmra.mrb[0].mxu0 %v1852
    %v2141 = vpop.f32.mrb[0].mxu0
    %v2142 = vadd.f32 0.0, %v2141
    %v2143 = vpop.f32.mrb[0].mxu0
    %v2144 = vadd.f32 0.0, %v2143
    %v2145 = vpop.f32.mrb[0].mxu0
    %v2146 = vadd.f32 0.0, %v2145
    %v2147 = vpop.f32.mrb[0].mxu0
    %v2148 = vadd.f32 0.0, %v2147
    %2149 = vdwg.mxu0
    %v2150 = vadd.f32 %v1864, %v2099
    %v2151 = vadd.f32 %v1865, %v2101
    %v2152 = vadd.f32 %v1866, %v2142
    %v2153 = vadd.f32 %v1867, %v2144
    %v2154 = vadd.f32 %v1868, %v2103
    %v2155 = vadd.f32 %v1869, %v2105
    %v2156 = vadd.f32 %v1870, %v2146
    %v2157 = vadd.f32 %v1871, %v2148
    %v2158 = vxor.u32 %v2150, 2147483648
    %v2159 = vxor.u32 %v2154, 2147483648
    %v2160 = vmul.f32 %v2158, 1.442695
    %v2161 = vpow.pop %v2160
    %v2162 = vmul.f32 %v2159, 1.442695
    %v2163 = vpow.pop %v2162
    %v2164 = vadd.f32 %v2161, 1.0
    %v2165 = vadd.f32 %v2163, 1.0
    %v2166 = vrcp.pop %v2164
    %v2167 = vmul.f32 1.0, %v2166
    %v2168 = vrcp.pop %v2165
    %v2169 = vmul.f32 1.0, %v2168
    %v2170 = vxor.u32 %v2151, 2147483648
    %v2171 = vxor.u32 %v2155, 2147483648
    %v2172 = vmul.f32 %v2170, 1.442695
    %v2173 = vpow.pop %v2172
    %v2174 = vmul.f32 %v2171, 1.442695
    %v2175 = vpow.pop %v2174
    %v2176 = vadd.f32 %v2173, 1.0
    %v2177 = vadd.f32 %v2175, 1.0
    %v2178 = vrcp.pop %v2176
    %v2179 = vmul.f32 1.0, %v2178
    %v2180 = vrcp.pop %v2177
    %v2181 = vmul.f32 1.0, %v2180
    %v2182 = vtanh.pop %v2152
    %v2183 = vtanh.pop %v2156
    %v2184 = vxor.u32 %v2153, 2147483648
    %v2185 = vxor.u32 %v2157, 2147483648
    %v2186 = vmul.f32 %v2184, 1.442695
    %v2187 = vpow.pop %v2186
    %v2188 = vmul.f32 %v2185, 1.442695
    %v2189 = vpow.pop %v2188
    %v2190 = vadd.f32 %v2187, 1.0
    %v2191 = vadd.f32 %v2189, 1.0
    %v2192 = vrcp.pop %v2190
    %v2193 = vmul.f32 1.0, %v2192
    %v2194 = vrcp.pop %v2191
    %v2195 = vmul.f32 1.0, %v2194
    %v2196 = vmul.f32 %v2179, %v1846
    %v2197 = vmul.f32 %v2181, %v1847
    %v2198 = vmul.f32 %v2167, %v2182
    %v2199 = vmul.f32 %v2169, %v2183
    %v2200 = vadd.f32 %v2196, %v2198
    %v2201 = vadd.f32 %v2197, %v2199
    %v2202 = vtanh.pop %v2200
    %v2203 = vtanh.pop %v2201
    %v2204 = vmul.f32 %v2193, %v2202
    %v2205 = vmul.f32 %v2195, %v2203
    %v2206 = vpack.c.bf16 %v2205, %v2204
    %v2208 = vunpack.c.l.b16 %v2206
    %v2209 = vunpack.c.h.b16 %v2206
    %v2210 = vpack.c.b16 %v2208, %v2208
    %v2211 = vpack.c.b16 %v2209, %v2209
    %s2214 = scalar_lea.vmem [#allocation12], 40
    %2215 = vst [vmem:[%s2214] sm:$0xf] %v2210
    %2216 = vst [vmem:[%s2214 + $0x4] sm:$0xf] %v2211
    %s2217 = scalar_lea.vmem [#allocation4], 384
    %v2218 = vld [vmem:[%s2217] sm:$0xff]
    %v2219 = vld [vmem:[%s2217 + $0x8] sm:$0xff]
    %v2220 = vld [vmem:[%s2217 + $0x10] sm:$0xff]
    %v2221 = vld [vmem:[%s2217 + $0x18] sm:$0xff]
    %v2222 = vld [vmem:[%s2217 + $0x20] sm:$0xff]
    %v2223 = vld [vmem:[%s2217 + $0x28] sm:$0xff]
    %v2224 = vld [vmem:[%s2217 + $0x30] sm:$0xff]
    %v2225 = vld [vmem:[%s2217 + $0x38] sm:$0xff]
    %v2226 = vld [vmem:[#allocation7] sm:$0xff]
    %v2227 = vld [vmem:[#allocation7 + $0x8] sm:$0xff]
    %v2228 = vld [vmem:[#allocation7 + $0x10] sm:$0xff]
    %v2229 = vld [vmem:[#allocation7 + $0x18] sm:$0xff]
    %v2230 = vld [vmem:[#allocation7 + $0x20] sm:$0xff]
    %v2231 = vld [vmem:[#allocation7 + $0x28] sm:$0xff]
    %v2232 = vld [vmem:[#allocation7 + $0x30] sm:$0xff]
    %v2233 = vld [vmem:[#allocation7 + $0x38] sm:$0xff]
    %v2234 = vld [vmem:[#allocation7 + $0x40] sm:$0xff]
    %v2235 = vld [vmem:[#allocation7 + $0x48] sm:$0xff]
    %v2236 = vld [vmem:[#allocation7 + $0x50] sm:$0xff]
    %v2237 = vld [vmem:[#allocation7 + $0x58] sm:$0xff]
    %v2238 = vld [vmem:[#allocation7 + $0x60] sm:$0xff]
    %v2239 = vld [vmem:[#allocation7 + $0x68] sm:$0xff]
    %v2240 = vld [vmem:[#allocation7 + $0x70] sm:$0xff]
    %v2241 = vld [vmem:[#allocation7 + $0x78] sm:$0xff]
    %v2242 = vld [vmem:[#allocation7 + $0x80] sm:$0xff]
    %v2243 = vld [vmem:[#allocation7 + $0x88] sm:$0xff]
    %v2244 = vld [vmem:[#allocation7 + $0x90] sm:$0xff]
    %v2245 = vld [vmem:[#allocation7 + $0x98] sm:$0xff]
    %v2246 = vld [vmem:[#allocation7 + $0xa0] sm:$0xff]
    %v2247 = vld [vmem:[#allocation7 + $0xa8] sm:$0xff]
    %v2248 = vld [vmem:[#allocation7 + $0xb0] sm:$0xff]
    %v2249 = vld [vmem:[#allocation7 + $0xb8] sm:$0xff]
    %v2250 = vld [vmem:[#allocation7 + $0xc0] sm:$0xff]
    %v2251 = vld [vmem:[#allocation7 + $0xc8] sm:$0xff]
    %v2252 = vld [vmem:[#allocation7 + $0xd0] sm:$0xff]
    %v2253 = vld [vmem:[#allocation7 + $0xd8] sm:$0xff]
    %v2254 = vld [vmem:[#allocation7 + $0xe0] sm:$0xff]
    %v2255 = vld [vmem:[#allocation7 + $0xe8] sm:$0xff]
    %v2256 = vld [vmem:[#allocation7 + $0xf0] sm:$0xff]
    %v2257 = vld [vmem:[#allocation7 + $0xf8] sm:$0xff]
    %v2290 = vunpack.c.l.b16 %v2226
    %v2291 = vunpack.c.h.b16 %v2226
    %v2292 = vunpack.c.l.b16 %v2227
    %v2293 = vunpack.c.h.b16 %v2227
    %v2294 = vunpack.c.l.b16 %v2228
    %v2295 = vunpack.c.h.b16 %v2228
    %v2296 = vunpack.c.l.b16 %v2229
    %v2297 = vunpack.c.h.b16 %v2229
    %v2298 = vunpack.c.l.b16 %v2230
    %v2299 = vunpack.c.h.b16 %v2230
    %v2300 = vunpack.c.l.b16 %v2231
    %v2301 = vunpack.c.h.b16 %v2231
    %v2302 = vunpack.c.l.b16 %v2232
    %v2303 = vunpack.c.h.b16 %v2232
    %v2304 = vunpack.c.l.b16 %v2233
    %v2305 = vunpack.c.h.b16 %v2233
    %v2306 = vunpack.c.l.b16 %v2234
    %v2307 = vunpack.c.h.b16 %v2234
    %v2308 = vunpack.c.l.b16 %v2235
    %v2309 = vunpack.c.h.b16 %v2235
    %v2310 = vunpack.c.l.b16 %v2236
    %v2311 = vunpack.c.h.b16 %v2236
    %v2312 = vunpack.c.l.b16 %v2237
    %v2313 = vunpack.c.h.b16 %v2237
    %v2314 = vunpack.c.l.b16 %v2238
    %v2315 = vunpack.c.h.b16 %v2238
    %v2316 = vunpack.c.l.b16 %v2239
    %v2317 = vunpack.c.h.b16 %v2239
    %v2318 = vunpack.c.l.b16 %v2240
    %v2319 = vunpack.c.h.b16 %v2240
    %v2320 = vunpack.c.l.b16 %v2241
    %v2321 = vunpack.c.h.b16 %v2241
    %v2322 = vunpack.c.l.b16 %v2242
    %v2323 = vunpack.c.h.b16 %v2242
    %v2324 = vunpack.c.l.b16 %v2243
    %v2325 = vunpack.c.h.b16 %v2243
    %v2326 = vunpack.c.l.b16 %v2244
    %v2327 = vunpack.c.h.b16 %v2244
    %v2328 = vunpack.c.l.b16 %v2245
    %v2329 = vunpack.c.h.b16 %v2245
    %v2330 = vunpack.c.l.b16 %v2246
    %v2331 = vunpack.c.h.b16 %v2246
    %v2332 = vunpack.c.l.b16 %v2247
    %v2333 = vunpack.c.h.b16 %v2247
    %v2334 = vunpack.c.l.b16 %v2248
    %v2335 = vunpack.c.h.b16 %v2248
    %v2336 = vunpack.c.l.b16 %v2249
    %v2337 = vunpack.c.h.b16 %v2249
    %v2338 = vunpack.c.l.b16 %v2250
    %v2339 = vunpack.c.h.b16 %v2250
    %v2340 = vunpack.c.l.b16 %v2251
    %v2341 = vunpack.c.h.b16 %v2251
    %v2342 = vunpack.c.l.b16 %v2252
    %v2343 = vunpack.c.h.b16 %v2252
    %v2344 = vunpack.c.l.b16 %v2253
    %v2345 = vunpack.c.h.b16 %v2253
    %v2346 = vunpack.c.l.b16 %v2254
    %v2347 = vunpack.c.h.b16 %v2254
    %v2348 = vunpack.c.l.b16 %v2255
    %v2349 = vunpack.c.h.b16 %v2255
    %v2350 = vunpack.c.l.b16 %v2256
    %v2351 = vunpack.c.h.b16 %v2256
    %v2352 = vunpack.c.l.b16 %v2257
    %v2353 = vunpack.c.h.b16 %v2257
    %v2354 = vpack.c.b16 %v2294, %v2290
    %v2355 = vpack.c.b16 %v2295, %v2291
    %v2356 = vpack.c.b16 %v2296, %v2292
    %v2357 = vpack.c.b16 %v2297, %v2293
    %v2358 = vpack.c.b16 %v2302, %v2298
    %v2359 = vpack.c.b16 %v2303, %v2299
    %v2360 = vpack.c.b16 %v2304, %v2300
    %v2361 = vpack.c.b16 %v2305, %v2301
    %v2362 = vpack.c.b16 %v2310, %v2306
    %v2363 = vpack.c.b16 %v2311, %v2307
    %v2364 = vpack.c.b16 %v2312, %v2308
    %v2365 = vpack.c.b16 %v2313, %v2309
    %v2366 = vpack.c.b16 %v2318, %v2314
    %v2367 = vpack.c.b16 %v2319, %v2315
    %v2368 = vpack.c.b16 %v2320, %v2316
    %v2369 = vpack.c.b16 %v2321, %v2317
    %v2370 = vpack.c.b16 %v2326, %v2322
    %v2371 = vpack.c.b16 %v2327, %v2323
    %v2372 = vpack.c.b16 %v2328, %v2324
    %v2373 = vpack.c.b16 %v2329, %v2325
    %v2374 = vpack.c.b16 %v2334, %v2330
    %v2375 = vpack.c.b16 %v2335, %v2331
    %v2376 = vpack.c.b16 %v2336, %v2332
    %v2377 = vpack.c.b16 %v2337, %v2333
    %v2378 = vpack.c.b16 %v2342, %v2338
    %v2379 = vpack.c.b16 %v2343, %v2339
    %v2380 = vpack.c.b16 %v2344, %v2340
    %v2381 = vpack.c.b16 %v2345, %v2341
    %v2382 = vpack.c.b16 %v2350, %v2346
    %v2383 = vpack.c.b16 %v2351, %v2347
    %v2384 = vpack.c.b16 %v2352, %v2348
    %v2385 = vpack.c.b16 %v2353, %v2349
    %2418 = vmatprep.subr.bf16.mxu0 %v2355
    %2419 = vmatpush1.bf16.msra.mxu0 %v2354
    %2420 = vmatprep.subr.bf16.mxu0 %v2359
    %2421 = vmatpush1.bf16.msra.mxu0 %v2358
    %2422 = vmatprep.subr.bf16.mxu0 %v2363
    %2423 = vmatpush1.bf16.msra.mxu0 %v2362
    %2424 = vmatprep.subr.bf16.mxu0 %v2367
    %2425 = vmatpush1.bf16.msra.mxu0 %v2366
    %2426 = vmatprep.subr.bf16.mxu0 %v2371
    %2427 = vmatpush1.bf16.msra.mxu0 %v2370
    %2428 = vmatprep.subr.bf16.mxu0 %v2375
    %2429 = vmatpush1.bf16.msra.mxu0 %v2374
    %2430 = vmatprep.subr.bf16.mxu0 %v2379
    %2431 = vmatpush1.bf16.msra.mxu0 %v2378
    %2432 = vmatprep.subr.bf16.mxu0 %v2383
    %2433 = vmatpush1.bf16.msra.mxu0 %v2382
    %2434 = vmatprep.subr.bf16.mxu0 0
    %2435 = vmatpush1.bf16.msra.mxu0 0
    %2436 = vmatprep.subr.bf16.mxu0 0
    %2437 = vmatpush1.bf16.msra.mxu0 0
    %2438 = vmatprep.subr.bf16.mxu0 0
    %2439 = vmatpush1.bf16.msra.mxu0 0
    %2440 = vmatprep.subr.bf16.mxu0 0
    %2441 = vmatpush1.bf16.msra.mxu0 0
    %2442 = vmatprep.subr.bf16.mxu0 0
    %2443 = vmatpush1.bf16.msra.mxu0 0
    %2444 = vmatprep.subr.bf16.mxu0 0
    %2445 = vmatpush1.bf16.msra.mxu0 0
    %2446 = vmatprep.subr.bf16.mxu0 0
    %2447 = vmatpush1.bf16.msra.mxu0 0
    %2448 = vmatprep.subr.bf16.mxu0 0
    %2449 = vmatpush1.bf16.msra.mxu0 0
    %2450 = vmatprep.mubr.bf16.mxu0 0
    %2451 = vmatmul.mubr.bf16.gmra.mrb[0].mxu0 %v2206
    %v2452 = vpop.f32.mrb[0].mxu0
    %v2453 = vadd.f32 0.0, %v2452
    %v2454 = vpop.f32.mrb[0].mxu0
    %v2455 = vadd.f32 0.0, %v2454
    %v2456 = vpop.f32.mrb[0].mxu0
    %v2457 = vadd.f32 0.0, %v2456
    %v2458 = vpop.f32.mrb[0].mxu0
    %v2459 = vadd.f32 0.0, %v2458
    %2460 = vdwg.mxu0
    %2461 = vmatprep.subr.bf16.mxu0 %v2357
    %2462 = vmatpush1.bf16.msra.mxu0 %v2356
    %2463 = vmatprep.subr.bf16.mxu0 %v2361
    %2464 = vmatpush1.bf16.msra.mxu0 %v2360
    %2465 = vmatprep.subr.bf16.mxu0 %v2365
    %2466 = vmatpush1.bf16.msra.mxu0 %v2364
    %2467 = vmatprep.subr.bf16.mxu0 %v2369
    %2468 = vmatpush1.bf16.msra.mxu0 %v2368
    %2469 = vmatprep.subr.bf16.mxu0 %v2373
    %2470 = vmatpush1.bf16.msra.mxu0 %v2372
    %2471 = vmatprep.subr.bf16.mxu0 %v2377
    %2472 = vmatpush1.bf16.msra.mxu0 %v2376
    %2473 = vmatprep.subr.bf16.mxu0 %v2381
    %2474 = vmatpush1.bf16.msra.mxu0 %v2380
    %2475 = vmatprep.subr.bf16.mxu0 %v2385
    %2476 = vmatpush1.bf16.msra.mxu0 %v2384
    %2477 = vmatprep.subr.bf16.mxu0 0
    %2478 = vmatpush1.bf16.msra.mxu0 0
    %2479 = vmatprep.subr.bf16.mxu0 0
    %2480 = vmatpush1.bf16.msra.mxu0 0
    %2481 = vmatprep.subr.bf16.mxu0 0
    %2482 = vmatpush1.bf16.msra.mxu0 0
    %2483 = vmatprep.subr.bf16.mxu0 0
    %2484 = vmatpush1.bf16.msra.mxu0 0
    %2485 = vmatprep.subr.bf16.mxu0 0
    %2486 = vmatpush1.bf16.msra.mxu0 0
    %2487 = vmatprep.subr.bf16.mxu0 0
    %2488 = vmatpush1.bf16.msra.mxu0 0
    %2489 = vmatprep.subr.bf16.mxu0 0
    %2490 = vmatpush1.bf16.msra.mxu0 0
    %2491 = vmatprep.subr.bf16.mxu0 0
    %2492 = vmatpush1.bf16.msra.mxu0 0
    %2493 = vmatprep.mubr.bf16.mxu0 0
    %2494 = vmatmul.mubr.bf16.gmra.mrb[0].mxu0 %v2206
    %v2495 = vpop.f32.mrb[0].mxu0
    %v2496 = vadd.f32 0.0, %v2495
    %v2497 = vpop.f32.mrb[0].mxu0
    %v2498 = vadd.f32 0.0, %v2497
    %v2499 = vpop.f32.mrb[0].mxu0
    %v2500 = vadd.f32 0.0, %v2499
    %v2501 = vpop.f32.mrb[0].mxu0
    %v2502 = vadd.f32 0.0, %v2501
    %2503 = vdwg.mxu0
    %v2504 = vadd.f32 %v2218, %v2453
    %v2505 = vadd.f32 %v2219, %v2455
    %v2506 = vadd.f32 %v2220, %v2496
    %v2507 = vadd.f32 %v2221, %v2498
    %v2508 = vadd.f32 %v2222, %v2457
    %v2509 = vadd.f32 %v2223, %v2459
    %v2510 = vadd.f32 %v2224, %v2500
    %v2511 = vadd.f32 %v2225, %v2502
    %v2512 = vxor.u32 %v2504, 2147483648
    %v2513 = vxor.u32 %v2508, 2147483648
    %v2514 = vmul.f32 %v2512, 1.442695
    %v2515 = vpow.pop %v2514
    %v2516 = vmul.f32 %v2513, 1.442695
    %v2517 = vpow.pop %v2516
    %v2518 = vadd.f32 %v2515, 1.0
    %v2519 = vadd.f32 %v2517, 1.0
    %v2520 = vrcp.pop %v2518
    %v2521 = vmul.f32 1.0, %v2520
    %v2522 = vrcp.pop %v2519
    %v2523 = vmul.f32 1.0, %v2522
    %v2524 = vxor.u32 %v2505, 2147483648
    %v2525 = vxor.u32 %v2509, 2147483648
    %v2526 = vmul.f32 %v2524, 1.442695
    %v2527 = vpow.pop %v2526
    %v2528 = vmul.f32 %v2525, 1.442695
    %v2529 = vpow.pop %v2528
    %v2530 = vadd.f32 %v2527, 1.0
    %v2531 = vadd.f32 %v2529, 1.0
    %v2532 = vrcp.pop %v2530
    %v2533 = vmul.f32 1.0, %v2532
    %v2534 = vrcp.pop %v2531
    %v2535 = vmul.f32 1.0, %v2534
    %v2536 = vtanh.pop %v2506
    %v2537 = vtanh.pop %v2510
    %v2538 = vxor.u32 %v2507, 2147483648
    %v2539 = vxor.u32 %v2511, 2147483648
    %v2540 = vmul.f32 %v2538, 1.442695
    %v2541 = vpow.pop %v2540
    %v2542 = vmul.f32 %v2539, 1.442695
    %v2543 = vpow.pop %v2542
    %v2544 = vadd.f32 %v2541, 1.0
    %v2545 = vadd.f32 %v2543, 1.0
    %v2546 = vrcp.pop %v2544
    %v2547 = vmul.f32 1.0, %v2546
    %v2548 = vrcp.pop %v2545
    %v2549 = vmul.f32 1.0, %v2548
    %v2550 = vmul.f32 %v2533, %v2200
    %v2551 = vmul.f32 %v2535, %v2201
    %v2552 = vmul.f32 %v2521, %v2536
    %v2553 = vmul.f32 %v2523, %v2537
    %v2554 = vadd.f32 %v2550, %v2552
    %v2555 = vadd.f32 %v2551, %v2553
    %v2556 = vtanh.pop %v2554
    %v2557 = vtanh.pop %v2555
    %v2558 = vmul.f32 %v2547, %v2556
    %v2559 = vmul.f32 %v2549, %v2557
    %v2560 = vpack.c.bf16 %v2559, %v2558
    %v2562 = vunpack.c.l.b16 %v2560
    %v2563 = vunpack.c.h.b16 %v2560
    %v2564 = vpack.c.b16 %v2562, %v2562
    %v2565 = vpack.c.b16 %v2563, %v2563
    %s2568 = scalar_lea.vmem [#allocation12], 48
    %2569 = vst [vmem:[%s2568] sm:$0xf] %v2564
    %2570 = vst [vmem:[%s2568 + $0x4] sm:$0xf] %v2565
    %s2571 = scalar_lea.vmem [#allocation4], 448
    %v2572 = vld [vmem:[%s2571] sm:$0xff]
    %v2573 = vld [vmem:[%s2571 + $0x8] sm:$0xff]
    %v2574 = vld [vmem:[%s2571 + $0x10] sm:$0xff]
    %v2575 = vld [vmem:[%s2571 + $0x18] sm:$0xff]
    %v2576 = vld [vmem:[%s2571 + $0x20] sm:$0xff]
    %v2577 = vld [vmem:[%s2571 + $0x28] sm:$0xff]
    %v2578 = vld [vmem:[%s2571 + $0x30] sm:$0xff]
    %v2579 = vld [vmem:[%s2571 + $0x38] sm:$0xff]
    %v2580 = vld [vmem:[#allocation7] sm:$0xff]
    %v2581 = vld [vmem:[#allocation7 + $0x8] sm:$0xff]
    %v2582 = vld [vmem:[#allocation7 + $0x10] sm:$0xff]
    %v2583 = vld [vmem:[#allocation7 + $0x18] sm:$0xff]
    %v2584 = vld [vmem:[#allocation7 + $0x20] sm:$0xff]
    %v2585 = vld [vmem:[#allocation7 + $0x28] sm:$0xff]
    %v2586 = vld [vmem:[#allocation7 + $0x30] sm:$0xff]
    %v2587 = vld [vmem:[#allocation7 + $0x38] sm:$0xff]
    %v2588 = vld [vmem:[#allocation7 + $0x40] sm:$0xff]
    %v2589 = vld [vmem:[#allocation7 + $0x48] sm:$0xff]
    %v2590 = vld [vmem:[#allocation7 + $0x50] sm:$0xff]
    %v2591 = vld [vmem:[#allocation7 + $0x58] sm:$0xff]
    %v2592 = vld [vmem:[#allocation7 + $0x60] sm:$0xff]
    %v2593 = vld [vmem:[#allocation7 + $0x68] sm:$0xff]
    %v2594 = vld [vmem:[#allocation7 + $0x70] sm:$0xff]
    %v2595 = vld [vmem:[#allocation7 + $0x78] sm:$0xff]
    %v2596 = vld [vmem:[#allocation7 + $0x80] sm:$0xff]
    %v2597 = vld [vmem:[#allocation7 + $0x88] sm:$0xff]
    %v2598 = vld [vmem:[#allocation7 + $0x90] sm:$0xff]
    %v2599 = vld [vmem:[#allocation7 + $0x98] sm:$0xff]
    %v2600 = vld [vmem:[#allocation7 + $0xa0] sm:$0xff]
    %v2601 = vld [vmem:[#allocation7 + $0xa8] sm:$0xff]
    %v2602 = vld [vmem:[#allocation7 + $0xb0] sm:$0xff]
    %v2603 = vld [vmem:[#allocation7 + $0xb8] sm:$0xff]
    %v2604 = vld [vmem:[#allocation7 + $0xc0] sm:$0xff]
    %v2605 = vld [vmem:[#allocation7 + $0xc8] sm:$0xff]
    %v2606 = vld [vmem:[#allocation7 + $0xd0] sm:$0xff]
    %v2607 = vld [vmem:[#allocation7 + $0xd8] sm:$0xff]
    %v2608 = vld [vmem:[#allocation7 + $0xe0] sm:$0xff]
    %v2609 = vld [vmem:[#allocation7 + $0xe8] sm:$0xff]
    %v2610 = vld [vmem:[#allocation7 + $0xf0] sm:$0xff]
    %v2611 = vld [vmem:[#allocation7 + $0xf8] sm:$0xff]
    %v2644 = vunpack.c.l.b16 %v2580
    %v2645 = vunpack.c.h.b16 %v2580
    %v2646 = vunpack.c.l.b16 %v2581
    %v2647 = vunpack.c.h.b16 %v2581
    %v2648 = vunpack.c.l.b16 %v2582
    %v2649 = vunpack.c.h.b16 %v2582
    %v2650 = vunpack.c.l.b16 %v2583
    %v2651 = vunpack.c.h.b16 %v2583
    %v2652 = vunpack.c.l.b16 %v2584
    %v2653 = vunpack.c.h.b16 %v2584
    %v2654 = vunpack.c.l.b16 %v2585
    %v2655 = vunpack.c.h.b16 %v2585
    %v2656 = vunpack.c.l.b16 %v2586
    %v2657 = vunpack.c.h.b16 %v2586
    %v2658 = vunpack.c.l.b16 %v2587
    %v2659 = vunpack.c.h.b16 %v2587
    %v2660 = vunpack.c.l.b16 %v2588
    %v2661 = vunpack.c.h.b16 %v2588
    %v2662 = vunpack.c.l.b16 %v2589
    %v2663 = vunpack.c.h.b16 %v2589
    %v2664 = vunpack.c.l.b16 %v2590
    %v2665 = vunpack.c.h.b16 %v2590
    %v2666 = vunpack.c.l.b16 %v2591
    %v2667 = vunpack.c.h.b16 %v2591
    %v2668 = vunpack.c.l.b16 %v2592
    %v2669 = vunpack.c.h.b16 %v2592
    %v2670 = vunpack.c.l.b16 %v2593
    %v2671 = vunpack.c.h.b16 %v2593
    %v2672 = vunpack.c.l.b16 %v2594
    %v2673 = vunpack.c.h.b16 %v2594
    %v2674 = vunpack.c.l.b16 %v2595
    %v2675 = vunpack.c.h.b16 %v2595
    %v2676 = vunpack.c.l.b16 %v2596
    %v2677 = vunpack.c.h.b16 %v2596
    %v2678 = vunpack.c.l.b16 %v2597
    %v2679 = vunpack.c.h.b16 %v2597
    %v2680 = vunpack.c.l.b16 %v2598
    %v2681 = vunpack.c.h.b16 %v2598
    %v2682 = vunpack.c.l.b16 %v2599
    %v2683 = vunpack.c.h.b16 %v2599
    %v2684 = vunpack.c.l.b16 %v2600
    %v2685 = vunpack.c.h.b16 %v2600
    %v2686 = vunpack.c.l.b16 %v2601
    %v2687 = vunpack.c.h.b16 %v2601
    %v2688 = vunpack.c.l.b16 %v2602
    %v2689 = vunpack.c.h.b16 %v2602
    %v2690 = vunpack.c.l.b16 %v2603
    %v2691 = vunpack.c.h.b16 %v2603
    %v2692 = vunpack.c.l.b16 %v2604
    %v2693 = vunpack.c.h.b16 %v2604
    %v2694 = vunpack.c.l.b16 %v2605
    %v2695 = vunpack.c.h.b16 %v2605
    %v2696 = vunpack.c.l.b16 %v2606
    %v2697 = vunpack.c.h.b16 %v2606
    %v2698 = vunpack.c.l.b16 %v2607
    %v2699 = vunpack.c.h.b16 %v2607
    %v2700 = vunpack.c.l.b16 %v2608
    %v2701 = vunpack.c.h.b16 %v2608
    %v2702 = vunpack.c.l.b16 %v2609
    %v2703 = vunpack.c.h.b16 %v2609
    %v2704 = vunpack.c.l.b16 %v2610
    %v2705 = vunpack.c.h.b16 %v2610
    %v2706 = vunpack.c.l.b16 %v2611
    %v2707 = vunpack.c.h.b16 %v2611
    %v2708 = vpack.c.b16 %v2648, %v2644
    %v2709 = vpack.c.b16 %v2649, %v2645
    %v2710 = vpack.c.b16 %v2650, %v2646
    %v2711 = vpack.c.b16 %v2651, %v2647
    %v2712 = vpack.c.b16 %v2656, %v2652
    %v2713 = vpack.c.b16 %v2657, %v2653
    %v2714 = vpack.c.b16 %v2658, %v2654
    %v2715 = vpack.c.b16 %v2659, %v2655
    %v2716 = vpack.c.b16 %v2664, %v2660
    %v2717 = vpack.c.b16 %v2665, %v2661
    %v2718 = vpack.c.b16 %v2666, %v2662
    %v2719 = vpack.c.b16 %v2667, %v2663
    %v2720 = vpack.c.b16 %v2672, %v2668
    %v2721 = vpack.c.b16 %v2673, %v2669
    %v2722 = vpack.c.b16 %v2674, %v2670
    %v2723 = vpack.c.b16 %v2675, %v2671
    %v2724 = vpack.c.b16 %v2680, %v2676
    %v2725 = vpack.c.b16 %v2681, %v2677
    %v2726 = vpack.c.b16 %v2682, %v2678
    %v2727 = vpack.c.b16 %v2683, %v2679
    %v2728 = vpack.c.b16 %v2688, %v2684
    %v2729 = vpack.c.b16 %v2689, %v2685
    %v2730 = vpack.c.b16 %v2690, %v2686
    %v2731 = vpack.c.b16 %v2691, %v2687
    %v2732 = vpack.c.b16 %v2696, %v2692
    %v2733 = vpack.c.b16 %v2697, %v2693
    %v2734 = vpack.c.b16 %v2698, %v2694
    %v2735 = vpack.c.b16 %v2699, %v2695
    %v2736 = vpack.c.b16 %v2704, %v2700
    %v2737 = vpack.c.b16 %v2705, %v2701
    %v2738 = vpack.c.b16 %v2706, %v2702
    %v2739 = vpack.c.b16 %v2707, %v2703
    %2772 = vmatprep.subr.bf16.mxu0 %v2709
    %2773 = vmatpush1.bf16.msra.mxu0 %v2708
    %2774 = vmatprep.subr.bf16.mxu0 %v2713
    %2775 = vmatpush1.bf16.msra.mxu0 %v2712
    %2776 = vmatprep.subr.bf16.mxu0 %v2717
    %2777 = vmatpush1.bf16.msra.mxu0 %v2716
    %2778 = vmatprep.subr.bf16.mxu0 %v2721
    %2779 = vmatpush1.bf16.msra.mxu0 %v2720
    %2780 = vmatprep.subr.bf16.mxu0 %v2725
    %2781 = vmatpush1.bf16.msra.mxu0 %v2724
    %2782 = vmatprep.subr.bf16.mxu0 %v2729
    %2783 = vmatpush1.bf16.msra.mxu0 %v2728
    %2784 = vmatprep.subr.bf16.mxu0 %v2733
    %2785 = vmatpush1.bf16.msra.mxu0 %v2732
    %2786 = vmatprep.subr.bf16.mxu0 %v2737
    %2787 = vmatpush1.bf16.msra.mxu0 %v2736
    %2788 = vmatprep.subr.bf16.mxu0 0
    %2789 = vmatpush1.bf16.msra.mxu0 0
    %2790 = vmatprep.subr.bf16.mxu0 0
    %2791 = vmatpush1.bf16.msra.mxu0 0
    %2792 = vmatprep.subr.bf16.mxu0 0
    %2793 = vmatpush1.bf16.msra.mxu0 0
    %2794 = vmatprep.subr.bf16.mxu0 0
    %2795 = vmatpush1.bf16.msra.mxu0 0
    %2796 = vmatprep.subr.bf16.mxu0 0
    %2797 = vmatpush1.bf16.msra.mxu0 0
    %2798 = vmatprep.subr.bf16.mxu0 0
    %2799 = vmatpush1.bf16.msra.mxu0 0
    %2800 = vmatprep.subr.bf16.mxu0 0
    %2801 = vmatpush1.bf16.msra.mxu0 0
    %2802 = vmatprep.subr.bf16.mxu0 0
    %2803 = vmatpush1.bf16.msra.mxu0 0
    %2804 = vmatprep.mubr.bf16.mxu0 0
    %2805 = vmatmul.mubr.bf16.gmra.mrb[0].mxu0 %v2560
    %v2806 = vpop.f32.mrb[0].mxu0
    %v2807 = vadd.f32 0.0, %v2806
    %v2808 = vpop.f32.mrb[0].mxu0
    %v2809 = vadd.f32 0.0, %v2808
    %v2810 = vpop.f32.mrb[0].mxu0
    %v2811 = vadd.f32 0.0, %v2810
    %v2812 = vpop.f32.mrb[0].mxu0
    %v2813 = vadd.f32 0.0, %v2812
    %2814 = vdwg.mxu0
    %2815 = vmatprep.subr.bf16.mxu0 %v2711
    %2816 = vmatpush1.bf16.msra.mxu0 %v2710
    %2817 = vmatprep.subr.bf16.mxu0 %v2715
    %2818 = vmatpush1.bf16.msra.mxu0 %v2714
    %2819 = vmatprep.subr.bf16.mxu0 %v2719
    %2820 = vmatpush1.bf16.msra.mxu0 %v2718
    %2821 = vmatprep.subr.bf16.mxu0 %v2723
    %2822 = vmatpush1.bf16.msra.mxu0 %v2722
    %2823 = vmatprep.subr.bf16.mxu0 %v2727
    %2824 = vmatpush1.bf16.msra.mxu0 %v2726
    %2825 = vmatprep.subr.bf16.mxu0 %v2731
    %2826 = vmatpush1.bf16.msra.mxu0 %v2730
    %2827 = vmatprep.subr.bf16.mxu0 %v2735
    %2828 = vmatpush1.bf16.msra.mxu0 %v2734
    %2829 = vmatprep.subr.bf16.mxu0 %v2739
    %2830 = vmatpush1.bf16.msra.mxu0 %v2738
    %2831 = vmatprep.subr.bf16.mxu0 0
    %2832 = vmatpush1.bf16.msra.mxu0 0
    %2833 = vmatprep.subr.bf16.mxu0 0
    %2834 = vmatpush1.bf16.msra.mxu0 0
    %2835 = vmatprep.subr.bf16.mxu0 0
    %2836 = vmatpush1.bf16.msra.mxu0 0
    %2837 = vmatprep.subr.bf16.mxu0 0
    %2838 = vmatpush1.bf16.msra.mxu0 0
    %2839 = vmatprep.subr.bf16.mxu0 0
    %2840 = vmatpush1.bf16.msra.mxu0 0
    %2841 = vmatprep.subr.bf16.mxu0 0
    %2842 = vmatpush1.bf16.msra.mxu0 0
    %2843 = vmatprep.subr.bf16.mxu0 0
    %2844 = vmatpush1.bf16.msra.mxu0 0
    %2845 = vmatprep.subr.bf16.mxu0 0
    %2846 = vmatpush1.bf16.msra.mxu0 0
    %2847 = vmatprep.mubr.bf16.mxu0 0
    %2848 = vmatmul.mubr.bf16.gmra.mrb[0].mxu0 %v2560
    %v2849 = vpop.f32.mrb[0].mxu0
    %v2850 = vadd.f32 0.0, %v2849
    %v2851 = vpop.f32.mrb[0].mxu0
    %v2852 = vadd.f32 0.0, %v2851
    %v2853 = vpop.f32.mrb[0].mxu0
    %v2854 = vadd.f32 0.0, %v2853
    %v2855 = vpop.f32.mrb[0].mxu0
    %v2856 = vadd.f32 0.0, %v2855
    %2857 = vdwg.mxu0
    %v2858 = vadd.f32 %v2572, %v2807
    %v2859 = vadd.f32 %v2573, %v2809
    %v2860 = vadd.f32 %v2574, %v2850
    %v2861 = vadd.f32 %v2575, %v2852
    %v2862 = vadd.f32 %v2576, %v2811
    %v2863 = vadd.f32 %v2577, %v2813
    %v2864 = vadd.f32 %v2578, %v2854
    %v2865 = vadd.f32 %v2579, %v2856
    %v2866 = vxor.u32 %v2858, 2147483648
    %v2867 = vxor.u32 %v2862, 2147483648
    %v2868 = vmul.f32 %v2866, 1.442695
    %v2869 = vpow.pop %v2868
    %v2870 = vmul.f32 %v2867, 1.442695
    %v2871 = vpow.pop %v2870
    %v2872 = vadd.f32 %v2869, 1.0
    %v2873 = vadd.f32 %v2871, 1.0
    %v2874 = vrcp.pop %v2872
    %v2875 = vmul.f32 1.0, %v2874
    %v2876 = vrcp.pop %v2873
    %v2877 = vmul.f32 1.0, %v2876
    %v2878 = vxor.u32 %v2859, 2147483648
    %v2879 = vxor.u32 %v2863, 2147483648
    %v2880 = vmul.f32 %v2878, 1.442695
    %v2881 = vpow.pop %v2880
    %v2882 = vmul.f32 %v2879, 1.442695
    %v2883 = vpow.pop %v2882
    %v2884 = vadd.f32 %v2881, 1.0
    %v2885 = vadd.f32 %v2883, 1.0
    %v2886 = vrcp.pop %v2884
    %v2887 = vmul.f32 1.0, %v2886
    %v2888 = vrcp.pop %v2885
    %v2889 = vmul.f32 1.0, %v2888
    %v2890 = vtanh.pop %v2860
    %v2891 = vtanh.pop %v2864
    %v2892 = vxor.u32 %v2861, 2147483648
    %v2893 = vxor.u32 %v2865, 2147483648
    %v2894 = vmul.f32 %v2892, 1.442695
    %v2895 = vpow.pop %v2894
    %v2896 = vmul.f32 %v2893, 1.442695
    %v2897 = vpow.pop %v2896
    %v2898 = vadd.f32 %v2895, 1.0
    %v2899 = vadd.f32 %v2897, 1.0
    %v2900 = vrcp.pop %v2898
    %v2901 = vmul.f32 1.0, %v2900
    %v2902 = vrcp.pop %v2899
    %v2903 = vmul.f32 1.0, %v2902
    %v2904 = vmul.f32 %v2887, %v2554
    %v2905 = vmul.f32 %v2889, %v2555
    %v2906 = vmul.f32 %v2875, %v2890
    %v2907 = vmul.f32 %v2877, %v2891
    %v2908 = vadd.f32 %v2904, %v2906
    %v2909 = vadd.f32 %v2905, %v2907
    %v2910 = vtanh.pop %v2908
    %v2911 = vtanh.pop %v2909
    %v2912 = vmul.f32 %v2901, %v2910
    %v2913 = vmul.f32 %v2903, %v2911
    %v2914 = vpack.c.bf16 %v2913, %v2912
    %v2916 = vunpack.c.l.b16 %v2914
    %v2917 = vunpack.c.h.b16 %v2914
    %v2918 = vpack.c.b16 %v2916, %v2916
    %v2919 = vpack.c.b16 %v2917, %v2917
    %s2922 = scalar_lea.vmem [#allocation12], 56
    %2923 = vst [vmem:[%s2922] sm:$0xf] %v2918
    %2924 = vst [vmem:[%s2922 + $0x4] sm:$0xf] %v2919
    %2925 = vst [vmem:[#allocation2] sm:$0xff] %v2912
    %2926 = vst [vmem:[#allocation2 + $0x8] sm:$0xff] %v2913
    %2927 = vst [vmem:[#allocation3] sm:$0xff] %v2908
    %2928 = vst [vmem:[#allocation3 + $0x8] sm:$0xff] %v2909
    // Predicated region
    $region38: #{tpu_custom_call.1} parent=1 // pred_check
      %p2929 = pneg %p78
    $region39: #{tpu_custom_call.1} parent=1 // pred_check_branch
      %2931 = sbr.rel (%p2929) target = $region41
    $region40: #{tpu_custom_call.1} parent=1 // pred_region
      %2932 = vst [vmem:[#allocation13] sm:$0xff] %v2912
      %2933 = vst [vmem:[#allocation13 + $0x8] sm:$0xff] %v2913
      %2934 = vst [vmem:[#allocation15] sm:$0xff] %v2908
      %2935 = vst [vmem:[#allocation15 + $0x8] sm:$0xff] %v2909
    $region41: #{tpu_custom_call.1} parent=1 // pred_fallthru
      _
    // Predicated region
    $region42: #{tpu_custom_call.1} parent=1 // pred_check
      _
    $region43: #{tpu_custom_call.1} parent=1 // pred_check_branch
      %2937 = sbr.rel (0) target = $region45
    $region44: #{tpu_custom_call.1} parent=1 // pred_region
      %s2939 = ssub.s32 1024, 1024
      %2940 = vsyncadd [#allocation6], %s2939
      %s2941 = sshll.u32 [#allocation12], 4
      %s2942 = int_to_ptr.vmem [resolvable:$true] %s2941
      %2947 = dma.vmem_to_hbm [thread:$0]  %s2942, 1024, %s4, [#allocation6], 64, 64, 4
    $region45: #{tpu_custom_call.1} parent=1 // pred_fallthru
      _
    // Predicated region
    $region46: #{tpu_custom_call.1} parent=1 // pred_check
      _
    $region47: #{tpu_custom_call.1} parent=1 // pred_check_branch
      %2949 = sbr.rel (0) target = $region49
    $region48: #{tpu_custom_call.1} parent=1 // pred_region
      %s2951 = ssub.s32 256, 256
      %2952 = vsyncadd [#allocation14], %s2951
      %s2953 = sshll.u32 [#allocation13], 4
      %s2954 = int_to_ptr.vmem [resolvable:$true] %s2953
      %2959 = dma.vmem_to_hbm [thread:$0]  %s2954, 256, %s5, [#allocation14], 128, 128, 8
    $region49: #{tpu_custom_call.1} parent=1 // pred_fallthru
      _
    // Predicated region
    $region50: #{tpu_custom_call.1} parent=1 // pred_check
      _
    $region51: #{tpu_custom_call.1} parent=1 // pred_check_branch
      %2961 = sbr.rel (0) target = $region53
    $region52: #{tpu_custom_call.1} parent=1 // pred_region
      %s2963 = ssub.s32 256, 256
      %2964 = vsyncadd [#allocation14], %s2963
      %s2965 = sshll.u32 [#allocation15], 4
      %s2966 = int_to_ptr.vmem [resolvable:$true] %s2965
      %2971 = dma.vmem_to_hbm [thread:$0]  %s2966, 256, %s6, [#allocation14], 128, 128, 8
    $region53: #{tpu_custom_call.1} parent=1 // pred_fallthru
      _
    // Predicated region
    $region54: #{tpu_custom_call.1} parent=1 // pred_check
      _
    $region55: #{tpu_custom_call.1} parent=1 // pred_check_branch
      %2973 = sbr.rel (0) target = $region57
    $region56: #{tpu_custom_call.1} parent=1 // pred_region
      %2974 = dma.done [#allocation6], 1024
    $region57: #{tpu_custom_call.1} parent=1 // pred_fallthru
      _
    // Predicated region
    $region58: #{tpu_custom_call.1} parent=1 // pred_check
      _
    $region59: #{tpu_custom_call.1} parent=1 // pred_check_branch
      %2976 = sbr.rel (0) target = $region61
    $region60: #{tpu_custom_call.1} parent=1 // pred_region
      %2977 = dma.done [#allocation14], 256
    $region61: #{tpu_custom_call.1} parent=1 // pred_fallthru
      _
    // Predicated region
    $region62: #{tpu_custom_call.1} parent=1 // pred_check
      _
    $region63: #{tpu_custom_call.1} parent=1 // pred_check_branch
      %2979 = sbr.rel (0) target = $region65
    $region64: #{tpu_custom_call.1} parent=1 // pred_region
      %2980 = dma.done [#allocation14], 256
    $region65: #{tpu_custom_call.1} parent=1 // pred_fallthru
      _
    %2981 = vsyncpa [#allocation5], 1
    %2982 = vsyncpa [#allocation8], 1
    %2983 = vsyncpa [#allocation11], 1
    %2984 = vsyncpa [#allocation6], 1
    %2985 = vsyncpa [#allocation14], 1

</llo_original>
